<compile_context>
chip_gen: v7x
topology: tpu7x:2x2x1
jax: 0.10.0
libtpu: 0.0.40
codegen_flags: <defaults>
</compile_context>

<pallas_src>
import functools

import jax
import jax.numpy as jnp
from jax.experimental import pallas as pl
from jax.experimental.pallas import tpu as pltpu


LANE = 128


def _round_up(x, m):
    return ((x + m - 1) // m) * m


# ----------------------------------------------------------------------------
# Fused kernel: [3x3 conv + bias + ReLU] * num_conv -> global-average-pool sums
# One batch element per grid step; activations stay in VMEM between layers.
# ----------------------------------------------------------------------------
def _fused_conv_pool_kernel(x_ref, w_ref, b_ref, m_ref,
                            feat_ref, pool_ref,
                            acta_ref, actb_ref,
                            *, H, W, Cin, Cpad, Cout, num_conv, chunk_rows):
    HW = H * W
    n_chunks = HW // chunk_rows
    bf16 = jnp.bfloat16

    # Per-step scratch init (no cross-step / cross-core persistence assumed):
    #  * buffer A: fully zeroed (a handful of vector stores), then the real
    #    input channels are written into its interior rows.  Pad lanes >= Cin
    #    stay exactly zero -> zero-padded weight rows only ever see zeros.
    #  * buffer B: only its 2W vertical-padding row bands need zeroing; its
    #    interior is fully overwritten by layer 0 before layer 1 reads it.
    acta_ref[...] = jnp.zeros_like(acta_ref)
    acta_ref[pl.ds(W, HW), :Cin] = x_ref[0].astype(bf16)
    if num_conv > 1:
        actb_ref[pl.ds(0, W), :] = jnp.zeros((W, Cpad), bf16)
        actb_ref[pl.ds(W + HW, W), :] = jnp.zeros((W, Cpad), bf16)

    for layer in range(num_conv):                        # static python loops
        src = acta_ref if layer % 2 == 0 else actb_ref
        dst = actb_ref if layer % 2 == 0 else acta_ref
        is_last = layer + 1 == num_conv
        if is_last:
            pooled = jnp.zeros((1, Cpad), jnp.float32)

        for c in range(n_chunks):
            row0 = c * chunk_rows
            # Horizontal-edge validity masks for this chunk: (chunk, 1) f32.
            m_l = m_ref[0, pl.ds(row0, chunk_rows), :]   # valid when w >= 1
            m_r = m_ref[1, pl.ds(row0, chunk_rows), :]   # valid when w <= W-2
            acc = jnp.zeros((chunk_rows, Cpad), jnp.float32)
            for dy in range(3):
                # Aligned flat slice = vertical tap dy (zero pad rows give the
                # vertical SAME padding for free).
                vsl = src[pl.ds(row0 + dy * W, chunk_rows), :]   # bf16
                for dx in range(3):
                    tap = layer * 9 + dy * 3 + dx
                    z = jnp.dot(vsl, w_ref[tap],
                                preferred_element_type=jnp.float32)
                    ox = dx - 1
                    if ox == 0:
                        acc = acc + z
                    else:
                        # out row p needs z[p + ox]: roll the f32 MXU result
                        # (32-bit sublane rotate) and mask image-edge rows.
                        zs = pltpu.roll(z, shift=(-ox) % chunk_rows, axis=0)
                        acc = acc + zs * (m_l if ox < 0 else m_r)
            y = jnp.maximum(acc + b_ref[layer], 0.0)     # (chunk, Cpad) f32
            if not is_last:
                dst[pl.ds(W + row0, chunk_rows), :] = y.astype(bf16)
            else:
                # Emit only the real channels, in bf16 (minimal HBM writeback),
                # and accumulate the global-average-pool sums.
                feat_ref[0, pl.ds(row0, chunk_rows), :] = (
                    y[:, :Cout].astype(bf16))
                pooled = pooled + jnp.sum(y, axis=0, keepdims=True)

        if is_last:
            pool_ref[0] = pooled


# ----------------------------------------------------------------------------
# Wrapper: pack params into lane-dense layouts, call the fused kernel, run the
# tiny cls/bbox heads as one batched f32 GEMM in XLA.
# ----------------------------------------------------------------------------
def cam_box_head_forward(x_nchw, params):
    """Pallas implementation of CAMBoxHeadConv.forward. x_nchw: [N, C, H, W]."""
    convs = params["convs"]
    num_conv = len(convs)
    N, Cin, H, W = x_nchw.shape
    HW = H * W

    # One shared channel padding covering every layer's in/out width.
    ch_dims = ([Cin]
               + [w.shape[2] for w, _ in convs]
               + [w.shape[3] for w, _ in convs])
    Cpad = _round_up(max(ch_dims), LANE)
    Cout = convs[-1][0].shape[3]

    # Row-chunk of whole image rows, ~128 rows, divisor of H (bounds vregs and
    # makes the in-chunk roll wrap coincide with masked image-edge rows).
    h_chunk = min(H, max(1, 128 // W))
    while H % h_chunk:
        h_chunk -= 1
    chunk_rows = h_chunk * W

    # ---- inputs / parameters -------------------------------------------
    # Input: NCHW -> flat (N, HW, Cin), no channel padding in HBM.
    x_flat = jnp.transpose(x_nchw, (0, 2, 3, 1)).reshape(N, HW, Cin)
    x_flat = x_flat.astype(jnp.float32)

    # Conv weights: per layer, 9 taps of (Cpad, Cpad), bf16; biases f32.
    w_taps, b_rows = [], []
    for (w, b) in convs:
        din, dout = w.shape[2], w.shape[3]
        wp = jnp.zeros((3, 3, Cpad, Cpad), jnp.float32)
        wp = wp.at[:, :, :din, :dout].set(w)
        w_taps.append(wp.reshape(9, Cpad, Cpad))
        b_rows.append(jnp.zeros((1, Cpad), jnp.float32).at[:, :dout].set(b))
    w_stack = jnp.concatenate(w_taps, axis=0).astype(jnp.bfloat16)
    b_stack = jnp.stack(b_rows, axis=0)                  # (num_conv, 1, Cpad)

    # Horizontal-edge masks over flattened rows: [0]: w>0 valid, [1]: w<W-1.
    w_idx = jnp.arange(HW, dtype=jnp.int32) % W
    masks = jnp.stack([w_idx >= 1, w_idx <= W - 2], axis=0)
    masks = masks.astype(jnp.float32).reshape(2, HW, 1)

    kernel = functools.partial(_fused_conv_pool_kernel,
                               H=H, W=W, Cin=Cin, Cpad=Cpad, Cout=Cout,
                               num_conv=num_conv, chunk_rows=chunk_rows)

    feat_flat, pool_sum = pl.pallas_call(
        kernel,
        grid=(N,),
        in_specs=[
            pl.BlockSpec((1, HW, Cin), lambda n: (n, 0, 0)),
            pl.BlockSpec((num_conv * 9, Cpad, Cpad), lambda n: (0, 0, 0)),
            pl.BlockSpec((num_conv, 1, Cpad), lambda n: (0, 0, 0)),
            pl.BlockSpec((2, HW, 1), lambda n: (0, 0, 0)),
        ],
        out_specs=[
            pl.BlockSpec((1, HW, Cout), lambda n: (n, 0, 0)),
            pl.BlockSpec((1, 1, Cpad), lambda n: (n, 0, 0)),
        ],
        out_shape=[
            jax.ShapeDtypeStruct((N, HW, Cout), jnp.bfloat16),
            jax.ShapeDtypeStruct((N, 1, Cpad), jnp.float32),
        ],
        scratch_shapes=[
            pltpu.VMEM((HW + 2 * W, Cpad), jnp.bfloat16),
            pltpu.VMEM((HW + 2 * W, Cpad), jnp.bfloat16),
        ],
        compiler_params=pltpu.CompilerParams(
            dimension_semantics=("parallel",),
            vmem_limit_bytes=32 * 1024 * 1024),
    )(x_flat, w_stack, b_stack, masks)

    # Feature map back to NCHW f32.
    feat = jnp.transpose(
        feat_flat.reshape(N, H, W, Cout).astype(jnp.float32), (0, 3, 1, 2))

    # Global-average-pool + cls/bbox heads as one small batched f32 GEMM.
    cdim = params["wc"].shape[0]
    pooled = pool_sum[:, 0, :cdim] / float(HW)
    scores = pooled @ params["wc"] + params["bc"]
    bbox = pooled @ params["wb"] + params["bb"]
    return scores, bbox, feat


# ----------------------------------------------------------------------------
# Parameter construction (matches the module's init) + pure-JAX reference
# ----------------------------------------------------------------------------
def build_params(key, in_channels, conv_dim, num_conv, num_classes, pred_reg):
    keys = jax.random.split(key, num_conv + 2)
    convs = []
    for k in range(num_conv):
        dim_in = conv_dim if in_channels * 2 ** k >= conv_dim else in_channels * 2 ** k
        dim_out = conv_dim if in_channels * 2 ** (k + 1) >= conv_dim else in_channels * 2 ** (k + 1)
        fan_in = 9 * dim_in
        # c2_msra_fill: normal(0, sqrt(2/fan_in)), bias = 0
        w = jax.random.normal(keys[k], (3, 3, dim_in, dim_out), jnp.float32) * jnp.sqrt(2.0 / fan_in)
        b = jnp.zeros((dim_out,), jnp.float32)
        convs.append((w, b))
    # cls_score: normal std 0.01, bias 0; bbox_pred: normal std 0.001, bias 0
    wc = jax.random.normal(keys[num_conv], (conv_dim, num_classes + 1), jnp.float32) * 0.01
    bc = jnp.zeros((num_classes + 1,), jnp.float32)
    wb = jax.random.normal(keys[num_conv + 1], (conv_dim, pred_reg), jnp.float32) * 0.001
    bb = jnp.zeros((pred_reg,), jnp.float32)
    return {"convs": convs, "wc": wc, "bc": bc, "wb": wb, "bb": bb}


def reference_forward(x_nchw, params):
    """Pure-JAX reference for correctness checking."""
    x = jnp.transpose(x_nchw, (0, 2, 3, 1)).astype(jnp.float32)
    for (w, b) in params["convs"]:
        x = jax.lax.conv_general_dilated(
            x, w, window_strides=(1, 1), padding="SAME",
            dimension_numbers=("NHWC", "HWIO", "NHWC"))
        x = jax.nn.relu(x + b)
    pool = x.mean(axis=(1, 2))
    scores = pool @ params["wc"] + params["bc"]
    bbox = pool @ params["wb"] + params["bb"]
    return scores, bbox, jnp.transpose(x, (0, 3, 1, 2))


if __name__ == "__main__":
    # Small config consistent with the module:
    #   input_shape = (channels=4, H=16, W=16), NUM_CONV=2, CONV_DIM=8, NUM_FC=0,
    #   NORM="" (conv has bias, no norm), num_classes=5, cls_agnostic=False, box_dim=4
    N, C_in, H, W = 2, 4, 16, 16
    num_conv, conv_dim = 2, 8
    num_classes, box_dim = 5, 4
    pred_reg = num_classes * box_dim     # cls_agnostic_bbox_reg = False

    key = jax.random.PRNGKey(0)
    k_x, k_p = jax.random.split(key)
    x = jax.random.normal(k_x, (N, C_in, H, W), jnp.float32)
    params = build_params(k_p, C_in, conv_dim, num_conv, num_classes, pred_reg)

    scores, bbox, feat = cam_box_head_forward(x, params)
    jax.block_until_ready((scores, bbox, feat))

    # Sanity checks vs pure-JAX reference (bf16 MXU inputs / bf16 feature
    # writeback -> modest tolerances).
    r_scores, r_bbox, r_feat = reference_forward(x, params)
    assert scores.shape == (N, num_classes + 1)
    assert bbox.shape == (N, pred_reg)
    assert feat.shape == (N, conv_dim, H, W)
    assert jnp.allclose(scores, r_scores, rtol=5e-2, atol=1e-2)
    assert jnp.allclose(bbox, r_bbox, rtol=5e-2, atol=1e-2)
    assert jnp.allclose(feat, r_feat, rtol=5e-2, atol=5e-2)

    print("KERNEL_OK")
</pallas_src>

<mosaic_0001>
module attributes {stable_mosaic.version = 11 : i64} {
  func.func @_fused_conv_pool_kernel(%arg0: i32, %arg1: memref<1x256x4xf32, #tpu.memory_space<vmem>>, %arg2: memref<18x128x128xbf16, #tpu.memory_space<vmem>>, %arg3: memref<2x1x128xf32, #tpu.memory_space<vmem>>, %arg4: memref<2x256x1xf32, #tpu.memory_space<vmem>>, %arg5: memref<1x256x8xbf16, #tpu.memory_space<vmem>>, %arg6: memref<1x1x128xf32, #tpu.memory_space<vmem>>, %arg7: memref<288x128xbf16, #tpu.memory_space<vmem>>, %arg8: memref<288x128xbf16, #tpu.memory_space<vmem>>) attributes {dimension_semantics = [#tpu.dimension_semantics<parallel>], iteration_bounds = array<i64: 2>, scalar_prefetch = 0 : i64, scratch_operands = 2 : i64, tpu.core_type = #tpu.core_type<tc>, window_params = [{transform_indices = @transform_0, window_bounds = array<i64: 1, 256, 4>}, {pipeline_mode = #tpu.pipeline_mode<synchronous>, transform_indices = @transform_1, window_bounds = array<i64: 18, 128, 128>}, {pipeline_mode = #tpu.pipeline_mode<synchronous>, transform_indices = @transform_2, window_bounds = array<i64: 2, 1, 128>}, {pipeline_mode = #tpu.pipeline_mode<synchronous>, transform_indices = @transform_3, window_bounds = array<i64: 2, 256, 1>}, {transform_indices = @transform_4, window_bounds = array<i64: 1, 256, 8>}, {transform_indices = @transform_5, window_bounds = array<i64: 1, 1, 128>}]} {
    %cst = arith.constant 0.000000e+00 : bf16
    %0 = vector.broadcast %cst : bf16 to vector<288x128xbf16>
    %c0 = arith.constant 0 : index
    %c0_0 = arith.constant 0 : index
    %1 = vector.load %arg7[%c0, %c0_0] : memref<288x128xbf16, #tpu.memory_space<vmem>>, vector<288x128xbf16>
    tpu.vector_store %arg7[%c0, %c0_0], %0 {strides = array<i32>} : memref<288x128xbf16, #tpu.memory_space<vmem>>, vector<288x128xbf16>,
    %c0_1 = arith.constant 0 : index
    %c0_2 = arith.constant 0 : index
    %c0_3 = arith.constant 0 : index
    %2 = vector.load %arg1[%c0_1, %c0_2, %c0_3] : memref<1x256x4xf32, #tpu.memory_space<vmem>>, vector<1x256x4xf32>
    %3 = vector.shape_cast %2 : vector<1x256x4xf32> to vector<256x4xf32>
    %4 = arith.truncf %3 : vector<256x4xf32> to vector<256x4xbf16>
    %c16 = arith.constant 16 : index
    %c0_4 = arith.constant 0 : index
    %5 = vector.load %arg7[%c16, %c0_4] : memref<288x128xbf16, #tpu.memory_space<vmem>>, vector<256x4xbf16>
    tpu.vector_store %arg7[%c16, %c0_4], %4 {strides = array<i32>} : memref<288x128xbf16, #tpu.memory_space<vmem>>, vector<256x4xbf16>,
    %cst_5 = arith.constant 0.000000e+00 : bf16
    %6 = vector.broadcast %cst_5 : bf16 to vector<16x128xbf16>
    %c0_6 = arith.constant 0 : index
    %c0_7 = arith.constant 0 : index
    %7 = vector.load %arg8[%c0_6, %c0_7] : memref<288x128xbf16, #tpu.memory_space<vmem>>, vector<16x128xbf16>
    tpu.vector_store %arg8[%c0_6, %c0_7], %6 {strides = array<i32>} : memref<288x128xbf16, #tpu.memory_space<vmem>>, vector<16x128xbf16>,
    %cst_8 = arith.constant 0.000000e+00 : bf16
    %8 = vector.broadcast %cst_8 : bf16 to vector<16x128xbf16>
    %c272 = arith.constant 272 : index
    %c0_9 = arith.constant 0 : index
    %9 = vector.load %arg8[%c272, %c0_9] : memref<288x128xbf16, #tpu.memory_space<vmem>>, vector<16x128xbf16>
    tpu.vector_store %arg8[%c272, %c0_9], %8 {strides = array<i32>} : memref<288x128xbf16, #tpu.memory_space<vmem>>, vector<16x128xbf16>,
    %c0_10 = arith.constant 0 : index
    %c0_11 = arith.constant 0 : index
    %c0_12 = arith.constant 0 : index
    %10 = vector.load %arg4[%c0_10, %c0_11, %c0_12] : memref<2x256x1xf32, #tpu.memory_space<vmem>>, vector<1x128x1xf32>
    %11 = vector.shape_cast %10 : vector<1x128x1xf32> to vector<128x1xf32>
    %c1 = arith.constant 1 : index
    %c0_13 = arith.constant 0 : index
    %c0_14 = arith.constant 0 : index
    %12 = vector.load %arg4[%c1, %c0_13, %c0_14] : memref<2x256x1xf32, #tpu.memory_space<vmem>>, vector<1x128x1xf32>
    %13 = vector.shape_cast %12 : vector<1x128x1xf32> to vector<128x1xf32>
    %cst_15 = arith.constant 0.000000e+00 : f32
    %14 = vector.broadcast %cst_15 : f32 to vector<128x128xf32>
    %c0_16 = arith.constant 0 : index
    %c0_17 = arith.constant 0 : index
    %15 = vector.load %arg7[%c0_16, %c0_17] : memref<288x128xbf16, #tpu.memory_space<vmem>>, vector<128x128xbf16>
    %c0_18 = arith.constant 0 : index
    %c0_19 = arith.constant 0 : index
    %c0_20 = arith.constant 0 : index
    %16 = vector.load %arg2[%c0_18, %c0_19, %c0_20] : memref<18x128x128xbf16, #tpu.memory_space<vmem>>, vector<1x128x128xbf16>
    %17 = vector.shape_cast %16 : vector<1x128x128xbf16> to vector<128x128xbf16>
    %cst_21 = arith.constant dense<0.000000e+00> : vector<128x128xf32>
    %18 = tpu.matmul %15, %17, %cst_21 {dimension_numbers = #tpu.dot_dimension_numbers<[1], [0], [0], [1], [0, 0, 1, 1], [], []>} : vector<128x128xbf16>, vector<128x128xbf16>, vector<128x128xf32> -> vector<128x128xf32>
    %c1_i32 = arith.constant 1 : i32
    %19 = tpu.dynamic_rotate %18 by %c1_i32 dim 0 : vector<128x128xf32>, i32 -> vector<128x128xf32>
    %20 = vector.broadcast %11 : vector<128x1xf32> to vector<128x128xf32>
    %21 = arith.mulf %19, %20 : vector<128x128xf32>
    %22 = arith.addf %14, %21 : vector<128x128xf32>
    %c1_22 = arith.constant 1 : index
    %c0_23 = arith.constant 0 : index
    %c0_24 = arith.constant 0 : index
    %23 = vector.load %arg2[%c1_22, %c0_23, %c0_24] : memref<18x128x128xbf16, #tpu.memory_space<vmem>>, vector<1x128x128xbf16>
    %24 = vector.shape_cast %23 : vector<1x128x128xbf16> to vector<128x128xbf16>
    %cst_25 = arith.constant dense<0.000000e+00> : vector<128x128xf32>
    %25 = tpu.matmul %15, %24, %cst_25 {dimension_numbers = #tpu.dot_dimension_numbers<[1], [0], [0], [1], [0, 0, 1, 1], [], []>} : vector<128x128xbf16>, vector<128x128xbf16>, vector<128x128xf32> -> vector<128x128xf32>
    %26 = arith.addf %22, %25 : vector<128x128xf32>
    %c2 = arith.constant 2 : index
    %c0_26 = arith.constant 0 : index
    %c0_27 = arith.constant 0 : index
    %27 = vector.load %arg2[%c2, %c0_26, %c0_27] : memref<18x128x128xbf16, #tpu.memory_space<vmem>>, vector<1x128x128xbf16>
    %28 = vector.shape_cast %27 : vector<1x128x128xbf16> to vector<128x128xbf16>
    %cst_28 = arith.constant dense<0.000000e+00> : vector<128x128xf32>
    %29 = tpu.matmul %15, %28, %cst_28 {dimension_numbers = #tpu.dot_dimension_numbers<[1], [0], [0], [1], [0, 0, 1, 1], [], []>} : vector<128x128xbf16>, vector<128x128xbf16>, vector<128x128xf32> -> vector<128x128xf32>
    %c127_i32 = arith.constant 127 : i32
    %30 = tpu.dynamic_rotate %29 by %c127_i32 dim 0 : vector<128x128xf32>, i32 -> vector<128x128xf32>
    %31 = vector.broadcast %13 : vector<128x1xf32> to vector<128x128xf32>
    %32 = arith.mulf %30, %31 : vector<128x128xf32>
    %33 = arith.addf %26, %32 : vector<128x128xf32>
    %c16_29 = arith.constant 16 : index
    %c0_30 = arith.constant 0 : index
    %34 = vector.load %arg7[%c16_29, %c0_30] : memref<288x128xbf16, #tpu.memory_space<vmem>>, vector<128x128xbf16>
    %c3 = arith.constant 3 : index
    %c0_31 = arith.constant 0 : index
    %c0_32 = arith.constant 0 : index
    %35 = vector.load %arg2[%c3, %c0_31, %c0_32] : memref<18x128x128xbf16, #tpu.memory_space<vmem>>, vector<1x128x128xbf16>
    %36 = vector.shape_cast %35 : vector<1x128x128xbf16> to vector<128x128xbf16>
    %cst_33 = arith.constant dense<0.000000e+00> : vector<128x128xf32>
    %37 = tpu.matmul %34, %36, %cst_33 {dimension_numbers = #tpu.dot_dimension_numbers<[1], [0], [0], [1], [0, 0, 1, 1], [], []>} : vector<128x128xbf16>, vector<128x128xbf16>, vector<128x128xf32> -> vector<128x128xf32>
    %c1_i32_34 = arith.constant 1 : i32
    %38 = tpu.dynamic_rotate %37 by %c1_i32_34 dim 0 : vector<128x128xf32>, i32 -> vector<128x128xf32>
    %39 = vector.broadcast %11 : vector<128x1xf32> to vector<128x128xf32>
    %40 = arith.mulf %38, %39 : vector<128x128xf32>
    %41 = arith.addf %33, %40 : vector<128x128xf32>
    %c4 = arith.constant 4 : index
    %c0_35 = arith.constant 0 : index
    %c0_36 = arith.constant 0 : index
    %42 = vector.load %arg2[%c4, %c0_35, %c0_36] : memref<18x128x128xbf16, #tpu.memory_space<vmem>>, vector<1x128x128xbf16>
    %43 = vector.shape_cast %42 : vector<1x128x128xbf16> to vector<128x128xbf16>
    %cst_37 = arith.constant dense<0.000000e+00> : vector<128x128xf32>
    %44 = tpu.matmul %34, %43, %cst_37 {dimension_numbers = #tpu.dot_dimension_numbers<[1], [0], [0], [1], [0, 0, 1, 1], [], []>} : vector<128x128xbf16>, vector<128x128xbf16>, vector<128x128xf32> -> vector<128x128xf32>
    %45 = arith.addf %41, %44 : vector<128x128xf32>
    %c5 = arith.constant 5 : index
    %c0_38 = arith.constant 0 : index
    %c0_39 = arith.constant 0 : index
    %46 = vector.load %arg2[%c5, %c0_38, %c0_39] : memref<18x128x128xbf16, #tpu.memory_space<vmem>>, vector<1x128x128xbf16>
    %47 = vector.shape_cast %46 : vector<1x128x128xbf16> to vector<128x128xbf16>
    %cst_40 = arith.constant dense<0.000000e+00> : vector<128x128xf32>
    %48 = tpu.matmul %34, %47, %cst_40 {dimension_numbers = #tpu.dot_dimension_numbers<[1], [0], [0], [1], [0, 0, 1, 1], [], []>} : vector<128x128xbf16>, vector<128x128xbf16>, vector<128x128xf32> -> vector<128x128xf32>
    %c127_i32_41 = arith.constant 127 : i32
    %49 = tpu.dynamic_rotate %48 by %c127_i32_41 dim 0 : vector<128x128xf32>, i32 -> vector<128x128xf32>
    %50 = vector.broadcast %13 : vector<128x1xf32> to vector<128x128xf32>
    %51 = arith.mulf %49, %50 : vector<128x128xf32>
    %52 = arith.addf %45, %51 : vector<128x128xf32>
    %c32 = arith.constant 32 : index
    %c0_42 = arith.constant 0 : index
    %53 = vector.load %arg7[%c32, %c0_42] : memref<288x128xbf16, #tpu.memory_space<vmem>>, vector<128x128xbf16>
    %c6 = arith.constant 6 : index
    %c0_43 = arith.constant 0 : index
    %c0_44 = arith.constant 0 : index
    %54 = vector.load %arg2[%c6, %c0_43, %c0_44] : memref<18x128x128xbf16, #tpu.memory_space<vmem>>, vector<1x128x128xbf16>
    %55 = vector.shape_cast %54 : vector<1x128x128xbf16> to vector<128x128xbf16>
    %cst_45 = arith.constant dense<0.000000e+00> : vector<128x128xf32>
    %56 = tpu.matmul %53, %55, %cst_45 {dimension_numbers = #tpu.dot_dimension_numbers<[1], [0], [0], [1], [0, 0, 1, 1], [], []>} : vector<128x128xbf16>, vector<128x128xbf16>, vector<128x128xf32> -> vector<128x128xf32>
    %c1_i32_46 = arith.constant 1 : i32
    %57 = tpu.dynamic_rotate %56 by %c1_i32_46 dim 0 : vector<128x128xf32>, i32 -> vector<128x128xf32>
    %58 = vector.broadcast %11 : vector<128x1xf32> to vector<128x128xf32>
    %59 = arith.mulf %57, %58 : vector<128x128xf32>
    %60 = arith.addf %52, %59 : vector<128x128xf32>
    %c7 = arith.constant 7 : index
    %c0_47 = arith.constant 0 : index
    %c0_48 = arith.constant 0 : index
    %61 = vector.load %arg2[%c7, %c0_47, %c0_48] : memref<18x128x128xbf16, #tpu.memory_space<vmem>>, vector<1x128x128xbf16>
    %62 = vector.shape_cast %61 : vector<1x128x128xbf16> to vector<128x128xbf16>
    %cst_49 = arith.constant dense<0.000000e+00> : vector<128x128xf32>
    %63 = tpu.matmul %53, %62, %cst_49 {dimension_numbers = #tpu.dot_dimension_numbers<[1], [0], [0], [1], [0, 0, 1, 1], [], []>} : vector<128x128xbf16>, vector<128x128xbf16>, vector<128x128xf32> -> vector<128x128xf32>
    %64 = arith.addf %60, %63 : vector<128x128xf32>
    %c8 = arith.constant 8 : index
    %c0_50 = arith.constant 0 : index
    %c0_51 = arith.constant 0 : index
    %65 = vector.load %arg2[%c8, %c0_50, %c0_51] : memref<18x128x128xbf16, #tpu.memory_space<vmem>>, vector<1x128x128xbf16>
    %66 = vector.shape_cast %65 : vector<1x128x128xbf16> to vector<128x128xbf16>
    %cst_52 = arith.constant dense<0.000000e+00> : vector<128x128xf32>
    %67 = tpu.matmul %53, %66, %cst_52 {dimension_numbers = #tpu.dot_dimension_numbers<[1], [0], [0], [1], [0, 0, 1, 1], [], []>} : vector<128x128xbf16>, vector<128x128xbf16>, vector<128x128xf32> -> vector<128x128xf32>
    %c127_i32_53 = arith.constant 127 : i32
    %68 = tpu.dynamic_rotate %67 by %c127_i32_53 dim 0 : vector<128x128xf32>, i32 -> vector<128x128xf32>
    %69 = vector.broadcast %13 : vector<128x1xf32> to vector<128x128xf32>
    %70 = arith.mulf %68, %69 : vector<128x128xf32>
    %71 = arith.addf %64, %70 : vector<128x128xf32>
    %c0_54 = arith.constant 0 : index
    %c0_55 = arith.constant 0 : index
    %c0_56 = arith.constant 0 : index
    %72 = vector.load %arg3[%c0_54, %c0_55, %c0_56] : memref<2x1x128xf32, #tpu.memory_space<vmem>>, vector<1x1x128xf32>
    %73 = vector.shape_cast %72 : vector<1x1x128xf32> to vector<1x128xf32>
    %74 = vector.broadcast %73 : vector<1x128xf32> to vector<128x128xf32>
    %75 = arith.addf %71, %74 : vector<128x128xf32>
    %cst_57 = arith.constant 0.000000e+00 : f32
    %76 = vector.broadcast %cst_57 : f32 to vector<128x128xf32>
    %77 = arith.maximumf %75, %76 : vector<128x128xf32>
    %78 = arith.truncf %77 : vector<128x128xf32> to vector<128x128xbf16>
    %c16_58 = arith.constant 16 : index
    %c0_59 = arith.constant 0 : index
    %79 = vector.load %arg8[%c16_58, %c0_59] : memref<288x128xbf16, #tpu.memory_space<vmem>>, vector<128x128xbf16>
    tpu.vector_store %arg8[%c16_58, %c0_59], %78 {strides = array<i32>} : memref<288x128xbf16, #tpu.memory_space<vmem>>, vector<128x128xbf16>,
    %c0_60 = arith.constant 0 : index
    %c128 = arith.constant 128 : index
    %c0_61 = arith.constant 0 : index
    %80 = vector.load %arg4[%c0_60, %c128, %c0_61] : memref<2x256x1xf32, #tpu.memory_space<vmem>>, vector<1x128x1xf32>
    %81 = vector.shape_cast %80 : vector<1x128x1xf32> to vector<128x1xf32>
    %c1_62 = arith.constant 1 : index
    %c128_63 = arith.constant 128 : index
    %c0_64 = arith.constant 0 : index
    %82 = vector.load %arg4[%c1_62, %c128_63, %c0_64] : memref<2x256x1xf32, #tpu.memory_space<vmem>>, vector<1x128x1xf32>
    %83 = vector.shape_cast %82 : vector<1x128x1xf32> to vector<128x1xf32>
    %cst_65 = arith.constant 0.000000e+00 : f32
    %84 = vector.broadcast %cst_65 : f32 to vector<128x128xf32>
    %c128_66 = arith.constant 128 : index
    %c0_67 = arith.constant 0 : index
    %85 = vector.load %arg7[%c128_66, %c0_67] : memref<288x128xbf16, #tpu.memory_space<vmem>>, vector<128x128xbf16>
    %c0_68 = arith.constant 0 : index
    %c0_69 = arith.constant 0 : index
    %c0_70 = arith.constant 0 : index
    %86 = vector.load %arg2[%c0_68, %c0_69, %c0_70] : memref<18x128x128xbf16, #tpu.memory_space<vmem>>, vector<1x128x128xbf16>
    %87 = vector.shape_cast %86 : vector<1x128x128xbf16> to vector<128x128xbf16>
    %cst_71 = arith.constant dense<0.000000e+00> : vector<128x128xf32>
    %88 = tpu.matmul %85, %87, %cst_71 {dimension_numbers = #tpu.dot_dimension_numbers<[1], [0], [0], [1], [0, 0, 1, 1], [], []>} : vector<128x128xbf16>, vector<128x128xbf16>, vector<128x128xf32> -> vector<128x128xf32>
    %c1_i32_72 = arith.constant 1 : i32
    %89 = tpu.dynamic_rotate %88 by %c1_i32_72 dim 0 : vector<128x128xf32>, i32 -> vector<128x128xf32>
    %90 = vector.broadcast %81 : vector<128x1xf32> to vector<128x128xf32>
    %91 = arith.mulf %89, %90 : vector<128x128xf32>
    %92 = arith.addf %84, %91 : vector<128x128xf32>
    %c1_73 = arith.constant 1 : index
    %c0_74 = arith.constant 0 : index
    %c0_75 = arith.constant 0 : index
    %93 = vector.load %arg2[%c1_73, %c0_74, %c0_75] : memref<18x128x128xbf16, #tpu.memory_space<vmem>>, vector<1x128x128xbf16>
    %94 = vector.shape_cast %93 : vector<1x128x128xbf16> to vector<128x128xbf16>
    %cst_76 = arith.constant dense<0.000000e+00> : vector<128x128xf32>
    %95 = tpu.matmul %85, %94, %cst_76 {dimension_numbers = #tpu.dot_dimension_numbers<[1], [0], [0], [1], [0, 0, 1, 1], [], []>} : vector<128x128xbf16>, vector<128x128xbf16>, vector<128x128xf32> -> vector<128x128xf32>
    %96 = arith.addf %92, %95 : vector<128x128xf32>
    %c2_77 = arith.constant 2 : index
    %c0_78 = arith.constant 0 : index
    %c0_79 = arith.constant 0 : index
    %97 = vector.load %arg2[%c2_77, %c0_78, %c0_79] : memref<18x128x128xbf16, #tpu.memory_space<vmem>>, vector<1x128x128xbf16>
    %98 = vector.shape_cast %97 : vector<1x128x128xbf16> to vector<128x128xbf16>
    %cst_80 = arith.constant dense<0.000000e+00> : vector<128x128xf32>
    %99 = tpu.matmul %85, %98, %cst_80 {dimension_numbers = #tpu.dot_dimension_numbers<[1], [0], [0], [1], [0, 0, 1, 1], [], []>} : vector<128x128xbf16>, vector<128x128xbf16>, vector<128x128xf32> -> vector<128x128xf32>
    %c127_i32_81 = arith.constant 127 : i32
    %100 = tpu.dynamic_rotate %99 by %c127_i32_81 dim 0 : vector<128x128xf32>, i32 -> vector<128x128xf32>
    %101 = vector.broadcast %83 : vector<128x1xf32> to vector<128x128xf32>
    %102 = arith.mulf %100, %101 : vector<128x128xf32>
    %103 = arith.addf %96, %102 : vector<128x128xf32>
    %c144 = arith.constant 144 : index
    %c0_82 = arith.constant 0 : index
    %104 = vector.load %arg7[%c144, %c0_82] : memref<288x128xbf16, #tpu.memory_space<vmem>>, vector<128x128xbf16>
    %c3_83 = arith.constant 3 : index
    %c0_84 = arith.constant 0 : index
    %c0_85 = arith.constant 0 : index
    %105 = vector.load %arg2[%c3_83, %c0_84, %c0_85] : memref<18x128x128xbf16, #tpu.memory_space<vmem>>, vector<1x128x128xbf16>
    %106 = vector.shape_cast %105 : vector<1x128x128xbf16> to vector<128x128xbf16>
    %cst_86 = arith.constant dense<0.000000e+00> : vector<128x128xf32>
    %107 = tpu.matmul %104, %106, %cst_86 {dimension_numbers = #tpu.dot_dimension_numbers<[1], [0], [0], [1], [0, 0, 1, 1], [], []>} : vector<128x128xbf16>, vector<128x128xbf16>, vector<128x128xf32> -> vector<128x128xf32>
    %c1_i32_87 = arith.constant 1 : i32
    %108 = tpu.dynamic_rotate %107 by %c1_i32_87 dim 0 : vector<128x128xf32>, i32 -> vector<128x128xf32>
    %109 = vector.broadcast %81 : vector<128x1xf32> to vector<128x128xf32>
    %110 = arith.mulf %108, %109 : vector<128x128xf32>
    %111 = arith.addf %103, %110 : vector<128x128xf32>
    %c4_88 = arith.constant 4 : index
    %c0_89 = arith.constant 0 : index
    %c0_90 = arith.constant 0 : index
    %112 = vector.load %arg2[%c4_88, %c0_89, %c0_90] : memref<18x128x128xbf16, #tpu.memory_space<vmem>>, vector<1x128x128xbf16>
    %113 = vector.shape_cast %112 : vector<1x128x128xbf16> to vector<128x128xbf16>
    %cst_91 = arith.constant dense<0.000000e+00> : vector<128x128xf32>
    %114 = tpu.matmul %104, %113, %cst_91 {dimension_numbers = #tpu.dot_dimension_numbers<[1], [0], [0], [1], [0, 0, 1, 1], [], []>} : vector<128x128xbf16>, vector<128x128xbf16>, vector<128x128xf32> -> vector<128x128xf32>
    %115 = arith.addf %111, %114 : vector<128x128xf32>
    %c5_92 = arith.constant 5 : index
    %c0_93 = arith.constant 0 : index
    %c0_94 = arith.constant 0 : index
    %116 = vector.load %arg2[%c5_92, %c0_93, %c0_94] : memref<18x128x128xbf16, #tpu.memory_space<vmem>>, vector<1x128x128xbf16>
    %117 = vector.shape_cast %116 : vector<1x128x128xbf16> to vector<128x128xbf16>
    %cst_95 = arith.constant dense<0.000000e+00> : vector<128x128xf32>
    %118 = tpu.matmul %104, %117, %cst_95 {dimension_numbers = #tpu.dot_dimension_numbers<[1], [0], [0], [1], [0, 0, 1, 1], [], []>} : vector<128x128xbf16>, vector<128x128xbf16>, vector<128x128xf32> -> vector<128x128xf32>
    %c127_i32_96 = arith.constant 127 : i32
    %119 = tpu.dynamic_rotate %118 by %c127_i32_96 dim 0 : vector<128x128xf32>, i32 -> vector<128x128xf32>
    %120 = vector.broadcast %83 : vector<128x1xf32> to vector<128x128xf32>
    %121 = arith.mulf %119, %120 : vector<128x128xf32>
    %122 = arith.addf %115, %121 : vector<128x128xf32>
    %c160 = arith.constant 160 : index
    %c0_97 = arith.constant 0 : index
    %123 = vector.load %arg7[%c160, %c0_97] : memref<288x128xbf16, #tpu.memory_space<vmem>>, vector<128x128xbf16>
    %c6_98 = arith.constant 6 : index
    %c0_99 = arith.constant 0 : index
    %c0_100 = arith.constant 0 : index
    %124 = vector.load %arg2[%c6_98, %c0_99, %c0_100] : memref<18x128x128xbf16, #tpu.memory_space<vmem>>, vector<1x128x128xbf16>
    %125 = vector.shape_cast %124 : vector<1x128x128xbf16> to vector<128x128xbf16>
    %cst_101 = arith.constant dense<0.000000e+00> : vector<128x128xf32>
    %126 = tpu.matmul %123, %125, %cst_101 {dimension_numbers = #tpu.dot_dimension_numbers<[1], [0], [0], [1], [0, 0, 1, 1], [], []>} : vector<128x128xbf16>, vector<128x128xbf16>, vector<128x128xf32> -> vector<128x128xf32>
    %c1_i32_102 = arith.constant 1 : i32
    %127 = tpu.dynamic_rotate %126 by %c1_i32_102 dim 0 : vector<128x128xf32>, i32 -> vector<128x128xf32>
    %128 = vector.broadcast %81 : vector<128x1xf32> to vector<128x128xf32>
    %129 = arith.mulf %127, %128 : vector<128x128xf32>
    %130 = arith.addf %122, %129 : vector<128x128xf32>
    %c7_103 = arith.constant 7 : index
    %c0_104 = arith.constant 0 : index
    %c0_105 = arith.constant 0 : index
    %131 = vector.load %arg2[%c7_103, %c0_104, %c0_105] : memref<18x128x128xbf16, #tpu.memory_space<vmem>>, vector<1x128x128xbf16>
    %132 = vector.shape_cast %131 : vector<1x128x128xbf16> to vector<128x128xbf16>
    %cst_106 = arith.constant dense<0.000000e+00> : vector<128x128xf32>
    %133 = tpu.matmul %123, %132, %cst_106 {dimension_numbers = #tpu.dot_dimension_numbers<[1], [0], [0], [1], [0, 0, 1, 1], [], []>} : vector<128x128xbf16>, vector<128x128xbf16>, vector<128x128xf32> -> vector<128x128xf32>
    %134 = arith.addf %130, %133 : vector<128x128xf32>
    %c8_107 = arith.constant 8 : index
    %c0_108 = arith.constant 0 : index
    %c0_109 = arith.constant 0 : index
    %135 = vector.load %arg2[%c8_107, %c0_108, %c0_109] : memref<18x128x128xbf16, #tpu.memory_space<vmem>>, vector<1x128x128xbf16>
    %136 = vector.shape_cast %135 : vector<1x128x128xbf16> to vector<128x128xbf16>
    %cst_110 = arith.constant dense<0.000000e+00> : vector<128x128xf32>
    %137 = tpu.matmul %123, %136, %cst_110 {dimension_numbers = #tpu.dot_dimension_numbers<[1], [0], [0], [1], [0, 0, 1, 1], [], []>} : vector<128x128xbf16>, vector<128x128xbf16>, vector<128x128xf32> -> vector<128x128xf32>
    %c127_i32_111 = arith.constant 127 : i32
    %138 = tpu.dynamic_rotate %137 by %c127_i32_111 dim 0 : vector<128x128xf32>, i32 -> vector<128x128xf32>
    %139 = vector.broadcast %83 : vector<128x1xf32> to vector<128x128xf32>
    %140 = arith.mulf %138, %139 : vector<128x128xf32>
    %141 = arith.addf %134, %140 : vector<128x128xf32>
    %c0_112 = arith.constant 0 : index
    %c0_113 = arith.constant 0 : index
    %c0_114 = arith.constant 0 : index
    %142 = vector.load %arg3[%c0_112, %c0_113, %c0_114] : memref<2x1x128xf32, #tpu.memory_space<vmem>>, vector<1x1x128xf32>
    %143 = vector.shape_cast %142 : vector<1x1x128xf32> to vector<1x128xf32>
    %144 = vector.broadcast %143 : vector<1x128xf32> to vector<128x128xf32>
    %145 = arith.addf %141, %144 : vector<128x128xf32>
    %cst_115 = arith.constant 0.000000e+00 : f32
    %146 = vector.broadcast %cst_115 : f32 to vector<128x128xf32>
    %147 = arith.maximumf %145, %146 : vector<128x128xf32>
    %148 = arith.truncf %147 : vector<128x128xf32> to vector<128x128xbf16>
    %c144_116 = arith.constant 144 : index
    %c0_117 = arith.constant 0 : index
    %149 = vector.load %arg8[%c144_116, %c0_117] : memref<288x128xbf16, #tpu.memory_space<vmem>>, vector<128x128xbf16>
    tpu.vector_store %arg8[%c144_116, %c0_117], %148 {strides = array<i32>} : memref<288x128xbf16, #tpu.memory_space<vmem>>, vector<128x128xbf16>,
    %cst_118 = arith.constant 0.000000e+00 : f32
    %150 = vector.broadcast %cst_118 : f32 to vector<1x128xf32>
    %c0_119 = arith.constant 0 : index
    %c0_120 = arith.constant 0 : index
    %c0_121 = arith.constant 0 : index
    %151 = vector.load %arg4[%c0_119, %c0_120, %c0_121] : memref<2x256x1xf32, #tpu.memory_space<vmem>>, vector<1x128x1xf32>
    %152 = vector.shape_cast %151 : vector<1x128x1xf32> to vector<128x1xf32>
    %c1_122 = arith.constant 1 : index
    %c0_123 = arith.constant 0 : index
    %c0_124 = arith.constant 0 : index
    %153 = vector.load %arg4[%c1_122, %c0_123, %c0_124] : memref<2x256x1xf32, #tpu.memory_space<vmem>>, vector<1x128x1xf32>
    %154 = vector.shape_cast %153 : vector<1x128x1xf32> to vector<128x1xf32>
    %cst_125 = arith.constant 0.000000e+00 : f32
    %155 = vector.broadcast %cst_125 : f32 to vector<128x128xf32>
    %c0_126 = arith.constant 0 : index
    %c0_127 = arith.constant 0 : index
    %156 = vector.load %arg8[%c0_126, %c0_127] : memref<288x128xbf16, #tpu.memory_space<vmem>>, vector<128x128xbf16>
    %c9 = arith.constant 9 : index
    %c0_128 = arith.constant 0 : index
    %c0_129 = arith.constant 0 : index
    %157 = vector.load %arg2[%c9, %c0_128, %c0_129] : memref<18x128x128xbf16, #tpu.memory_space<vmem>>, vector<1x128x128xbf16>
    %158 = vector.shape_cast %157 : vector<1x128x128xbf16> to vector<128x128xbf16>
    %cst_130 = arith.constant dense<0.000000e+00> : vector<128x128xf32>
    %159 = tpu.matmul %156, %158, %cst_130 {dimension_numbers = #tpu.dot_dimension_numbers<[1], [0], [0], [1], [0, 0, 1, 1], [], []>} : vector<128x128xbf16>, vector<128x128xbf16>, vector<128x128xf32> -> vector<128x128xf32>
    %c1_i32_131 = arith.constant 1 : i32
    %160 = tpu.dynamic_rotate %159 by %c1_i32_131 dim 0 : vector<128x128xf32>, i32 -> vector<128x128xf32>
    %161 = vector.broadcast %152 : vector<128x1xf32> to vector<128x128xf32>
    %162 = arith.mulf %160, %161 : vector<128x128xf32>
    %163 = arith.addf %155, %162 : vector<128x128xf32>
    %c10 = arith.constant 10 : index
    %c0_132 = arith.constant 0 : index
    %c0_133 = arith.constant 0 : index
    %164 = vector.load %arg2[%c10, %c0_132, %c0_133] : memref<18x128x128xbf16, #tpu.memory_space<vmem>>, vector<1x128x128xbf16>
    %165 = vector.shape_cast %164 : vector<1x128x128xbf16> to vector<128x128xbf16>
    %cst_134 = arith.constant dense<0.000000e+00> : vector<128x128xf32>
    %166 = tpu.matmul %156, %165, %cst_134 {dimension_numbers = #tpu.dot_dimension_numbers<[1], [0], [0], [1], [0, 0, 1, 1], [], []>} : vector<128x128xbf16>, vector<128x128xbf16>, vector<128x128xf32> -> vector<128x128xf32>
    %167 = arith.addf %163, %166 : vector<128x128xf32>
    %c11 = arith.constant 11 : index
    %c0_135 = arith.constant 0 : index
    %c0_136 = arith.constant 0 : index
    %168 = vector.load %arg2[%c11, %c0_135, %c0_136] : memref<18x128x128xbf16, #tpu.memory_space<vmem>>, vector<1x128x128xbf16>
    %169 = vector.shape_cast %168 : vector<1x128x128xbf16> to vector<128x128xbf16>
    %cst_137 = arith.constant dense<0.000000e+00> : vector<128x128xf32>
    %170 = tpu.matmul %156, %169, %cst_137 {dimension_numbers = #tpu.dot_dimension_numbers<[1], [0], [0], [1], [0, 0, 1, 1], [], []>} : vector<128x128xbf16>, vector<128x128xbf16>, vector<128x128xf32> -> vector<128x128xf32>
    %c127_i32_138 = arith.constant 127 : i32
    %171 = tpu.dynamic_rotate %170 by %c127_i32_138 dim 0 : vector<128x128xf32>, i32 -> vector<128x128xf32>
    %172 = vector.broadcast %154 : vector<128x1xf32> to vector<128x128xf32>
    %173 = arith.mulf %171, %172 : vector<128x128xf32>
    %174 = arith.addf %167, %173 : vector<128x128xf32>
    %c16_139 = arith.constant 16 : index
    %c0_140 = arith.constant 0 : index
    %175 = vector.load %arg8[%c16_139, %c0_140] : memref<288x128xbf16, #tpu.memory_space<vmem>>, vector<128x128xbf16>
    %c12 = arith.constant 12 : index
    %c0_141 = arith.constant 0 : index
    %c0_142 = arith.constant 0 : index
    %176 = vector.load %arg2[%c12, %c0_141, %c0_142] : memref<18x128x128xbf16, #tpu.memory_space<vmem>>, vector<1x128x128xbf16>
    %177 = vector.shape_cast %176 : vector<1x128x128xbf16> to vector<128x128xbf16>
    %cst_143 = arith.constant dense<0.000000e+00> : vector<128x128xf32>
    %178 = tpu.matmul %175, %177, %cst_143 {dimension_numbers = #tpu.dot_dimension_numbers<[1], [0], [0], [1], [0, 0, 1, 1], [], []>} : vector<128x128xbf16>, vector<128x128xbf16>, vector<128x128xf32> -> vector<128x128xf32>
    %c1_i32_144 = arith.constant 1 : i32
    %179 = tpu.dynamic_rotate %178 by %c1_i32_144 dim 0 : vector<128x128xf32>, i32 -> vector<128x128xf32>
    %180 = vector.broadcast %152 : vector<128x1xf32> to vector<128x128xf32>
    %181 = arith.mulf %179, %180 : vector<128x128xf32>
    %182 = arith.addf %174, %181 : vector<128x128xf32>
    %c13 = arith.constant 13 : index
    %c0_145 = arith.constant 0 : index
    %c0_146 = arith.constant 0 : index
    %183 = vector.load %arg2[%c13, %c0_145, %c0_146] : memref<18x128x128xbf16, #tpu.memory_space<vmem>>, vector<1x128x128xbf16>
    %184 = vector.shape_cast %183 : vector<1x128x128xbf16> to vector<128x128xbf16>
    %cst_147 = arith.constant dense<0.000000e+00> : vector<128x128xf32>
    %185 = tpu.matmul %175, %184, %cst_147 {dimension_numbers = #tpu.dot_dimension_numbers<[1], [0], [0], [1], [0, 0, 1, 1], [], []>} : vector<128x128xbf16>, vector<128x128xbf16>, vector<128x128xf32> -> vector<128x128xf32>
    %186 = arith.addf %182, %185 : vector<128x128xf32>
    %c14 = arith.constant 14 : index
    %c0_148 = arith.constant 0 : index
    %c0_149 = arith.constant 0 : index
    %187 = vector.load %arg2[%c14, %c0_148, %c0_149] : memref<18x128x128xbf16, #tpu.memory_space<vmem>>, vector<1x128x128xbf16>
    %188 = vector.shape_cast %187 : vector<1x128x128xbf16> to vector<128x128xbf16>
    %cst_150 = arith.constant dense<0.000000e+00> : vector<128x128xf32>
    %189 = tpu.matmul %175, %188, %cst_150 {dimension_numbers = #tpu.dot_dimension_numbers<[1], [0], [0], [1], [0, 0, 1, 1], [], []>} : vector<128x128xbf16>, vector<128x128xbf16>, vector<128x128xf32> -> vector<128x128xf32>
    %c127_i32_151 = arith.constant 127 : i32
    %190 = tpu.dynamic_rotate %189 by %c127_i32_151 dim 0 : vector<128x128xf32>, i32 -> vector<128x128xf32>
    %191 = vector.broadcast %154 : vector<128x1xf32> to vector<128x128xf32>
    %192 = arith.mulf %190, %191 : vector<128x128xf32>
    %193 = arith.addf %186, %192 : vector<128x128xf32>
    %c32_152 = arith.constant 32 : index
    %c0_153 = arith.constant 0 : index
    %194 = vector.load %arg8[%c32_152, %c0_153] : memref<288x128xbf16, #tpu.memory_space<vmem>>, vector<128x128xbf16>
    %c15 = arith.constant 15 : index
    %c0_154 = arith.constant 0 : index
    %c0_155 = arith.constant 0 : index
    %195 = vector.load %arg2[%c15, %c0_154, %c0_155] : memref<18x128x128xbf16, #tpu.memory_space<vmem>>, vector<1x128x128xbf16>
    %196 = vector.shape_cast %195 : vector<1x128x128xbf16> to vector<128x128xbf16>
    %cst_156 = arith.constant dense<0.000000e+00> : vector<128x128xf32>
    %197 = tpu.matmul %194, %196, %cst_156 {dimension_numbers = #tpu.dot_dimension_numbers<[1], [0], [0], [1], [0, 0, 1, 1], [], []>} : vector<128x128xbf16>, vector<128x128xbf16>, vector<128x128xf32> -> vector<128x128xf32>
    %c1_i32_157 = arith.constant 1 : i32
    %198 = tpu.dynamic_rotate %197 by %c1_i32_157 dim 0 : vector<128x128xf32>, i32 -> vector<128x128xf32>
    %199 = vector.broadcast %152 : vector<128x1xf32> to vector<128x128xf32>
    %200 = arith.mulf %198, %199 : vector<128x128xf32>
    %201 = arith.addf %193, %200 : vector<128x128xf32>
    %c16_158 = arith.constant 16 : index
    %c0_159 = arith.constant 0 : index
    %c0_160 = arith.constant 0 : index
    %202 = vector.load %arg2[%c16_158, %c0_159, %c0_160] : memref<18x128x128xbf16, #tpu.memory_space<vmem>>, vector<1x128x128xbf16>
    %203 = vector.shape_cast %202 : vector<1x128x128xbf16> to vector<128x128xbf16>
    %cst_161 = arith.constant dense<0.000000e+00> : vector<128x128xf32>
    %204 = tpu.matmul %194, %203, %cst_161 {dimension_numbers = #tpu.dot_dimension_numbers<[1], [0], [0], [1], [0, 0, 1, 1], [], []>} : vector<128x128xbf16>, vector<128x128xbf16>, vector<128x128xf32> -> vector<128x128xf32>
    %205 = arith.addf %201, %204 : vector<128x128xf32>
    %c17 = arith.constant 17 : index
    %c0_162 = arith.constant 0 : index
    %c0_163 = arith.constant 0 : index
    %206 = vector.load %arg2[%c17, %c0_162, %c0_163] : memref<18x128x128xbf16, #tpu.memory_space<vmem>>, vector<1x128x128xbf16>
    %207 = vector.shape_cast %206 : vector<1x128x128xbf16> to vector<128x128xbf16>
    %cst_164 = arith.constant dense<0.000000e+00> : vector<128x128xf32>
    %208 = tpu.matmul %194, %207, %cst_164 {dimension_numbers = #tpu.dot_dimension_numbers<[1], [0], [0], [1], [0, 0, 1, 1], [], []>} : vector<128x128xbf16>, vector<128x128xbf16>, vector<128x128xf32> -> vector<128x128xf32>
    %c127_i32_165 = arith.constant 127 : i32
    %209 = tpu.dynamic_rotate %208 by %c127_i32_165 dim 0 : vector<128x128xf32>, i32 -> vector<128x128xf32>
    %210 = vector.broadcast %154 : vector<128x1xf32> to vector<128x128xf32>
    %211 = arith.mulf %209, %210 : vector<128x128xf32>
    %212 = arith.addf %205, %211 : vector<128x128xf32>
    %c1_166 = arith.constant 1 : index
    %c0_167 = arith.constant 0 : index
    %c0_168 = arith.constant 0 : index
    %213 = vector.load %arg3[%c1_166, %c0_167, %c0_168] : memref<2x1x128xf32, #tpu.memory_space<vmem>>, vector<1x1x128xf32>
    %214 = vector.shape_cast %213 : vector<1x1x128xf32> to vector<1x128xf32>
    %215 = vector.broadcast %214 : vector<1x128xf32> to vector<128x128xf32>
    %216 = arith.addf %212, %215 : vector<128x128xf32>
    %cst_169 = arith.constant 0.000000e+00 : f32
    %217 = vector.broadcast %cst_169 : f32 to vector<128x128xf32>
    %218 = arith.maximumf %216, %217 : vector<128x128xf32>
    %219 = vector.extract_strided_slice %218 {offsets = [0, 0], sizes = [128, 8], strides = [1, 1]} : vector<128x128xf32> to vector<128x8xf32>
    %220 = arith.truncf %219 : vector<128x8xf32> to vector<128x8xbf16>
    %c0_170 = arith.constant 0 : index
    %c0_171 = arith.constant 0 : index
    %c0_172 = arith.constant 0 : index
    %221 = vector.load %arg5[%c0_170, %c0_171, %c0_172] : memref<1x256x8xbf16, #tpu.memory_space<vmem>>, vector<1x128x8xbf16>
    %222 = vector.shape_cast %221 : vector<1x128x8xbf16> to vector<128x8xbf16>
    %223 = vector.shape_cast %220 : vector<128x8xbf16> to vector<1x128x8xbf16>
    tpu.vector_store %arg5[%c0_170, %c0_171, %c0_172], %223 {strides = array<i32>} : memref<1x256x8xbf16, #tpu.memory_space<vmem>>, vector<1x128x8xbf16>,
    %cst_173 = arith.constant dense<0.000000e+00> : vector<128xf32>
    %224 = vector.multi_reduction <add>, %218, %cst_173 [0] : vector<128x128xf32> to vector<128xf32>
    %225 = vector.shape_cast %224 : vector<128xf32> to vector<1x128xf32>
    %226 = arith.addf %150, %225 : vector<1x128xf32>
    %c0_174 = arith.constant 0 : index
    %c128_175 = arith.constant 128 : index
    %c0_176 = arith.constant 0 : index
    %227 = vector.load %arg4[%c0_174, %c128_175, %c0_176] : memref<2x256x1xf32, #tpu.memory_space<vmem>>, vector<1x128x1xf32>
    %228 = vector.shape_cast %227 : vector<1x128x1xf32> to vector<128x1xf32>
    %c1_177 = arith.constant 1 : index
    %c128_178 = arith.constant 128 : index
    %c0_179 = arith.constant 0 : index
    %229 = vector.load %arg4[%c1_177, %c128_178, %c0_179] : memref<2x256x1xf32, #tpu.memory_space<vmem>>, vector<1x128x1xf32>
    %230 = vector.shape_cast %229 : vector<1x128x1xf32> to vector<128x1xf32>
    %cst_180 = arith.constant 0.000000e+00 : f32
    %231 = vector.broadcast %cst_180 : f32 to vector<128x128xf32>
    %c128_181 = arith.constant 128 : index
    %c0_182 = arith.constant 0 : index
    %232 = vector.load %arg8[%c128_181, %c0_182] : memref<288x128xbf16, #tpu.memory_space<vmem>>, vector<128x128xbf16>
    %c9_183 = arith.constant 9 : index
    %c0_184 = arith.constant 0 : index
    %c0_185 = arith.constant 0 : index
    %233 = vector.load %arg2[%c9_183, %c0_184, %c0_185] : memref<18x128x128xbf16, #tpu.memory_space<vmem>>, vector<1x128x128xbf16>
    %234 = vector.shape_cast %233 : vector<1x128x128xbf16> to vector<128x128xbf16>
    %cst_186 = arith.constant dense<0.000000e+00> : vector<128x128xf32>
    %235 = tpu.matmul %232, %234, %cst_186 {dimension_numbers = #tpu.dot_dimension_numbers<[1], [0], [0], [1], [0, 0, 1, 1], [], []>} : vector<128x128xbf16>, vector<128x128xbf16>, vector<128x128xf32> -> vector<128x128xf32>
    %c1_i32_187 = arith.constant 1 : i32
    %236 = tpu.dynamic_rotate %235 by %c1_i32_187 dim 0 : vector<128x128xf32>, i32 -> vector<128x128xf32>
    %237 = vector.broadcast %228 : vector<128x1xf32> to vector<128x128xf32>
    %238 = arith.mulf %236, %237 : vector<128x128xf32>
    %239 = arith.addf %231, %238 : vector<128x128xf32>
    %c10_188 = arith.constant 10 : index
    %c0_189 = arith.constant 0 : index
    %c0_190 = arith.constant 0 : index
    %240 = vector.load %arg2[%c10_188, %c0_189, %c0_190] : memref<18x128x128xbf16, #tpu.memory_space<vmem>>, vector<1x128x128xbf16>
    %241 = vector.shape_cast %240 : vector<1x128x128xbf16> to vector<128x128xbf16>
    %cst_191 = arith.constant dense<0.000000e+00> : vector<128x128xf32>
    %242 = tpu.matmul %232, %241, %cst_191 {dimension_numbers = #tpu.dot_dimension_numbers<[1], [0], [0], [1], [0, 0, 1, 1], [], []>} : vector<128x128xbf16>, vector<128x128xbf16>, vector<128x128xf32> -> vector<128x128xf32>
    %243 = arith.addf %239, %242 : vector<128x128xf32>
    %c11_192 = arith.constant 11 : index
    %c0_193 = arith.constant 0 : index
    %c0_194 = arith.constant 0 : index
    %244 = vector.load %arg2[%c11_192, %c0_193, %c0_194] : memref<18x128x128xbf16, #tpu.memory_space<vmem>>, vector<1x128x128xbf16>
    %245 = vector.shape_cast %244 : vector<1x128x128xbf16> to vector<128x128xbf16>
    %cst_195 = arith.constant dense<0.000000e+00> : vector<128x128xf32>
    %246 = tpu.matmul %232, %245, %cst_195 {dimension_numbers = #tpu.dot_dimension_numbers<[1], [0], [0], [1], [0, 0, 1, 1], [], []>} : vector<128x128xbf16>, vector<128x128xbf16>, vector<128x128xf32> -> vector<128x128xf32>
    %c127_i32_196 = arith.constant 127 : i32
    %247 = tpu.dynamic_rotate %246 by %c127_i32_196 dim 0 : vector<128x128xf32>, i32 -> vector<128x128xf32>
    %248 = vector.broadcast %230 : vector<128x1xf32> to vector<128x128xf32>
    %249 = arith.mulf %247, %248 : vector<128x128xf32>
    %250 = arith.addf %243, %249 : vector<128x128xf32>
    %c144_197 = arith.constant 144 : index
    %c0_198 = arith.constant 0 : index
    %251 = vector.load %arg8[%c144_197, %c0_198] : memref<288x128xbf16, #tpu.memory_space<vmem>>, vector<128x128xbf16>
    %c12_199 = arith.constant 12 : index
    %c0_200 = arith.constant 0 : index
    %c0_201 = arith.constant 0 : index
    %252 = vector.load %arg2[%c12_199, %c0_200, %c0_201] : memref<18x128x128xbf16, #tpu.memory_space<vmem>>, vector<1x128x128xbf16>
    %253 = vector.shape_cast %252 : vector<1x128x128xbf16> to vector<128x128xbf16>
    %cst_202 = arith.constant dense<0.000000e+00> : vector<128x128xf32>
    %254 = tpu.matmul %251, %253, %cst_202 {dimension_numbers = #tpu.dot_dimension_numbers<[1], [0], [0], [1], [0, 0, 1, 1], [], []>} : vector<128x128xbf16>, vector<128x128xbf16>, vector<128x128xf32> -> vector<128x128xf32>
    %c1_i32_203 = arith.constant 1 : i32
    %255 = tpu.dynamic_rotate %254 by %c1_i32_203 dim 0 : vector<128x128xf32>, i32 -> vector<128x128xf32>
    %256 = vector.broadcast %228 : vector<128x1xf32> to vector<128x128xf32>
    %257 = arith.mulf %255, %256 : vector<128x128xf32>
    %258 = arith.addf %250, %257 : vector<128x128xf32>
    %c13_204 = arith.constant 13 : index
    %c0_205 = arith.constant 0 : index
    %c0_206 = arith.constant 0 : index
    %259 = vector.load %arg2[%c13_204, %c0_205, %c0_206] : memref<18x128x128xbf16, #tpu.memory_space<vmem>>, vector<1x128x128xbf16>
    %260 = vector.shape_cast %259 : vector<1x128x128xbf16> to vector<128x128xbf16>
    %cst_207 = arith.constant dense<0.000000e+00> : vector<128x128xf32>
    %261 = tpu.matmul %251, %260, %cst_207 {dimension_numbers = #tpu.dot_dimension_numbers<[1], [0], [0], [1], [0, 0, 1, 1], [], []>} : vector<128x128xbf16>, vector<128x128xbf16>, vector<128x128xf32> -> vector<128x128xf32>
    %262 = arith.addf %258, %261 : vector<128x128xf32>
    %c14_208 = arith.constant 14 : index
    %c0_209 = arith.constant 0 : index
    %c0_210 = arith.constant 0 : index
    %263 = vector.load %arg2[%c14_208, %c0_209, %c0_210] : memref<18x128x128xbf16, #tpu.memory_space<vmem>>, vector<1x128x128xbf16>
    %264 = vector.shape_cast %263 : vector<1x128x128xbf16> to vector<128x128xbf16>
    %cst_211 = arith.constant dense<0.000000e+00> : vector<128x128xf32>
    %265 = tpu.matmul %251, %264, %cst_211 {dimension_numbers = #tpu.dot_dimension_numbers<[1], [0], [0], [1], [0, 0, 1, 1], [], []>} : vector<128x128xbf16>, vector<128x128xbf16>, vector<128x128xf32> -> vector<128x128xf32>
    %c127_i32_212 = arith.constant 127 : i32
    %266 = tpu.dynamic_rotate %265 by %c127_i32_212 dim 0 : vector<128x128xf32>, i32 -> vector<128x128xf32>
    %267 = vector.broadcast %230 : vector<128x1xf32> to vector<128x128xf32>
    %268 = arith.mulf %266, %267 : vector<128x128xf32>
    %269 = arith.addf %262, %268 : vector<128x128xf32>
    %c160_213 = arith.constant 160 : index
    %c0_214 = arith.constant 0 : index
    %270 = vector.load %arg8[%c160_213, %c0_214] : memref<288x128xbf16, #tpu.memory_space<vmem>>, vector<128x128xbf16>
    %c15_215 = arith.constant 15 : index
    %c0_216 = arith.constant 0 : index
    %c0_217 = arith.constant 0 : index
    %271 = vector.load %arg2[%c15_215, %c0_216, %c0_217] : memref<18x128x128xbf16, #tpu.memory_space<vmem>>, vector<1x128x128xbf16>
    %272 = vector.shape_cast %271 : vector<1x128x128xbf16> to vector<128x128xbf16>
    %cst_218 = arith.constant dense<0.000000e+00> : vector<128x128xf32>
    %273 = tpu.matmul %270, %272, %cst_218 {dimension_numbers = #tpu.dot_dimension_numbers<[1], [0], [0], [1], [0, 0, 1, 1], [], []>} : vector<128x128xbf16>, vector<128x128xbf16>, vector<128x128xf32> -> vector<128x128xf32>
    %c1_i32_219 = arith.constant 1 : i32
    %274 = tpu.dynamic_rotate %273 by %c1_i32_219 dim 0 : vector<128x128xf32>, i32 -> vector<128x128xf32>
    %275 = vector.broadcast %228 : vector<128x1xf32> to vector<128x128xf32>
    %276 = arith.mulf %274, %275 : vector<128x128xf32>
    %277 = arith.addf %269, %276 : vector<128x128xf32>
    %c16_220 = arith.constant 16 : index
    %c0_221 = arith.constant 0 : index
    %c0_222 = arith.constant 0 : index
    %278 = vector.load %arg2[%c16_220, %c0_221, %c0_222] : memref<18x128x128xbf16, #tpu.memory_space<vmem>>, vector<1x128x128xbf16>
    %279 = vector.shape_cast %278 : vector<1x128x128xbf16> to vector<128x128xbf16>
    %cst_223 = arith.constant dense<0.000000e+00> : vector<128x128xf32>
    %280 = tpu.matmul %270, %279, %cst_223 {dimension_numbers = #tpu.dot_dimension_numbers<[1], [0], [0], [1], [0, 0, 1, 1], [], []>} : vector<128x128xbf16>, vector<128x128xbf16>, vector<128x128xf32> -> vector<128x128xf32>
    %281 = arith.addf %277, %280 : vector<128x128xf32>
    %c17_224 = arith.constant 17 : index
    %c0_225 = arith.constant 0 : index
    %c0_226 = arith.constant 0 : index
    %282 = vector.load %arg2[%c17_224, %c0_225, %c0_226] : memref<18x128x128xbf16, #tpu.memory_space<vmem>>, vector<1x128x128xbf16>
    %283 = vector.shape_cast %282 : vector<1x128x128xbf16> to vector<128x128xbf16>
    %cst_227 = arith.constant dense<0.000000e+00> : vector<128x128xf32>
    %284 = tpu.matmul %270, %283, %cst_227 {dimension_numbers = #tpu.dot_dimension_numbers<[1], [0], [0], [1], [0, 0, 1, 1], [], []>} : vector<128x128xbf16>, vector<128x128xbf16>, vector<128x128xf32> -> vector<128x128xf32>
    %c127_i32_228 = arith.constant 127 : i32
    %285 = tpu.dynamic_rotate %284 by %c127_i32_228 dim 0 : vector<128x128xf32>, i32 -> vector<128x128xf32>
    %286 = vector.broadcast %230 : vector<128x1xf32> to vector<128x128xf32>
    %287 = arith.mulf %285, %286 : vector<128x128xf32>
    %288 = arith.addf %281, %287 : vector<128x128xf32>
    %c1_229 = arith.constant 1 : index
    %c0_230 = arith.constant 0 : index
    %c0_231 = arith.constant 0 : index
    %289 = vector.load %arg3[%c1_229, %c0_230, %c0_231] : memref<2x1x128xf32, #tpu.memory_space<vmem>>, vector<1x1x128xf32>
    %290 = vector.shape_cast %289 : vector<1x1x128xf32> to vector<1x128xf32>
    %291 = vector.broadcast %290 : vector<1x128xf32> to vector<128x128xf32>
    %292 = arith.addf %288, %291 : vector<128x128xf32>
    %cst_232 = arith.constant 0.000000e+00 : f32
    %293 = vector.broadcast %cst_232 : f32 to vector<128x128xf32>
    %294 = arith.maximumf %292, %293 : vector<128x128xf32>
    %295 = vector.extract_strided_slice %294 {offsets = [0, 0], sizes = [128, 8], strides = [1, 1]} : vector<128x128xf32> to vector<128x8xf32>
    %296 = arith.truncf %295 : vector<128x8xf32> to vector<128x8xbf16>
    %c0_233 = arith.constant 0 : index
    %c128_234 = arith.constant 128 : index
    %c0_235 = arith.constant 0 : index
    %297 = vector.load %arg5[%c0_233, %c128_234, %c0_235] : memref<1x256x8xbf16, #tpu.memory_space<vmem>>, vector<1x128x8xbf16>
    %298 = vector.shape_cast %297 : vector<1x128x8xbf16> to vector<128x8xbf16>
    %299 = vector.shape_cast %296 : vector<128x8xbf16> to vector<1x128x8xbf16>
    tpu.vector_store %arg5[%c0_233, %c128_234, %c0_235], %299 {strides = array<i32>} : memref<1x256x8xbf16, #tpu.memory_space<vmem>>, vector<1x128x8xbf16>,
    %cst_236 = arith.constant dense<0.000000e+00> : vector<128xf32>
    %300 = vector.multi_reduction <add>, %294, %cst_236 [0] : vector<128x128xf32> to vector<128xf32>
    %301 = vector.shape_cast %300 : vector<128xf32> to vector<1x128xf32>
    %302 = arith.addf %226, %301 : vector<1x128xf32>
    %c0_237 = arith.constant 0 : index
    %c0_238 = arith.constant 0 : index
    %c0_239 = arith.constant 0 : index
    %303 = vector.load %arg6[%c0_237, %c0_238, %c0_239] : memref<1x1x128xf32, #tpu.memory_space<vmem>>, vector<1x1x128xf32>
    %304 = vector.shape_cast %303 : vector<1x1x128xf32> to vector<1x128xf32>
    %305 = vector.shape_cast %302 : vector<1x128xf32> to vector<1x1x128xf32>
    tpu.vector_store %arg6[%c0_237, %c0_238, %c0_239], %305 {strides = array<i32>} : memref<1x1x128xf32, #tpu.memory_space<vmem>>, vector<1x1x128xf32>,
    return
  }
  func.func @transform_0(%arg0: i32) -> (i32, i32, i32) {
    %c0_i32 = arith.constant 0 : i32
    %c0_i32_0 = arith.constant 0 : i32
    %c0_i32_1 = arith.constant 0 : i32
    return %arg0, %c0_i32, %c0_i32_0 : i32, i32, i32
  }
  func.func @transform_1(%arg0: i32) -> (i32, i32, i32) {
    %c0_i32 = arith.constant 0 : i32
    %c0_i32_0 = arith.constant 0 : i32
    %c0_i32_1 = arith.constant 0 : i32
    %c0_i32_2 = arith.constant 0 : i32
    return %c0_i32, %c0_i32_0, %c0_i32_1 : i32, i32, i32
  }
  func.func @transform_2(%arg0: i32) -> (i32, i32, i32) {
    %c0_i32 = arith.constant 0 : i32
    %c0_i32_0 = arith.constant 0 : i32
    %c0_i32_1 = arith.constant 0 : i32
    %c0_i32_2 = arith.constant 0 : i32
    return %c0_i32, %c0_i32_0, %c0_i32_1 : i32, i32, i32
  }
  func.func @transform_3(%arg0: i32) -> (i32, i32, i32) {
    %c0_i32 = arith.constant 0 : i32
    %c0_i32_0 = arith.constant 0 : i32
    %c0_i32_1 = arith.constant 0 : i32
    %c0_i32_2 = arith.constant 0 : i32
    return %c0_i32, %c0_i32_0, %c0_i32_1 : i32, i32, i32
  }
  func.func @transform_4(%arg0: i32) -> (i32, i32, i32) {
    %c0_i32 = arith.constant 0 : i32
    %c0_i32_0 = arith.constant 0 : i32
    %c0_i32_1 = arith.constant 0 : i32
    return %arg0, %c0_i32, %c0_i32_0 : i32, i32, i32
  }
  func.func @transform_5(%arg0: i32) -> (i32, i32, i32) {
    %c0_i32 = arith.constant 0 : i32
    %c0_i32_0 = arith.constant 0 : i32
    %c0_i32_1 = arith.constant 0 : i32
    return %arg0, %c0_i32, %c0_i32_0 : i32, i32, i32
  }
}

</mosaic_0001>

<llo_original>
// kernel: tpu_custom_call.1
$region0: #{tpu_custom_call.1}
  #allocation0 [shape = 'u32[]', space=smem, size = 0x4, offset = 0x4, fixed_abs, tag = 'smem constant byte address 0x4 - core index']
  #allocation1 [shape = 'u32[144,128]{1,0:T(1,128)}', space=vmem, size = 0x12000, scoped, tag = 'internal scratch']
  #allocation2 [shape = 'bf16[288,128]{1,0:T(16,128)(2,1)}', space=vmem, size = 0x12000, scoped, tag = 'scratch operand']
  #allocation3 [shape = 'bf16[288,128]{1,0:T(16,128)(2,1)}', space=vmem, size = 0x12000, scoped, tag = 'scratch operand']
  %s0 = inlined_call_operand.vmem [shape: f32[2,256,4], index: 0, kind: input, shape index: {}]
  %s1 = inlined_call_operand.hbm [shape: bf16[18,128,128], index: 1, kind: input, shape index: {}]
  %s2 = inlined_call_operand.vmem [shape: f32[2,1,128], index: 2, kind: input, shape index: {}]
  %s3 = inlined_call_operand.vmem [shape: f32[2,256,1], index: 3, kind: input, shape index: {}]
  %s4 = inlined_call_operand.vmem [shape: bf16[2,256,8], index: 4, kind: output, shape index: {0}]
  %s5 = inlined_call_operand.hbm [shape: f32[2,1,128], index: 5, kind: output, shape index: {1}]
  %6 = xla_tuple %s4, %s5
  %s7 = sld [smem:[#allocation0]]
  $region61: #{tpu_custom_call.1} parent=0
    _
  %s9 = ssub.s32 1, %s7
  %s10 = scalar_select 0, %s9, %s7
  $region1: #{tpu_custom_call.1} parent=0
    #allocation4 [shape = 'u8[589824]{0}', space=vmem, size = 0x90000, scoped, tag = 'input window, operand 1, single buffered']
    #allocation5 [shape = 's32[2]{0}', space=sflag, size = 0x8, scoped, tag = 'scoped memory for tpu_custom_call.1']
    #allocation6 [shape = 's32[2]{0}', space=sflag, size = 0x8, scoped, tag = 'scoped memory for tpu_custom_call.1']
    #allocation7 [shape = 'u8[1024]{0}', space=vmem, size = 0x400, scoped, tag = 'output window, operand 1']
    %11 = vsyncpa [#allocation5], 0
    %12 = vsyncpa [#allocation6], 0
    %s13 = scalar_lea.sflag [#allocation6], 1
    %14 = vsyncpa %s13, 0
    loop: start=0, step=1, limit=4
    $region2: #{tpu_custom_call.1} parent=1 // loop_pre_header
      _
    $region3: #{tpu_custom_call.1} parent=1 // loop_header
      %s16 = sphi 0, %s20
      %p17 = scmp.ge.s32.totalorder %s16, 4
      %s26 = sphi 0, %s28
      %s29 = sphi 0, %s26
      %s30 = sphi 0, %s29
      %s46 = sphi 0, %s30
      %s50 = sphi 0, %s50
      %s52 = sphi 0, %s50
      %s53 = sphi 0, %s52
      %s67 = sphi 0, %s53
      %s71 = sphi 0, %s71
      %s73 = sphi 0, %s71
      %s74 = sphi 0, %s73
      %s88 = sphi 0, %s74
      %s92 = sphi 0, %s92
      %s94 = sphi 0, %s92
      %s95 = sphi 0, %s94
      %s109 = sphi 0, %s95
      %s115 = sphi 0, %s117
      %s118 = sphi 0, %s115
      %s119 = sphi 0, %s118
      %s135 = sphi 0, %s119
      %s141 = sphi 0, %s143
      %s144 = sphi 0, %s141
      %s145 = sphi 0, %s144
      %s161 = sphi 0, %s145
    $region4: #{tpu_custom_call.1} parent=1 // loop_header_branch
      %19 = sbr.rel (%p17) target = $region8
    $region5: #{tpu_custom_call.1} parent=1 // loop_body
      %s21 = ssub.s32 %s16, 1
      %s22 = ssub.s32 %s16, 2
      %s23 = sadd.s32 %s16, 1
      %s24 = ssub.s32 %s16, %s23
      %p25 = scmp.eq.s32.totalorder %s24, 0
      %s27 = sadd.s32 %s26, 1
      %s28 = scalar_select %p25, %s26, %s27
      %p31 = pneg %p25
      %p32 = scmp.eq.s32.totalorder %s16, 1
      %p33 = por %p31, %p32
      %p34 = scmp.ne.s32.totalorder %s26, %s29
      %p35 = scmp.eq.s32.totalorder %s16, 0
      %p36 = por %p34, %p35
      %p37 = scmp.ne.s32.totalorder %s26, %s29
      %p38 = scmp.eq.s32.totalorder %s21, 1
      %p39 = por %p37, %p38
      %p40 = scmp.ne.s32.totalorder %s29, %s30
      %p41 = scmp.eq.s32.totalorder %s21, 0
      %p42 = por %p40, %p41
      %p43 = scmp.ne.s32.totalorder %s29, %s30
      %p44 = scmp.eq.s32.totalorder %s22, 1
      %p45 = por %p43, %p44
      %p47 = scmp.ne.s32.totalorder %s30, %s46
      %p48 = scmp.eq.s32.totalorder %s22, 0
      %p49 = por %p47, %p48
      %s51 = sadd.s32 %s50, 1
      %p54 = scmp.eq.s32.totalorder %s16, 1
      %p55 = scmp.ne.s32.totalorder %s50, %s52
      %p56 = scmp.eq.s32.totalorder %s16, 0
      %p57 = por %p55, %p56
      %p58 = scmp.ne.s32.totalorder %s50, %s52
      %p59 = scmp.eq.s32.totalorder %s21, 1
      %p60 = por %p58, %p59
      %p61 = scmp.ne.s32.totalorder %s52, %s53
      %p62 = scmp.eq.s32.totalorder %s21, 0
      %p63 = por %p61, %p62
      %p64 = scmp.ne.s32.totalorder %s52, %s53
      %p65 = scmp.eq.s32.totalorder %s22, 1
      %p66 = por %p64, %p65
      %p68 = scmp.ne.s32.totalorder %s53, %s67
      %p69 = scmp.eq.s32.totalorder %s22, 0
      %p70 = por %p68, %p69
      %s72 = sadd.s32 %s71, 1
      %p75 = scmp.eq.s32.totalorder %s16, 1
      %p76 = scmp.ne.s32.totalorder %s71, %s73
      %p77 = scmp.eq.s32.totalorder %s16, 0
      %p78 = por %p76, %p77
      %p79 = scmp.ne.s32.totalorder %s71, %s73
      %p80 = scmp.eq.s32.totalorder %s21, 1
      %p81 = por %p79, %p80
      %p82 = scmp.ne.s32.totalorder %s73, %s74
      %p83 = scmp.eq.s32.totalorder %s21, 0
      %p84 = por %p82, %p83
      %p85 = scmp.ne.s32.totalorder %s73, %s74
      %p86 = scmp.eq.s32.totalorder %s22, 1
      %p87 = por %p85, %p86
      %p89 = scmp.ne.s32.totalorder %s74, %s88
      %p90 = scmp.eq.s32.totalorder %s22, 0
      %p91 = por %p89, %p90
      %s93 = sadd.s32 %s92, 1
      %p96 = scmp.eq.s32.totalorder %s16, 1
      %p97 = scmp.ne.s32.totalorder %s92, %s94
      %p98 = scmp.eq.s32.totalorder %s16, 0
      %p99 = por %p97, %p98
      %p100 = scmp.ne.s32.totalorder %s92, %s94
      %p101 = scmp.eq.s32.totalorder %s21, 1
      %p102 = por %p100, %p101
      %p103 = scmp.ne.s32.totalorder %s94, %s95
      %p104 = scmp.eq.s32.totalorder %s21, 0
      %p105 = por %p103, %p104
      %p106 = scmp.ne.s32.totalorder %s94, %s95
      %p107 = scmp.eq.s32.totalorder %s22, 1
      %p108 = por %p106, %p107
      %p110 = scmp.ne.s32.totalorder %s95, %s109
      %p111 = scmp.eq.s32.totalorder %s22, 0
      %p112 = por %p110, %p111
      %s113 = ssub.s32 %s16, %s23
      %p114 = scmp.eq.s32.totalorder %s113, 0
      %s116 = sadd.s32 %s115, 1
      %s117 = scalar_select %p114, %s115, %s116
      %p120 = pneg %p114
      %p121 = scmp.eq.s32.totalorder %s16, 1
      %p122 = por %p120, %p121
      %p123 = scmp.ne.s32.totalorder %s115, %s118
      %p124 = scmp.eq.s32.totalorder %s16, 0
      %p125 = por %p123, %p124
      %p126 = scmp.ne.s32.totalorder %s115, %s118
      %p127 = scmp.eq.s32.totalorder %s21, 1
      %p128 = por %p126, %p127
      %p129 = scmp.ne.s32.totalorder %s118, %s119
      %p130 = scmp.eq.s32.totalorder %s21, 0
      %p131 = por %p129, %p130
      %p132 = scmp.ne.s32.totalorder %s118, %s119
      %p133 = scmp.eq.s32.totalorder %s22, 1
      %p134 = por %p132, %p133
      %p136 = scmp.ne.s32.totalorder %s119, %s135
      %p137 = scmp.eq.s32.totalorder %s22, 0
      %p138 = por %p136, %p137
      %s139 = ssub.s32 %s16, %s23
      %p140 = scmp.eq.s32.totalorder %s139, 0
      %s142 = sadd.s32 %s141, 1
      %s143 = scalar_select %p140, %s141, %s142
      %p146 = pneg %p140
      %p147 = scmp.eq.s32.totalorder %s16, 1
      %p148 = por %p146, %p147
      %p149 = scmp.ne.s32.totalorder %s141, %s144
      %p150 = scmp.eq.s32.totalorder %s16, 0
      %p151 = por %p149, %p150
      %p152 = scmp.ne.s32.totalorder %s141, %s144
      %p153 = scmp.eq.s32.totalorder %s21, 1
      %p154 = por %p152, %p153
      %p155 = scmp.ne.s32.totalorder %s144, %s145
      %p156 = scmp.eq.s32.totalorder %s21, 0
      %p157 = por %p155, %p156
      %p158 = scmp.ne.s32.totalorder %s144, %s145
      %p159 = scmp.eq.s32.totalorder %s22, 1
      %p160 = por %p158, %p159
      %p162 = scmp.ne.s32.totalorder %s145, %s161
      %p163 = scmp.eq.s32.totalorder %s22, 0
      %p164 = por %p162, %p163
      %p165 = scmp.le.s32.totalorder 1, %s16
      %p166 = scmp.lt.s32.totalorder %s16, 3
      %p167 = pnand %p165, %p166
      %p168 = pneg %p167
      // Predicated region
      $region9: #{tpu_custom_call.1} parent=5 // pred_check
        _
      $region10: #{tpu_custom_call.1} parent=5 // pred_check_branch
        %170 = sbr.rel (%p167) target = $region12
      $region11: #{tpu_custom_call.1} parent=5 // pred_region
        %s171 = ssub.s32 %s16, 1
        // Predicated region
        $region13: #{tpu_custom_call.1} parent=11 // pred_check
          %p172 = pneg %p63
        $region14: #{tpu_custom_call.1} parent=11 // pred_check_branch
          %174 = sbr.rel (%p172) target = $region16
        $region15: #{tpu_custom_call.1} parent=11 // pred_region
          %s176 = ssub.s32 18432, 18432
          %177 = vsyncadd [#allocation5], %s176
          %s178 = sshll.u32 [#allocation4], 4
          %s179 = int_to_ptr.vmem [resolvable:$true] %s178
          %184 = dma.hbm_to_vmem [thread:$0]  %s1, 18432, %s179, [#allocation5], 64, 64, 4
        $region16: #{tpu_custom_call.1} parent=11 // pred_fallthru
          _
        // Predicated region
        $region17: #{tpu_custom_call.1} parent=11 // pred_check
          %p185 = pneg %p84
        $region18: #{tpu_custom_call.1} parent=11 // pred_check_branch
          %187 = sbr.rel (%p185) target = $region20
        $region19: #{tpu_custom_call.1} parent=11 // pred_region
          _
        $region20: #{tpu_custom_call.1} parent=11 // pred_fallthru
          _
        // Predicated region
        $region21: #{tpu_custom_call.1} parent=11 // pred_check
          %p188 = pneg %p105
        $region22: #{tpu_custom_call.1} parent=11 // pred_check_branch
          %190 = sbr.rel (%p188) target = $region24
        $region23: #{tpu_custom_call.1} parent=11 // pred_region
          _
        $region24: #{tpu_custom_call.1} parent=11 // pred_fallthru
          _
      $region12: #{tpu_custom_call.1} parent=5 // pred_fallthru
        _
      %p191 = scmp.lt.s32.totalorder %s16, 2
      // Predicated region
      $region25: #{tpu_custom_call.1} parent=5 // pred_check
        %p192 = pneg %p191
      $region26: #{tpu_custom_call.1} parent=5 // pred_check_branch
        %194 = sbr.rel (%p192) target = $region28
      $region27: #{tpu_custom_call.1} parent=5 // pred_region
        // Predicated region
        $region29: #{tpu_custom_call.1} parent=27 // pred_check
          %p195 = pneg %p36
        $region30: #{tpu_custom_call.1} parent=27 // pred_check_branch
          %197 = sbr.rel (%p195) target = $region32
        $region31: #{tpu_custom_call.1} parent=27 // pred_region
          %p198 = scmp.lt.s32.totalorder %s16, 1
          %s199 = scalar_select %p198, %s16, 1
          %s200 = smul.addr %s199, 32
          %s201 = smul.addr %s200, 8
          %s202 = scalar_lea.vmem %s0, %s201
        $region32: #{tpu_custom_call.1} parent=27 // pred_fallthru
          _
      $region28: #{tpu_custom_call.1} parent=5 // pred_fallthru
        _
      %p203 = scmp.le.s32.totalorder 1, %s16
      %p204 = scmp.lt.s32.totalorder %s16, 3
      %p205 = pnand %p203, %p204
      %p206 = pneg %p205
      // Predicated region
      $region33: #{tpu_custom_call.1} parent=5 // pred_check
        _
      $region34: #{tpu_custom_call.1} parent=5 // pred_check_branch
        %208 = sbr.rel (%p205) target = $region36
      $region35: #{tpu_custom_call.1} parent=5 // pred_region
        %s209 = ssub.s32 %s16, 1
        // Predicated region
        $region37: #{tpu_custom_call.1} parent=35 // pred_check
          %p210 = pneg %p63
        $region38: #{tpu_custom_call.1} parent=35 // pred_check_branch
          %212 = sbr.rel (%p210) target = $region40
        $region39: #{tpu_custom_call.1} parent=35 // pred_region
          %213 = dma.done [#allocation5], 18432
        $region40: #{tpu_custom_call.1} parent=35 // pred_fallthru
          _
        %p214 = scmp.lt.s32.totalorder %s21, 1
        %s215 = scalar_select %p214, %s21, 1
        %s216 = smul.addr %s215, 32
        %s217 = smul.addr %s216, 8
        %s218 = scalar_lea.vmem %s0, %s217
        %p219 = pneg %p42
        %p220 = pneg %p39
        %p221 = pneg %p63
        %p222 = pneg %p60
        %p223 = pneg %p84
        %p224 = pneg %p81
        %p225 = pneg %p105
        %p226 = pneg %p102
        %p227 = pneg %p131
        %p228 = pneg %p128
        %p229 = scmp.lt.s32.totalorder %s21, 1
        %s230 = scalar_select %p229, %s21, 1
        %s231 = smul.addr %s230, 32
        %s232 = smul.addr %s231, 4
        %s233 = scalar_lea.vmem %s4, %s232
        %p234 = pneg %p157
        %p235 = pneg %p154
        %s236 = sand.u32 %s144, 1
        %s237 = scalar_lea.sflag [#allocation6], %s236
        %s238 = sand.u32 %s144, 1
        %s239 = scalar_lea.vmem [#allocation7], %s238
        %p240 = scmp.lt.s32.totalorder %s21, 1
        %s241 = scalar_select %p240, %s21, 1
        %s242 = smul.addr %s241, 32
        %s243 = smul.addr %s242, 8
        %s244 = scalar_lea.vmem %s0, %s243
        %p245 = scmp.lt.s32.totalorder %s21, 1
        %s246 = scalar_select %p245, %s21, 1
        %s247 = smul.addr %s246, 32
        %s248 = smul.addr %s247, 4
        %s249 = scalar_lea.vmem %s4, %s248
        %251 = vst [vmem:[#allocation2] sm:$0xff] 0
        %252 = vst [vmem:[#allocation2 + $0x8] sm:$0xff] 0
        %253 = vst [vmem:[#allocation2 + $0x10] sm:$0xff] 0
        %254 = vst [vmem:[#allocation2 + $0x18] sm:$0xff] 0
        %255 = vst [vmem:[#allocation2 + $0x20] sm:$0xff] 0
        %256 = vst [vmem:[#allocation2 + $0x28] sm:$0xff] 0
        %257 = vst [vmem:[#allocation2 + $0x30] sm:$0xff] 0
        %258 = vst [vmem:[#allocation2 + $0x38] sm:$0xff] 0
        %259 = vst [vmem:[#allocation2 + $0x40] sm:$0xff] 0
        %260 = vst [vmem:[#allocation2 + $0x48] sm:$0xff] 0
        %261 = vst [vmem:[#allocation2 + $0x50] sm:$0xff] 0
        %262 = vst [vmem:[#allocation2 + $0x58] sm:$0xff] 0
        %263 = vst [vmem:[#allocation2 + $0x60] sm:$0xff] 0
        %264 = vst [vmem:[#allocation2 + $0x68] sm:$0xff] 0
        %265 = vst [vmem:[#allocation2 + $0x70] sm:$0xff] 0
        %266 = vst [vmem:[#allocation2 + $0x78] sm:$0xff] 0
        %267 = vst [vmem:[#allocation2 + $0x80] sm:$0xff] 0
        %268 = vst [vmem:[#allocation2 + $0x88] sm:$0xff] 0
        %v269 = vld [vmem:[%s244] sm:$0xff]
        %v270 = vld [vmem:[%s244 + $0x8] sm:$0xff]
        %v271 = vld [vmem:[%s244 + $0x10] sm:$0xff]
        %v272 = vld [vmem:[%s244 + $0x18] sm:$0xff]
        %v273 = vld [vmem:[%s244 + $0x20] sm:$0xff]
        %v274 = vld [vmem:[%s244 + $0x28] sm:$0xff]
        %v275 = vld [vmem:[%s244 + $0x30] sm:$0xff]
        %v276 = vld [vmem:[%s244 + $0x38] sm:$0xff]
        %v277 = vld [vmem:[%s244 + $0x40] sm:$0xff]
        %v278 = vld [vmem:[%s244 + $0x48] sm:$0xff]
        %v279 = vld [vmem:[%s244 + $0x50] sm:$0xff]
        %v280 = vld [vmem:[%s244 + $0x58] sm:$0xff]
        %v281 = vld [vmem:[%s244 + $0x60] sm:$0xff]
        %v282 = vld [vmem:[%s244 + $0x68] sm:$0xff]
        %v283 = vld [vmem:[%s244 + $0x70] sm:$0xff]
        %v284 = vld [vmem:[%s244 + $0x78] sm:$0xff]
        %v285 = vld [vmem:[%s244 + $0x80] sm:$0xff]
        %v286 = vld [vmem:[%s244 + $0x88] sm:$0xff]
        %v287 = vld [vmem:[%s244 + $0x90] sm:$0xff]
        %v288 = vld [vmem:[%s244 + $0x98] sm:$0xff]
        %v289 = vld [vmem:[%s244 + $0xa0] sm:$0xff]
        %v290 = vld [vmem:[%s244 + $0xa8] sm:$0xff]
        %v291 = vld [vmem:[%s244 + $0xb0] sm:$0xff]
        %v292 = vld [vmem:[%s244 + $0xb8] sm:$0xff]
        %v293 = vld [vmem:[%s244 + $0xc0] sm:$0xff]
        %v294 = vld [vmem:[%s244 + $0xc8] sm:$0xff]
        %v295 = vld [vmem:[%s244 + $0xd0] sm:$0xff]
        %v296 = vld [vmem:[%s244 + $0xd8] sm:$0xff]
        %v297 = vld [vmem:[%s244 + $0xe0] sm:$0xff]
        %v298 = vld [vmem:[%s244 + $0xe8] sm:$0xff]
        %v299 = vld [vmem:[%s244 + $0xf0] sm:$0xff]
        %v300 = vld [vmem:[%s244 + $0xf8] sm:$0xff]
        %v301 = vpack.c.bf16 %v270, %v269
        %v302 = vpack.c.bf16 %v272, %v271
        %v303 = vpack.c.bf16 %v274, %v273
        %v304 = vpack.c.bf16 %v276, %v275
        %v305 = vpack.c.bf16 %v278, %v277
        %v306 = vpack.c.bf16 %v280, %v279
        %v307 = vpack.c.bf16 %v282, %v281
        %v308 = vpack.c.bf16 %v284, %v283
        %v309 = vpack.c.bf16 %v286, %v285
        %v310 = vpack.c.bf16 %v288, %v287
        %v311 = vpack.c.bf16 %v290, %v289
        %v312 = vpack.c.bf16 %v292, %v291
        %v313 = vpack.c.bf16 %v294, %v293
        %v314 = vpack.c.bf16 %v296, %v295
        %v315 = vpack.c.bf16 %v298, %v297
        %v316 = vpack.c.bf16 %v300, %v299
        %vm317 = vcmask 31744
        %318 = vst.msk [vmem:[#allocation2 + $0x8] sm:$0xff] %vm317, %v301
        %319 = vst.msk [vmem:[#allocation2 + $0x10] sm:$0xff] %vm317, %v302
        %320 = vst.msk [vmem:[#allocation2 + $0x18] sm:$0xff] %vm317, %v303
        %321 = vst.msk [vmem:[#allocation2 + $0x20] sm:$0xff] %vm317, %v304
        %322 = vst.msk [vmem:[#allocation2 + $0x28] sm:$0xff] %vm317, %v305
        %323 = vst.msk [vmem:[#allocation2 + $0x30] sm:$0xff] %vm317, %v306
        %324 = vst.msk [vmem:[#allocation2 + $0x38] sm:$0xff] %vm317, %v307
        %325 = vst.msk [vmem:[#allocation2 + $0x40] sm:$0xff] %vm317, %v308
        %326 = vst.msk [vmem:[#allocation2 + $0x48] sm:$0xff] %vm317, %v309
        %327 = vst.msk [vmem:[#allocation2 + $0x50] sm:$0xff] %vm317, %v310
        %328 = vst.msk [vmem:[#allocation2 + $0x58] sm:$0xff] %vm317, %v311
        %329 = vst.msk [vmem:[#allocation2 + $0x60] sm:$0xff] %vm317, %v312
        %330 = vst.msk [vmem:[#allocation2 + $0x68] sm:$0xff] %vm317, %v313
        %331 = vst.msk [vmem:[#allocation2 + $0x70] sm:$0xff] %vm317, %v314
        %332 = vst.msk [vmem:[#allocation2 + $0x78] sm:$0xff] %vm317, %v315
        %333 = vst.msk [vmem:[#allocation2 + $0x80] sm:$0xff] %vm317, %v316
        %334 = vst [vmem:[#allocation3] sm:$0xff] 0
        %335 = vst [vmem:[#allocation3 + $0x88] sm:$0xff] 0
        %v336 = vld [vmem:[%s3] sm:$0xff]
        %v337 = vld [vmem:[%s3 + $0x8] sm:$0xff]
        %v338 = vld [vmem:[%s3 + $0x10] sm:$0xff]
        %v339 = vld [vmem:[%s3 + $0x18] sm:$0xff]
        %v340 = vld [vmem:[%s3 + $0x20] sm:$0xff]
        %v341 = vld [vmem:[%s3 + $0x28] sm:$0xff]
        %v342 = vld [vmem:[%s3 + $0x30] sm:$0xff]
        %v343 = vld [vmem:[%s3 + $0x38] sm:$0xff]
        %v344 = vld [vmem:[%s3 + $0x40] sm:$0xff]
        %v345 = vld [vmem:[%s3 + $0x48] sm:$0xff]
        %v346 = vld [vmem:[%s3 + $0x50] sm:$0xff]
        %v347 = vld [vmem:[%s3 + $0x58] sm:$0xff]
        %v348 = vld [vmem:[%s3 + $0x60] sm:$0xff]
        %v349 = vld [vmem:[%s3 + $0x68] sm:$0xff]
        %v350 = vld [vmem:[%s3 + $0x70] sm:$0xff]
        %v351 = vld [vmem:[%s3 + $0x78] sm:$0xff]
        %s352 = scalar_lea.vmem %s3, 256
        %v353 = vld [vmem:[%s352] sm:$0xff]
        %v354 = vld [vmem:[%s352 + $0x8] sm:$0xff]
        %v355 = vld [vmem:[%s352 + $0x10] sm:$0xff]
        %v356 = vld [vmem:[%s352 + $0x18] sm:$0xff]
        %v357 = vld [vmem:[%s352 + $0x20] sm:$0xff]
        %v358 = vld [vmem:[%s352 + $0x28] sm:$0xff]
        %v359 = vld [vmem:[%s352 + $0x30] sm:$0xff]
        %v360 = vld [vmem:[%s352 + $0x38] sm:$0xff]
        %v361 = vld [vmem:[%s352 + $0x40] sm:$0xff]
        %v362 = vld [vmem:[%s352 + $0x48] sm:$0xff]
        %v363 = vld [vmem:[%s352 + $0x50] sm:$0xff]
        %v364 = vld [vmem:[%s352 + $0x58] sm:$0xff]
        %v365 = vld [vmem:[%s352 + $0x60] sm:$0xff]
        %v366 = vld [vmem:[%s352 + $0x68] sm:$0xff]
        %v367 = vld [vmem:[%s352 + $0x70] sm:$0xff]
        %v368 = vld [vmem:[%s352 + $0x78] sm:$0xff]
        %v369 = vld [vmem:[#allocation2] sm:$0xff]
        %v370 = vld [vmem:[#allocation2 + $0x8] sm:$0xff]
        %v371 = vld [vmem:[#allocation2 + $0x10] sm:$0xff]
        %v372 = vld [vmem:[#allocation2 + $0x18] sm:$0xff]
        %v373 = vld [vmem:[#allocation2 + $0x20] sm:$0xff]
        %v374 = vld [vmem:[#allocation2 + $0x28] sm:$0xff]
        %v375 = vld [vmem:[#allocation2 + $0x30] sm:$0xff]
        %v376 = vld [vmem:[#allocation2 + $0x38] sm:$0xff]
        %v377 = vld [vmem:[#allocation4] sm:$0xf]
        %v378 = vld [vmem:[#allocation4 + $0x4] sm:$0xf]
        %v379 = vld [vmem:[#allocation4 + $0x8] sm:$0xf]
        %v380 = vld [vmem:[#allocation4 + $0xc] sm:$0xf]
        %v381 = vld [vmem:[#allocation4 + $0x10] sm:$0xf]
        %v382 = vld [vmem:[#allocation4 + $0x14] sm:$0xf]
        %v383 = vld [vmem:[#allocation4 + $0x18] sm:$0xf]
        %v384 = vld [vmem:[#allocation4 + $0x1c] sm:$0xf]
        %v385 = vld [vmem:[#allocation4 + $0x20] sm:$0xf]
        %v386 = vld [vmem:[#allocation4 + $0x24] sm:$0xf]
        %v387 = vld [vmem:[#allocation4 + $0x28] sm:$0xf]
        %v388 = vld [vmem:[#allocation4 + $0x2c] sm:$0xf]
        %v389 = vld [vmem:[#allocation4 + $0x30] sm:$0xf]
        %v390 = vld [vmem:[#allocation4 + $0x34] sm:$0xf]
        %v391 = vld [vmem:[#allocation4 + $0x38] sm:$0xf]
        %v392 = vld [vmem:[#allocation4 + $0x3c] sm:$0xf]
        %v409 = vunpack.c.l.b16 %v377
        %v410 = vunpack.c.l.b16 %v378
        %v411 = vunpack.c.l.b16 %v379
        %v412 = vunpack.c.l.b16 %v380
        %v413 = vunpack.c.l.b16 %v381
        %v414 = vunpack.c.l.b16 %v382
        %v415 = vunpack.c.l.b16 %v383
        %v416 = vunpack.c.l.b16 %v384
        %v417 = vunpack.c.l.b16 %v385
        %v418 = vunpack.c.l.b16 %v386
        %v419 = vunpack.c.l.b16 %v387
        %v420 = vunpack.c.l.b16 %v388
        %v421 = vunpack.c.l.b16 %v389
        %v422 = vunpack.c.l.b16 %v390
        %v423 = vunpack.c.l.b16 %v391
        %v424 = vunpack.c.l.b16 %v392
        %v425 = vpack.c.b16 %v410, %v409
        %v426 = vpack.c.b16 %v412, %v411
        %v427 = vpack.c.b16 %v414, %v413
        %v428 = vpack.c.b16 %v416, %v415
        %v429 = vpack.c.b16 %v418, %v417
        %v430 = vpack.c.b16 %v420, %v419
        %v431 = vpack.c.b16 %v422, %v421
        %v432 = vpack.c.b16 %v424, %v423
        %441 = vmatprep.subr.bf16.mxu0 0
        %442 = vmatpush1.bf16.msra.mxu0 %v425
        %443 = vmatprep.subr.bf16.mxu0 0
        %444 = vmatpush1.bf16.msra.mxu0 %v426
        %445 = vmatprep.subr.bf16.mxu0 0
        %446 = vmatpush1.bf16.msra.mxu0 %v427
        %447 = vmatprep.subr.bf16.mxu0 0
        %448 = vmatpush1.bf16.msra.mxu0 %v428
        %449 = vmatprep.subr.bf16.mxu0 0
        %450 = vmatpush1.bf16.msra.mxu0 %v429
        %451 = vmatprep.subr.bf16.mxu0 0
        %452 = vmatpush1.bf16.msra.mxu0 %v430
        %453 = vmatprep.subr.bf16.mxu0 0
        %454 = vmatpush1.bf16.msra.mxu0 %v431
        %455 = vmatprep.subr.bf16.mxu0 0
        %456 = vmatpush1.bf16.msra.mxu0 %v432
        %457 = vmatprep.subr.bf16.mxu0 0
        %458 = vmatpush1.bf16.msra.mxu0 0
        %459 = vmatprep.subr.bf16.mxu0 0
        %460 = vmatpush1.bf16.msra.mxu0 0
        %461 = vmatprep.subr.bf16.mxu0 0
        %462 = vmatpush1.bf16.msra.mxu0 0
        %463 = vmatprep.subr.bf16.mxu0 0
        %464 = vmatpush1.bf16.msra.mxu0 0
        %465 = vmatprep.subr.bf16.mxu0 0
        %466 = vmatpush1.bf16.msra.mxu0 0
        %467 = vmatprep.subr.bf16.mxu0 0
        %468 = vmatpush1.bf16.msra.mxu0 0
        %469 = vmatprep.subr.bf16.mxu0 0
        %470 = vmatpush1.bf16.msra.mxu0 0
        %471 = vmatprep.subr.bf16.mxu0 0
        %472 = vmatpush1.bf16.msra.mxu0 0
        %473 = vmatprep.mubr.bf16.mxu0 0
        %474 = vmatmul.mubr.bf16.gmra.mrb[0].mxu0 %v369
        %v475 = vpop.f32.mrb[0].mxu0
        %v476 = vadd.f32 0.0, %v475
        %v477 = vpop.f32.mrb[0].mxu0
        %v478 = vpop.f32.mrb[0].mxu0
        %v479 = vadd.f32 0.0, %v478
        %v480 = vpop.f32.mrb[0].mxu0
        %481 = vmatprep.mubr.bf16.mxu0 0
        %482 = vmatmul.mubr.bf16.gmra.mrb[0].mxu0 %v370
        %v483 = vpop.f32.mrb[0].mxu0
        %v484 = vadd.f32 0.0, %v483
        %v485 = vpop.f32.mrb[0].mxu0
        %v486 = vpop.f32.mrb[0].mxu0
        %v487 = vadd.f32 0.0, %v486
        %v488 = vpop.f32.mrb[0].mxu0
        %489 = vmatprep.mubr.bf16.mxu0 0
        %490 = vmatmul.mubr.bf16.gmra.mrb[0].mxu0 %v371
        %v491 = vpop.f32.mrb[0].mxu0
        %v492 = vadd.f32 0.0, %v491
        %v493 = vpop.f32.mrb[0].mxu0
        %v494 = vpop.f32.mrb[0].mxu0
        %v495 = vadd.f32 0.0, %v494
        %v496 = vpop.f32.mrb[0].mxu0
        %497 = vmatprep.mubr.bf16.mxu0 0
        %498 = vmatmul.mubr.bf16.gmra.mrb[0].mxu0 %v372
        %v499 = vpop.f32.mrb[0].mxu0
        %v500 = vadd.f32 0.0, %v499
        %v501 = vpop.f32.mrb[0].mxu0
        %v502 = vpop.f32.mrb[0].mxu0
        %v503 = vadd.f32 0.0, %v502
        %v504 = vpop.f32.mrb[0].mxu0
        %505 = vmatprep.mubr.bf16.mxu0 0
        %506 = vmatmul.mubr.bf16.gmra.mrb[0].mxu0 %v373
        %v507 = vpop.f32.mrb[0].mxu0
        %v508 = vadd.f32 0.0, %v507
        %v509 = vpop.f32.mrb[0].mxu0
        %v510 = vpop.f32.mrb[0].mxu0
        %v511 = vadd.f32 0.0, %v510
        %v512 = vpop.f32.mrb[0].mxu0
        %513 = vmatprep.mubr.bf16.mxu0 0
        %514 = vmatmul.mubr.bf16.gmra.mrb[0].mxu0 %v374
        %v515 = vpop.f32.mrb[0].mxu0
        %v516 = vadd.f32 0.0, %v515
        %v517 = vpop.f32.mrb[0].mxu0
        %v518 = vpop.f32.mrb[0].mxu0
        %v519 = vadd.f32 0.0, %v518
        %v520 = vpop.f32.mrb[0].mxu0
        %521 = vmatprep.mubr.bf16.mxu0 0
        %522 = vmatmul.mubr.bf16.gmra.mrb[0].mxu0 %v375
        %v523 = vpop.f32.mrb[0].mxu0
        %v524 = vadd.f32 0.0, %v523
        %v525 = vpop.f32.mrb[0].mxu0
        %v526 = vpop.f32.mrb[0].mxu0
        %v527 = vadd.f32 0.0, %v526
        %v528 = vpop.f32.mrb[0].mxu0
        %529 = vmatprep.mubr.bf16.mxu0 0
        %530 = vmatmul.mubr.bf16.gmra.mrb[0].mxu0 %v376
        %v531 = vpop.f32.mrb[0].mxu0
        %v532 = vadd.f32 0.0, %v531
        %v533 = vpop.f32.mrb[0].mxu0
        %v534 = vpop.f32.mrb[0].mxu0
        %v535 = vadd.f32 0.0, %v534
        %v536 = vpop.f32.mrb[0].mxu0
        %537 = vdwg.mxu0
        %v538 = vrot.slane %v476, 7
        %v539 = vrot.slane %v479, 7
        %v540 = vrot.slane %v484, 7
        %v541 = vrot.slane %v487, 7
        %v542 = vrot.slane %v492, 7
        %v543 = vrot.slane %v495, 7
        %v544 = vrot.slane %v500, 7
        %v545 = vrot.slane %v503, 7
        %v546 = vrot.slane %v508, 7
        %v547 = vrot.slane %v511, 7
        %v548 = vrot.slane %v516, 7
        %v549 = vrot.slane %v519, 7
        %v550 = vrot.slane %v524, 7
        %v551 = vrot.slane %v527, 7
        %v552 = vrot.slane %v532, 7
        %v553 = vrot.slane %v535, 7
        %v554 = vlaneseq
        %v555 = vshrl.u32 %v554, 7
        %vm556 = vcmp.lt.s32.totalorder %v555, 1
        %v557 = vsel %vm556, %v552, %v553
        %v558 = vsel %vm556, %v551, %v552
        %v559 = vsel %vm556, %v550, %v551
        %v560 = vsel %vm556, %v549, %v550
        %v561 = vsel %vm556, %v548, %v549
        %v562 = vsel %vm556, %v547, %v548
        %v563 = vsel %vm556, %v546, %v547
        %v564 = vsel %vm556, %v545, %v546
        %v565 = vsel %vm556, %v544, %v545
        %v566 = vsel %vm556, %v543, %v544
        %v567 = vsel %vm556, %v542, %v543
        %v568 = vsel %vm556, %v541, %v542
        %v569 = vsel %vm556, %v540, %v541
        %v570 = vsel %vm556, %v539, %v540
        %v571 = vsel %vm556, %v538, %v539
        %v572 = vsel %vm556, %v553, %v538
        %574 = vset.pattern.permute.xlu0 0
        %575 = vperm.xlu0 %574, %v336
        %v576 = vpop.permute.xlu0 %575
        %579 = vset.pattern.permute.xlu0 0
        %580 = vperm.xlu0 %579, %v337
        %v581 = vpop.permute.xlu0 %580
        %584 = vset.pattern.permute.xlu0 0
        %585 = vperm.xlu0 %584, %v338
        %v586 = vpop.permute.xlu0 %585
        %589 = vset.pattern.permute.xlu0 0
        %590 = vperm.xlu0 %589, %v339
        %v591 = vpop.permute.xlu0 %590
        %594 = vset.pattern.permute.xlu0 0
        %595 = vperm.xlu0 %594, %v340
        %v596 = vpop.permute.xlu0 %595
        %599 = vset.pattern.permute.xlu0 0
        %600 = vperm.xlu0 %599, %v341
        %v601 = vpop.permute.xlu0 %600
        %604 = vset.pattern.permute.xlu0 0
        %605 = vperm.xlu0 %604, %v342
        %v606 = vpop.permute.xlu0 %605
        %609 = vset.pattern.permute.xlu0 0
        %610 = vperm.xlu0 %609, %v343
        %v611 = vpop.permute.xlu0 %610
        %614 = vset.pattern.permute.xlu0 0
        %615 = vperm.xlu0 %614, %v344
        %v616 = vpop.permute.xlu0 %615
        %619 = vset.pattern.permute.xlu0 0
        %620 = vperm.xlu0 %619, %v345
        %v621 = vpop.permute.xlu0 %620
        %624 = vset.pattern.permute.xlu0 0
        %625 = vperm.xlu0 %624, %v346
        %v626 = vpop.permute.xlu0 %625
        %629 = vset.pattern.permute.xlu0 0
        %630 = vperm.xlu0 %629, %v347
        %v631 = vpop.permute.xlu0 %630
        %634 = vset.pattern.permute.xlu0 0
        %635 = vperm.xlu0 %634, %v348
        %v636 = vpop.permute.xlu0 %635
        %639 = vset.pattern.permute.xlu0 0
        %640 = vperm.xlu0 %639, %v349
        %v641 = vpop.permute.xlu0 %640
        %644 = vset.pattern.permute.xlu0 0
        %645 = vperm.xlu0 %644, %v350
        %v646 = vpop.permute.xlu0 %645
        %649 = vset.pattern.permute.xlu0 0
        %650 = vperm.xlu0 %649, %v351
        %v651 = vpop.permute.xlu0 %650
        %v653 = vmul.f32 %v572, %v576
        %v654 = vmul.f32 %v571, %v581
        %v655 = vmul.f32 %v570, %v586
        %v656 = vmul.f32 %v569, %v591
        %v657 = vmul.f32 %v568, %v596
        %v658 = vmul.f32 %v567, %v601
        %v659 = vmul.f32 %v566, %v606
        %v660 = vmul.f32 %v565, %v611
        %v661 = vmul.f32 %v564, %v616
        %v662 = vmul.f32 %v563, %v621
        %v663 = vmul.f32 %v562, %v626
        %v664 = vmul.f32 %v561, %v631
        %v665 = vmul.f32 %v560, %v636
        %v666 = vmul.f32 %v559, %v641
        %v667 = vmul.f32 %v558, %v646
        %v668 = vmul.f32 %v557, %v651
        %v669 = vadd.f32 %v653, 0.0
        %v670 = vadd.f32 %v654, 0.0
        %v671 = vadd.f32 %v655, 0.0
        %v672 = vadd.f32 %v656, 0.0
        %v673 = vadd.f32 %v657, 0.0
        %v674 = vadd.f32 %v658, 0.0
        %v675 = vadd.f32 %v659, 0.0
        %v676 = vadd.f32 %v660, 0.0
        %v677 = vadd.f32 %v661, 0.0
        %v678 = vadd.f32 %v662, 0.0
        %v679 = vadd.f32 %v663, 0.0
        %v680 = vadd.f32 %v664, 0.0
        %v681 = vadd.f32 %v665, 0.0
        %v682 = vadd.f32 %v666, 0.0
        %v683 = vadd.f32 %v667, 0.0
        %v684 = vadd.f32 %v668, 0.0
        %s685 = scalar_lea.vmem [#allocation4], 64
        %v686 = vld [vmem:[%s685] sm:$0xf]
        %v687 = vld [vmem:[%s685 + $0x4] sm:$0xf]
        %v688 = vld [vmem:[%s685 + $0x8] sm:$0xf]
        %v689 = vld [vmem:[%s685 + $0xc] sm:$0xf]
        %v690 = vld [vmem:[%s685 + $0x10] sm:$0xf]
        %v691 = vld [vmem:[%s685 + $0x14] sm:$0xf]
        %v692 = vld [vmem:[%s685 + $0x18] sm:$0xf]
        %v693 = vld [vmem:[%s685 + $0x1c] sm:$0xf]
        %v694 = vld [vmem:[%s685 + $0x20] sm:$0xf]
        %v695 = vld [vmem:[%s685 + $0x24] sm:$0xf]
        %v696 = vld [vmem:[%s685 + $0x28] sm:$0xf]
        %v697 = vld [vmem:[%s685 + $0x2c] sm:$0xf]
        %v698 = vld [vmem:[%s685 + $0x30] sm:$0xf]
        %v699 = vld [vmem:[%s685 + $0x34] sm:$0xf]
        %v700 = vld [vmem:[%s685 + $0x38] sm:$0xf]
        %v701 = vld [vmem:[%s685 + $0x3c] sm:$0xf]
        %v718 = vunpack.c.l.b16 %v686
        %v719 = vunpack.c.l.b16 %v687
        %v720 = vunpack.c.l.b16 %v688
        %v721 = vunpack.c.l.b16 %v689
        %v722 = vunpack.c.l.b16 %v690
        %v723 = vunpack.c.l.b16 %v691
        %v724 = vunpack.c.l.b16 %v692
        %v725 = vunpack.c.l.b16 %v693
        %v726 = vunpack.c.l.b16 %v694
        %v727 = vunpack.c.l.b16 %v695
        %v728 = vunpack.c.l.b16 %v696
        %v729 = vunpack.c.l.b16 %v697
        %v730 = vunpack.c.l.b16 %v698
        %v731 = vunpack.c.l.b16 %v699
        %v732 = vunpack.c.l.b16 %v700
        %v733 = vunpack.c.l.b16 %v701
        %v734 = vpack.c.b16 %v719, %v718
        %v735 = vpack.c.b16 %v721, %v720
        %v736 = vpack.c.b16 %v723, %v722
        %v737 = vpack.c.b16 %v725, %v724
        %v738 = vpack.c.b16 %v727, %v726
        %v739 = vpack.c.b16 %v729, %v728
        %v740 = vpack.c.b16 %v731, %v730
        %v741 = vpack.c.b16 %v733, %v732
        %750 = vmatprep.subr.bf16.mxu0 0
        %751 = vmatpush1.bf16.msra.mxu0 %v734
        %752 = vmatprep.subr.bf16.mxu0 0
        %753 = vmatpush1.bf16.msra.mxu0 %v735
        %754 = vmatprep.subr.bf16.mxu0 0
        %755 = vmatpush1.bf16.msra.mxu0 %v736
        %756 = vmatprep.subr.bf16.mxu0 0
        %757 = vmatpush1.bf16.msra.mxu0 %v737
        %758 = vmatprep.subr.bf16.mxu0 0
        %759 = vmatpush1.bf16.msra.mxu0 %v738
        %760 = vmatprep.subr.bf16.mxu0 0
        %761 = vmatpush1.bf16.msra.mxu0 %v739
        %762 = vmatprep.subr.bf16.mxu0 0
        %763 = vmatpush1.bf16.msra.mxu0 %v740
        %764 = vmatprep.subr.bf16.mxu0 0
        %765 = vmatpush1.bf16.msra.mxu0 %v741
        %766 = vmatprep.subr.bf16.mxu0 0
        %767 = vmatpush1.bf16.msra.mxu0 0
        %768 = vmatprep.subr.bf16.mxu0 0
        %769 = vmatpush1.bf16.msra.mxu0 0
        %770 = vmatprep.subr.bf16.mxu0 0
        %771 = vmatpush1.bf16.msra.mxu0 0
        %772 = vmatprep.subr.bf16.mxu0 0
        %773 = vmatpush1.bf16.msra.mxu0 0
        %774 = vmatprep.subr.bf16.mxu0 0
        %775 = vmatpush1.bf16.msra.mxu0 0
        %776 = vmatprep.subr.bf16.mxu0 0
        %777 = vmatpush1.bf16.msra.mxu0 0
        %778 = vmatprep.subr.bf16.mxu0 0
        %779 = vmatpush1.bf16.msra.mxu0 0
        %780 = vmatprep.subr.bf16.mxu0 0
        %781 = vmatpush1.bf16.msra.mxu0 0
        %782 = vmatprep.mubr.bf16.mxu0 0
        %783 = vmatmul.mubr.bf16.gmra.mrb[0].mxu0 %v369
        %v784 = vpop.f32.mrb[0].mxu0
        %v785 = vadd.f32 0.0, %v784
        %v786 = vpop.f32.mrb[0].mxu0
        %v787 = vpop.f32.mrb[0].mxu0
        %v788 = vadd.f32 0.0, %v787
        %v789 = vpop.f32.mrb[0].mxu0
        %790 = vmatprep.mubr.bf16.mxu0 0
        %791 = vmatmul.mubr.bf16.gmra.mrb[0].mxu0 %v370
        %v792 = vpop.f32.mrb[0].mxu0
        %v793 = vadd.f32 0.0, %v792
        %v794 = vpop.f32.mrb[0].mxu0
        %v795 = vpop.f32.mrb[0].mxu0
        %v796 = vadd.f32 0.0, %v795
        %v797 = vpop.f32.mrb[0].mxu0
        %798 = vmatprep.mubr.bf16.mxu0 0
        %799 = vmatmul.mubr.bf16.gmra.mrb[0].mxu0 %v371
        %v800 = vpop.f32.mrb[0].mxu0
        %v801 = vadd.f32 0.0, %v800
        %v802 = vpop.f32.mrb[0].mxu0
        %v803 = vpop.f32.mrb[0].mxu0
        %v804 = vadd.f32 0.0, %v803
        %v805 = vpop.f32.mrb[0].mxu0
        %806 = vmatprep.mubr.bf16.mxu0 0
        %807 = vmatmul.mubr.bf16.gmra.mrb[0].mxu0 %v372
        %v808 = vpop.f32.mrb[0].mxu0
        %v809 = vadd.f32 0.0, %v808
        %v810 = vpop.f32.mrb[0].mxu0
        %v811 = vpop.f32.mrb[0].mxu0
        %v812 = vadd.f32 0.0, %v811
        %v813 = vpop.f32.mrb[0].mxu0
        %814 = vmatprep.mubr.bf16.mxu0 0
        %815 = vmatmul.mubr.bf16.gmra.mrb[0].mxu0 %v373
        %v816 = vpop.f32.mrb[0].mxu0
        %v817 = vadd.f32 0.0, %v816
        %v818 = vpop.f32.mrb[0].mxu0
        %v819 = vpop.f32.mrb[0].mxu0
        %v820 = vadd.f32 0.0, %v819
        %v821 = vpop.f32.mrb[0].mxu0
        %822 = vmatprep.mubr.bf16.mxu0 0
        %823 = vmatmul.mubr.bf16.gmra.mrb[0].mxu0 %v374
        %v824 = vpop.f32.mrb[0].mxu0
        %v825 = vadd.f32 0.0, %v824
        %v826 = vpop.f32.mrb[0].mxu0
        %v827 = vpop.f32.mrb[0].mxu0
        %v828 = vadd.f32 0.0, %v827
        %v829 = vpop.f32.mrb[0].mxu0
        %830 = vmatprep.mubr.bf16.mxu0 0
        %831 = vmatmul.mubr.bf16.gmra.mrb[0].mxu0 %v375
        %v832 = vpop.f32.mrb[0].mxu0
        %v833 = vadd.f32 0.0, %v832
        %v834 = vpop.f32.mrb[0].mxu0
        %v835 = vpop.f32.mrb[0].mxu0
        %v836 = vadd.f32 0.0, %v835
        %v837 = vpop.f32.mrb[0].mxu0
        %838 = vmatprep.mubr.bf16.mxu0 0
        %839 = vmatmul.mubr.bf16.gmra.mrb[0].mxu0 %v376
        %v840 = vpop.f32.mrb[0].mxu0
        %v841 = vadd.f32 0.0, %v840
        %v842 = vpop.f32.mrb[0].mxu0
        %v843 = vpop.f32.mrb[0].mxu0
        %v844 = vadd.f32 0.0, %v843
        %v845 = vpop.f32.mrb[0].mxu0
        %846 = vdwg.mxu0
        %v847 = vadd.f32 %v669, %v785
        %v848 = vadd.f32 %v670, %v788
        %v849 = vadd.f32 %v671, %v793
        %v850 = vadd.f32 %v672, %v796
        %v851 = vadd.f32 %v673, %v801
        %v852 = vadd.f32 %v674, %v804
        %v853 = vadd.f32 %v675, %v809
        %v854 = vadd.f32 %v676, %v812
        %v855 = vadd.f32 %v677, %v817
        %v856 = vadd.f32 %v678, %v820
        %v857 = vadd.f32 %v679, %v825
        %v858 = vadd.f32 %v680, %v828
        %v859 = vadd.f32 %v681, %v833
        %v860 = vadd.f32 %v682, %v836
        %v861 = vadd.f32 %v683, %v841
        %v862 = vadd.f32 %v684, %v844
        %s863 = scalar_lea.vmem [#allocation4], 128
        %v864 = vld [vmem:[%s863] sm:$0xf]
        %v865 = vld [vmem:[%s863 + $0x4] sm:$0xf]
        %v866 = vld [vmem:[%s863 + $0x8] sm:$0xf]
        %v867 = vld [vmem:[%s863 + $0xc] sm:$0xf]
        %v868 = vld [vmem:[%s863 + $0x10] sm:$0xf]
        %v869 = vld [vmem:[%s863 + $0x14] sm:$0xf]
        %v870 = vld [vmem:[%s863 + $0x18] sm:$0xf]
        %v871 = vld [vmem:[%s863 + $0x1c] sm:$0xf]
        %v872 = vld [vmem:[%s863 + $0x20] sm:$0xf]
        %v873 = vld [vmem:[%s863 + $0x24] sm:$0xf]
        %v874 = vld [vmem:[%s863 + $0x28] sm:$0xf]
        %v875 = vld [vmem:[%s863 + $0x2c] sm:$0xf]
        %v876 = vld [vmem:[%s863 + $0x30] sm:$0xf]
        %v877 = vld [vmem:[%s863 + $0x34] sm:$0xf]
        %v878 = vld [vmem:[%s863 + $0x38] sm:$0xf]
        %v879 = vld [vmem:[%s863 + $0x3c] sm:$0xf]
        %v896 = vunpack.c.l.b16 %v864
        %v897 = vunpack.c.l.b16 %v865
        %v898 = vunpack.c.l.b16 %v866
        %v899 = vunpack.c.l.b16 %v867
        %v900 = vunpack.c.l.b16 %v868
        %v901 = vunpack.c.l.b16 %v869
        %v902 = vunpack.c.l.b16 %v870
        %v903 = vunpack.c.l.b16 %v871
        %v904 = vunpack.c.l.b16 %v872
        %v905 = vunpack.c.l.b16 %v873
        %v906 = vunpack.c.l.b16 %v874
        %v907 = vunpack.c.l.b16 %v875
        %v908 = vunpack.c.l.b16 %v876
        %v909 = vunpack.c.l.b16 %v877
        %v910 = vunpack.c.l.b16 %v878
        %v911 = vunpack.c.l.b16 %v879
        %v912 = vpack.c.b16 %v897, %v896
        %v913 = vpack.c.b16 %v899, %v898
        %v914 = vpack.c.b16 %v901, %v900
        %v915 = vpack.c.b16 %v903, %v902
        %v916 = vpack.c.b16 %v905, %v904
        %v917 = vpack.c.b16 %v907, %v906
        %v918 = vpack.c.b16 %v909, %v908
        %v919 = vpack.c.b16 %v911, %v910
        %928 = vmatprep.subr.bf16.mxu0 0
        %929 = vmatpush1.bf16.msra.mxu0 %v912
        %930 = vmatprep.subr.bf16.mxu0 0
        %931 = vmatpush1.bf16.msra.mxu0 %v913
        %932 = vmatprep.subr.bf16.mxu0 0
        %933 = vmatpush1.bf16.msra.mxu0 %v914
        %934 = vmatprep.subr.bf16.mxu0 0
        %935 = vmatpush1.bf16.msra.mxu0 %v915
        %936 = vmatprep.subr.bf16.mxu0 0
        %937 = vmatpush1.bf16.msra.mxu0 %v916
        %938 = vmatprep.subr.bf16.mxu0 0
        %939 = vmatpush1.bf16.msra.mxu0 %v917
        %940 = vmatprep.subr.bf16.mxu0 0
        %941 = vmatpush1.bf16.msra.mxu0 %v918
        %942 = vmatprep.subr.bf16.mxu0 0
        %943 = vmatpush1.bf16.msra.mxu0 %v919
        %944 = vmatprep.subr.bf16.mxu0 0
        %945 = vmatpush1.bf16.msra.mxu0 0
        %946 = vmatprep.subr.bf16.mxu0 0
        %947 = vmatpush1.bf16.msra.mxu0 0
        %948 = vmatprep.subr.bf16.mxu0 0
        %949 = vmatpush1.bf16.msra.mxu0 0
        %950 = vmatprep.subr.bf16.mxu0 0
        %951 = vmatpush1.bf16.msra.mxu0 0
        %952 = vmatprep.subr.bf16.mxu0 0
        %953 = vmatpush1.bf16.msra.mxu0 0
        %954 = vmatprep.subr.bf16.mxu0 0
        %955 = vmatpush1.bf16.msra.mxu0 0
        %956 = vmatprep.subr.bf16.mxu0 0
        %957 = vmatpush1.bf16.msra.mxu0 0
        %958 = vmatprep.subr.bf16.mxu0 0
        %959 = vmatpush1.bf16.msra.mxu0 0
        %960 = vmatprep.mubr.bf16.mxu0 0
        %961 = vmatmul.mubr.bf16.gmra.mrb[0].mxu0 %v369
        %v962 = vpop.f32.mrb[0].mxu0
        %v963 = vadd.f32 0.0, %v962
        %v964 = vpop.f32.mrb[0].mxu0
        %v965 = vpop.f32.mrb[0].mxu0
        %v966 = vadd.f32 0.0, %v965
        %v967 = vpop.f32.mrb[0].mxu0
        %968 = vmatprep.mubr.bf16.mxu0 0
        %969 = vmatmul.mubr.bf16.gmra.mrb[0].mxu0 %v370
        %v970 = vpop.f32.mrb[0].mxu0
        %v971 = vadd.f32 0.0, %v970
        %v972 = vpop.f32.mrb[0].mxu0
        %v973 = vpop.f32.mrb[0].mxu0
        %v974 = vadd.f32 0.0, %v973
        %v975 = vpop.f32.mrb[0].mxu0
        %976 = vmatprep.mubr.bf16.mxu0 0
        %977 = vmatmul.mubr.bf16.gmra.mrb[0].mxu0 %v371
        %v978 = vpop.f32.mrb[0].mxu0
        %v979 = vadd.f32 0.0, %v978
        %v980 = vpop.f32.mrb[0].mxu0
        %v981 = vpop.f32.mrb[0].mxu0
        %v982 = vadd.f32 0.0, %v981
        %v983 = vpop.f32.mrb[0].mxu0
        %984 = vmatprep.mubr.bf16.mxu0 0
        %985 = vmatmul.mubr.bf16.gmra.mrb[0].mxu0 %v372
        %v986 = vpop.f32.mrb[0].mxu0
        %v987 = vadd.f32 0.0, %v986
        %v988 = vpop.f32.mrb[0].mxu0
        %v989 = vpop.f32.mrb[0].mxu0
        %v990 = vadd.f32 0.0, %v989
        %v991 = vpop.f32.mrb[0].mxu0
        %992 = vmatprep.mubr.bf16.mxu0 0
        %993 = vmatmul.mubr.bf16.gmra.mrb[0].mxu0 %v373
        %v994 = vpop.f32.mrb[0].mxu0
        %v995 = vadd.f32 0.0, %v994
        %v996 = vpop.f32.mrb[0].mxu0
        %v997 = vpop.f32.mrb[0].mxu0
        %v998 = vadd.f32 0.0, %v997
        %v999 = vpop.f32.mrb[0].mxu0
        %1000 = vmatprep.mubr.bf16.mxu0 0
        %1001 = vmatmul.mubr.bf16.gmra.mrb[0].mxu0 %v374
        %v1002 = vpop.f32.mrb[0].mxu0
        %v1003 = vadd.f32 0.0, %v1002
        %v1004 = vpop.f32.mrb[0].mxu0
        %v1005 = vpop.f32.mrb[0].mxu0
        %v1006 = vadd.f32 0.0, %v1005
        %v1007 = vpop.f32.mrb[0].mxu0
        %1008 = vmatprep.mubr.bf16.mxu0 0
        %1009 = vmatmul.mubr.bf16.gmra.mrb[0].mxu0 %v375
        %v1010 = vpop.f32.mrb[0].mxu0
        %v1011 = vadd.f32 0.0, %v1010
        %v1012 = vpop.f32.mrb[0].mxu0
        %v1013 = vpop.f32.mrb[0].mxu0
        %v1014 = vadd.f32 0.0, %v1013
        %v1015 = vpop.f32.mrb[0].mxu0
        %1016 = vmatprep.mubr.bf16.mxu0 0
        %1017 = vmatmul.mubr.bf16.gmra.mrb[0].mxu0 %v376
        %v1018 = vpop.f32.mrb[0].mxu0
        %v1019 = vadd.f32 0.0, %v1018
        %v1020 = vpop.f32.mrb[0].mxu0
        %v1021 = vpop.f32.mrb[0].mxu0
        %v1022 = vadd.f32 0.0, %v1021
        %v1023 = vpop.f32.mrb[0].mxu0
        %1024 = vdwg.mxu0
        %v1025 = vrot.slane %v963, 1
        %v1026 = vrot.slane %v966, 1
        %v1027 = vrot.slane %v971, 1
        %v1028 = vrot.slane %v974, 1
        %v1029 = vrot.slane %v979, 1
        %v1030 = vrot.slane %v982, 1
        %v1031 = vrot.slane %v987, 1
        %v1032 = vrot.slane %v990, 1
        %v1033 = vrot.slane %v995, 1
        %v1034 = vrot.slane %v998, 1
        %v1035 = vrot.slane %v1003, 1
        %v1036 = vrot.slane %v1006, 1
        %v1037 = vrot.slane %v1011, 1
        %v1038 = vrot.slane %v1014, 1
        %v1039 = vrot.slane %v1019, 1
        %v1040 = vrot.slane %v1022, 1
        %vm1041 = vcmp.lt.s32.totalorder %v555, 7
        %v1042 = vsel %vm1041, %v1039, %v1040
        %v1043 = vsel %vm1041, %v1038, %v1039
        %v1044 = vsel %vm1041, %v1037, %v1038
        %v1045 = vsel %vm1041, %v1036, %v1037
        %v1046 = vsel %vm1041, %v1035, %v1036
        %v1047 = vsel %vm1041, %v1034, %v1035
        %v1048 = vsel %vm1041, %v1033, %v1034
        %v1049 = vsel %vm1041, %v1032, %v1033
        %v1050 = vsel %vm1041, %v1031, %v1032
        %v1051 = vsel %vm1041, %v1030, %v1031
        %v1052 = vsel %vm1041, %v1029, %v1030
        %v1053 = vsel %vm1041, %v1028, %v1029
        %v1054 = vsel %vm1041, %v1027, %v1028
        %v1055 = vsel %vm1041, %v1026, %v1027
        %v1056 = vsel %vm1041, %v1025, %v1026
        %v1057 = vsel %vm1041, %v1040, %v1025
        %1059 = vset.pattern.permute.xlu0 0
        %1060 = vperm.xlu0 %1059, %v353
        %v1061 = vpop.permute.xlu0 %1060
        %1064 = vset.pattern.permute.xlu0 0
        %1065 = vperm.xlu0 %1064, %v354
        %v1066 = vpop.permute.xlu0 %1065
        %1069 = vset.pattern.permute.xlu0 0
        %1070 = vperm.xlu0 %1069, %v355
        %v1071 = vpop.permute.xlu0 %1070
        %1074 = vset.pattern.permute.xlu0 0
        %1075 = vperm.xlu0 %1074, %v356
        %v1076 = vpop.permute.xlu0 %1075
        %1079 = vset.pattern.permute.xlu0 0
        %1080 = vperm.xlu0 %1079, %v357
        %v1081 = vpop.permute.xlu0 %1080
        %1084 = vset.pattern.permute.xlu0 0
        %1085 = vperm.xlu0 %1084, %v358
        %v1086 = vpop.permute.xlu0 %1085
        %1089 = vset.pattern.permute.xlu0 0
        %1090 = vperm.xlu0 %1089, %v359
        %v1091 = vpop.permute.xlu0 %1090
        %1094 = vset.pattern.permute.xlu0 0
        %1095 = vperm.xlu0 %1094, %v360
        %v1096 = vpop.permute.xlu0 %1095
        %1099 = vset.pattern.permute.xlu0 0
        %1100 = vperm.xlu0 %1099, %v361
        %v1101 = vpop.permute.xlu0 %1100
        %1104 = vset.pattern.permute.xlu0 0
        %1105 = vperm.xlu0 %1104, %v362
        %v1106 = vpop.permute.xlu0 %1105
        %1109 = vset.pattern.permute.xlu0 0
        %1110 = vperm.xlu0 %1109, %v363
        %v1111 = vpop.permute.xlu0 %1110
        %1114 = vset.pattern.permute.xlu0 0
        %1115 = vperm.xlu0 %1114, %v364
        %v1116 = vpop.permute.xlu0 %1115
        %1119 = vset.pattern.permute.xlu0 0
        %1120 = vperm.xlu0 %1119, %v365
        %v1121 = vpop.permute.xlu0 %1120
        %1124 = vset.pattern.permute.xlu0 0
        %1125 = vperm.xlu0 %1124, %v366
        %v1126 = vpop.permute.xlu0 %1125
        %1129 = vset.pattern.permute.xlu0 0
        %1130 = vperm.xlu0 %1129, %v367
        %v1131 = vpop.permute.xlu0 %1130
        %1134 = vset.pattern.permute.xlu0 0
        %1135 = vperm.xlu0 %1134, %v368
        %v1136 = vpop.permute.xlu0 %1135
        %v1138 = vmul.f32 %v1056, %v1061
        %v1139 = vmul.f32 %v1055, %v1066
        %v1140 = vmul.f32 %v1054, %v1071
        %v1141 = vmul.f32 %v1053, %v1076
        %v1142 = vmul.f32 %v1052, %v1081
        %v1143 = vmul.f32 %v1051, %v1086
        %v1144 = vmul.f32 %v1050, %v1091
        %v1145 = vmul.f32 %v1049, %v1096
        %v1146 = vmul.f32 %v1048, %v1101
        %v1147 = vmul.f32 %v1047, %v1106
        %v1148 = vmul.f32 %v1046, %v1111
        %v1149 = vmul.f32 %v1045, %v1116
        %v1150 = vmul.f32 %v1044, %v1121
        %v1151 = vmul.f32 %v1043, %v1126
        %v1152 = vmul.f32 %v1042, %v1131
        %v1153 = vmul.f32 %v1057, %v1136
        %v1154 = vadd.f32 %v847, %v1138
        %v1155 = vadd.f32 %v848, %v1139
        %v1156 = vadd.f32 %v849, %v1140
        %v1157 = vadd.f32 %v850, %v1141
        %v1158 = vadd.f32 %v851, %v1142
        %v1159 = vadd.f32 %v852, %v1143
        %v1160 = vadd.f32 %v853, %v1144
        %v1161 = vadd.f32 %v854, %v1145
        %v1162 = vadd.f32 %v855, %v1146
        %v1163 = vadd.f32 %v856, %v1147
        %v1164 = vadd.f32 %v857, %v1148
        %v1165 = vadd.f32 %v858, %v1149
        %v1166 = vadd.f32 %v859, %v1150
        %v1167 = vadd.f32 %v860, %v1151
        %v1168 = vadd.f32 %v861, %v1152
        %v1169 = vadd.f32 %v862, %v1153
        %v1170 = vld [vmem:[#allocation2 + $0x8] sm:$0xff]
        %v1171 = vld [vmem:[#allocation2 + $0x10] sm:$0xff]
        %v1172 = vld [vmem:[#allocation2 + $0x18] sm:$0xff]
        %v1173 = vld [vmem:[#allocation2 + $0x20] sm:$0xff]
        %v1174 = vld [vmem:[#allocation2 + $0x28] sm:$0xff]
        %v1175 = vld [vmem:[#allocation2 + $0x30] sm:$0xff]
        %v1176 = vld [vmem:[#allocation2 + $0x38] sm:$0xff]
        %v1177 = vld [vmem:[#allocation2 + $0x40] sm:$0xff]
        %s1178 = scalar_lea.vmem [#allocation4], 192
        %v1179 = vld [vmem:[%s1178] sm:$0xf]
        %v1180 = vld [vmem:[%s1178 + $0x4] sm:$0xf]
        %v1181 = vld [vmem:[%s1178 + $0x8] sm:$0xf]
        %v1182 = vld [vmem:[%s1178 + $0xc] sm:$0xf]
        %v1183 = vld [vmem:[%s1178 + $0x10] sm:$0xf]
        %v1184 = vld [vmem:[%s1178 + $0x14] sm:$0xf]
        %v1185 = vld [vmem:[%s1178 + $0x18] sm:$0xf]
        %v1186 = vld [vmem:[%s1178 + $0x1c] sm:$0xf]
        %v1187 = vld [vmem:[%s1178 + $0x20] sm:$0xf]
        %v1188 = vld [vmem:[%s1178 + $0x24] sm:$0xf]
        %v1189 = vld [vmem:[%s1178 + $0x28] sm:$0xf]
        %v1190 = vld [vmem:[%s1178 + $0x2c] sm:$0xf]
        %v1191 = vld [vmem:[%s1178 + $0x30] sm:$0xf]
        %v1192 = vld [vmem:[%s1178 + $0x34] sm:$0xf]
        %v1193 = vld [vmem:[%s1178 + $0x38] sm:$0xf]
        %v1194 = vld [vmem:[%s1178 + $0x3c] sm:$0xf]
        %v1211 = vunpack.c.l.b16 %v1179
        %v1212 = vunpack.c.l.b16 %v1180
        %v1213 = vunpack.c.l.b16 %v1181
        %v1214 = vunpack.c.l.b16 %v1182
        %v1215 = vunpack.c.l.b16 %v1183
        %v1216 = vunpack.c.l.b16 %v1184
        %v1217 = vunpack.c.l.b16 %v1185
        %v1218 = vunpack.c.l.b16 %v1186
        %v1219 = vunpack.c.l.b16 %v1187
        %v1220 = vunpack.c.l.b16 %v1188
        %v1221 = vunpack.c.l.b16 %v1189
        %v1222 = vunpack.c.l.b16 %v1190
        %v1223 = vunpack.c.l.b16 %v1191
        %v1224 = vunpack.c.l.b16 %v1192
        %v1225 = vunpack.c.l.b16 %v1193
        %v1226 = vunpack.c.l.b16 %v1194
        %v1227 = vpack.c.b16 %v1212, %v1211
        %v1228 = vpack.c.b16 %v1214, %v1213
        %v1229 = vpack.c.b16 %v1216, %v1215
        %v1230 = vpack.c.b16 %v1218, %v1217
        %v1231 = vpack.c.b16 %v1220, %v1219
        %v1232 = vpack.c.b16 %v1222, %v1221
        %v1233 = vpack.c.b16 %v1224, %v1223
        %v1234 = vpack.c.b16 %v1226, %v1225
        %1243 = vmatprep.subr.bf16.mxu0 0
        %1244 = vmatpush1.bf16.msra.mxu0 %v1227
        %1245 = vmatprep.subr.bf16.mxu0 0
        %1246 = vmatpush1.bf16.msra.mxu0 %v1228
        %1247 = vmatprep.subr.bf16.mxu0 0
        %1248 = vmatpush1.bf16.msra.mxu0 %v1229
        %1249 = vmatprep.subr.bf16.mxu0 0
        %1250 = vmatpush1.bf16.msra.mxu0 %v1230
        %1251 = vmatprep.subr.bf16.mxu0 0
        %1252 = vmatpush1.bf16.msra.mxu0 %v1231
        %1253 = vmatprep.subr.bf16.mxu0 0
        %1254 = vmatpush1.bf16.msra.mxu0 %v1232
        %1255 = vmatprep.subr.bf16.mxu0 0
        %1256 = vmatpush1.bf16.msra.mxu0 %v1233
        %1257 = vmatprep.subr.bf16.mxu0 0
        %1258 = vmatpush1.bf16.msra.mxu0 %v1234
        %1259 = vmatprep.subr.bf16.mxu0 0
        %1260 = vmatpush1.bf16.msra.mxu0 0
        %1261 = vmatprep.subr.bf16.mxu0 0
        %1262 = vmatpush1.bf16.msra.mxu0 0
        %1263 = vmatprep.subr.bf16.mxu0 0
        %1264 = vmatpush1.bf16.msra.mxu0 0
        %1265 = vmatprep.subr.bf16.mxu0 0
        %1266 = vmatpush1.bf16.msra.mxu0 0
        %1267 = vmatprep.subr.bf16.mxu0 0
        %1268 = vmatpush1.bf16.msra.mxu0 0
        %1269 = vmatprep.subr.bf16.mxu0 0
        %1270 = vmatpush1.bf16.msra.mxu0 0
        %1271 = vmatprep.subr.bf16.mxu0 0
        %1272 = vmatpush1.bf16.msra.mxu0 0
        %1273 = vmatprep.subr.bf16.mxu0 0
        %1274 = vmatpush1.bf16.msra.mxu0 0
        %1275 = vmatprep.mubr.bf16.mxu0 0
        %1276 = vmatmul.mubr.bf16.gmra.mrb[0].mxu0 %v1170
        %v1277 = vpop.f32.mrb[0].mxu0
        %v1278 = vadd.f32 0.0, %v1277
        %v1279 = vpop.f32.mrb[0].mxu0
        %v1280 = vpop.f32.mrb[0].mxu0
        %v1281 = vadd.f32 0.0, %v1280
        %v1282 = vpop.f32.mrb[0].mxu0
        %1283 = vmatprep.mubr.bf16.mxu0 0
        %1284 = vmatmul.mubr.bf16.gmra.mrb[0].mxu0 %v1171
        %v1285 = vpop.f32.mrb[0].mxu0
        %v1286 = vadd.f32 0.0, %v1285
        %v1287 = vpop.f32.mrb[0].mxu0
        %v1288 = vpop.f32.mrb[0].mxu0
        %v1289 = vadd.f32 0.0, %v1288
        %v1290 = vpop.f32.mrb[0].mxu0
        %1291 = vmatprep.mubr.bf16.mxu0 0
        %1292 = vmatmul.mubr.bf16.gmra.mrb[0].mxu0 %v1172
        %v1293 = vpop.f32.mrb[0].mxu0
        %v1294 = vadd.f32 0.0, %v1293
        %v1295 = vpop.f32.mrb[0].mxu0
        %v1296 = vpop.f32.mrb[0].mxu0
        %v1297 = vadd.f32 0.0, %v1296
        %v1298 = vpop.f32.mrb[0].mxu0
        %1299 = vmatprep.mubr.bf16.mxu0 0
        %1300 = vmatmul.mubr.bf16.gmra.mrb[0].mxu0 %v1173
        %v1301 = vpop.f32.mrb[0].mxu0
        %v1302 = vadd.f32 0.0, %v1301
        %v1303 = vpop.f32.mrb[0].mxu0
        %v1304 = vpop.f32.mrb[0].mxu0
        %v1305 = vadd.f32 0.0, %v1304
        %v1306 = vpop.f32.mrb[0].mxu0
        %1307 = vmatprep.mubr.bf16.mxu0 0
        %1308 = vmatmul.mubr.bf16.gmra.mrb[0].mxu0 %v1174
        %v1309 = vpop.f32.mrb[0].mxu0
        %v1310 = vadd.f32 0.0, %v1309
        %v1311 = vpop.f32.mrb[0].mxu0
        %v1312 = vpop.f32.mrb[0].mxu0
        %v1313 = vadd.f32 0.0, %v1312
        %v1314 = vpop.f32.mrb[0].mxu0
        %1315 = vmatprep.mubr.bf16.mxu0 0
        %1316 = vmatmul.mubr.bf16.gmra.mrb[0].mxu0 %v1175
        %v1317 = vpop.f32.mrb[0].mxu0
        %v1318 = vadd.f32 0.0, %v1317
        %v1319 = vpop.f32.mrb[0].mxu0
        %v1320 = vpop.f32.mrb[0].mxu0
        %v1321 = vadd.f32 0.0, %v1320
        %v1322 = vpop.f32.mrb[0].mxu0
        %1323 = vmatprep.mubr.bf16.mxu0 0
        %1324 = vmatmul.mubr.bf16.gmra.mrb[0].mxu0 %v1176
        %v1325 = vpop.f32.mrb[0].mxu0
        %v1326 = vadd.f32 0.0, %v1325
        %v1327 = vpop.f32.mrb[0].mxu0
        %v1328 = vpop.f32.mrb[0].mxu0
        %v1329 = vadd.f32 0.0, %v1328
        %v1330 = vpop.f32.mrb[0].mxu0
        %1331 = vmatprep.mubr.bf16.mxu0 0
        %1332 = vmatmul.mubr.bf16.gmra.mrb[0].mxu0 %v1177
        %v1333 = vpop.f32.mrb[0].mxu0
        %v1334 = vadd.f32 0.0, %v1333
        %v1335 = vpop.f32.mrb[0].mxu0
        %v1336 = vpop.f32.mrb[0].mxu0
        %v1337 = vadd.f32 0.0, %v1336
        %v1338 = vpop.f32.mrb[0].mxu0
        %1339 = vdwg.mxu0
        %v1340 = vrot.slane %v1278, 7
        %v1341 = vrot.slane %v1281, 7
        %v1342 = vrot.slane %v1286, 7
        %v1343 = vrot.slane %v1289, 7
        %v1344 = vrot.slane %v1294, 7
        %v1345 = vrot.slane %v1297, 7
        %v1346 = vrot.slane %v1302, 7
        %v1347 = vrot.slane %v1305, 7
        %v1348 = vrot.slane %v1310, 7
        %v1349 = vrot.slane %v1313, 7
        %v1350 = vrot.slane %v1318, 7
        %v1351 = vrot.slane %v1321, 7
        %v1352 = vrot.slane %v1326, 7
        %v1353 = vrot.slane %v1329, 7
        %v1354 = vrot.slane %v1334, 7
        %v1355 = vrot.slane %v1337, 7
        %v1356 = vsel %vm556, %v1354, %v1355
        %v1357 = vsel %vm556, %v1353, %v1354
        %v1358 = vsel %vm556, %v1352, %v1353
        %v1359 = vsel %vm556, %v1351, %v1352
        %v1360 = vsel %vm556, %v1350, %v1351
        %v1361 = vsel %vm556, %v1349, %v1350
        %v1362 = vsel %vm556, %v1348, %v1349
        %v1363 = vsel %vm556, %v1347, %v1348
        %v1364 = vsel %vm556, %v1346, %v1347
        %v1365 = vsel %vm556, %v1345, %v1346
        %v1366 = vsel %vm556, %v1344, %v1345
        %v1367 = vsel %vm556, %v1343, %v1344
        %v1368 = vsel %vm556, %v1342, %v1343
        %v1369 = vsel %vm556, %v1341, %v1342
        %v1370 = vsel %vm556, %v1340, %v1341
        %v1371 = vsel %vm556, %v1355, %v1340
        %v1372 = vmul.f32 %v1371, %v576
        %v1373 = vmul.f32 %v1370, %v581
        %v1374 = vmul.f32 %v1369, %v586
        %v1375 = vmul.f32 %v1368, %v591
        %v1376 = vmul.f32 %v1367, %v596
        %v1377 = vmul.f32 %v1366, %v601
        %v1378 = vmul.f32 %v1365, %v606
        %v1379 = vmul.f32 %v1364, %v611
        %v1380 = vmul.f32 %v1363, %v616
        %v1381 = vmul.f32 %v1362, %v621
        %v1382 = vmul.f32 %v1361, %v626
        %v1383 = vmul.f32 %v1360, %v631
        %v1384 = vmul.f32 %v1359, %v636
        %v1385 = vmul.f32 %v1358, %v641
        %v1386 = vmul.f32 %v1357, %v646
        %v1387 = vmul.f32 %v1356, %v651
        %v1388 = vadd.f32 %v1154, %v1372
        %v1389 = vadd.f32 %v1155, %v1373
        %v1390 = vadd.f32 %v1156, %v1374
        %v1391 = vadd.f32 %v1157, %v1375
        %v1392 = vadd.f32 %v1158, %v1376
        %v1393 = vadd.f32 %v1159, %v1377
        %v1394 = vadd.f32 %v1160, %v1378
        %v1395 = vadd.f32 %v1161, %v1379
        %v1396 = vadd.f32 %v1162, %v1380
        %v1397 = vadd.f32 %v1163, %v1381
        %v1398 = vadd.f32 %v1164, %v1382
        %v1399 = vadd.f32 %v1165, %v1383
        %v1400 = vadd.f32 %v1166, %v1384
        %v1401 = vadd.f32 %v1167, %v1385
        %v1402 = vadd.f32 %v1168, %v1386
        %v1403 = vadd.f32 %v1169, %v1387
        %s1404 = scalar_lea.vmem [#allocation4], 256
        %v1405 = vld [vmem:[%s1404] sm:$0xf]
        %v1406 = vld [vmem:[%s1404 + $0x4] sm:$0xf]
        %v1407 = vld [vmem:[%s1404 + $0x8] sm:$0xf]
        %v1408 = vld [vmem:[%s1404 + $0xc] sm:$0xf]
        %v1409 = vld [vmem:[%s1404 + $0x10] sm:$0xf]
        %v1410 = vld [vmem:[%s1404 + $0x14] sm:$0xf]
        %v1411 = vld [vmem:[%s1404 + $0x18] sm:$0xf]
        %v1412 = vld [vmem:[%s1404 + $0x1c] sm:$0xf]
        %v1413 = vld [vmem:[%s1404 + $0x20] sm:$0xf]
        %v1414 = vld [vmem:[%s1404 + $0x24] sm:$0xf]
        %v1415 = vld [vmem:[%s1404 + $0x28] sm:$0xf]
        %v1416 = vld [vmem:[%s1404 + $0x2c] sm:$0xf]
        %v1417 = vld [vmem:[%s1404 + $0x30] sm:$0xf]
        %v1418 = vld [vmem:[%s1404 + $0x34] sm:$0xf]
        %v1419 = vld [vmem:[%s1404 + $0x38] sm:$0xf]
        %v1420 = vld [vmem:[%s1404 + $0x3c] sm:$0xf]
        %v1437 = vunpack.c.l.b16 %v1405
        %v1438 = vunpack.c.l.b16 %v1406
        %v1439 = vunpack.c.l.b16 %v1407
        %v1440 = vunpack.c.l.b16 %v1408
        %v1441 = vunpack.c.l.b16 %v1409
        %v1442 = vunpack.c.l.b16 %v1410
        %v1443 = vunpack.c.l.b16 %v1411
        %v1444 = vunpack.c.l.b16 %v1412
        %v1445 = vunpack.c.l.b16 %v1413
        %v1446 = vunpack.c.l.b16 %v1414
        %v1447 = vunpack.c.l.b16 %v1415
        %v1448 = vunpack.c.l.b16 %v1416
        %v1449 = vunpack.c.l.b16 %v1417
        %v1450 = vunpack.c.l.b16 %v1418
        %v1451 = vunpack.c.l.b16 %v1419
        %v1452 = vunpack.c.l.b16 %v1420
        %v1453 = vpack.c.b16 %v1438, %v1437
        %v1454 = vpack.c.b16 %v1440, %v1439
        %v1455 = vpack.c.b16 %v1442, %v1441
        %v1456 = vpack.c.b16 %v1444, %v1443
        %v1457 = vpack.c.b16 %v1446, %v1445
        %v1458 = vpack.c.b16 %v1448, %v1447
        %v1459 = vpack.c.b16 %v1450, %v1449
        %v1460 = vpack.c.b16 %v1452, %v1451
        %1469 = vmatprep.subr.bf16.mxu0 0
        %1470 = vmatpush1.bf16.msra.mxu0 %v1453
        %1471 = vmatprep.subr.bf16.mxu0 0
        %1472 = vmatpush1.bf16.msra.mxu0 %v1454
        %1473 = vmatprep.subr.bf16.mxu0 0
        %1474 = vmatpush1.bf16.msra.mxu0 %v1455
        %1475 = vmatprep.subr.bf16.mxu0 0
        %1476 = vmatpush1.bf16.msra.mxu0 %v1456
        %1477 = vmatprep.subr.bf16.mxu0 0
        %1478 = vmatpush1.bf16.msra.mxu0 %v1457
        %1479 = vmatprep.subr.bf16.mxu0 0
        %1480 = vmatpush1.bf16.msra.mxu0 %v1458
        %1481 = vmatprep.subr.bf16.mxu0 0
        %1482 = vmatpush1.bf16.msra.mxu0 %v1459
        %1483 = vmatprep.subr.bf16.mxu0 0
        %1484 = vmatpush1.bf16.msra.mxu0 %v1460
        %1485 = vmatprep.subr.bf16.mxu0 0
        %1486 = vmatpush1.bf16.msra.mxu0 0
        %1487 = vmatprep.subr.bf16.mxu0 0
        %1488 = vmatpush1.bf16.msra.mxu0 0
        %1489 = vmatprep.subr.bf16.mxu0 0
        %1490 = vmatpush1.bf16.msra.mxu0 0
        %1491 = vmatprep.subr.bf16.mxu0 0
        %1492 = vmatpush1.bf16.msra.mxu0 0
        %1493 = vmatprep.subr.bf16.mxu0 0
        %1494 = vmatpush1.bf16.msra.mxu0 0
        %1495 = vmatprep.subr.bf16.mxu0 0
        %1496 = vmatpush1.bf16.msra.mxu0 0
        %1497 = vmatprep.subr.bf16.mxu0 0
        %1498 = vmatpush1.bf16.msra.mxu0 0
        %1499 = vmatprep.subr.bf16.mxu0 0
        %1500 = vmatpush1.bf16.msra.mxu0 0
        %1501 = vmatprep.mubr.bf16.mxu0 0
        %1502 = vmatmul.mubr.bf16.gmra.mrb[0].mxu0 %v1170
        %v1503 = vpop.f32.mrb[0].mxu0
        %v1504 = vadd.f32 0.0, %v1503
        %v1505 = vpop.f32.mrb[0].mxu0
        %v1506 = vpop.f32.mrb[0].mxu0
        %v1507 = vadd.f32 0.0, %v1506
        %v1508 = vpop.f32.mrb[0].mxu0
        %1509 = vmatprep.mubr.bf16.mxu0 0
        %1510 = vmatmul.mubr.bf16.gmra.mrb[0].mxu0 %v1171
        %v1511 = vpop.f32.mrb[0].mxu0
        %v1512 = vadd.f32 0.0, %v1511
        %v1513 = vpop.f32.mrb[0].mxu0
        %v1514 = vpop.f32.mrb[0].mxu0
        %v1515 = vadd.f32 0.0, %v1514
        %v1516 = vpop.f32.mrb[0].mxu0
        %1517 = vmatprep.mubr.bf16.mxu0 0
        %1518 = vmatmul.mubr.bf16.gmra.mrb[0].mxu0 %v1172
        %v1519 = vpop.f32.mrb[0].mxu0
        %v1520 = vadd.f32 0.0, %v1519
        %v1521 = vpop.f32.mrb[0].mxu0
        %v1522 = vpop.f32.mrb[0].mxu0
        %v1523 = vadd.f32 0.0, %v1522
        %v1524 = vpop.f32.mrb[0].mxu0
        %1525 = vmatprep.mubr.bf16.mxu0 0
        %1526 = vmatmul.mubr.bf16.gmra.mrb[0].mxu0 %v1173
        %v1527 = vpop.f32.mrb[0].mxu0
        %v1528 = vadd.f32 0.0, %v1527
        %v1529 = vpop.f32.mrb[0].mxu0
        %v1530 = vpop.f32.mrb[0].mxu0
        %v1531 = vadd.f32 0.0, %v1530
        %v1532 = vpop.f32.mrb[0].mxu0
        %1533 = vmatprep.mubr.bf16.mxu0 0
        %1534 = vmatmul.mubr.bf16.gmra.mrb[0].mxu0 %v1174
        %v1535 = vpop.f32.mrb[0].mxu0
        %v1536 = vadd.f32 0.0, %v1535
        %v1537 = vpop.f32.mrb[0].mxu0
        %v1538 = vpop.f32.mrb[0].mxu0
        %v1539 = vadd.f32 0.0, %v1538
        %v1540 = vpop.f32.mrb[0].mxu0
        %1541 = vmatprep.mubr.bf16.mxu0 0
        %1542 = vmatmul.mubr.bf16.gmra.mrb[0].mxu0 %v1175
        %v1543 = vpop.f32.mrb[0].mxu0
        %v1544 = vadd.f32 0.0, %v1543
        %v1545 = vpop.f32.mrb[0].mxu0
        %v1546 = vpop.f32.mrb[0].mxu0
        %v1547 = vadd.f32 0.0, %v1546
        %v1548 = vpop.f32.mrb[0].mxu0
        %1549 = vmatprep.mubr.bf16.mxu0 0
        %1550 = vmatmul.mubr.bf16.gmra.mrb[0].mxu0 %v1176
        %v1551 = vpop.f32.mrb[0].mxu0
        %v1552 = vadd.f32 0.0, %v1551
        %v1553 = vpop.f32.mrb[0].mxu0
        %v1554 = vpop.f32.mrb[0].mxu0
        %v1555 = vadd.f32 0.0, %v1554
        %v1556 = vpop.f32.mrb[0].mxu0
        %1557 = vmatprep.mubr.bf16.mxu0 0
        %1558 = vmatmul.mubr.bf16.gmra.mrb[0].mxu0 %v1177
        %v1559 = vpop.f32.mrb[0].mxu0
        %v1560 = vadd.f32 0.0, %v1559
        %v1561 = vpop.f32.mrb[0].mxu0
        %v1562 = vpop.f32.mrb[0].mxu0
        %v1563 = vadd.f32 0.0, %v1562
        %v1564 = vpop.f32.mrb[0].mxu0
        %1565 = vdwg.mxu0
        %v1566 = vadd.f32 %v1388, %v1504
        %v1567 = vadd.f32 %v1389, %v1507
        %v1568 = vadd.f32 %v1390, %v1512
        %v1569 = vadd.f32 %v1391, %v1515
        %v1570 = vadd.f32 %v1392, %v1520
        %v1571 = vadd.f32 %v1393, %v1523
        %v1572 = vadd.f32 %v1394, %v1528
        %v1573 = vadd.f32 %v1395, %v1531
        %v1574 = vadd.f32 %v1396, %v1536
        %v1575 = vadd.f32 %v1397, %v1539
        %v1576 = vadd.f32 %v1398, %v1544
        %v1577 = vadd.f32 %v1399, %v1547
        %v1578 = vadd.f32 %v1400, %v1552
        %v1579 = vadd.f32 %v1401, %v1555
        %v1580 = vadd.f32 %v1402, %v1560
        %v1581 = vadd.f32 %v1403, %v1563
        %s1582 = scalar_lea.vmem [#allocation4], 320
        %v1583 = vld [vmem:[%s1582] sm:$0xf]
        %v1584 = vld [vmem:[%s1582 + $0x4] sm:$0xf]
        %v1585 = vld [vmem:[%s1582 + $0x8] sm:$0xf]
        %v1586 = vld [vmem:[%s1582 + $0xc] sm:$0xf]
        %v1587 = vld [vmem:[%s1582 + $0x10] sm:$0xf]
        %v1588 = vld [vmem:[%s1582 + $0x14] sm:$0xf]
        %v1589 = vld [vmem:[%s1582 + $0x18] sm:$0xf]
        %v1590 = vld [vmem:[%s1582 + $0x1c] sm:$0xf]
        %v1591 = vld [vmem:[%s1582 + $0x20] sm:$0xf]
        %v1592 = vld [vmem:[%s1582 + $0x24] sm:$0xf]
        %v1593 = vld [vmem:[%s1582 + $0x28] sm:$0xf]
        %v1594 = vld [vmem:[%s1582 + $0x2c] sm:$0xf]
        %v1595 = vld [vmem:[%s1582 + $0x30] sm:$0xf]
        %v1596 = vld [vmem:[%s1582 + $0x34] sm:$0xf]
        %v1597 = vld [vmem:[%s1582 + $0x38] sm:$0xf]
        %v1598 = vld [vmem:[%s1582 + $0x3c] sm:$0xf]
        %v1615 = vunpack.c.l.b16 %v1583
        %v1616 = vunpack.c.l.b16 %v1584
        %v1617 = vunpack.c.l.b16 %v1585
        %v1618 = vunpack.c.l.b16 %v1586
        %v1619 = vunpack.c.l.b16 %v1587
        %v1620 = vunpack.c.l.b16 %v1588
        %v1621 = vunpack.c.l.b16 %v1589
        %v1622 = vunpack.c.l.b16 %v1590
        %v1623 = vunpack.c.l.b16 %v1591
        %v1624 = vunpack.c.l.b16 %v1592
        %v1625 = vunpack.c.l.b16 %v1593
        %v1626 = vunpack.c.l.b16 %v1594
        %v1627 = vunpack.c.l.b16 %v1595
        %v1628 = vunpack.c.l.b16 %v1596
        %v1629 = vunpack.c.l.b16 %v1597
        %v1630 = vunpack.c.l.b16 %v1598
        %v1631 = vpack.c.b16 %v1616, %v1615
        %v1632 = vpack.c.b16 %v1618, %v1617
        %v1633 = vpack.c.b16 %v1620, %v1619
        %v1634 = vpack.c.b16 %v1622, %v1621
        %v1635 = vpack.c.b16 %v1624, %v1623
        %v1636 = vpack.c.b16 %v1626, %v1625
        %v1637 = vpack.c.b16 %v1628, %v1627
        %v1638 = vpack.c.b16 %v1630, %v1629
        %1647 = vmatprep.subr.bf16.mxu0 0
        %1648 = vmatpush1.bf16.msra.mxu0 %v1631
        %1649 = vmatprep.subr.bf16.mxu0 0
        %1650 = vmatpush1.bf16.msra.mxu0 %v1632
        %1651 = vmatprep.subr.bf16.mxu0 0
        %1652 = vmatpush1.bf16.msra.mxu0 %v1633
        %1653 = vmatprep.subr.bf16.mxu0 0
        %1654 = vmatpush1.bf16.msra.mxu0 %v1634
        %1655 = vmatprep.subr.bf16.mxu0 0
        %1656 = vmatpush1.bf16.msra.mxu0 %v1635
        %1657 = vmatprep.subr.bf16.mxu0 0
        %1658 = vmatpush1.bf16.msra.mxu0 %v1636
        %1659 = vmatprep.subr.bf16.mxu0 0
        %1660 = vmatpush1.bf16.msra.mxu0 %v1637
        %1661 = vmatprep.subr.bf16.mxu0 0
        %1662 = vmatpush1.bf16.msra.mxu0 %v1638
        %1663 = vmatprep.subr.bf16.mxu0 0
        %1664 = vmatpush1.bf16.msra.mxu0 0
        %1665 = vmatprep.subr.bf16.mxu0 0
        %1666 = vmatpush1.bf16.msra.mxu0 0
        %1667 = vmatprep.subr.bf16.mxu0 0
        %1668 = vmatpush1.bf16.msra.mxu0 0
        %1669 = vmatprep.subr.bf16.mxu0 0
        %1670 = vmatpush1.bf16.msra.mxu0 0
        %1671 = vmatprep.subr.bf16.mxu0 0
        %1672 = vmatpush1.bf16.msra.mxu0 0
        %1673 = vmatprep.subr.bf16.mxu0 0
        %1674 = vmatpush1.bf16.msra.mxu0 0
        %1675 = vmatprep.subr.bf16.mxu0 0
        %1676 = vmatpush1.bf16.msra.mxu0 0
        %1677 = vmatprep.subr.bf16.mxu0 0
        %1678 = vmatpush1.bf16.msra.mxu0 0
        %1679 = vmatprep.mubr.bf16.mxu0 0
        %1680 = vmatmul.mubr.bf16.gmra.mrb[0].mxu0 %v1170
        %v1681 = vpop.f32.mrb[0].mxu0
        %v1682 = vadd.f32 0.0, %v1681
        %v1683 = vpop.f32.mrb[0].mxu0
        %v1684 = vpop.f32.mrb[0].mxu0
        %v1685 = vadd.f32 0.0, %v1684
        %v1686 = vpop.f32.mrb[0].mxu0
        %1687 = vmatprep.mubr.bf16.mxu0 0
        %1688 = vmatmul.mubr.bf16.gmra.mrb[0].mxu0 %v1171
        %v1689 = vpop.f32.mrb[0].mxu0
        %v1690 = vadd.f32 0.0, %v1689
        %v1691 = vpop.f32.mrb[0].mxu0
        %v1692 = vpop.f32.mrb[0].mxu0
        %v1693 = vadd.f32 0.0, %v1692
        %v1694 = vpop.f32.mrb[0].mxu0
        %1695 = vmatprep.mubr.bf16.mxu0 0
        %1696 = vmatmul.mubr.bf16.gmra.mrb[0].mxu0 %v1172
        %v1697 = vpop.f32.mrb[0].mxu0
        %v1698 = vadd.f32 0.0, %v1697
        %v1699 = vpop.f32.mrb[0].mxu0
        %v1700 = vpop.f32.mrb[0].mxu0
        %v1701 = vadd.f32 0.0, %v1700
        %v1702 = vpop.f32.mrb[0].mxu0
        %1703 = vmatprep.mubr.bf16.mxu0 0
        %1704 = vmatmul.mubr.bf16.gmra.mrb[0].mxu0 %v1173
        %v1705 = vpop.f32.mrb[0].mxu0
        %v1706 = vadd.f32 0.0, %v1705
        %v1707 = vpop.f32.mrb[0].mxu0
        %v1708 = vpop.f32.mrb[0].mxu0
        %v1709 = vadd.f32 0.0, %v1708
        %v1710 = vpop.f32.mrb[0].mxu0
        %1711 = vmatprep.mubr.bf16.mxu0 0
        %1712 = vmatmul.mubr.bf16.gmra.mrb[0].mxu0 %v1174
        %v1713 = vpop.f32.mrb[0].mxu0
        %v1714 = vadd.f32 0.0, %v1713
        %v1715 = vpop.f32.mrb[0].mxu0
        %v1716 = vpop.f32.mrb[0].mxu0
        %v1717 = vadd.f32 0.0, %v1716
        %v1718 = vpop.f32.mrb[0].mxu0
        %1719 = vmatprep.mubr.bf16.mxu0 0
        %1720 = vmatmul.mubr.bf16.gmra.mrb[0].mxu0 %v1175
        %v1721 = vpop.f32.mrb[0].mxu0
        %v1722 = vadd.f32 0.0, %v1721
        %v1723 = vpop.f32.mrb[0].mxu0
        %v1724 = vpop.f32.mrb[0].mxu0
        %v1725 = vadd.f32 0.0, %v1724
        %v1726 = vpop.f32.mrb[0].mxu0
        %1727 = vmatprep.mubr.bf16.mxu0 0
        %1728 = vmatmul.mubr.bf16.gmra.mrb[0].mxu0 %v1176
        %v1729 = vpop.f32.mrb[0].mxu0
        %v1730 = vadd.f32 0.0, %v1729
        %v1731 = vpop.f32.mrb[0].mxu0
        %v1732 = vpop.f32.mrb[0].mxu0
        %v1733 = vadd.f32 0.0, %v1732
        %v1734 = vpop.f32.mrb[0].mxu0
        %1735 = vmatprep.mubr.bf16.mxu0 0
        %1736 = vmatmul.mubr.bf16.gmra.mrb[0].mxu0 %v1177
        %v1737 = vpop.f32.mrb[0].mxu0
        %v1738 = vadd.f32 0.0, %v1737
        %v1739 = vpop.f32.mrb[0].mxu0
        %v1740 = vpop.f32.mrb[0].mxu0
        %v1741 = vadd.f32 0.0, %v1740
        %v1742 = vpop.f32.mrb[0].mxu0
        %1743 = vdwg.mxu0
        %v1744 = vrot.slane %v1682, 1
        %v1745 = vrot.slane %v1685, 1
        %v1746 = vrot.slane %v1690, 1
        %v1747 = vrot.slane %v1693, 1
        %v1748 = vrot.slane %v1698, 1
        %v1749 = vrot.slane %v1701, 1
        %v1750 = vrot.slane %v1706, 1
        %v1751 = vrot.slane %v1709, 1
        %v1752 = vrot.slane %v1714, 1
        %v1753 = vrot.slane %v1717, 1
        %v1754 = vrot.slane %v1722, 1
        %v1755 = vrot.slane %v1725, 1
        %v1756 = vrot.slane %v1730, 1
        %v1757 = vrot.slane %v1733, 1
        %v1758 = vrot.slane %v1738, 1
        %v1759 = vrot.slane %v1741, 1
        %v1760 = vsel %vm1041, %v1758, %v1759
        %v1761 = vsel %vm1041, %v1757, %v1758
        %v1762 = vsel %vm1041, %v1756, %v1757
        %v1763 = vsel %vm1041, %v1755, %v1756
        %v1764 = vsel %vm1041, %v1754, %v1755
        %v1765 = vsel %vm1041, %v1753, %v1754
        %v1766 = vsel %vm1041, %v1752, %v1753
        %v1767 = vsel %vm1041, %v1751, %v1752
        %v1768 = vsel %vm1041, %v1750, %v1751
        %v1769 = vsel %vm1041, %v1749, %v1750
        %v1770 = vsel %vm1041, %v1748, %v1749
        %v1771 = vsel %vm1041, %v1747, %v1748
        %v1772 = vsel %vm1041, %v1746, %v1747
        %v1773 = vsel %vm1041, %v1745, %v1746
        %v1774 = vsel %vm1041, %v1744, %v1745
        %v1775 = vsel %vm1041, %v1759, %v1744
        %v1776 = vmul.f32 %v1774, %v1061
        %v1777 = vmul.f32 %v1773, %v1066
        %v1778 = vmul.f32 %v1772, %v1071
        %v1779 = vmul.f32 %v1771, %v1076
        %v1780 = vmul.f32 %v1770, %v1081
        %v1781 = vmul.f32 %v1769, %v1086
        %v1782 = vmul.f32 %v1768, %v1091
        %v1783 = vmul.f32 %v1767, %v1096
        %v1784 = vmul.f32 %v1766, %v1101
        %v1785 = vmul.f32 %v1765, %v1106
        %v1786 = vmul.f32 %v1764, %v1111
        %v1787 = vmul.f32 %v1763, %v1116
        %v1788 = vmul.f32 %v1762, %v1121
        %v1789 = vmul.f32 %v1761, %v1126
        %v1790 = vmul.f32 %v1760, %v1131
        %v1791 = vmul.f32 %v1775, %v1136
        %v1792 = vadd.f32 %v1566, %v1776
        %v1793 = vadd.f32 %v1567, %v1777
        %v1794 = vadd.f32 %v1568, %v1778
        %v1795 = vadd.f32 %v1569, %v1779
        %v1796 = vadd.f32 %v1570, %v1780
        %v1797 = vadd.f32 %v1571, %v1781
        %v1798 = vadd.f32 %v1572, %v1782
        %v1799 = vadd.f32 %v1573, %v1783
        %v1800 = vadd.f32 %v1574, %v1784
        %v1801 = vadd.f32 %v1575, %v1785
        %v1802 = vadd.f32 %v1576, %v1786
        %v1803 = vadd.f32 %v1577, %v1787
        %v1804 = vadd.f32 %v1578, %v1788
        %v1805 = vadd.f32 %v1579, %v1789
        %v1806 = vadd.f32 %v1580, %v1790
        %v1807 = vadd.f32 %v1581, %v1791
        %v1808 = vld [vmem:[#allocation2 + $0x10] sm:$0xff]
        %v1809 = vld [vmem:[#allocation2 + $0x18] sm:$0xff]
        %v1810 = vld [vmem:[#allocation2 + $0x20] sm:$0xff]
        %v1811 = vld [vmem:[#allocation2 + $0x28] sm:$0xff]
        %v1812 = vld [vmem:[#allocation2 + $0x30] sm:$0xff]
        %v1813 = vld [vmem:[#allocation2 + $0x38] sm:$0xff]
        %v1814 = vld [vmem:[#allocation2 + $0x40] sm:$0xff]
        %v1815 = vld [vmem:[#allocation2 + $0x48] sm:$0xff]
        %s1816 = scalar_lea.vmem [#allocation4], 384
        %v1817 = vld [vmem:[%s1816] sm:$0xf]
        %v1818 = vld [vmem:[%s1816 + $0x4] sm:$0xf]
        %v1819 = vld [vmem:[%s1816 + $0x8] sm:$0xf]
        %v1820 = vld [vmem:[%s1816 + $0xc] sm:$0xf]
        %v1821 = vld [vmem:[%s1816 + $0x10] sm:$0xf]
        %v1822 = vld [vmem:[%s1816 + $0x14] sm:$0xf]
        %v1823 = vld [vmem:[%s1816 + $0x18] sm:$0xf]
        %v1824 = vld [vmem:[%s1816 + $0x1c] sm:$0xf]
        %v1825 = vld [vmem:[%s1816 + $0x20] sm:$0xf]
        %v1826 = vld [vmem:[%s1816 + $0x24] sm:$0xf]
        %v1827 = vld [vmem:[%s1816 + $0x28] sm:$0xf]
        %v1828 = vld [vmem:[%s1816 + $0x2c] sm:$0xf]
        %v1829 = vld [vmem:[%s1816 + $0x30] sm:$0xf]
        %v1830 = vld [vmem:[%s1816 + $0x34] sm:$0xf]
        %v1831 = vld [vmem:[%s1816 + $0x38] sm:$0xf]
        %v1832 = vld [vmem:[%s1816 + $0x3c] sm:$0xf]
        %v1849 = vunpack.c.l.b16 %v1817
        %v1850 = vunpack.c.l.b16 %v1818
        %v1851 = vunpack.c.l.b16 %v1819
        %v1852 = vunpack.c.l.b16 %v1820
        %v1853 = vunpack.c.l.b16 %v1821
        %v1854 = vunpack.c.l.b16 %v1822
        %v1855 = vunpack.c.l.b16 %v1823
        %v1856 = vunpack.c.l.b16 %v1824
        %v1857 = vunpack.c.l.b16 %v1825
        %v1858 = vunpack.c.l.b16 %v1826
        %v1859 = vunpack.c.l.b16 %v1827
        %v1860 = vunpack.c.l.b16 %v1828
        %v1861 = vunpack.c.l.b16 %v1829
        %v1862 = vunpack.c.l.b16 %v1830
        %v1863 = vunpack.c.l.b16 %v1831
        %v1864 = vunpack.c.l.b16 %v1832
        %v1865 = vpack.c.b16 %v1850, %v1849
        %v1866 = vpack.c.b16 %v1852, %v1851
        %v1867 = vpack.c.b16 %v1854, %v1853
        %v1868 = vpack.c.b16 %v1856, %v1855
        %v1869 = vpack.c.b16 %v1858, %v1857
        %v1870 = vpack.c.b16 %v1860, %v1859
        %v1871 = vpack.c.b16 %v1862, %v1861
        %v1872 = vpack.c.b16 %v1864, %v1863
        %1881 = vmatprep.subr.bf16.mxu0 0
        %1882 = vmatpush1.bf16.msra.mxu0 %v1865
        %1883 = vmatprep.subr.bf16.mxu0 0
        %1884 = vmatpush1.bf16.msra.mxu0 %v1866
        %1885 = vmatprep.subr.bf16.mxu0 0
        %1886 = vmatpush1.bf16.msra.mxu0 %v1867
        %1887 = vmatprep.subr.bf16.mxu0 0
        %1888 = vmatpush1.bf16.msra.mxu0 %v1868
        %1889 = vmatprep.subr.bf16.mxu0 0
        %1890 = vmatpush1.bf16.msra.mxu0 %v1869
        %1891 = vmatprep.subr.bf16.mxu0 0
        %1892 = vmatpush1.bf16.msra.mxu0 %v1870
        %1893 = vmatprep.subr.bf16.mxu0 0
        %1894 = vmatpush1.bf16.msra.mxu0 %v1871
        %1895 = vmatprep.subr.bf16.mxu0 0
        %1896 = vmatpush1.bf16.msra.mxu0 %v1872
        %1897 = vmatprep.subr.bf16.mxu0 0
        %1898 = vmatpush1.bf16.msra.mxu0 0
        %1899 = vmatprep.subr.bf16.mxu0 0
        %1900 = vmatpush1.bf16.msra.mxu0 0
        %1901 = vmatprep.subr.bf16.mxu0 0
        %1902 = vmatpush1.bf16.msra.mxu0 0
        %1903 = vmatprep.subr.bf16.mxu0 0
        %1904 = vmatpush1.bf16.msra.mxu0 0
        %1905 = vmatprep.subr.bf16.mxu0 0
        %1906 = vmatpush1.bf16.msra.mxu0 0
        %1907 = vmatprep.subr.bf16.mxu0 0
        %1908 = vmatpush1.bf16.msra.mxu0 0
        %1909 = vmatprep.subr.bf16.mxu0 0
        %1910 = vmatpush1.bf16.msra.mxu0 0
        %1911 = vmatprep.subr.bf16.mxu0 0
        %1912 = vmatpush1.bf16.msra.mxu0 0
        %1913 = vmatprep.mubr.bf16.mxu0 0
        %1914 = vmatmul.mubr.bf16.gmra.mrb[0].mxu0 %v1808
        %v1915 = vpop.f32.mrb[0].mxu0
        %v1916 = vadd.f32 0.0, %v1915
        %v1917 = vpop.f32.mrb[0].mxu0
        %v1918 = vpop.f32.mrb[0].mxu0
        %v1919 = vadd.f32 0.0, %v1918
        %v1920 = vpop.f32.mrb[0].mxu0
        %1921 = vmatprep.mubr.bf16.mxu0 0
        %1922 = vmatmul.mubr.bf16.gmra.mrb[0].mxu0 %v1809
        %v1923 = vpop.f32.mrb[0].mxu0
        %v1924 = vadd.f32 0.0, %v1923
        %v1925 = vpop.f32.mrb[0].mxu0
        %v1926 = vpop.f32.mrb[0].mxu0
        %v1927 = vadd.f32 0.0, %v1926
        %v1928 = vpop.f32.mrb[0].mxu0
        %1929 = vmatprep.mubr.bf16.mxu0 0
        %1930 = vmatmul.mubr.bf16.gmra.mrb[0].mxu0 %v1810
        %v1931 = vpop.f32.mrb[0].mxu0
        %v1932 = vadd.f32 0.0, %v1931
        %v1933 = vpop.f32.mrb[0].mxu0
        %v1934 = vpop.f32.mrb[0].mxu0
        %v1935 = vadd.f32 0.0, %v1934
        %v1936 = vpop.f32.mrb[0].mxu0
        %1937 = vmatprep.mubr.bf16.mxu0 0
        %1938 = vmatmul.mubr.bf16.gmra.mrb[0].mxu0 %v1811
        %v1939 = vpop.f32.mrb[0].mxu0
        %v1940 = vadd.f32 0.0, %v1939
        %v1941 = vpop.f32.mrb[0].mxu0
        %v1942 = vpop.f32.mrb[0].mxu0
        %v1943 = vadd.f32 0.0, %v1942
        %v1944 = vpop.f32.mrb[0].mxu0
        %1945 = vmatprep.mubr.bf16.mxu0 0
        %1946 = vmatmul.mubr.bf16.gmra.mrb[0].mxu0 %v1812
        %v1947 = vpop.f32.mrb[0].mxu0
        %v1948 = vadd.f32 0.0, %v1947
        %v1949 = vpop.f32.mrb[0].mxu0
        %v1950 = vpop.f32.mrb[0].mxu0
        %v1951 = vadd.f32 0.0, %v1950
        %v1952 = vpop.f32.mrb[0].mxu0
        %1953 = vmatprep.mubr.bf16.mxu0 0
        %1954 = vmatmul.mubr.bf16.gmra.mrb[0].mxu0 %v1813
        %v1955 = vpop.f32.mrb[0].mxu0
        %v1956 = vadd.f32 0.0, %v1955
        %v1957 = vpop.f32.mrb[0].mxu0
        %v1958 = vpop.f32.mrb[0].mxu0
        %v1959 = vadd.f32 0.0, %v1958
        %v1960 = vpop.f32.mrb[0].mxu0
        %1961 = vmatprep.mubr.bf16.mxu0 0
        %1962 = vmatmul.mubr.bf16.gmra.mrb[0].mxu0 %v1814
        %v1963 = vpop.f32.mrb[0].mxu0
        %v1964 = vadd.f32 0.0, %v1963
        %v1965 = vpop.f32.mrb[0].mxu0
        %v1966 = vpop.f32.mrb[0].mxu0
        %v1967 = vadd.f32 0.0, %v1966
        %v1968 = vpop.f32.mrb[0].mxu0
        %1969 = vmatprep.mubr.bf16.mxu0 0
        %1970 = vmatmul.mubr.bf16.gmra.mrb[0].mxu0 %v1815
        %v1971 = vpop.f32.mrb[0].mxu0
        %v1972 = vadd.f32 0.0, %v1971
        %v1973 = vpop.f32.mrb[0].mxu0
        %v1974 = vpop.f32.mrb[0].mxu0
        %v1975 = vadd.f32 0.0, %v1974
        %v1976 = vpop.f32.mrb[0].mxu0
        %1977 = vdwg.mxu0
        %v1978 = vrot.slane %v1916, 7
        %v1979 = vrot.slane %v1919, 7
        %v1980 = vrot.slane %v1924, 7
        %v1981 = vrot.slane %v1927, 7
        %v1982 = vrot.slane %v1932, 7
        %v1983 = vrot.slane %v1935, 7
        %v1984 = vrot.slane %v1940, 7
        %v1985 = vrot.slane %v1943, 7
        %v1986 = vrot.slane %v1948, 7
        %v1987 = vrot.slane %v1951, 7
        %v1988 = vrot.slane %v1956, 7
        %v1989 = vrot.slane %v1959, 7
        %v1990 = vrot.slane %v1964, 7
        %v1991 = vrot.slane %v1967, 7
        %v1992 = vrot.slane %v1972, 7
        %v1993 = vrot.slane %v1975, 7
        %v1994 = vsel %vm556, %v1992, %v1993
        %v1995 = vsel %vm556, %v1991, %v1992
        %v1996 = vsel %vm556, %v1990, %v1991
        %v1997 = vsel %vm556, %v1989, %v1990
        %v1998 = vsel %vm556, %v1988, %v1989
        %v1999 = vsel %vm556, %v1987, %v1988
        %v2000 = vsel %vm556, %v1986, %v1987
        %v2001 = vsel %vm556, %v1985, %v1986
        %v2002 = vsel %vm556, %v1984, %v1985
        %v2003 = vsel %vm556, %v1983, %v1984
        %v2004 = vsel %vm556, %v1982, %v1983
        %v2005 = vsel %vm556, %v1981, %v1982
        %v2006 = vsel %vm556, %v1980, %v1981
        %v2007 = vsel %vm556, %v1979, %v1980
        %v2008 = vsel %vm556, %v1978, %v1979
        %v2009 = vsel %vm556, %v1993, %v1978
        %v2010 = vmul.f32 %v2009, %v576
        %v2011 = vmul.f32 %v2008, %v581
        %v2012 = vmul.f32 %v2007, %v586
        %v2013 = vmul.f32 %v2006, %v591
        %v2014 = vmul.f32 %v2005, %v596
        %v2015 = vmul.f32 %v2004, %v601
        %v2016 = vmul.f32 %v2003, %v606
        %v2017 = vmul.f32 %v2002, %v611
        %v2018 = vmul.f32 %v2001, %v616
        %v2019 = vmul.f32 %v2000, %v621
        %v2020 = vmul.f32 %v1999, %v626
        %v2021 = vmul.f32 %v1998, %v631
        %v2022 = vmul.f32 %v1997, %v636
        %v2023 = vmul.f32 %v1996, %v641
        %v2024 = vmul.f32 %v1995, %v646
        %v2025 = vmul.f32 %v1994, %v651
        %v2026 = vadd.f32 %v1792, %v2010
        %v2027 = vadd.f32 %v1793, %v2011
        %v2028 = vadd.f32 %v1794, %v2012
        %v2029 = vadd.f32 %v1795, %v2013
        %v2030 = vadd.f32 %v1796, %v2014
        %v2031 = vadd.f32 %v1797, %v2015
        %v2032 = vadd.f32 %v1798, %v2016
        %v2033 = vadd.f32 %v1799, %v2017
        %v2034 = vadd.f32 %v1800, %v2018
        %v2035 = vadd.f32 %v1801, %v2019
        %v2036 = vadd.f32 %v1802, %v2020
        %v2037 = vadd.f32 %v1803, %v2021
        %v2038 = vadd.f32 %v1804, %v2022
        %v2039 = vadd.f32 %v1805, %v2023
        %v2040 = vadd.f32 %v1806, %v2024
        %v2041 = vadd.f32 %v1807, %v2025
        %s2042 = scalar_lea.vmem [#allocation4], 448
        %v2043 = vld [vmem:[%s2042] sm:$0xf]
        %v2044 = vld [vmem:[%s2042 + $0x4] sm:$0xf]
        %v2045 = vld [vmem:[%s2042 + $0x8] sm:$0xf]
        %v2046 = vld [vmem:[%s2042 + $0xc] sm:$0xf]
        %v2047 = vld [vmem:[%s2042 + $0x10] sm:$0xf]
        %v2048 = vld [vmem:[%s2042 + $0x14] sm:$0xf]
        %v2049 = vld [vmem:[%s2042 + $0x18] sm:$0xf]
        %v2050 = vld [vmem:[%s2042 + $0x1c] sm:$0xf]
        %v2051 = vld [vmem:[%s2042 + $0x20] sm:$0xf]
        %v2052 = vld [vmem:[%s2042 + $0x24] sm:$0xf]
        %v2053 = vld [vmem:[%s2042 + $0x28] sm:$0xf]
        %v2054 = vld [vmem:[%s2042 + $0x2c] sm:$0xf]
        %v2055 = vld [vmem:[%s2042 + $0x30] sm:$0xf]
        %v2056 = vld [vmem:[%s2042 + $0x34] sm:$0xf]
        %v2057 = vld [vmem:[%s2042 + $0x38] sm:$0xf]
        %v2058 = vld [vmem:[%s2042 + $0x3c] sm:$0xf]
        %v2075 = vunpack.c.l.b16 %v2043
        %v2076 = vunpack.c.l.b16 %v2044
        %v2077 = vunpack.c.l.b16 %v2045
        %v2078 = vunpack.c.l.b16 %v2046
        %v2079 = vunpack.c.l.b16 %v2047
        %v2080 = vunpack.c.l.b16 %v2048
        %v2081 = vunpack.c.l.b16 %v2049
        %v2082 = vunpack.c.l.b16 %v2050
        %v2083 = vunpack.c.l.b16 %v2051
        %v2084 = vunpack.c.l.b16 %v2052
        %v2085 = vunpack.c.l.b16 %v2053
        %v2086 = vunpack.c.l.b16 %v2054
        %v2087 = vunpack.c.l.b16 %v2055
        %v2088 = vunpack.c.l.b16 %v2056
        %v2089 = vunpack.c.l.b16 %v2057
        %v2090 = vunpack.c.l.b16 %v2058
        %v2091 = vpack.c.b16 %v2076, %v2075
        %v2092 = vpack.c.b16 %v2078, %v2077
        %v2093 = vpack.c.b16 %v2080, %v2079
        %v2094 = vpack.c.b16 %v2082, %v2081
        %v2095 = vpack.c.b16 %v2084, %v2083
        %v2096 = vpack.c.b16 %v2086, %v2085
        %v2097 = vpack.c.b16 %v2088, %v2087
        %v2098 = vpack.c.b16 %v2090, %v2089
        %2107 = vmatprep.subr.bf16.mxu0 0
        %2108 = vmatpush1.bf16.msra.mxu0 %v2091
        %2109 = vmatprep.subr.bf16.mxu0 0
        %2110 = vmatpush1.bf16.msra.mxu0 %v2092
        %2111 = vmatprep.subr.bf16.mxu0 0
        %2112 = vmatpush1.bf16.msra.mxu0 %v2093
        %2113 = vmatprep.subr.bf16.mxu0 0
        %2114 = vmatpush1.bf16.msra.mxu0 %v2094
        %2115 = vmatprep.subr.bf16.mxu0 0
        %2116 = vmatpush1.bf16.msra.mxu0 %v2095
        %2117 = vmatprep.subr.bf16.mxu0 0
        %2118 = vmatpush1.bf16.msra.mxu0 %v2096
        %2119 = vmatprep.subr.bf16.mxu0 0
        %2120 = vmatpush1.bf16.msra.mxu0 %v2097
        %2121 = vmatprep.subr.bf16.mxu0 0
        %2122 = vmatpush1.bf16.msra.mxu0 %v2098
        %2123 = vmatprep.subr.bf16.mxu0 0
        %2124 = vmatpush1.bf16.msra.mxu0 0
        %2125 = vmatprep.subr.bf16.mxu0 0
        %2126 = vmatpush1.bf16.msra.mxu0 0
        %2127 = vmatprep.subr.bf16.mxu0 0
        %2128 = vmatpush1.bf16.msra.mxu0 0
        %2129 = vmatprep.subr.bf16.mxu0 0
        %2130 = vmatpush1.bf16.msra.mxu0 0
        %2131 = vmatprep.subr.bf16.mxu0 0
        %2132 = vmatpush1.bf16.msra.mxu0 0
        %2133 = vmatprep.subr.bf16.mxu0 0
        %2134 = vmatpush1.bf16.msra.mxu0 0
        %2135 = vmatprep.subr.bf16.mxu0 0
        %2136 = vmatpush1.bf16.msra.mxu0 0
        %2137 = vmatprep.subr.bf16.mxu0 0
        %2138 = vmatpush1.bf16.msra.mxu0 0
        %2139 = vmatprep.mubr.bf16.mxu0 0
        %2140 = vmatmul.mubr.bf16.gmra.mrb[0].mxu0 %v1808
        %v2141 = vpop.f32.mrb[0].mxu0
        %v2142 = vadd.f32 0.0, %v2141
        %v2143 = vpop.f32.mrb[0].mxu0
        %v2144 = vpop.f32.mrb[0].mxu0
        %v2145 = vadd.f32 0.0, %v2144
        %v2146 = vpop.f32.mrb[0].mxu0
        %2147 = vmatprep.mubr.bf16.mxu0 0
        %2148 = vmatmul.mubr.bf16.gmra.mrb[0].mxu0 %v1809
        %v2149 = vpop.f32.mrb[0].mxu0
        %v2150 = vadd.f32 0.0, %v2149
        %v2151 = vpop.f32.mrb[0].mxu0
        %v2152 = vpop.f32.mrb[0].mxu0
        %v2153 = vadd.f32 0.0, %v2152
        %v2154 = vpop.f32.mrb[0].mxu0
        %2155 = vmatprep.mubr.bf16.mxu0 0
        %2156 = vmatmul.mubr.bf16.gmra.mrb[0].mxu0 %v1810
        %v2157 = vpop.f32.mrb[0].mxu0
        %v2158 = vadd.f32 0.0, %v2157
        %v2159 = vpop.f32.mrb[0].mxu0
        %v2160 = vpop.f32.mrb[0].mxu0
        %v2161 = vadd.f32 0.0, %v2160
        %v2162 = vpop.f32.mrb[0].mxu0
        %2163 = vmatprep.mubr.bf16.mxu0 0
        %2164 = vmatmul.mubr.bf16.gmra.mrb[0].mxu0 %v1811
        %v2165 = vpop.f32.mrb[0].mxu0
        %v2166 = vadd.f32 0.0, %v2165
        %v2167 = vpop.f32.mrb[0].mxu0
        %v2168 = vpop.f32.mrb[0].mxu0
        %v2169 = vadd.f32 0.0, %v2168
        %v2170 = vpop.f32.mrb[0].mxu0
        %2171 = vmatprep.mubr.bf16.mxu0 0
        %2172 = vmatmul.mubr.bf16.gmra.mrb[0].mxu0 %v1812
        %v2173 = vpop.f32.mrb[0].mxu0
        %v2174 = vadd.f32 0.0, %v2173
        %v2175 = vpop.f32.mrb[0].mxu0
        %v2176 = vpop.f32.mrb[0].mxu0
        %v2177 = vadd.f32 0.0, %v2176
        %v2178 = vpop.f32.mrb[0].mxu0
        %2179 = vmatprep.mubr.bf16.mxu0 0
        %2180 = vmatmul.mubr.bf16.gmra.mrb[0].mxu0 %v1813
        %v2181 = vpop.f32.mrb[0].mxu0
        %v2182 = vadd.f32 0.0, %v2181
        %v2183 = vpop.f32.mrb[0].mxu0
        %v2184 = vpop.f32.mrb[0].mxu0
        %v2185 = vadd.f32 0.0, %v2184
        %v2186 = vpop.f32.mrb[0].mxu0
        %2187 = vmatprep.mubr.bf16.mxu0 0
        %2188 = vmatmul.mubr.bf16.gmra.mrb[0].mxu0 %v1814
        %v2189 = vpop.f32.mrb[0].mxu0
        %v2190 = vadd.f32 0.0, %v2189
        %v2191 = vpop.f32.mrb[0].mxu0
        %v2192 = vpop.f32.mrb[0].mxu0
        %v2193 = vadd.f32 0.0, %v2192
        %v2194 = vpop.f32.mrb[0].mxu0
        %2195 = vmatprep.mubr.bf16.mxu0 0
        %2196 = vmatmul.mubr.bf16.gmra.mrb[0].mxu0 %v1815
        %v2197 = vpop.f32.mrb[0].mxu0
        %v2198 = vadd.f32 0.0, %v2197
        %v2199 = vpop.f32.mrb[0].mxu0
        %v2200 = vpop.f32.mrb[0].mxu0
        %v2201 = vadd.f32 0.0, %v2200
        %v2202 = vpop.f32.mrb[0].mxu0
        %2203 = vdwg.mxu0
        %v2204 = vadd.f32 %v2026, %v2142
        %v2205 = vadd.f32 %v2027, %v2145
        %v2206 = vadd.f32 %v2028, %v2150
        %v2207 = vadd.f32 %v2029, %v2153
        %v2208 = vadd.f32 %v2030, %v2158
        %v2209 = vadd.f32 %v2031, %v2161
        %v2210 = vadd.f32 %v2032, %v2166
        %v2211 = vadd.f32 %v2033, %v2169
        %v2212 = vadd.f32 %v2034, %v2174
        %v2213 = vadd.f32 %v2035, %v2177
        %v2214 = vadd.f32 %v2036, %v2182
        %v2215 = vadd.f32 %v2037, %v2185
        %v2216 = vadd.f32 %v2038, %v2190
        %v2217 = vadd.f32 %v2039, %v2193
        %v2218 = vadd.f32 %v2040, %v2198
        %v2219 = vadd.f32 %v2041, %v2201
        %s2220 = scalar_lea.vmem [#allocation4], 512
        %v2221 = vld [vmem:[%s2220] sm:$0xf]
        %v2222 = vld [vmem:[%s2220 + $0x4] sm:$0xf]
        %v2223 = vld [vmem:[%s2220 + $0x8] sm:$0xf]
        %v2224 = vld [vmem:[%s2220 + $0xc] sm:$0xf]
        %v2225 = vld [vmem:[%s2220 + $0x10] sm:$0xf]
        %v2226 = vld [vmem:[%s2220 + $0x14] sm:$0xf]
        %v2227 = vld [vmem:[%s2220 + $0x18] sm:$0xf]
        %v2228 = vld [vmem:[%s2220 + $0x1c] sm:$0xf]
        %v2229 = vld [vmem:[%s2220 + $0x20] sm:$0xf]
        %v2230 = vld [vmem:[%s2220 + $0x24] sm:$0xf]
        %v2231 = vld [vmem:[%s2220 + $0x28] sm:$0xf]
        %v2232 = vld [vmem:[%s2220 + $0x2c] sm:$0xf]
        %v2233 = vld [vmem:[%s2220 + $0x30] sm:$0xf]
        %v2234 = vld [vmem:[%s2220 + $0x34] sm:$0xf]
        %v2235 = vld [vmem:[%s2220 + $0x38] sm:$0xf]
        %v2236 = vld [vmem:[%s2220 + $0x3c] sm:$0xf]
        %v2253 = vunpack.c.l.b16 %v2221
        %v2254 = vunpack.c.l.b16 %v2222
        %v2255 = vunpack.c.l.b16 %v2223
        %v2256 = vunpack.c.l.b16 %v2224
        %v2257 = vunpack.c.l.b16 %v2225
        %v2258 = vunpack.c.l.b16 %v2226
        %v2259 = vunpack.c.l.b16 %v2227
        %v2260 = vunpack.c.l.b16 %v2228
        %v2261 = vunpack.c.l.b16 %v2229
        %v2262 = vunpack.c.l.b16 %v2230
        %v2263 = vunpack.c.l.b16 %v2231
        %v2264 = vunpack.c.l.b16 %v2232
        %v2265 = vunpack.c.l.b16 %v2233
        %v2266 = vunpack.c.l.b16 %v2234
        %v2267 = vunpack.c.l.b16 %v2235
        %v2268 = vunpack.c.l.b16 %v2236
        %v2269 = vpack.c.b16 %v2254, %v2253
        %v2270 = vpack.c.b16 %v2256, %v2255
        %v2271 = vpack.c.b16 %v2258, %v2257
        %v2272 = vpack.c.b16 %v2260, %v2259
        %v2273 = vpack.c.b16 %v2262, %v2261
        %v2274 = vpack.c.b16 %v2264, %v2263
        %v2275 = vpack.c.b16 %v2266, %v2265
        %v2276 = vpack.c.b16 %v2268, %v2267
        %2285 = vmatprep.subr.bf16.mxu0 0
        %2286 = vmatpush1.bf16.msra.mxu0 %v2269
        %2287 = vmatprep.subr.bf16.mxu0 0
        %2288 = vmatpush1.bf16.msra.mxu0 %v2270
        %2289 = vmatprep.subr.bf16.mxu0 0
        %2290 = vmatpush1.bf16.msra.mxu0 %v2271
        %2291 = vmatprep.subr.bf16.mxu0 0
        %2292 = vmatpush1.bf16.msra.mxu0 %v2272
        %2293 = vmatprep.subr.bf16.mxu0 0
        %2294 = vmatpush1.bf16.msra.mxu0 %v2273
        %2295 = vmatprep.subr.bf16.mxu0 0
        %2296 = vmatpush1.bf16.msra.mxu0 %v2274
        %2297 = vmatprep.subr.bf16.mxu0 0
        %2298 = vmatpush1.bf16.msra.mxu0 %v2275
        %2299 = vmatprep.subr.bf16.mxu0 0
        %2300 = vmatpush1.bf16.msra.mxu0 %v2276
        %2301 = vmatprep.subr.bf16.mxu0 0
        %2302 = vmatpush1.bf16.msra.mxu0 0
        %2303 = vmatprep.subr.bf16.mxu0 0
        %2304 = vmatpush1.bf16.msra.mxu0 0
        %2305 = vmatprep.subr.bf16.mxu0 0
        %2306 = vmatpush1.bf16.msra.mxu0 0
        %2307 = vmatprep.subr.bf16.mxu0 0
        %2308 = vmatpush1.bf16.msra.mxu0 0
        %2309 = vmatprep.subr.bf16.mxu0 0
        %2310 = vmatpush1.bf16.msra.mxu0 0
        %2311 = vmatprep.subr.bf16.mxu0 0
        %2312 = vmatpush1.bf16.msra.mxu0 0
        %2313 = vmatprep.subr.bf16.mxu0 0
        %2314 = vmatpush1.bf16.msra.mxu0 0
        %2315 = vmatprep.subr.bf16.mxu0 0
        %2316 = vmatpush1.bf16.msra.mxu0 0
        %2317 = vmatprep.mubr.bf16.mxu0 0
        %2318 = vmatmul.mubr.bf16.gmra.mrb[0].mxu0 %v1808
        %v2319 = vpop.f32.mrb[0].mxu0
        %v2320 = vadd.f32 0.0, %v2319
        %v2321 = vpop.f32.mrb[0].mxu0
        %v2322 = vpop.f32.mrb[0].mxu0
        %v2323 = vadd.f32 0.0, %v2322
        %v2324 = vpop.f32.mrb[0].mxu0
        %2325 = vmatprep.mubr.bf16.mxu0 0
        %2326 = vmatmul.mubr.bf16.gmra.mrb[0].mxu0 %v1809
        %v2327 = vpop.f32.mrb[0].mxu0
        %v2328 = vadd.f32 0.0, %v2327
        %v2329 = vpop.f32.mrb[0].mxu0
        %v2330 = vpop.f32.mrb[0].mxu0
        %v2331 = vadd.f32 0.0, %v2330
        %v2332 = vpop.f32.mrb[0].mxu0
        %2333 = vmatprep.mubr.bf16.mxu0 0
        %2334 = vmatmul.mubr.bf16.gmra.mrb[0].mxu0 %v1810
        %v2335 = vpop.f32.mrb[0].mxu0
        %v2336 = vadd.f32 0.0, %v2335
        %v2337 = vpop.f32.mrb[0].mxu0
        %v2338 = vpop.f32.mrb[0].mxu0
        %v2339 = vadd.f32 0.0, %v2338
        %v2340 = vpop.f32.mrb[0].mxu0
        %2341 = vmatprep.mubr.bf16.mxu0 0
        %2342 = vmatmul.mubr.bf16.gmra.mrb[0].mxu0 %v1811
        %v2343 = vpop.f32.mrb[0].mxu0
        %v2344 = vadd.f32 0.0, %v2343
        %v2345 = vpop.f32.mrb[0].mxu0
        %v2346 = vpop.f32.mrb[0].mxu0
        %v2347 = vadd.f32 0.0, %v2346
        %v2348 = vpop.f32.mrb[0].mxu0
        %2349 = vmatprep.mubr.bf16.mxu0 0
        %2350 = vmatmul.mubr.bf16.gmra.mrb[0].mxu0 %v1812
        %v2351 = vpop.f32.mrb[0].mxu0
        %v2352 = vadd.f32 0.0, %v2351
        %v2353 = vpop.f32.mrb[0].mxu0
        %v2354 = vpop.f32.mrb[0].mxu0
        %v2355 = vadd.f32 0.0, %v2354
        %v2356 = vpop.f32.mrb[0].mxu0
        %2357 = vmatprep.mubr.bf16.mxu0 0
        %2358 = vmatmul.mubr.bf16.gmra.mrb[0].mxu0 %v1813
        %v2359 = vpop.f32.mrb[0].mxu0
        %v2360 = vadd.f32 0.0, %v2359
        %v2361 = vpop.f32.mrb[0].mxu0
        %v2362 = vpop.f32.mrb[0].mxu0
        %v2363 = vadd.f32 0.0, %v2362
        %v2364 = vpop.f32.mrb[0].mxu0
        %2365 = vmatprep.mubr.bf16.mxu0 0
        %2366 = vmatmul.mubr.bf16.gmra.mrb[0].mxu0 %v1814
        %v2367 = vpop.f32.mrb[0].mxu0
        %v2368 = vadd.f32 0.0, %v2367
        %v2369 = vpop.f32.mrb[0].mxu0
        %v2370 = vpop.f32.mrb[0].mxu0
        %v2371 = vadd.f32 0.0, %v2370
        %v2372 = vpop.f32.mrb[0].mxu0
        %2373 = vmatprep.mubr.bf16.mxu0 0
        %2374 = vmatmul.mubr.bf16.gmra.mrb[0].mxu0 %v1815
        %v2375 = vpop.f32.mrb[0].mxu0
        %v2376 = vadd.f32 0.0, %v2375
        %v2377 = vpop.f32.mrb[0].mxu0
        %v2378 = vpop.f32.mrb[0].mxu0
        %v2379 = vadd.f32 0.0, %v2378
        %v2380 = vpop.f32.mrb[0].mxu0
        %2381 = vdwg.mxu0
        %v2382 = vrot.slane %v2320, 1
        %v2383 = vrot.slane %v2323, 1
        %v2384 = vrot.slane %v2328, 1
        %v2385 = vrot.slane %v2331, 1
        %v2386 = vrot.slane %v2336, 1
        %v2387 = vrot.slane %v2339, 1
        %v2388 = vrot.slane %v2344, 1
        %v2389 = vrot.slane %v2347, 1
        %v2390 = vrot.slane %v2352, 1
        %v2391 = vrot.slane %v2355, 1
        %v2392 = vrot.slane %v2360, 1
        %v2393 = vrot.slane %v2363, 1
        %v2394 = vrot.slane %v2368, 1
        %v2395 = vrot.slane %v2371, 1
        %v2396 = vrot.slane %v2376, 1
        %v2397 = vrot.slane %v2379, 1
        %v2398 = vsel %vm1041, %v2396, %v2397
        %v2399 = vsel %vm1041, %v2395, %v2396
        %v2400 = vsel %vm1041, %v2394, %v2395
        %v2401 = vsel %vm1041, %v2393, %v2394
        %v2402 = vsel %vm1041, %v2392, %v2393
        %v2403 = vsel %vm1041, %v2391, %v2392
        %v2404 = vsel %vm1041, %v2390, %v2391
        %v2405 = vsel %vm1041, %v2389, %v2390
        %v2406 = vsel %vm1041, %v2388, %v2389
        %v2407 = vsel %vm1041, %v2387, %v2388
        %v2408 = vsel %vm1041, %v2386, %v2387
        %v2409 = vsel %vm1041, %v2385, %v2386
        %v2410 = vsel %vm1041, %v2384, %v2385
        %v2411 = vsel %vm1041, %v2383, %v2384
        %v2412 = vsel %vm1041, %v2382, %v2383
        %v2413 = vsel %vm1041, %v2397, %v2382
        %v2414 = vmul.f32 %v2412, %v1061
        %v2415 = vmul.f32 %v2411, %v1066
        %v2416 = vmul.f32 %v2410, %v1071
        %v2417 = vmul.f32 %v2409, %v1076
        %v2418 = vmul.f32 %v2408, %v1081
        %v2419 = vmul.f32 %v2407, %v1086
        %v2420 = vmul.f32 %v2406, %v1091
        %v2421 = vmul.f32 %v2405, %v1096
        %v2422 = vmul.f32 %v2404, %v1101
        %v2423 = vmul.f32 %v2403, %v1106
        %v2424 = vmul.f32 %v2402, %v1111
        %v2425 = vmul.f32 %v2401, %v1116
        %v2426 = vmul.f32 %v2400, %v1121
        %v2427 = vmul.f32 %v2399, %v1126
        %v2428 = vmul.f32 %v2398, %v1131
        %v2429 = vmul.f32 %v2413, %v1136
        %v2430 = vadd.f32 %v2204, %v2414
        %v2431 = vadd.f32 %v2205, %v2415
        %v2432 = vadd.f32 %v2206, %v2416
        %v2433 = vadd.f32 %v2207, %v2417
        %v2434 = vadd.f32 %v2208, %v2418
        %v2435 = vadd.f32 %v2209, %v2419
        %v2436 = vadd.f32 %v2210, %v2420
        %v2437 = vadd.f32 %v2211, %v2421
        %v2438 = vadd.f32 %v2212, %v2422
        %v2439 = vadd.f32 %v2213, %v2423
        %v2440 = vadd.f32 %v2214, %v2424
        %v2441 = vadd.f32 %v2215, %v2425
        %v2442 = vadd.f32 %v2216, %v2426
        %v2443 = vadd.f32 %v2217, %v2427
        %v2444 = vadd.f32 %v2218, %v2428
        %v2445 = vadd.f32 %v2219, %v2429
        %v2446 = vld [vmem:[%s2] sm:$0x1]
        %v2448 = vlaneseq
        %v2449 = vshrl.u32 %v2448, 7
        %v2450 = vsub.s32 0, %v2449
        %v2451 = vrot.slane %v2446, %v2450
        %v2453 = vadd.f32 %v2430, %v2451
        %v2454 = vadd.f32 %v2431, %v2451
        %v2455 = vadd.f32 %v2432, %v2451
        %v2456 = vadd.f32 %v2433, %v2451
        %v2457 = vadd.f32 %v2434, %v2451
        %v2458 = vadd.f32 %v2435, %v2451
        %v2459 = vadd.f32 %v2436, %v2451
        %v2460 = vadd.f32 %v2437, %v2451
        %v2461 = vadd.f32 %v2438, %v2451
        %v2462 = vadd.f32 %v2439, %v2451
        %v2463 = vadd.f32 %v2440, %v2451
        %v2464 = vadd.f32 %v2441, %v2451
        %v2465 = vadd.f32 %v2442, %v2451
        %v2466 = vadd.f32 %v2443, %v2451
        %v2467 = vadd.f32 %v2444, %v2451
        %v2468 = vadd.f32 %v2445, %v2451
        %v2469 = vmax.f32 %v2453, 0.0
        %v2470 = vmax.f32 %v2454, 0.0
        %v2471 = vmax.f32 %v2455, 0.0
        %v2472 = vmax.f32 %v2456, 0.0
        %v2473 = vmax.f32 %v2457, 0.0
        %v2474 = vmax.f32 %v2458, 0.0
        %v2475 = vmax.f32 %v2459, 0.0
        %v2476 = vmax.f32 %v2460, 0.0
        %v2477 = vmax.f32 %v2461, 0.0
        %v2478 = vmax.f32 %v2462, 0.0
        %v2479 = vmax.f32 %v2463, 0.0
        %v2480 = vmax.f32 %v2464, 0.0
        %v2481 = vmax.f32 %v2465, 0.0
        %v2482 = vmax.f32 %v2466, 0.0
        %v2483 = vmax.f32 %v2467, 0.0
        %v2484 = vmax.f32 %v2468, 0.0
        %v2485 = vpack.c.bf16 %v2470, %v2469
        %v2486 = vpack.c.bf16 %v2472, %v2471
        %v2487 = vpack.c.bf16 %v2474, %v2473
        %v2488 = vpack.c.bf16 %v2476, %v2475
        %v2489 = vpack.c.bf16 %v2478, %v2477
        %v2490 = vpack.c.bf16 %v2480, %v2479
        %v2491 = vpack.c.bf16 %v2482, %v2481
        %v2492 = vpack.c.bf16 %v2484, %v2483
        %2493 = vst [vmem:[#allocation3 + $0x8] sm:$0xff] %v2485
        %2494 = vst [vmem:[#allocation3 + $0x10] sm:$0xff] %v2486
        %2495 = vst [vmem:[#allocation3 + $0x18] sm:$0xff] %v2487
        %2496 = vst [vmem:[#allocation3 + $0x20] sm:$0xff] %v2488
        %2497 = vst [vmem:[#allocation3 + $0x28] sm:$0xff] %v2489
        %2498 = vst [vmem:[#allocation3 + $0x30] sm:$0xff] %v2490
        %2499 = vst [vmem:[#allocation3 + $0x38] sm:$0xff] %v2491
        %2500 = vst [vmem:[#allocation3 + $0x40] sm:$0xff] %v2492
        %v2501 = vld [vmem:[%s3 + $0x80] sm:$0xff]
        %v2502 = vld [vmem:[%s3 + $0x88] sm:$0xff]
        %v2503 = vld [vmem:[%s3 + $0x90] sm:$0xff]
        %v2504 = vld [vmem:[%s3 + $0x98] sm:$0xff]
        %v2505 = vld [vmem:[%s3 + $0xa0] sm:$0xff]
        %v2506 = vld [vmem:[%s3 + $0xa8] sm:$0xff]
        %v2507 = vld [vmem:[%s3 + $0xb0] sm:$0xff]
        %v2508 = vld [vmem:[%s3 + $0xb8] sm:$0xff]
        %v2509 = vld [vmem:[%s3 + $0xc0] sm:$0xff]
        %v2510 = vld [vmem:[%s3 + $0xc8] sm:$0xff]
        %v2511 = vld [vmem:[%s3 + $0xd0] sm:$0xff]
        %v2512 = vld [vmem:[%s3 + $0xd8] sm:$0xff]
        %v2513 = vld [vmem:[%s3 + $0xe0] sm:$0xff]
        %v2514 = vld [vmem:[%s3 + $0xe8] sm:$0xff]
        %v2515 = vld [vmem:[%s3 + $0xf0] sm:$0xff]
        %v2516 = vld [vmem:[%s3 + $0xf8] sm:$0xff]
        %v2517 = vld [vmem:[%s352 + $0x80] sm:$0xff]
        %v2518 = vld [vmem:[%s352 + $0x88] sm:$0xff]
        %v2519 = vld [vmem:[%s352 + $0x90] sm:$0xff]
        %v2520 = vld [vmem:[%s352 + $0x98] sm:$0xff]
        %v2521 = vld [vmem:[%s352 + $0xa0] sm:$0xff]
        %v2522 = vld [vmem:[%s352 + $0xa8] sm:$0xff]
        %v2523 = vld [vmem:[%s352 + $0xb0] sm:$0xff]
        %v2524 = vld [vmem:[%s352 + $0xb8] sm:$0xff]
        %v2525 = vld [vmem:[%s352 + $0xc0] sm:$0xff]
        %v2526 = vld [vmem:[%s352 + $0xc8] sm:$0xff]
        %v2527 = vld [vmem:[%s352 + $0xd0] sm:$0xff]
        %v2528 = vld [vmem:[%s352 + $0xd8] sm:$0xff]
        %v2529 = vld [vmem:[%s352 + $0xe0] sm:$0xff]
        %v2530 = vld [vmem:[%s352 + $0xe8] sm:$0xff]
        %v2531 = vld [vmem:[%s352 + $0xf0] sm:$0xff]
        %v2532 = vld [vmem:[%s352 + $0xf8] sm:$0xff]
        %v2533 = vld [vmem:[#allocation2 + $0x40] sm:$0xff]
        %v2534 = vld [vmem:[#allocation2 + $0x48] sm:$0xff]
        %v2535 = vld [vmem:[#allocation2 + $0x50] sm:$0xff]
        %v2536 = vld [vmem:[#allocation2 + $0x58] sm:$0xff]
        %v2537 = vld [vmem:[#allocation2 + $0x60] sm:$0xff]
        %v2538 = vld [vmem:[#allocation2 + $0x68] sm:$0xff]
        %v2539 = vld [vmem:[#allocation2 + $0x70] sm:$0xff]
        %v2540 = vld [vmem:[#allocation2 + $0x78] sm:$0xff]
        %v2541 = vld [vmem:[#allocation4] sm:$0xf]
        %v2542 = vld [vmem:[#allocation4 + $0x4] sm:$0xf]
        %v2543 = vld [vmem:[#allocation4 + $0x8] sm:$0xf]
        %v2544 = vld [vmem:[#allocation4 + $0xc] sm:$0xf]
        %v2545 = vld [vmem:[#allocation4 + $0x10] sm:$0xf]
        %v2546 = vld [vmem:[#allocation4 + $0x14] sm:$0xf]
        %v2547 = vld [vmem:[#allocation4 + $0x18] sm:$0xf]
        %v2548 = vld [vmem:[#allocation4 + $0x1c] sm:$0xf]
        %v2549 = vld [vmem:[#allocation4 + $0x20] sm:$0xf]
        %v2550 = vld [vmem:[#allocation4 + $0x24] sm:$0xf]
        %v2551 = vld [vmem:[#allocation4 + $0x28] sm:$0xf]
        %v2552 = vld [vmem:[#allocation4 + $0x2c] sm:$0xf]
        %v2553 = vld [vmem:[#allocation4 + $0x30] sm:$0xf]
        %v2554 = vld [vmem:[#allocation4 + $0x34] sm:$0xf]
        %v2555 = vld [vmem:[#allocation4 + $0x38] sm:$0xf]
        %v2556 = vld [vmem:[#allocation4 + $0x3c] sm:$0xf]
        %v2573 = vunpack.c.l.b16 %v2541
        %v2574 = vunpack.c.l.b16 %v2542
        %v2575 = vunpack.c.l.b16 %v2543
        %v2576 = vunpack.c.l.b16 %v2544
        %v2577 = vunpack.c.l.b16 %v2545
        %v2578 = vunpack.c.l.b16 %v2546
        %v2579 = vunpack.c.l.b16 %v2547
        %v2580 = vunpack.c.l.b16 %v2548
        %v2581 = vunpack.c.l.b16 %v2549
        %v2582 = vunpack.c.l.b16 %v2550
        %v2583 = vunpack.c.l.b16 %v2551
        %v2584 = vunpack.c.l.b16 %v2552
        %v2585 = vunpack.c.l.b16 %v2553
        %v2586 = vunpack.c.l.b16 %v2554
        %v2587 = vunpack.c.l.b16 %v2555
        %v2588 = vunpack.c.l.b16 %v2556
        %v2589 = vpack.c.b16 %v2574, %v2573
        %v2590 = vpack.c.b16 %v2576, %v2575
        %v2591 = vpack.c.b16 %v2578, %v2577
        %v2592 = vpack.c.b16 %v2580, %v2579
        %v2593 = vpack.c.b16 %v2582, %v2581
        %v2594 = vpack.c.b16 %v2584, %v2583
        %v2595 = vpack.c.b16 %v2586, %v2585
        %v2596 = vpack.c.b16 %v2588, %v2587
        %2605 = vmatprep.subr.bf16.mxu0 0
        %2606 = vmatpush1.bf16.msra.mxu0 %v2589
        %2607 = vmatprep.subr.bf16.mxu0 0
        %2608 = vmatpush1.bf16.msra.mxu0 %v2590
        %2609 = vmatprep.subr.bf16.mxu0 0
        %2610 = vmatpush1.bf16.msra.mxu0 %v2591
        %2611 = vmatprep.subr.bf16.mxu0 0
        %2612 = vmatpush1.bf16.msra.mxu0 %v2592
        %2613 = vmatprep.subr.bf16.mxu0 0
        %2614 = vmatpush1.bf16.msra.mxu0 %v2593
        %2615 = vmatprep.subr.bf16.mxu0 0
        %2616 = vmatpush1.bf16.msra.mxu0 %v2594
        %2617 = vmatprep.subr.bf16.mxu0 0
        %2618 = vmatpush1.bf16.msra.mxu0 %v2595
        %2619 = vmatprep.subr.bf16.mxu0 0
        %2620 = vmatpush1.bf16.msra.mxu0 %v2596
        %2621 = vmatprep.subr.bf16.mxu0 0
        %2622 = vmatpush1.bf16.msra.mxu0 0
        %2623 = vmatprep.subr.bf16.mxu0 0
        %2624 = vmatpush1.bf16.msra.mxu0 0
        %2625 = vmatprep.subr.bf16.mxu0 0
        %2626 = vmatpush1.bf16.msra.mxu0 0
        %2627 = vmatprep.subr.bf16.mxu0 0
        %2628 = vmatpush1.bf16.msra.mxu0 0
        %2629 = vmatprep.subr.bf16.mxu0 0
        %2630 = vmatpush1.bf16.msra.mxu0 0
        %2631 = vmatprep.subr.bf16.mxu0 0
        %2632 = vmatpush1.bf16.msra.mxu0 0
        %2633 = vmatprep.subr.bf16.mxu0 0
        %2634 = vmatpush1.bf16.msra.mxu0 0
        %2635 = vmatprep.subr.bf16.mxu0 0
        %2636 = vmatpush1.bf16.msra.mxu0 0
        %2637 = vmatprep.mubr.bf16.mxu0 0
        %2638 = vmatmul.mubr.bf16.gmra.mrb[0].mxu0 %v2533
        %v2639 = vpop.f32.mrb[0].mxu0
        %v2640 = vadd.f32 0.0, %v2639
        %v2641 = vpop.f32.mrb[0].mxu0
        %v2642 = vpop.f32.mrb[0].mxu0
        %v2643 = vadd.f32 0.0, %v2642
        %v2644 = vpop.f32.mrb[0].mxu0
        %2645 = vmatprep.mubr.bf16.mxu0 0
        %2646 = vmatmul.mubr.bf16.gmra.mrb[0].mxu0 %v2534
        %v2647 = vpop.f32.mrb[0].mxu0
        %v2648 = vadd.f32 0.0, %v2647
        %v2649 = vpop.f32.mrb[0].mxu0
        %v2650 = vpop.f32.mrb[0].mxu0
        %v2651 = vadd.f32 0.0, %v2650
        %v2652 = vpop.f32.mrb[0].mxu0
        %2653 = vmatprep.mubr.bf16.mxu0 0
        %2654 = vmatmul.mubr.bf16.gmra.mrb[0].mxu0 %v2535
        %v2655 = vpop.f32.mrb[0].mxu0
        %v2656 = vadd.f32 0.0, %v2655
        %v2657 = vpop.f32.mrb[0].mxu0
        %v2658 = vpop.f32.mrb[0].mxu0
        %v2659 = vadd.f32 0.0, %v2658
        %v2660 = vpop.f32.mrb[0].mxu0
        %2661 = vmatprep.mubr.bf16.mxu0 0
        %2662 = vmatmul.mubr.bf16.gmra.mrb[0].mxu0 %v2536
        %v2663 = vpop.f32.mrb[0].mxu0
        %v2664 = vadd.f32 0.0, %v2663
        %v2665 = vpop.f32.mrb[0].mxu0
        %v2666 = vpop.f32.mrb[0].mxu0
        %v2667 = vadd.f32 0.0, %v2666
        %v2668 = vpop.f32.mrb[0].mxu0
        %2669 = vmatprep.mubr.bf16.mxu0 0
        %2670 = vmatmul.mubr.bf16.gmra.mrb[0].mxu0 %v2537
        %v2671 = vpop.f32.mrb[0].mxu0
        %v2672 = vadd.f32 0.0, %v2671
        %v2673 = vpop.f32.mrb[0].mxu0
        %v2674 = vpop.f32.mrb[0].mxu0
        %v2675 = vadd.f32 0.0, %v2674
        %v2676 = vpop.f32.mrb[0].mxu0
        %2677 = vmatprep.mubr.bf16.mxu0 0
        %2678 = vmatmul.mubr.bf16.gmra.mrb[0].mxu0 %v2538
        %v2679 = vpop.f32.mrb[0].mxu0
        %v2680 = vadd.f32 0.0, %v2679
        %v2681 = vpop.f32.mrb[0].mxu0
        %v2682 = vpop.f32.mrb[0].mxu0
        %v2683 = vadd.f32 0.0, %v2682
        %v2684 = vpop.f32.mrb[0].mxu0
        %2685 = vmatprep.mubr.bf16.mxu0 0
        %2686 = vmatmul.mubr.bf16.gmra.mrb[0].mxu0 %v2539
        %v2687 = vpop.f32.mrb[0].mxu0
        %v2688 = vadd.f32 0.0, %v2687
        %v2689 = vpop.f32.mrb[0].mxu0
        %v2690 = vpop.f32.mrb[0].mxu0
        %v2691 = vadd.f32 0.0, %v2690
        %v2692 = vpop.f32.mrb[0].mxu0
        %2693 = vmatprep.mubr.bf16.mxu0 0
        %2694 = vmatmul.mubr.bf16.gmra.mrb[0].mxu0 %v2540
        %v2695 = vpop.f32.mrb[0].mxu0
        %v2696 = vadd.f32 0.0, %v2695
        %v2697 = vpop.f32.mrb[0].mxu0
        %v2698 = vpop.f32.mrb[0].mxu0
        %v2699 = vadd.f32 0.0, %v2698
        %v2700 = vpop.f32.mrb[0].mxu0
        %2701 = vdwg.mxu0
        %v2702 = vrot.slane %v2640, 7
        %v2703 = vrot.slane %v2643, 7
        %v2704 = vrot.slane %v2648, 7
        %v2705 = vrot.slane %v2651, 7
        %v2706 = vrot.slane %v2656, 7
        %v2707 = vrot.slane %v2659, 7
        %v2708 = vrot.slane %v2664, 7
        %v2709 = vrot.slane %v2667, 7
        %v2710 = vrot.slane %v2672, 7
        %v2711 = vrot.slane %v2675, 7
        %v2712 = vrot.slane %v2680, 7
        %v2713 = vrot.slane %v2683, 7
        %v2714 = vrot.slane %v2688, 7
        %v2715 = vrot.slane %v2691, 7
        %v2716 = vrot.slane %v2696, 7
        %v2717 = vrot.slane %v2699, 7
        %v2718 = vsel %vm556, %v2716, %v2717
        %v2719 = vsel %vm556, %v2715, %v2716
        %v2720 = vsel %vm556, %v2714, %v2715
        %v2721 = vsel %vm556, %v2713, %v2714
        %v2722 = vsel %vm556, %v2712, %v2713
        %v2723 = vsel %vm556, %v2711, %v2712
        %v2724 = vsel %vm556, %v2710, %v2711
        %v2725 = vsel %vm556, %v2709, %v2710
        %v2726 = vsel %vm556, %v2708, %v2709
        %v2727 = vsel %vm556, %v2707, %v2708
        %v2728 = vsel %vm556, %v2706, %v2707
        %v2729 = vsel %vm556, %v2705, %v2706
        %v2730 = vsel %vm556, %v2704, %v2705
        %v2731 = vsel %vm556, %v2703, %v2704
        %v2732 = vsel %vm556, %v2702, %v2703
        %v2733 = vsel %vm556, %v2717, %v2702
        %2735 = vset.pattern.permute.xlu0 0
        %2736 = vperm.xlu0 %2735, %v2501
        %v2737 = vpop.permute.xlu0 %2736
        %2740 = vset.pattern.permute.xlu0 0
        %2741 = vperm.xlu0 %2740, %v2502
        %v2742 = vpop.permute.xlu0 %2741
        %2745 = vset.pattern.permute.xlu0 0
        %2746 = vperm.xlu0 %2745, %v2503
        %v2747 = vpop.permute.xlu0 %2746
        %2750 = vset.pattern.permute.xlu0 0
        %2751 = vperm.xlu0 %2750, %v2504
        %v2752 = vpop.permute.xlu0 %2751
        %2755 = vset.pattern.permute.xlu0 0
        %2756 = vperm.xlu0 %2755, %v2505
        %v2757 = vpop.permute.xlu0 %2756
        %2760 = vset.pattern.permute.xlu0 0
        %2761 = vperm.xlu0 %2760, %v2506
        %v2762 = vpop.permute.xlu0 %2761
        %2765 = vset.pattern.permute.xlu0 0
        %2766 = vperm.xlu0 %2765, %v2507
        %v2767 = vpop.permute.xlu0 %2766
        %2770 = vset.pattern.permute.xlu0 0
        %2771 = vperm.xlu0 %2770, %v2508
        %v2772 = vpop.permute.xlu0 %2771
        %2775 = vset.pattern.permute.xlu0 0
        %2776 = vperm.xlu0 %2775, %v2509
        %v2777 = vpop.permute.xlu0 %2776
        %2780 = vset.pattern.permute.xlu0 0
        %2781 = vperm.xlu0 %2780, %v2510
        %v2782 = vpop.permute.xlu0 %2781
        %2785 = vset.pattern.permute.xlu0 0
        %2786 = vperm.xlu0 %2785, %v2511
        %v2787 = vpop.permute.xlu0 %2786
        %2790 = vset.pattern.permute.xlu0 0
        %2791 = vperm.xlu0 %2790, %v2512
        %v2792 = vpop.permute.xlu0 %2791
        %2795 = vset.pattern.permute.xlu0 0
        %2796 = vperm.xlu0 %2795, %v2513
        %v2797 = vpop.permute.xlu0 %2796
        %2800 = vset.pattern.permute.xlu0 0
        %2801 = vperm.xlu0 %2800, %v2514
        %v2802 = vpop.permute.xlu0 %2801
        %2805 = vset.pattern.permute.xlu0 0
        %2806 = vperm.xlu0 %2805, %v2515
        %v2807 = vpop.permute.xlu0 %2806
        %2810 = vset.pattern.permute.xlu0 0
        %2811 = vperm.xlu0 %2810, %v2516
        %v2812 = vpop.permute.xlu0 %2811
        %v2814 = vmul.f32 %v2733, %v2737
        %v2815 = vmul.f32 %v2732, %v2742
        %v2816 = vmul.f32 %v2731, %v2747
        %v2817 = vmul.f32 %v2730, %v2752
        %v2818 = vmul.f32 %v2729, %v2757
        %v2819 = vmul.f32 %v2728, %v2762
        %v2820 = vmul.f32 %v2727, %v2767
        %v2821 = vmul.f32 %v2726, %v2772
        %v2822 = vmul.f32 %v2725, %v2777
        %v2823 = vmul.f32 %v2724, %v2782
        %v2824 = vmul.f32 %v2723, %v2787
        %v2825 = vmul.f32 %v2722, %v2792
        %v2826 = vmul.f32 %v2721, %v2797
        %v2827 = vmul.f32 %v2720, %v2802
        %v2828 = vmul.f32 %v2719, %v2807
        %v2829 = vmul.f32 %v2718, %v2812
        %v2830 = vadd.f32 %v2814, 0.0
        %v2831 = vadd.f32 %v2815, 0.0
        %v2832 = vadd.f32 %v2816, 0.0
        %v2833 = vadd.f32 %v2817, 0.0
        %v2834 = vadd.f32 %v2818, 0.0
        %v2835 = vadd.f32 %v2819, 0.0
        %v2836 = vadd.f32 %v2820, 0.0
        %v2837 = vadd.f32 %v2821, 0.0
        %v2838 = vadd.f32 %v2822, 0.0
        %v2839 = vadd.f32 %v2823, 0.0
        %v2840 = vadd.f32 %v2824, 0.0
        %v2841 = vadd.f32 %v2825, 0.0
        %v2842 = vadd.f32 %v2826, 0.0
        %v2843 = vadd.f32 %v2827, 0.0
        %v2844 = vadd.f32 %v2828, 0.0
        %v2845 = vadd.f32 %v2829, 0.0
        %v2846 = vld [vmem:[%s685] sm:$0xf]
        %v2847 = vld [vmem:[%s685 + $0x4] sm:$0xf]
        %v2848 = vld [vmem:[%s685 + $0x8] sm:$0xf]
        %v2849 = vld [vmem:[%s685 + $0xc] sm:$0xf]
        %v2850 = vld [vmem:[%s685 + $0x10] sm:$0xf]
        %v2851 = vld [vmem:[%s685 + $0x14] sm:$0xf]
        %v2852 = vld [vmem:[%s685 + $0x18] sm:$0xf]
        %v2853 = vld [vmem:[%s685 + $0x1c] sm:$0xf]
        %v2854 = vld [vmem:[%s685 + $0x20] sm:$0xf]
        %v2855 = vld [vmem:[%s685 + $0x24] sm:$0xf]
        %v2856 = vld [vmem:[%s685 + $0x28] sm:$0xf]
        %v2857 = vld [vmem:[%s685 + $0x2c] sm:$0xf]
        %v2858 = vld [vmem:[%s685 + $0x30] sm:$0xf]
        %v2859 = vld [vmem:[%s685 + $0x34] sm:$0xf]
        %v2860 = vld [vmem:[%s685 + $0x38] sm:$0xf]
        %v2861 = vld [vmem:[%s685 + $0x3c] sm:$0xf]
        %v2878 = vunpack.c.l.b16 %v2846
        %v2879 = vunpack.c.l.b16 %v2847
        %v2880 = vunpack.c.l.b16 %v2848
        %v2881 = vunpack.c.l.b16 %v2849
        %v2882 = vunpack.c.l.b16 %v2850
        %v2883 = vunpack.c.l.b16 %v2851
        %v2884 = vunpack.c.l.b16 %v2852
        %v2885 = vunpack.c.l.b16 %v2853
        %v2886 = vunpack.c.l.b16 %v2854
        %v2887 = vunpack.c.l.b16 %v2855
        %v2888 = vunpack.c.l.b16 %v2856
        %v2889 = vunpack.c.l.b16 %v2857
        %v2890 = vunpack.c.l.b16 %v2858
        %v2891 = vunpack.c.l.b16 %v2859
        %v2892 = vunpack.c.l.b16 %v2860
        %v2893 = vunpack.c.l.b16 %v2861
        %v2894 = vpack.c.b16 %v2879, %v2878
        %v2895 = vpack.c.b16 %v2881, %v2880
        %v2896 = vpack.c.b16 %v2883, %v2882
        %v2897 = vpack.c.b16 %v2885, %v2884
        %v2898 = vpack.c.b16 %v2887, %v2886
        %v2899 = vpack.c.b16 %v2889, %v2888
        %v2900 = vpack.c.b16 %v2891, %v2890
        %v2901 = vpack.c.b16 %v2893, %v2892
        %2910 = vmatprep.subr.bf16.mxu0 0
        %2911 = vmatpush1.bf16.msra.mxu0 %v2894
        %2912 = vmatprep.subr.bf16.mxu0 0
        %2913 = vmatpush1.bf16.msra.mxu0 %v2895
        %2914 = vmatprep.subr.bf16.mxu0 0
        %2915 = vmatpush1.bf16.msra.mxu0 %v2896
        %2916 = vmatprep.subr.bf16.mxu0 0
        %2917 = vmatpush1.bf16.msra.mxu0 %v2897
        %2918 = vmatprep.subr.bf16.mxu0 0
        %2919 = vmatpush1.bf16.msra.mxu0 %v2898
        %2920 = vmatprep.subr.bf16.mxu0 0
        %2921 = vmatpush1.bf16.msra.mxu0 %v2899
        %2922 = vmatprep.subr.bf16.mxu0 0
        %2923 = vmatpush1.bf16.msra.mxu0 %v2900
        %2924 = vmatprep.subr.bf16.mxu0 0
        %2925 = vmatpush1.bf16.msra.mxu0 %v2901
        %2926 = vmatprep.subr.bf16.mxu0 0
        %2927 = vmatpush1.bf16.msra.mxu0 0
        %2928 = vmatprep.subr.bf16.mxu0 0
        %2929 = vmatpush1.bf16.msra.mxu0 0
        %2930 = vmatprep.subr.bf16.mxu0 0
        %2931 = vmatpush1.bf16.msra.mxu0 0
        %2932 = vmatprep.subr.bf16.mxu0 0
        %2933 = vmatpush1.bf16.msra.mxu0 0
        %2934 = vmatprep.subr.bf16.mxu0 0
        %2935 = vmatpush1.bf16.msra.mxu0 0
        %2936 = vmatprep.subr.bf16.mxu0 0
        %2937 = vmatpush1.bf16.msra.mxu0 0
        %2938 = vmatprep.subr.bf16.mxu0 0
        %2939 = vmatpush1.bf16.msra.mxu0 0
        %2940 = vmatprep.subr.bf16.mxu0 0
        %2941 = vmatpush1.bf16.msra.mxu0 0
        %2942 = vmatprep.mubr.bf16.mxu0 0
        %2943 = vmatmul.mubr.bf16.gmra.mrb[0].mxu0 %v2533
        %v2944 = vpop.f32.mrb[0].mxu0
        %v2945 = vadd.f32 0.0, %v2944
        %v2946 = vpop.f32.mrb[0].mxu0
        %v2947 = vpop.f32.mrb[0].mxu0
        %v2948 = vadd.f32 0.0, %v2947
        %v2949 = vpop.f32.mrb[0].mxu0
        %2950 = vmatprep.mubr.bf16.mxu0 0
        %2951 = vmatmul.mubr.bf16.gmra.mrb[0].mxu0 %v2534
        %v2952 = vpop.f32.mrb[0].mxu0
        %v2953 = vadd.f32 0.0, %v2952
        %v2954 = vpop.f32.mrb[0].mxu0
        %v2955 = vpop.f32.mrb[0].mxu0
        %v2956 = vadd.f32 0.0, %v2955
        %v2957 = vpop.f32.mrb[0].mxu0
        %2958 = vmatprep.mubr.bf16.mxu0 0
        %2959 = vmatmul.mubr.bf16.gmra.mrb[0].mxu0 %v2535
        %v2960 = vpop.f32.mrb[0].mxu0
        %v2961 = vadd.f32 0.0, %v2960
        %v2962 = vpop.f32.mrb[0].mxu0
        %v2963 = vpop.f32.mrb[0].mxu0
        %v2964 = vadd.f32 0.0, %v2963
        %v2965 = vpop.f32.mrb[0].mxu0
        %2966 = vmatprep.mubr.bf16.mxu0 0
        %2967 = vmatmul.mubr.bf16.gmra.mrb[0].mxu0 %v2536
        %v2968 = vpop.f32.mrb[0].mxu0
        %v2969 = vadd.f32 0.0, %v2968
        %v2970 = vpop.f32.mrb[0].mxu0
        %v2971 = vpop.f32.mrb[0].mxu0
        %v2972 = vadd.f32 0.0, %v2971
        %v2973 = vpop.f32.mrb[0].mxu0
        %2974 = vmatprep.mubr.bf16.mxu0 0
        %2975 = vmatmul.mubr.bf16.gmra.mrb[0].mxu0 %v2537
        %v2976 = vpop.f32.mrb[0].mxu0
        %v2977 = vadd.f32 0.0, %v2976
        %v2978 = vpop.f32.mrb[0].mxu0
        %v2979 = vpop.f32.mrb[0].mxu0
        %v2980 = vadd.f32 0.0, %v2979
        %v2981 = vpop.f32.mrb[0].mxu0
        %2982 = vmatprep.mubr.bf16.mxu0 0
        %2983 = vmatmul.mubr.bf16.gmra.mrb[0].mxu0 %v2538
        %v2984 = vpop.f32.mrb[0].mxu0
        %v2985 = vadd.f32 0.0, %v2984
        %v2986 = vpop.f32.mrb[0].mxu0
        %v2987 = vpop.f32.mrb[0].mxu0
        %v2988 = vadd.f32 0.0, %v2987
        %v2989 = vpop.f32.mrb[0].mxu0
        %2990 = vmatprep.mubr.bf16.mxu0 0
        %2991 = vmatmul.mubr.bf16.gmra.mrb[0].mxu0 %v2539
        %v2992 = vpop.f32.mrb[0].mxu0
        %v2993 = vadd.f32 0.0, %v2992
        %v2994 = vpop.f32.mrb[0].mxu0
        %v2995 = vpop.f32.mrb[0].mxu0
        %v2996 = vadd.f32 0.0, %v2995
        %v2997 = vpop.f32.mrb[0].mxu0
        %2998 = vmatprep.mubr.bf16.mxu0 0
        %2999 = vmatmul.mubr.bf16.gmra.mrb[0].mxu0 %v2540
        %v3000 = vpop.f32.mrb[0].mxu0
        %v3001 = vadd.f32 0.0, %v3000
        %v3002 = vpop.f32.mrb[0].mxu0
        %v3003 = vpop.f32.mrb[0].mxu0
        %v3004 = vadd.f32 0.0, %v3003
        %v3005 = vpop.f32.mrb[0].mxu0
        %3006 = vdwg.mxu0
        %v3007 = vadd.f32 %v2830, %v2945
        %v3008 = vadd.f32 %v2831, %v2948
        %v3009 = vadd.f32 %v2832, %v2953
        %v3010 = vadd.f32 %v2833, %v2956
        %v3011 = vadd.f32 %v2834, %v2961
        %v3012 = vadd.f32 %v2835, %v2964
        %v3013 = vadd.f32 %v2836, %v2969
        %v3014 = vadd.f32 %v2837, %v2972
        %v3015 = vadd.f32 %v2838, %v2977
        %v3016 = vadd.f32 %v2839, %v2980
        %v3017 = vadd.f32 %v2840, %v2985
        %v3018 = vadd.f32 %v2841, %v2988
        %v3019 = vadd.f32 %v2842, %v2993
        %v3020 = vadd.f32 %v2843, %v2996
        %v3021 = vadd.f32 %v2844, %v3001
        %v3022 = vadd.f32 %v2845, %v3004
        %v3023 = vld [vmem:[%s863] sm:$0xf]
        %v3024 = vld [vmem:[%s863 + $0x4] sm:$0xf]
        %v3025 = vld [vmem:[%s863 + $0x8] sm:$0xf]
        %v3026 = vld [vmem:[%s863 + $0xc] sm:$0xf]
        %v3027 = vld [vmem:[%s863 + $0x10] sm:$0xf]
        %v3028 = vld [vmem:[%s863 + $0x14] sm:$0xf]
        %v3029 = vld [vmem:[%s863 + $0x18] sm:$0xf]
        %v3030 = vld [vmem:[%s863 + $0x1c] sm:$0xf]
        %v3031 = vld [vmem:[%s863 + $0x20] sm:$0xf]
        %v3032 = vld [vmem:[%s863 + $0x24] sm:$0xf]
        %v3033 = vld [vmem:[%s863 + $0x28] sm:$0xf]
        %v3034 = vld [vmem:[%s863 + $0x2c] sm:$0xf]
        %v3035 = vld [vmem:[%s863 + $0x30] sm:$0xf]
        %v3036 = vld [vmem:[%s863 + $0x34] sm:$0xf]
        %v3037 = vld [vmem:[%s863 + $0x38] sm:$0xf]
        %v3038 = vld [vmem:[%s863 + $0x3c] sm:$0xf]
        %v3055 = vunpack.c.l.b16 %v3023
        %v3056 = vunpack.c.l.b16 %v3024
        %v3057 = vunpack.c.l.b16 %v3025
        %v3058 = vunpack.c.l.b16 %v3026
        %v3059 = vunpack.c.l.b16 %v3027
        %v3060 = vunpack.c.l.b16 %v3028
        %v3061 = vunpack.c.l.b16 %v3029
        %v3062 = vunpack.c.l.b16 %v3030
        %v3063 = vunpack.c.l.b16 %v3031
        %v3064 = vunpack.c.l.b16 %v3032
        %v3065 = vunpack.c.l.b16 %v3033
        %v3066 = vunpack.c.l.b16 %v3034
        %v3067 = vunpack.c.l.b16 %v3035
        %v3068 = vunpack.c.l.b16 %v3036
        %v3069 = vunpack.c.l.b16 %v3037
        %v3070 = vunpack.c.l.b16 %v3038
        %v3071 = vpack.c.b16 %v3056, %v3055
        %v3072 = vpack.c.b16 %v3058, %v3057
        %v3073 = vpack.c.b16 %v3060, %v3059
        %v3074 = vpack.c.b16 %v3062, %v3061
        %v3075 = vpack.c.b16 %v3064, %v3063
        %v3076 = vpack.c.b16 %v3066, %v3065
        %v3077 = vpack.c.b16 %v3068, %v3067
        %v3078 = vpack.c.b16 %v3070, %v3069
        %3087 = vmatprep.subr.bf16.mxu0 0
        %3088 = vmatpush1.bf16.msra.mxu0 %v3071
        %3089 = vmatprep.subr.bf16.mxu0 0
        %3090 = vmatpush1.bf16.msra.mxu0 %v3072
        %3091 = vmatprep.subr.bf16.mxu0 0
        %3092 = vmatpush1.bf16.msra.mxu0 %v3073
        %3093 = vmatprep.subr.bf16.mxu0 0
        %3094 = vmatpush1.bf16.msra.mxu0 %v3074
        %3095 = vmatprep.subr.bf16.mxu0 0
        %3096 = vmatpush1.bf16.msra.mxu0 %v3075
        %3097 = vmatprep.subr.bf16.mxu0 0
        %3098 = vmatpush1.bf16.msra.mxu0 %v3076
        %3099 = vmatprep.subr.bf16.mxu0 0
        %3100 = vmatpush1.bf16.msra.mxu0 %v3077
        %3101 = vmatprep.subr.bf16.mxu0 0
        %3102 = vmatpush1.bf16.msra.mxu0 %v3078
        %3103 = vmatprep.subr.bf16.mxu0 0
        %3104 = vmatpush1.bf16.msra.mxu0 0
        %3105 = vmatprep.subr.bf16.mxu0 0
        %3106 = vmatpush1.bf16.msra.mxu0 0
        %3107 = vmatprep.subr.bf16.mxu0 0
        %3108 = vmatpush1.bf16.msra.mxu0 0
        %3109 = vmatprep.subr.bf16.mxu0 0
        %3110 = vmatpush1.bf16.msra.mxu0 0
        %3111 = vmatprep.subr.bf16.mxu0 0
        %3112 = vmatpush1.bf16.msra.mxu0 0
        %3113 = vmatprep.subr.bf16.mxu0 0
        %3114 = vmatpush1.bf16.msra.mxu0 0
        %3115 = vmatprep.subr.bf16.mxu0 0
        %3116 = vmatpush1.bf16.msra.mxu0 0
        %3117 = vmatprep.subr.bf16.mxu0 0
        %3118 = vmatpush1.bf16.msra.mxu0 0
        %3119 = vmatprep.mubr.bf16.mxu0 0
        %3120 = vmatmul.mubr.bf16.gmra.mrb[0].mxu0 %v2533
        %v3121 = vpop.f32.mrb[0].mxu0
        %v3122 = vadd.f32 0.0, %v3121
        %v3123 = vpop.f32.mrb[0].mxu0
        %v3124 = vpop.f32.mrb[0].mxu0
        %v3125 = vadd.f32 0.0, %v3124
        %v3126 = vpop.f32.mrb[0].mxu0
        %3127 = vmatprep.mubr.bf16.mxu0 0
        %3128 = vmatmul.mubr.bf16.gmra.mrb[0].mxu0 %v2534
        %v3129 = vpop.f32.mrb[0].mxu0
        %v3130 = vadd.f32 0.0, %v3129
        %v3131 = vpop.f32.mrb[0].mxu0
        %v3132 = vpop.f32.mrb[0].mxu0
        %v3133 = vadd.f32 0.0, %v3132
        %v3134 = vpop.f32.mrb[0].mxu0
        %3135 = vmatprep.mubr.bf16.mxu0 0
        %3136 = vmatmul.mubr.bf16.gmra.mrb[0].mxu0 %v2535
        %v3137 = vpop.f32.mrb[0].mxu0
        %v3138 = vadd.f32 0.0, %v3137
        %v3139 = vpop.f32.mrb[0].mxu0
        %v3140 = vpop.f32.mrb[0].mxu0
        %v3141 = vadd.f32 0.0, %v3140
        %v3142 = vpop.f32.mrb[0].mxu0
        %3143 = vmatprep.mubr.bf16.mxu0 0
        %3144 = vmatmul.mubr.bf16.gmra.mrb[0].mxu0 %v2536
        %v3145 = vpop.f32.mrb[0].mxu0
        %v3146 = vadd.f32 0.0, %v3145
        %v3147 = vpop.f32.mrb[0].mxu0
        %v3148 = vpop.f32.mrb[0].mxu0
        %v3149 = vadd.f32 0.0, %v3148
        %v3150 = vpop.f32.mrb[0].mxu0
        %3151 = vmatprep.mubr.bf16.mxu0 0
        %3152 = vmatmul.mubr.bf16.gmra.mrb[0].mxu0 %v2537
        %v3153 = vpop.f32.mrb[0].mxu0
        %v3154 = vadd.f32 0.0, %v3153
        %v3155 = vpop.f32.mrb[0].mxu0
        %v3156 = vpop.f32.mrb[0].mxu0
        %v3157 = vadd.f32 0.0, %v3156
        %v3158 = vpop.f32.mrb[0].mxu0
        %3159 = vmatprep.mubr.bf16.mxu0 0
        %3160 = vmatmul.mubr.bf16.gmra.mrb[0].mxu0 %v2538
        %v3161 = vpop.f32.mrb[0].mxu0
        %v3162 = vadd.f32 0.0, %v3161
        %v3163 = vpop.f32.mrb[0].mxu0
        %v3164 = vpop.f32.mrb[0].mxu0
        %v3165 = vadd.f32 0.0, %v3164
        %v3166 = vpop.f32.mrb[0].mxu0
        %3167 = vmatprep.mubr.bf16.mxu0 0
        %3168 = vmatmul.mubr.bf16.gmra.mrb[0].mxu0 %v2539
        %v3169 = vpop.f32.mrb[0].mxu0
        %v3170 = vadd.f32 0.0, %v3169
        %v3171 = vpop.f32.mrb[0].mxu0
        %v3172 = vpop.f32.mrb[0].mxu0
        %v3173 = vadd.f32 0.0, %v3172
        %v3174 = vpop.f32.mrb[0].mxu0
        %3175 = vmatprep.mubr.bf16.mxu0 0
        %3176 = vmatmul.mubr.bf16.gmra.mrb[0].mxu0 %v2540
        %v3177 = vpop.f32.mrb[0].mxu0
        %v3178 = vadd.f32 0.0, %v3177
        %v3179 = vpop.f32.mrb[0].mxu0
        %v3180 = vpop.f32.mrb[0].mxu0
        %v3181 = vadd.f32 0.0, %v3180
        %v3182 = vpop.f32.mrb[0].mxu0
        %3183 = vdwg.mxu0
        %v3184 = vrot.slane %v3122, 1
        %v3185 = vrot.slane %v3125, 1
        %v3186 = vrot.slane %v3130, 1
        %v3187 = vrot.slane %v3133, 1
        %v3188 = vrot.slane %v3138, 1
        %v3189 = vrot.slane %v3141, 1
        %v3190 = vrot.slane %v3146, 1
        %v3191 = vrot.slane %v3149, 1
        %v3192 = vrot.slane %v3154, 1
        %v3193 = vrot.slane %v3157, 1
        %v3194 = vrot.slane %v3162, 1
        %v3195 = vrot.slane %v3165, 1
        %v3196 = vrot.slane %v3170, 1
        %v3197 = vrot.slane %v3173, 1
        %v3198 = vrot.slane %v3178, 1
        %v3199 = vrot.slane %v3181, 1
        %v3200 = vsel %vm1041, %v3198, %v3199
        %v3201 = vsel %vm1041, %v3197, %v3198
        %v3202 = vsel %vm1041, %v3196, %v3197
        %v3203 = vsel %vm1041, %v3195, %v3196
        %v3204 = vsel %vm1041, %v3194, %v3195
        %v3205 = vsel %vm1041, %v3193, %v3194
        %v3206 = vsel %vm1041, %v3192, %v3193
        %v3207 = vsel %vm1041, %v3191, %v3192
        %v3208 = vsel %vm1041, %v3190, %v3191
        %v3209 = vsel %vm1041, %v3189, %v3190
        %v3210 = vsel %vm1041, %v3188, %v3189
        %v3211 = vsel %vm1041, %v3187, %v3188
        %v3212 = vsel %vm1041, %v3186, %v3187
        %v3213 = vsel %vm1041, %v3185, %v3186
        %v3214 = vsel %vm1041, %v3184, %v3185
        %v3215 = vsel %vm1041, %v3199, %v3184
        %3217 = vset.pattern.permute.xlu0 0
        %3218 = vperm.xlu0 %3217, %v2517
        %v3219 = vpop.permute.xlu0 %3218
        %3222 = vset.pattern.permute.xlu0 0
        %3223 = vperm.xlu0 %3222, %v2518
        %v3224 = vpop.permute.xlu0 %3223
        %3227 = vset.pattern.permute.xlu0 0
        %3228 = vperm.xlu0 %3227, %v2519
        %v3229 = vpop.permute.xlu0 %3228
        %3232 = vset.pattern.permute.xlu0 0
        %3233 = vperm.xlu0 %3232, %v2520
        %v3234 = vpop.permute.xlu0 %3233
        %3237 = vset.pattern.permute.xlu0 0
        %3238 = vperm.xlu0 %3237, %v2521
        %v3239 = vpop.permute.xlu0 %3238
        %3242 = vset.pattern.permute.xlu0 0
        %3243 = vperm.xlu0 %3242, %v2522
        %v3244 = vpop.permute.xlu0 %3243
        %3247 = vset.pattern.permute.xlu0 0
        %3248 = vperm.xlu0 %3247, %v2523
        %v3249 = vpop.permute.xlu0 %3248
        %3252 = vset.pattern.permute.xlu0 0
        %3253 = vperm.xlu0 %3252, %v2524
        %v3254 = vpop.permute.xlu0 %3253
        %3257 = vset.pattern.permute.xlu0 0
        %3258 = vperm.xlu0 %3257, %v2525
        %v3259 = vpop.permute.xlu0 %3258
        %3262 = vset.pattern.permute.xlu0 0
        %3263 = vperm.xlu0 %3262, %v2526
        %v3264 = vpop.permute.xlu0 %3263
        %3267 = vset.pattern.permute.xlu0 0
        %3268 = vperm.xlu0 %3267, %v2527
        %v3269 = vpop.permute.xlu0 %3268
        %3272 = vset.pattern.permute.xlu0 0
        %3273 = vperm.xlu0 %3272, %v2528
        %v3274 = vpop.permute.xlu0 %3273
        %3277 = vset.pattern.permute.xlu0 0
        %3278 = vperm.xlu0 %3277, %v2529
        %v3279 = vpop.permute.xlu0 %3278
        %3282 = vset.pattern.permute.xlu0 0
        %3283 = vperm.xlu0 %3282, %v2530
        %v3284 = vpop.permute.xlu0 %3283
        %3287 = vset.pattern.permute.xlu0 0
        %3288 = vperm.xlu0 %3287, %v2531
        %v3289 = vpop.permute.xlu0 %3288
        %3292 = vset.pattern.permute.xlu0 0
        %3293 = vperm.xlu0 %3292, %v2532
        %v3294 = vpop.permute.xlu0 %3293
        %v3296 = vmul.f32 %v3214, %v3219
        %v3297 = vmul.f32 %v3213, %v3224
        %v3298 = vmul.f32 %v3212, %v3229
        %v3299 = vmul.f32 %v3211, %v3234
        %v3300 = vmul.f32 %v3210, %v3239
        %v3301 = vmul.f32 %v3209, %v3244
        %v3302 = vmul.f32 %v3208, %v3249
        %v3303 = vmul.f32 %v3207, %v3254
        %v3304 = vmul.f32 %v3206, %v3259
        %v3305 = vmul.f32 %v3205, %v3264
        %v3306 = vmul.f32 %v3204, %v3269
        %v3307 = vmul.f32 %v3203, %v3274
        %v3308 = vmul.f32 %v3202, %v3279
        %v3309 = vmul.f32 %v3201, %v3284
        %v3310 = vmul.f32 %v3200, %v3289
        %v3311 = vmul.f32 %v3215, %v3294
        %v3312 = vadd.f32 %v3007, %v3296
        %v3313 = vadd.f32 %v3008, %v3297
        %v3314 = vadd.f32 %v3009, %v3298
        %v3315 = vadd.f32 %v3010, %v3299
        %v3316 = vadd.f32 %v3011, %v3300
        %v3317 = vadd.f32 %v3012, %v3301
        %v3318 = vadd.f32 %v3013, %v3302
        %v3319 = vadd.f32 %v3014, %v3303
        %v3320 = vadd.f32 %v3015, %v3304
        %v3321 = vadd.f32 %v3016, %v3305
        %v3322 = vadd.f32 %v3017, %v3306
        %v3323 = vadd.f32 %v3018, %v3307
        %v3324 = vadd.f32 %v3019, %v3308
        %v3325 = vadd.f32 %v3020, %v3309
        %v3326 = vadd.f32 %v3021, %v3310
        %v3327 = vadd.f32 %v3022, %v3311
        %v3328 = vld [vmem:[#allocation2 + $0x48] sm:$0xff]
        %v3329 = vld [vmem:[#allocation2 + $0x50] sm:$0xff]
        %v3330 = vld [vmem:[#allocation2 + $0x58] sm:$0xff]
        %v3331 = vld [vmem:[#allocation2 + $0x60] sm:$0xff]
        %v3332 = vld [vmem:[#allocation2 + $0x68] sm:$0xff]
        %v3333 = vld [vmem:[#allocation2 + $0x70] sm:$0xff]
        %v3334 = vld [vmem:[#allocation2 + $0x78] sm:$0xff]
        %v3335 = vld [vmem:[#allocation2 + $0x80] sm:$0xff]
        %v3336 = vld [vmem:[%s1178] sm:$0xf]
        %v3337 = vld [vmem:[%s1178 + $0x4] sm:$0xf]
        %v3338 = vld [vmem:[%s1178 + $0x8] sm:$0xf]
        %v3339 = vld [vmem:[%s1178 + $0xc] sm:$0xf]
        %v3340 = vld [vmem:[%s1178 + $0x10] sm:$0xf]
        %v3341 = vld [vmem:[%s1178 + $0x14] sm:$0xf]
        %v3342 = vld [vmem:[%s1178 + $0x18] sm:$0xf]
        %v3343 = vld [vmem:[%s1178 + $0x1c] sm:$0xf]
        %v3344 = vld [vmem:[%s1178 + $0x20] sm:$0xf]
        %v3345 = vld [vmem:[%s1178 + $0x24] sm:$0xf]
        %v3346 = vld [vmem:[%s1178 + $0x28] sm:$0xf]
        %v3347 = vld [vmem:[%s1178 + $0x2c] sm:$0xf]
        %v3348 = vld [vmem:[%s1178 + $0x30] sm:$0xf]
        %v3349 = vld [vmem:[%s1178 + $0x34] sm:$0xf]
        %v3350 = vld [vmem:[%s1178 + $0x38] sm:$0xf]
        %v3351 = vld [vmem:[%s1178 + $0x3c] sm:$0xf]
        %v3368 = vunpack.c.l.b16 %v3336
        %v3369 = vunpack.c.l.b16 %v3337
        %v3370 = vunpack.c.l.b16 %v3338
        %v3371 = vunpack.c.l.b16 %v3339
        %v3372 = vunpack.c.l.b16 %v3340
        %v3373 = vunpack.c.l.b16 %v3341
        %v3374 = vunpack.c.l.b16 %v3342
        %v3375 = vunpack.c.l.b16 %v3343
        %v3376 = vunpack.c.l.b16 %v3344
        %v3377 = vunpack.c.l.b16 %v3345
        %v3378 = vunpack.c.l.b16 %v3346
        %v3379 = vunpack.c.l.b16 %v3347
        %v3380 = vunpack.c.l.b16 %v3348
        %v3381 = vunpack.c.l.b16 %v3349
        %v3382 = vunpack.c.l.b16 %v3350
        %v3383 = vunpack.c.l.b16 %v3351
        %v3384 = vpack.c.b16 %v3369, %v3368
        %v3385 = vpack.c.b16 %v3371, %v3370
        %v3386 = vpack.c.b16 %v3373, %v3372
        %v3387 = vpack.c.b16 %v3375, %v3374
        %v3388 = vpack.c.b16 %v3377, %v3376
        %v3389 = vpack.c.b16 %v3379, %v3378
        %v3390 = vpack.c.b16 %v3381, %v3380
        %v3391 = vpack.c.b16 %v3383, %v3382
        %3400 = vmatprep.subr.bf16.mxu0 0
        %3401 = vmatpush1.bf16.msra.mxu0 %v3384
        %3402 = vmatprep.subr.bf16.mxu0 0
        %3403 = vmatpush1.bf16.msra.mxu0 %v3385
        %3404 = vmatprep.subr.bf16.mxu0 0
        %3405 = vmatpush1.bf16.msra.mxu0 %v3386
        %3406 = vmatprep.subr.bf16.mxu0 0
        %3407 = vmatpush1.bf16.msra.mxu0 %v3387
        %3408 = vmatprep.subr.bf16.mxu0 0
        %3409 = vmatpush1.bf16.msra.mxu0 %v3388
        %3410 = vmatprep.subr.bf16.mxu0 0
        %3411 = vmatpush1.bf16.msra.mxu0 %v3389
        %3412 = vmatprep.subr.bf16.mxu0 0
        %3413 = vmatpush1.bf16.msra.mxu0 %v3390
        %3414 = vmatprep.subr.bf16.mxu0 0
        %3415 = vmatpush1.bf16.msra.mxu0 %v3391
        %3416 = vmatprep.subr.bf16.mxu0 0
        %3417 = vmatpush1.bf16.msra.mxu0 0
        %3418 = vmatprep.subr.bf16.mxu0 0
        %3419 = vmatpush1.bf16.msra.mxu0 0
        %3420 = vmatprep.subr.bf16.mxu0 0
        %3421 = vmatpush1.bf16.msra.mxu0 0
        %3422 = vmatprep.subr.bf16.mxu0 0
        %3423 = vmatpush1.bf16.msra.mxu0 0
        %3424 = vmatprep.subr.bf16.mxu0 0
        %3425 = vmatpush1.bf16.msra.mxu0 0
        %3426 = vmatprep.subr.bf16.mxu0 0
        %3427 = vmatpush1.bf16.msra.mxu0 0
        %3428 = vmatprep.subr.bf16.mxu0 0
        %3429 = vmatpush1.bf16.msra.mxu0 0
        %3430 = vmatprep.subr.bf16.mxu0 0
        %3431 = vmatpush1.bf16.msra.mxu0 0
        %3432 = vmatprep.mubr.bf16.mxu0 0
        %3433 = vmatmul.mubr.bf16.gmra.mrb[0].mxu0 %v3328
        %v3434 = vpop.f32.mrb[0].mxu0
        %v3435 = vadd.f32 0.0, %v3434
        %v3436 = vpop.f32.mrb[0].mxu0
        %v3437 = vpop.f32.mrb[0].mxu0
        %v3438 = vadd.f32 0.0, %v3437
        %v3439 = vpop.f32.mrb[0].mxu0
        %3440 = vmatprep.mubr.bf16.mxu0 0
        %3441 = vmatmul.mubr.bf16.gmra.mrb[0].mxu0 %v3329
        %v3442 = vpop.f32.mrb[0].mxu0
        %v3443 = vadd.f32 0.0, %v3442
        %v3444 = vpop.f32.mrb[0].mxu0
        %v3445 = vpop.f32.mrb[0].mxu0
        %v3446 = vadd.f32 0.0, %v3445
        %v3447 = vpop.f32.mrb[0].mxu0
        %3448 = vmatprep.mubr.bf16.mxu0 0
        %3449 = vmatmul.mubr.bf16.gmra.mrb[0].mxu0 %v3330
        %v3450 = vpop.f32.mrb[0].mxu0
        %v3451 = vadd.f32 0.0, %v3450
        %v3452 = vpop.f32.mrb[0].mxu0
        %v3453 = vpop.f32.mrb[0].mxu0
        %v3454 = vadd.f32 0.0, %v3453
        %v3455 = vpop.f32.mrb[0].mxu0
        %3456 = vmatprep.mubr.bf16.mxu0 0
        %3457 = vmatmul.mubr.bf16.gmra.mrb[0].mxu0 %v3331
        %v3458 = vpop.f32.mrb[0].mxu0
        %v3459 = vadd.f32 0.0, %v3458
        %v3460 = vpop.f32.mrb[0].mxu0
        %v3461 = vpop.f32.mrb[0].mxu0
        %v3462 = vadd.f32 0.0, %v3461
        %v3463 = vpop.f32.mrb[0].mxu0
        %3464 = vmatprep.mubr.bf16.mxu0 0
        %3465 = vmatmul.mubr.bf16.gmra.mrb[0].mxu0 %v3332
        %v3466 = vpop.f32.mrb[0].mxu0
        %v3467 = vadd.f32 0.0, %v3466
        %v3468 = vpop.f32.mrb[0].mxu0
        %v3469 = vpop.f32.mrb[0].mxu0
        %v3470 = vadd.f32 0.0, %v3469
        %v3471 = vpop.f32.mrb[0].mxu0
        %3472 = vmatprep.mubr.bf16.mxu0 0
        %3473 = vmatmul.mubr.bf16.gmra.mrb[0].mxu0 %v3333
        %v3474 = vpop.f32.mrb[0].mxu0
        %v3475 = vadd.f32 0.0, %v3474
        %v3476 = vpop.f32.mrb[0].mxu0
        %v3477 = vpop.f32.mrb[0].mxu0
        %v3478 = vadd.f32 0.0, %v3477
        %v3479 = vpop.f32.mrb[0].mxu0
        %3480 = vmatprep.mubr.bf16.mxu0 0
        %3481 = vmatmul.mubr.bf16.gmra.mrb[0].mxu0 %v3334
        %v3482 = vpop.f32.mrb[0].mxu0
        %v3483 = vadd.f32 0.0, %v3482
        %v3484 = vpop.f32.mrb[0].mxu0
        %v3485 = vpop.f32.mrb[0].mxu0
        %v3486 = vadd.f32 0.0, %v3485
        %v3487 = vpop.f32.mrb[0].mxu0
        %3488 = vmatprep.mubr.bf16.mxu0 0
        %3489 = vmatmul.mubr.bf16.gmra.mrb[0].mxu0 %v3335
        %v3490 = vpop.f32.mrb[0].mxu0
        %v3491 = vadd.f32 0.0, %v3490
        %v3492 = vpop.f32.mrb[0].mxu0
        %v3493 = vpop.f32.mrb[0].mxu0
        %v3494 = vadd.f32 0.0, %v3493
        %v3495 = vpop.f32.mrb[0].mxu0
        %3496 = vdwg.mxu0
        %v3497 = vrot.slane %v3435, 7
        %v3498 = vrot.slane %v3438, 7
        %v3499 = vrot.slane %v3443, 7
        %v3500 = vrot.slane %v3446, 7
        %v3501 = vrot.slane %v3451, 7
        %v3502 = vrot.slane %v3454, 7
        %v3503 = vrot.slane %v3459, 7
        %v3504 = vrot.slane %v3462, 7
        %v3505 = vrot.slane %v3467, 7
        %v3506 = vrot.slane %v3470, 7
        %v3507 = vrot.slane %v3475, 7
        %v3508 = vrot.slane %v3478, 7
        %v3509 = vrot.slane %v3483, 7
        %v3510 = vrot.slane %v3486, 7
        %v3511 = vrot.slane %v3491, 7
        %v3512 = vrot.slane %v3494, 7
        %v3513 = vsel %vm556, %v3511, %v3512
        %v3514 = vsel %vm556, %v3510, %v3511
        %v3515 = vsel %vm556, %v3509, %v3510
        %v3516 = vsel %vm556, %v3508, %v3509
        %v3517 = vsel %vm556, %v3507, %v3508
        %v3518 = vsel %vm556, %v3506, %v3507
        %v3519 = vsel %vm556, %v3505, %v3506
        %v3520 = vsel %vm556, %v3504, %v3505
        %v3521 = vsel %vm556, %v3503, %v3504
        %v3522 = vsel %vm556, %v3502, %v3503
        %v3523 = vsel %vm556, %v3501, %v3502
        %v3524 = vsel %vm556, %v3500, %v3501
        %v3525 = vsel %vm556, %v3499, %v3500
        %v3526 = vsel %vm556, %v3498, %v3499
        %v3527 = vsel %vm556, %v3497, %v3498
        %v3528 = vsel %vm556, %v3512, %v3497
        %v3529 = vmul.f32 %v3528, %v2737
        %v3530 = vmul.f32 %v3527, %v2742
        %v3531 = vmul.f32 %v3526, %v2747
        %v3532 = vmul.f32 %v3525, %v2752
        %v3533 = vmul.f32 %v3524, %v2757
        %v3534 = vmul.f32 %v3523, %v2762
        %v3535 = vmul.f32 %v3522, %v2767
        %v3536 = vmul.f32 %v3521, %v2772
        %v3537 = vmul.f32 %v3520, %v2777
        %v3538 = vmul.f32 %v3519, %v2782
        %v3539 = vmul.f32 %v3518, %v2787
        %v3540 = vmul.f32 %v3517, %v2792
        %v3541 = vmul.f32 %v3516, %v2797
        %v3542 = vmul.f32 %v3515, %v2802
        %v3543 = vmul.f32 %v3514, %v2807
        %v3544 = vmul.f32 %v3513, %v2812
        %v3545 = vadd.f32 %v3312, %v3529
        %v3546 = vadd.f32 %v3313, %v3530
        %v3547 = vadd.f32 %v3314, %v3531
        %v3548 = vadd.f32 %v3315, %v3532
        %v3549 = vadd.f32 %v3316, %v3533
        %v3550 = vadd.f32 %v3317, %v3534
        %v3551 = vadd.f32 %v3318, %v3535
        %v3552 = vadd.f32 %v3319, %v3536
        %v3553 = vadd.f32 %v3320, %v3537
        %v3554 = vadd.f32 %v3321, %v3538
        %v3555 = vadd.f32 %v3322, %v3539
        %v3556 = vadd.f32 %v3323, %v3540
        %v3557 = vadd.f32 %v3324, %v3541
        %v3558 = vadd.f32 %v3325, %v3542
        %v3559 = vadd.f32 %v3326, %v3543
        %v3560 = vadd.f32 %v3327, %v3544
        %v3561 = vld [vmem:[%s1404] sm:$0xf]
        %v3562 = vld [vmem:[%s1404 + $0x4] sm:$0xf]
        %v3563 = vld [vmem:[%s1404 + $0x8] sm:$0xf]
        %v3564 = vld [vmem:[%s1404 + $0xc] sm:$0xf]
        %v3565 = vld [vmem:[%s1404 + $0x10] sm:$0xf]
        %v3566 = vld [vmem:[%s1404 + $0x14] sm:$0xf]
        %v3567 = vld [vmem:[%s1404 + $0x18] sm:$0xf]
        %v3568 = vld [vmem:[%s1404 + $0x1c] sm:$0xf]
        %v3569 = vld [vmem:[%s1404 + $0x20] sm:$0xf]
        %v3570 = vld [vmem:[%s1404 + $0x24] sm:$0xf]
        %v3571 = vld [vmem:[%s1404 + $0x28] sm:$0xf]
        %v3572 = vld [vmem:[%s1404 + $0x2c] sm:$0xf]
        %v3573 = vld [vmem:[%s1404 + $0x30] sm:$0xf]
        %v3574 = vld [vmem:[%s1404 + $0x34] sm:$0xf]
        %v3575 = vld [vmem:[%s1404 + $0x38] sm:$0xf]
        %v3576 = vld [vmem:[%s1404 + $0x3c] sm:$0xf]
        %v3593 = vunpack.c.l.b16 %v3561
        %v3594 = vunpack.c.l.b16 %v3562
        %v3595 = vunpack.c.l.b16 %v3563
        %v3596 = vunpack.c.l.b16 %v3564
        %v3597 = vunpack.c.l.b16 %v3565
        %v3598 = vunpack.c.l.b16 %v3566
        %v3599 = vunpack.c.l.b16 %v3567
        %v3600 = vunpack.c.l.b16 %v3568
        %v3601 = vunpack.c.l.b16 %v3569
        %v3602 = vunpack.c.l.b16 %v3570
        %v3603 = vunpack.c.l.b16 %v3571
        %v3604 = vunpack.c.l.b16 %v3572
        %v3605 = vunpack.c.l.b16 %v3573
        %v3606 = vunpack.c.l.b16 %v3574
        %v3607 = vunpack.c.l.b16 %v3575
        %v3608 = vunpack.c.l.b16 %v3576
        %v3609 = vpack.c.b16 %v3594, %v3593
        %v3610 = vpack.c.b16 %v3596, %v3595
        %v3611 = vpack.c.b16 %v3598, %v3597
        %v3612 = vpack.c.b16 %v3600, %v3599
        %v3613 = vpack.c.b16 %v3602, %v3601
        %v3614 = vpack.c.b16 %v3604, %v3603
        %v3615 = vpack.c.b16 %v3606, %v3605
        %v3616 = vpack.c.b16 %v3608, %v3607
        %3625 = vmatprep.subr.bf16.mxu0 0
        %3626 = vmatpush1.bf16.msra.mxu0 %v3609
        %3627 = vmatprep.subr.bf16.mxu0 0
        %3628 = vmatpush1.bf16.msra.mxu0 %v3610
        %3629 = vmatprep.subr.bf16.mxu0 0
        %3630 = vmatpush1.bf16.msra.mxu0 %v3611
        %3631 = vmatprep.subr.bf16.mxu0 0
        %3632 = vmatpush1.bf16.msra.mxu0 %v3612
        %3633 = vmatprep.subr.bf16.mxu0 0
        %3634 = vmatpush1.bf16.msra.mxu0 %v3613
        %3635 = vmatprep.subr.bf16.mxu0 0
        %3636 = vmatpush1.bf16.msra.mxu0 %v3614
        %3637 = vmatprep.subr.bf16.mxu0 0
        %3638 = vmatpush1.bf16.msra.mxu0 %v3615
        %3639 = vmatprep.subr.bf16.mxu0 0
        %3640 = vmatpush1.bf16.msra.mxu0 %v3616
        %3641 = vmatprep.subr.bf16.mxu0 0
        %3642 = vmatpush1.bf16.msra.mxu0 0
        %3643 = vmatprep.subr.bf16.mxu0 0
        %3644 = vmatpush1.bf16.msra.mxu0 0
        %3645 = vmatprep.subr.bf16.mxu0 0
        %3646 = vmatpush1.bf16.msra.mxu0 0
        %3647 = vmatprep.subr.bf16.mxu0 0
        %3648 = vmatpush1.bf16.msra.mxu0 0
        %3649 = vmatprep.subr.bf16.mxu0 0
        %3650 = vmatpush1.bf16.msra.mxu0 0
        %3651 = vmatprep.subr.bf16.mxu0 0
        %3652 = vmatpush1.bf16.msra.mxu0 0
        %3653 = vmatprep.subr.bf16.mxu0 0
        %3654 = vmatpush1.bf16.msra.mxu0 0
        %3655 = vmatprep.subr.bf16.mxu0 0
        %3656 = vmatpush1.bf16.msra.mxu0 0
        %3657 = vmatprep.mubr.bf16.mxu0 0
        %3658 = vmatmul.mubr.bf16.gmra.mrb[0].mxu0 %v3328
        %v3659 = vpop.f32.mrb[0].mxu0
        %v3660 = vadd.f32 0.0, %v3659
        %v3661 = vpop.f32.mrb[0].mxu0
        %v3662 = vpop.f32.mrb[0].mxu0
        %v3663 = vadd.f32 0.0, %v3662
        %v3664 = vpop.f32.mrb[0].mxu0
        %3665 = vmatprep.mubr.bf16.mxu0 0
        %3666 = vmatmul.mubr.bf16.gmra.mrb[0].mxu0 %v3329
        %v3667 = vpop.f32.mrb[0].mxu0
        %v3668 = vadd.f32 0.0, %v3667
        %v3669 = vpop.f32.mrb[0].mxu0
        %v3670 = vpop.f32.mrb[0].mxu0
        %v3671 = vadd.f32 0.0, %v3670
        %v3672 = vpop.f32.mrb[0].mxu0
        %3673 = vmatprep.mubr.bf16.mxu0 0
        %3674 = vmatmul.mubr.bf16.gmra.mrb[0].mxu0 %v3330
        %v3675 = vpop.f32.mrb[0].mxu0
        %v3676 = vadd.f32 0.0, %v3675
        %v3677 = vpop.f32.mrb[0].mxu0
        %v3678 = vpop.f32.mrb[0].mxu0
        %v3679 = vadd.f32 0.0, %v3678
        %v3680 = vpop.f32.mrb[0].mxu0
        %3681 = vmatprep.mubr.bf16.mxu0 0
        %3682 = vmatmul.mubr.bf16.gmra.mrb[0].mxu0 %v3331
        %v3683 = vpop.f32.mrb[0].mxu0
        %v3684 = vadd.f32 0.0, %v3683
        %v3685 = vpop.f32.mrb[0].mxu0
        %v3686 = vpop.f32.mrb[0].mxu0
        %v3687 = vadd.f32 0.0, %v3686
        %v3688 = vpop.f32.mrb[0].mxu0
        %3689 = vmatprep.mubr.bf16.mxu0 0
        %3690 = vmatmul.mubr.bf16.gmra.mrb[0].mxu0 %v3332
        %v3691 = vpop.f32.mrb[0].mxu0
        %v3692 = vadd.f32 0.0, %v3691
        %v3693 = vpop.f32.mrb[0].mxu0
        %v3694 = vpop.f32.mrb[0].mxu0
        %v3695 = vadd.f32 0.0, %v3694
        %v3696 = vpop.f32.mrb[0].mxu0
        %3697 = vmatprep.mubr.bf16.mxu0 0
        %3698 = vmatmul.mubr.bf16.gmra.mrb[0].mxu0 %v3333
        %v3699 = vpop.f32.mrb[0].mxu0
        %v3700 = vadd.f32 0.0, %v3699
        %v3701 = vpop.f32.mrb[0].mxu0
        %v3702 = vpop.f32.mrb[0].mxu0
        %v3703 = vadd.f32 0.0, %v3702
        %v3704 = vpop.f32.mrb[0].mxu0
        %3705 = vmatprep.mubr.bf16.mxu0 0
        %3706 = vmatmul.mubr.bf16.gmra.mrb[0].mxu0 %v3334
        %v3707 = vpop.f32.mrb[0].mxu0
        %v3708 = vadd.f32 0.0, %v3707
        %v3709 = vpop.f32.mrb[0].mxu0
        %v3710 = vpop.f32.mrb[0].mxu0
        %v3711 = vadd.f32 0.0, %v3710
        %v3712 = vpop.f32.mrb[0].mxu0
        %3713 = vmatprep.mubr.bf16.mxu0 0
        %3714 = vmatmul.mubr.bf16.gmra.mrb[0].mxu0 %v3335
        %v3715 = vpop.f32.mrb[0].mxu0
        %v3716 = vadd.f32 0.0, %v3715
        %v3717 = vpop.f32.mrb[0].mxu0
        %v3718 = vpop.f32.mrb[0].mxu0
        %v3719 = vadd.f32 0.0, %v3718
        %v3720 = vpop.f32.mrb[0].mxu0
        %3721 = vdwg.mxu0
        %v3722 = vadd.f32 %v3545, %v3660
        %v3723 = vadd.f32 %v3546, %v3663
        %v3724 = vadd.f32 %v3547, %v3668
        %v3725 = vadd.f32 %v3548, %v3671
        %v3726 = vadd.f32 %v3549, %v3676
        %v3727 = vadd.f32 %v3550, %v3679
        %v3728 = vadd.f32 %v3551, %v3684
        %v3729 = vadd.f32 %v3552, %v3687
        %v3730 = vadd.f32 %v3553, %v3692
        %v3731 = vadd.f32 %v3554, %v3695
        %v3732 = vadd.f32 %v3555, %v3700
        %v3733 = vadd.f32 %v3556, %v3703
        %v3734 = vadd.f32 %v3557, %v3708
        %v3735 = vadd.f32 %v3558, %v3711
        %v3736 = vadd.f32 %v3559, %v3716
        %v3737 = vadd.f32 %v3560, %v3719
        %v3738 = vld [vmem:[%s1582] sm:$0xf]
        %v3739 = vld [vmem:[%s1582 + $0x4] sm:$0xf]
        %v3740 = vld [vmem:[%s1582 + $0x8] sm:$0xf]
        %v3741 = vld [vmem:[%s1582 + $0xc] sm:$0xf]
        %v3742 = vld [vmem:[%s1582 + $0x10] sm:$0xf]
        %v3743 = vld [vmem:[%s1582 + $0x14] sm:$0xf]
        %v3744 = vld [vmem:[%s1582 + $0x18] sm:$0xf]
        %v3745 = vld [vmem:[%s1582 + $0x1c] sm:$0xf]
        %v3746 = vld [vmem:[%s1582 + $0x20] sm:$0xf]
        %v3747 = vld [vmem:[%s1582 + $0x24] sm:$0xf]
        %v3748 = vld [vmem:[%s1582 + $0x28] sm:$0xf]
        %v3749 = vld [vmem:[%s1582 + $0x2c] sm:$0xf]
        %v3750 = vld [vmem:[%s1582 + $0x30] sm:$0xf]
        %v3751 = vld [vmem:[%s1582 + $0x34] sm:$0xf]
        %v3752 = vld [vmem:[%s1582 + $0x38] sm:$0xf]
        %v3753 = vld [vmem:[%s1582 + $0x3c] sm:$0xf]
        %v3770 = vunpack.c.l.b16 %v3738
        %v3771 = vunpack.c.l.b16 %v3739
        %v3772 = vunpack.c.l.b16 %v3740
        %v3773 = vunpack.c.l.b16 %v3741
        %v3774 = vunpack.c.l.b16 %v3742
        %v3775 = vunpack.c.l.b16 %v3743
        %v3776 = vunpack.c.l.b16 %v3744
        %v3777 = vunpack.c.l.b16 %v3745
        %v3778 = vunpack.c.l.b16 %v3746
        %v3779 = vunpack.c.l.b16 %v3747
        %v3780 = vunpack.c.l.b16 %v3748
        %v3781 = vunpack.c.l.b16 %v3749
        %v3782 = vunpack.c.l.b16 %v3750
        %v3783 = vunpack.c.l.b16 %v3751
        %v3784 = vunpack.c.l.b16 %v3752
        %v3785 = vunpack.c.l.b16 %v3753
        %v3786 = vpack.c.b16 %v3771, %v3770
        %v3787 = vpack.c.b16 %v3773, %v3772
        %v3788 = vpack.c.b16 %v3775, %v3774
        %v3789 = vpack.c.b16 %v3777, %v3776
        %v3790 = vpack.c.b16 %v3779, %v3778
        %v3791 = vpack.c.b16 %v3781, %v3780
        %v3792 = vpack.c.b16 %v3783, %v3782
        %v3793 = vpack.c.b16 %v3785, %v3784
        %3802 = vmatprep.subr.bf16.mxu0 0
        %3803 = vmatpush1.bf16.msra.mxu0 %v3786
        %3804 = vmatprep.subr.bf16.mxu0 0
        %3805 = vmatpush1.bf16.msra.mxu0 %v3787
        %3806 = vmatprep.subr.bf16.mxu0 0
        %3807 = vmatpush1.bf16.msra.mxu0 %v3788
        %3808 = vmatprep.subr.bf16.mxu0 0
        %3809 = vmatpush1.bf16.msra.mxu0 %v3789
        %3810 = vmatprep.subr.bf16.mxu0 0
        %3811 = vmatpush1.bf16.msra.mxu0 %v3790
        %3812 = vmatprep.subr.bf16.mxu0 0
        %3813 = vmatpush1.bf16.msra.mxu0 %v3791
        %3814 = vmatprep.subr.bf16.mxu0 0
        %3815 = vmatpush1.bf16.msra.mxu0 %v3792
        %3816 = vmatprep.subr.bf16.mxu0 0
        %3817 = vmatpush1.bf16.msra.mxu0 %v3793
        %3818 = vmatprep.subr.bf16.mxu0 0
        %3819 = vmatpush1.bf16.msra.mxu0 0
        %3820 = vmatprep.subr.bf16.mxu0 0
        %3821 = vmatpush1.bf16.msra.mxu0 0
        %3822 = vmatprep.subr.bf16.mxu0 0
        %3823 = vmatpush1.bf16.msra.mxu0 0
        %3824 = vmatprep.subr.bf16.mxu0 0
        %3825 = vmatpush1.bf16.msra.mxu0 0
        %3826 = vmatprep.subr.bf16.mxu0 0
        %3827 = vmatpush1.bf16.msra.mxu0 0
        %3828 = vmatprep.subr.bf16.mxu0 0
        %3829 = vmatpush1.bf16.msra.mxu0 0
        %3830 = vmatprep.subr.bf16.mxu0 0
        %3831 = vmatpush1.bf16.msra.mxu0 0
        %3832 = vmatprep.subr.bf16.mxu0 0
        %3833 = vmatpush1.bf16.msra.mxu0 0
        %3834 = vmatprep.mubr.bf16.mxu0 0
        %3835 = vmatmul.mubr.bf16.gmra.mrb[0].mxu0 %v3328
        %v3836 = vpop.f32.mrb[0].mxu0
        %v3837 = vadd.f32 0.0, %v3836
        %v3838 = vpop.f32.mrb[0].mxu0
        %v3839 = vpop.f32.mrb[0].mxu0
        %v3840 = vadd.f32 0.0, %v3839
        %v3841 = vpop.f32.mrb[0].mxu0
        %3842 = vmatprep.mubr.bf16.mxu0 0
        %3843 = vmatmul.mubr.bf16.gmra.mrb[0].mxu0 %v3329
        %v3844 = vpop.f32.mrb[0].mxu0
        %v3845 = vadd.f32 0.0, %v3844
        %v3846 = vpop.f32.mrb[0].mxu0
        %v3847 = vpop.f32.mrb[0].mxu0
        %v3848 = vadd.f32 0.0, %v3847
        %v3849 = vpop.f32.mrb[0].mxu0
        %3850 = vmatprep.mubr.bf16.mxu0 0
        %3851 = vmatmul.mubr.bf16.gmra.mrb[0].mxu0 %v3330
        %v3852 = vpop.f32.mrb[0].mxu0
        %v3853 = vadd.f32 0.0, %v3852
        %v3854 = vpop.f32.mrb[0].mxu0
        %v3855 = vpop.f32.mrb[0].mxu0
        %v3856 = vadd.f32 0.0, %v3855
        %v3857 = vpop.f32.mrb[0].mxu0
        %3858 = vmatprep.mubr.bf16.mxu0 0
        %3859 = vmatmul.mubr.bf16.gmra.mrb[0].mxu0 %v3331
        %v3860 = vpop.f32.mrb[0].mxu0
        %v3861 = vadd.f32 0.0, %v3860
        %v3862 = vpop.f32.mrb[0].mxu0
        %v3863 = vpop.f32.mrb[0].mxu0
        %v3864 = vadd.f32 0.0, %v3863
        %v3865 = vpop.f32.mrb[0].mxu0
        %3866 = vmatprep.mubr.bf16.mxu0 0
        %3867 = vmatmul.mubr.bf16.gmra.mrb[0].mxu0 %v3332
        %v3868 = vpop.f32.mrb[0].mxu0
        %v3869 = vadd.f32 0.0, %v3868
        %v3870 = vpop.f32.mrb[0].mxu0
        %v3871 = vpop.f32.mrb[0].mxu0
        %v3872 = vadd.f32 0.0, %v3871
        %v3873 = vpop.f32.mrb[0].mxu0
        %3874 = vmatprep.mubr.bf16.mxu0 0
        %3875 = vmatmul.mubr.bf16.gmra.mrb[0].mxu0 %v3333
        %v3876 = vpop.f32.mrb[0].mxu0
        %v3877 = vadd.f32 0.0, %v3876
        %v3878 = vpop.f32.mrb[0].mxu0
        %v3879 = vpop.f32.mrb[0].mxu0
        %v3880 = vadd.f32 0.0, %v3879
        %v3881 = vpop.f32.mrb[0].mxu0
        %3882 = vmatprep.mubr.bf16.mxu0 0
        %3883 = vmatmul.mubr.bf16.gmra.mrb[0].mxu0 %v3334
        %v3884 = vpop.f32.mrb[0].mxu0
        %v3885 = vadd.f32 0.0, %v3884
        %v3886 = vpop.f32.mrb[0].mxu0
        %v3887 = vpop.f32.mrb[0].mxu0
        %v3888 = vadd.f32 0.0, %v3887
        %v3889 = vpop.f32.mrb[0].mxu0
        %3890 = vmatprep.mubr.bf16.mxu0 0
        %3891 = vmatmul.mubr.bf16.gmra.mrb[0].mxu0 %v3335
        %v3892 = vpop.f32.mrb[0].mxu0
        %v3893 = vadd.f32 0.0, %v3892
        %v3894 = vpop.f32.mrb[0].mxu0
        %v3895 = vpop.f32.mrb[0].mxu0
        %v3896 = vadd.f32 0.0, %v3895
        %v3897 = vpop.f32.mrb[0].mxu0
        %3898 = vdwg.mxu0
        %v3899 = vrot.slane %v3837, 1
        %v3900 = vrot.slane %v3840, 1
        %v3901 = vrot.slane %v3845, 1
        %v3902 = vrot.slane %v3848, 1
        %v3903 = vrot.slane %v3853, 1
        %v3904 = vrot.slane %v3856, 1
        %v3905 = vrot.slane %v3861, 1
        %v3906 = vrot.slane %v3864, 1
        %v3907 = vrot.slane %v3869, 1
        %v3908 = vrot.slane %v3872, 1
        %v3909 = vrot.slane %v3877, 1
        %v3910 = vrot.slane %v3880, 1
        %v3911 = vrot.slane %v3885, 1
        %v3912 = vrot.slane %v3888, 1
        %v3913 = vrot.slane %v3893, 1
        %v3914 = vrot.slane %v3896, 1
        %v3915 = vsel %vm1041, %v3913, %v3914
        %v3916 = vsel %vm1041, %v3912, %v3913
        %v3917 = vsel %vm1041, %v3911, %v3912
        %v3918 = vsel %vm1041, %v3910, %v3911
        %v3919 = vsel %vm1041, %v3909, %v3910
        %v3920 = vsel %vm1041, %v3908, %v3909
        %v3921 = vsel %vm1041, %v3907, %v3908
        %v3922 = vsel %vm1041, %v3906, %v3907
        %v3923 = vsel %vm1041, %v3905, %v3906
        %v3924 = vsel %vm1041, %v3904, %v3905
        %v3925 = vsel %vm1041, %v3903, %v3904
        %v3926 = vsel %vm1041, %v3902, %v3903
        %v3927 = vsel %vm1041, %v3901, %v3902
        %v3928 = vsel %vm1041, %v3900, %v3901
        %v3929 = vsel %vm1041, %v3899, %v3900
        %v3930 = vsel %vm1041, %v3914, %v3899
        %v3931 = vmul.f32 %v3929, %v3219
        %v3932 = vmul.f32 %v3928, %v3224
        %v3933 = vmul.f32 %v3927, %v3229
        %v3934 = vmul.f32 %v3926, %v3234
        %v3935 = vmul.f32 %v3925, %v3239
        %v3936 = vmul.f32 %v3924, %v3244
        %v3937 = vmul.f32 %v3923, %v3249
        %v3938 = vmul.f32 %v3922, %v3254
        %v3939 = vmul.f32 %v3921, %v3259
        %v3940 = vmul.f32 %v3920, %v3264
        %v3941 = vmul.f32 %v3919, %v3269
        %v3942 = vmul.f32 %v3918, %v3274
        %v3943 = vmul.f32 %v3917, %v3279
        %v3944 = vmul.f32 %v3916, %v3284
        %v3945 = vmul.f32 %v3915, %v3289
        %v3946 = vmul.f32 %v3930, %v3294
        %v3947 = vadd.f32 %v3722, %v3931
        %v3948 = vadd.f32 %v3723, %v3932
        %v3949 = vadd.f32 %v3724, %v3933
        %v3950 = vadd.f32 %v3725, %v3934
        %v3951 = vadd.f32 %v3726, %v3935
        %v3952 = vadd.f32 %v3727, %v3936
        %v3953 = vadd.f32 %v3728, %v3937
        %v3954 = vadd.f32 %v3729, %v3938
        %v3955 = vadd.f32 %v3730, %v3939
        %v3956 = vadd.f32 %v3731, %v3940
        %v3957 = vadd.f32 %v3732, %v3941
        %v3958 = vadd.f32 %v3733, %v3942
        %v3959 = vadd.f32 %v3734, %v3943
        %v3960 = vadd.f32 %v3735, %v3944
        %v3961 = vadd.f32 %v3736, %v3945
        %v3962 = vadd.f32 %v3737, %v3946
        %v3963 = vld [vmem:[#allocation2 + $0x50] sm:$0xff]
        %v3964 = vld [vmem:[#allocation2 + $0x58] sm:$0xff]
        %v3965 = vld [vmem:[#allocation2 + $0x60] sm:$0xff]
        %v3966 = vld [vmem:[#allocation2 + $0x68] sm:$0xff]
        %v3967 = vld [vmem:[#allocation2 + $0x70] sm:$0xff]
        %v3968 = vld [vmem:[#allocation2 + $0x78] sm:$0xff]
        %v3969 = vld [vmem:[#allocation2 + $0x80] sm:$0xff]
        %v3970 = vld [vmem:[#allocation2 + $0x88] sm:$0xff]
        %v3971 = vld [vmem:[%s1816] sm:$0xf]
        %v3972 = vld [vmem:[%s1816 + $0x4] sm:$0xf]
        %v3973 = vld [vmem:[%s1816 + $0x8] sm:$0xf]
        %v3974 = vld [vmem:[%s1816 + $0xc] sm:$0xf]
        %v3975 = vld [vmem:[%s1816 + $0x10] sm:$0xf]
        %v3976 = vld [vmem:[%s1816 + $0x14] sm:$0xf]
        %v3977 = vld [vmem:[%s1816 + $0x18] sm:$0xf]
        %v3978 = vld [vmem:[%s1816 + $0x1c] sm:$0xf]
        %v3979 = vld [vmem:[%s1816 + $0x20] sm:$0xf]
        %v3980 = vld [vmem:[%s1816 + $0x24] sm:$0xf]
        %v3981 = vld [vmem:[%s1816 + $0x28] sm:$0xf]
        %v3982 = vld [vmem:[%s1816 + $0x2c] sm:$0xf]
        %v3983 = vld [vmem:[%s1816 + $0x30] sm:$0xf]
        %v3984 = vld [vmem:[%s1816 + $0x34] sm:$0xf]
        %v3985 = vld [vmem:[%s1816 + $0x38] sm:$0xf]
        %v3986 = vld [vmem:[%s1816 + $0x3c] sm:$0xf]
        %v4003 = vunpack.c.l.b16 %v3971
        %v4004 = vunpack.c.l.b16 %v3972
        %v4005 = vunpack.c.l.b16 %v3973
        %v4006 = vunpack.c.l.b16 %v3974
        %v4007 = vunpack.c.l.b16 %v3975
        %v4008 = vunpack.c.l.b16 %v3976
        %v4009 = vunpack.c.l.b16 %v3977
        %v4010 = vunpack.c.l.b16 %v3978
        %v4011 = vunpack.c.l.b16 %v3979
        %v4012 = vunpack.c.l.b16 %v3980
        %v4013 = vunpack.c.l.b16 %v3981
        %v4014 = vunpack.c.l.b16 %v3982
        %v4015 = vunpack.c.l.b16 %v3983
        %v4016 = vunpack.c.l.b16 %v3984
        %v4017 = vunpack.c.l.b16 %v3985
        %v4018 = vunpack.c.l.b16 %v3986
        %v4019 = vpack.c.b16 %v4004, %v4003
        %v4020 = vpack.c.b16 %v4006, %v4005
        %v4021 = vpack.c.b16 %v4008, %v4007
        %v4022 = vpack.c.b16 %v4010, %v4009
        %v4023 = vpack.c.b16 %v4012, %v4011
        %v4024 = vpack.c.b16 %v4014, %v4013
        %v4025 = vpack.c.b16 %v4016, %v4015
        %v4026 = vpack.c.b16 %v4018, %v4017
        %4035 = vmatprep.subr.bf16.mxu0 0
        %4036 = vmatpush1.bf16.msra.mxu0 %v4019
        %4037 = vmatprep.subr.bf16.mxu0 0
        %4038 = vmatpush1.bf16.msra.mxu0 %v4020
        %4039 = vmatprep.subr.bf16.mxu0 0
        %4040 = vmatpush1.bf16.msra.mxu0 %v4021
        %4041 = vmatprep.subr.bf16.mxu0 0
        %4042 = vmatpush1.bf16.msra.mxu0 %v4022
        %4043 = vmatprep.subr.bf16.mxu0 0
        %4044 = vmatpush1.bf16.msra.mxu0 %v4023
        %4045 = vmatprep.subr.bf16.mxu0 0
        %4046 = vmatpush1.bf16.msra.mxu0 %v4024
        %4047 = vmatprep.subr.bf16.mxu0 0
        %4048 = vmatpush1.bf16.msra.mxu0 %v4025
        %4049 = vmatprep.subr.bf16.mxu0 0
        %4050 = vmatpush1.bf16.msra.mxu0 %v4026
        %4051 = vmatprep.subr.bf16.mxu0 0
        %4052 = vmatpush1.bf16.msra.mxu0 0
        %4053 = vmatprep.subr.bf16.mxu0 0
        %4054 = vmatpush1.bf16.msra.mxu0 0
        %4055 = vmatprep.subr.bf16.mxu0 0
        %4056 = vmatpush1.bf16.msra.mxu0 0
        %4057 = vmatprep.subr.bf16.mxu0 0
        %4058 = vmatpush1.bf16.msra.mxu0 0
        %4059 = vmatprep.subr.bf16.mxu0 0
        %4060 = vmatpush1.bf16.msra.mxu0 0
        %4061 = vmatprep.subr.bf16.mxu0 0
        %4062 = vmatpush1.bf16.msra.mxu0 0
        %4063 = vmatprep.subr.bf16.mxu0 0
        %4064 = vmatpush1.bf16.msra.mxu0 0
        %4065 = vmatprep.subr.bf16.mxu0 0
        %4066 = vmatpush1.bf16.msra.mxu0 0
        %4067 = vmatprep.mubr.bf16.mxu0 0
        %4068 = vmatmul.mubr.bf16.gmra.mrb[0].mxu0 %v3963
        %v4069 = vpop.f32.mrb[0].mxu0
        %v4070 = vadd.f32 0.0, %v4069
        %v4071 = vpop.f32.mrb[0].mxu0
        %v4072 = vpop.f32.mrb[0].mxu0
        %v4073 = vadd.f32 0.0, %v4072
        %v4074 = vpop.f32.mrb[0].mxu0
        %4075 = vmatprep.mubr.bf16.mxu0 0
        %4076 = vmatmul.mubr.bf16.gmra.mrb[0].mxu0 %v3964
        %v4077 = vpop.f32.mrb[0].mxu0
        %v4078 = vadd.f32 0.0, %v4077
        %v4079 = vpop.f32.mrb[0].mxu0
        %v4080 = vpop.f32.mrb[0].mxu0
        %v4081 = vadd.f32 0.0, %v4080
        %v4082 = vpop.f32.mrb[0].mxu0
        %4083 = vmatprep.mubr.bf16.mxu0 0
        %4084 = vmatmul.mubr.bf16.gmra.mrb[0].mxu0 %v3965
        %v4085 = vpop.f32.mrb[0].mxu0
        %v4086 = vadd.f32 0.0, %v4085
        %v4087 = vpop.f32.mrb[0].mxu0
        %v4088 = vpop.f32.mrb[0].mxu0
        %v4089 = vadd.f32 0.0, %v4088
        %v4090 = vpop.f32.mrb[0].mxu0
        %4091 = vmatprep.mubr.bf16.mxu0 0
        %4092 = vmatmul.mubr.bf16.gmra.mrb[0].mxu0 %v3966
        %v4093 = vpop.f32.mrb[0].mxu0
        %v4094 = vadd.f32 0.0, %v4093
        %v4095 = vpop.f32.mrb[0].mxu0
        %v4096 = vpop.f32.mrb[0].mxu0
        %v4097 = vadd.f32 0.0, %v4096
        %v4098 = vpop.f32.mrb[0].mxu0
        %4099 = vmatprep.mubr.bf16.mxu0 0
        %4100 = vmatmul.mubr.bf16.gmra.mrb[0].mxu0 %v3967
        %v4101 = vpop.f32.mrb[0].mxu0
        %v4102 = vadd.f32 0.0, %v4101
        %v4103 = vpop.f32.mrb[0].mxu0
        %v4104 = vpop.f32.mrb[0].mxu0
        %v4105 = vadd.f32 0.0, %v4104
        %v4106 = vpop.f32.mrb[0].mxu0
        %4107 = vmatprep.mubr.bf16.mxu0 0
        %4108 = vmatmul.mubr.bf16.gmra.mrb[0].mxu0 %v3968
        %v4109 = vpop.f32.mrb[0].mxu0
        %v4110 = vadd.f32 0.0, %v4109
        %v4111 = vpop.f32.mrb[0].mxu0
        %v4112 = vpop.f32.mrb[0].mxu0
        %v4113 = vadd.f32 0.0, %v4112
        %v4114 = vpop.f32.mrb[0].mxu0
        %4115 = vmatprep.mubr.bf16.mxu0 0
        %4116 = vmatmul.mubr.bf16.gmra.mrb[0].mxu0 %v3969
        %v4117 = vpop.f32.mrb[0].mxu0
        %v4118 = vadd.f32 0.0, %v4117
        %v4119 = vpop.f32.mrb[0].mxu0
        %v4120 = vpop.f32.mrb[0].mxu0
        %v4121 = vadd.f32 0.0, %v4120
        %v4122 = vpop.f32.mrb[0].mxu0
        %4123 = vmatprep.mubr.bf16.mxu0 0
        %4124 = vmatmul.mubr.bf16.gmra.mrb[0].mxu0 %v3970
        %v4125 = vpop.f32.mrb[0].mxu0
        %v4126 = vadd.f32 0.0, %v4125
        %v4127 = vpop.f32.mrb[0].mxu0
        %v4128 = vpop.f32.mrb[0].mxu0
        %v4129 = vadd.f32 0.0, %v4128
        %v4130 = vpop.f32.mrb[0].mxu0
        %4131 = vdwg.mxu0
        %v4132 = vrot.slane %v4070, 7
        %v4133 = vrot.slane %v4073, 7
        %v4134 = vrot.slane %v4078, 7
        %v4135 = vrot.slane %v4081, 7
        %v4136 = vrot.slane %v4086, 7
        %v4137 = vrot.slane %v4089, 7
        %v4138 = vrot.slane %v4094, 7
        %v4139 = vrot.slane %v4097, 7
        %v4140 = vrot.slane %v4102, 7
        %v4141 = vrot.slane %v4105, 7
        %v4142 = vrot.slane %v4110, 7
        %v4143 = vrot.slane %v4113, 7
        %v4144 = vrot.slane %v4118, 7
        %v4145 = vrot.slane %v4121, 7
        %v4146 = vrot.slane %v4126, 7
        %v4147 = vrot.slane %v4129, 7
        %v4148 = vsel %vm556, %v4146, %v4147
        %v4149 = vsel %vm556, %v4145, %v4146
        %v4150 = vsel %vm556, %v4144, %v4145
        %v4151 = vsel %vm556, %v4143, %v4144
        %v4152 = vsel %vm556, %v4142, %v4143
        %v4153 = vsel %vm556, %v4141, %v4142
        %v4154 = vsel %vm556, %v4140, %v4141
        %v4155 = vsel %vm556, %v4139, %v4140
        %v4156 = vsel %vm556, %v4138, %v4139
        %v4157 = vsel %vm556, %v4137, %v4138
        %v4158 = vsel %vm556, %v4136, %v4137
        %v4159 = vsel %vm556, %v4135, %v4136
        %v4160 = vsel %vm556, %v4134, %v4135
        %v4161 = vsel %vm556, %v4133, %v4134
        %v4162 = vsel %vm556, %v4132, %v4133
        %v4163 = vsel %vm556, %v4147, %v4132
        %v4164 = vmul.f32 %v4163, %v2737
        %v4165 = vmul.f32 %v4162, %v2742
        %v4166 = vmul.f32 %v4161, %v2747
        %v4167 = vmul.f32 %v4160, %v2752
        %v4168 = vmul.f32 %v4159, %v2757
        %v4169 = vmul.f32 %v4158, %v2762
        %v4170 = vmul.f32 %v4157, %v2767
        %v4171 = vmul.f32 %v4156, %v2772
        %v4172 = vmul.f32 %v4155, %v2777
        %v4173 = vmul.f32 %v4154, %v2782
        %v4174 = vmul.f32 %v4153, %v2787
        %v4175 = vmul.f32 %v4152, %v2792
        %v4176 = vmul.f32 %v4151, %v2797
        %v4177 = vmul.f32 %v4150, %v2802
        %v4178 = vmul.f32 %v4149, %v2807
        %v4179 = vmul.f32 %v4148, %v2812
        %v4180 = vadd.f32 %v3947, %v4164
        %v4181 = vadd.f32 %v3948, %v4165
        %v4182 = vadd.f32 %v3949, %v4166
        %v4183 = vadd.f32 %v3950, %v4167
        %v4184 = vadd.f32 %v3951, %v4168
        %v4185 = vadd.f32 %v3952, %v4169
        %v4186 = vadd.f32 %v3953, %v4170
        %v4187 = vadd.f32 %v3954, %v4171
        %v4188 = vadd.f32 %v3955, %v4172
        %v4189 = vadd.f32 %v3956, %v4173
        %v4190 = vadd.f32 %v3957, %v4174
        %v4191 = vadd.f32 %v3958, %v4175
        %v4192 = vadd.f32 %v3959, %v4176
        %v4193 = vadd.f32 %v3960, %v4177
        %v4194 = vadd.f32 %v3961, %v4178
        %v4195 = vadd.f32 %v3962, %v4179
        %v4196 = vld [vmem:[%s2042] sm:$0xf]
        %v4197 = vld [vmem:[%s2042 + $0x4] sm:$0xf]
        %v4198 = vld [vmem:[%s2042 + $0x8] sm:$0xf]
        %v4199 = vld [vmem:[%s2042 + $0xc] sm:$0xf]
        %v4200 = vld [vmem:[%s2042 + $0x10] sm:$0xf]
        %v4201 = vld [vmem:[%s2042 + $0x14] sm:$0xf]
        %v4202 = vld [vmem:[%s2042 + $0x18] sm:$0xf]
        %v4203 = vld [vmem:[%s2042 + $0x1c] sm:$0xf]
        %v4204 = vld [vmem:[%s2042 + $0x20] sm:$0xf]
        %v4205 = vld [vmem:[%s2042 + $0x24] sm:$0xf]
        %v4206 = vld [vmem:[%s2042 + $0x28] sm:$0xf]
        %v4207 = vld [vmem:[%s2042 + $0x2c] sm:$0xf]
        %v4208 = vld [vmem:[%s2042 + $0x30] sm:$0xf]
        %v4209 = vld [vmem:[%s2042 + $0x34] sm:$0xf]
        %v4210 = vld [vmem:[%s2042 + $0x38] sm:$0xf]
        %v4211 = vld [vmem:[%s2042 + $0x3c] sm:$0xf]
        %v4228 = vunpack.c.l.b16 %v4196
        %v4229 = vunpack.c.l.b16 %v4197
        %v4230 = vunpack.c.l.b16 %v4198
        %v4231 = vunpack.c.l.b16 %v4199
        %v4232 = vunpack.c.l.b16 %v4200
        %v4233 = vunpack.c.l.b16 %v4201
        %v4234 = vunpack.c.l.b16 %v4202
        %v4235 = vunpack.c.l.b16 %v4203
        %v4236 = vunpack.c.l.b16 %v4204
        %v4237 = vunpack.c.l.b16 %v4205
        %v4238 = vunpack.c.l.b16 %v4206
        %v4239 = vunpack.c.l.b16 %v4207
        %v4240 = vunpack.c.l.b16 %v4208
        %v4241 = vunpack.c.l.b16 %v4209
        %v4242 = vunpack.c.l.b16 %v4210
        %v4243 = vunpack.c.l.b16 %v4211
        %v4244 = vpack.c.b16 %v4229, %v4228
        %v4245 = vpack.c.b16 %v4231, %v4230
        %v4246 = vpack.c.b16 %v4233, %v4232
        %v4247 = vpack.c.b16 %v4235, %v4234
        %v4248 = vpack.c.b16 %v4237, %v4236
        %v4249 = vpack.c.b16 %v4239, %v4238
        %v4250 = vpack.c.b16 %v4241, %v4240
        %v4251 = vpack.c.b16 %v4243, %v4242
        %4260 = vmatprep.subr.bf16.mxu0 0
        %4261 = vmatpush1.bf16.msra.mxu0 %v4244
        %4262 = vmatprep.subr.bf16.mxu0 0
        %4263 = vmatpush1.bf16.msra.mxu0 %v4245
        %4264 = vmatprep.subr.bf16.mxu0 0
        %4265 = vmatpush1.bf16.msra.mxu0 %v4246
        %4266 = vmatprep.subr.bf16.mxu0 0
        %4267 = vmatpush1.bf16.msra.mxu0 %v4247
        %4268 = vmatprep.subr.bf16.mxu0 0
        %4269 = vmatpush1.bf16.msra.mxu0 %v4248
        %4270 = vmatprep.subr.bf16.mxu0 0
        %4271 = vmatpush1.bf16.msra.mxu0 %v4249
        %4272 = vmatprep.subr.bf16.mxu0 0
        %4273 = vmatpush1.bf16.msra.mxu0 %v4250
        %4274 = vmatprep.subr.bf16.mxu0 0
        %4275 = vmatpush1.bf16.msra.mxu0 %v4251
        %4276 = vmatprep.subr.bf16.mxu0 0
        %4277 = vmatpush1.bf16.msra.mxu0 0
        %4278 = vmatprep.subr.bf16.mxu0 0
        %4279 = vmatpush1.bf16.msra.mxu0 0
        %4280 = vmatprep.subr.bf16.mxu0 0
        %4281 = vmatpush1.bf16.msra.mxu0 0
        %4282 = vmatprep.subr.bf16.mxu0 0
        %4283 = vmatpush1.bf16.msra.mxu0 0
        %4284 = vmatprep.subr.bf16.mxu0 0
        %4285 = vmatpush1.bf16.msra.mxu0 0
        %4286 = vmatprep.subr.bf16.mxu0 0
        %4287 = vmatpush1.bf16.msra.mxu0 0
        %4288 = vmatprep.subr.bf16.mxu0 0
        %4289 = vmatpush1.bf16.msra.mxu0 0
        %4290 = vmatprep.subr.bf16.mxu0 0
        %4291 = vmatpush1.bf16.msra.mxu0 0
        %4292 = vmatprep.mubr.bf16.mxu0 0
        %4293 = vmatmul.mubr.bf16.gmra.mrb[0].mxu0 %v3963
        %v4294 = vpop.f32.mrb[0].mxu0
        %v4295 = vadd.f32 0.0, %v4294
        %v4296 = vpop.f32.mrb[0].mxu0
        %v4297 = vpop.f32.mrb[0].mxu0
        %v4298 = vadd.f32 0.0, %v4297
        %v4299 = vpop.f32.mrb[0].mxu0
        %4300 = vmatprep.mubr.bf16.mxu0 0
        %4301 = vmatmul.mubr.bf16.gmra.mrb[0].mxu0 %v3964
        %v4302 = vpop.f32.mrb[0].mxu0
        %v4303 = vadd.f32 0.0, %v4302
        %v4304 = vpop.f32.mrb[0].mxu0
        %v4305 = vpop.f32.mrb[0].mxu0
        %v4306 = vadd.f32 0.0, %v4305
        %v4307 = vpop.f32.mrb[0].mxu0
        %4308 = vmatprep.mubr.bf16.mxu0 0
        %4309 = vmatmul.mubr.bf16.gmra.mrb[0].mxu0 %v3965
        %v4310 = vpop.f32.mrb[0].mxu0
        %v4311 = vadd.f32 0.0, %v4310
        %v4312 = vpop.f32.mrb[0].mxu0
        %v4313 = vpop.f32.mrb[0].mxu0
        %v4314 = vadd.f32 0.0, %v4313
        %v4315 = vpop.f32.mrb[0].mxu0
        %4316 = vmatprep.mubr.bf16.mxu0 0
        %4317 = vmatmul.mubr.bf16.gmra.mrb[0].mxu0 %v3966
        %v4318 = vpop.f32.mrb[0].mxu0
        %v4319 = vadd.f32 0.0, %v4318
        %v4320 = vpop.f32.mrb[0].mxu0
        %v4321 = vpop.f32.mrb[0].mxu0
        %v4322 = vadd.f32 0.0, %v4321
        %v4323 = vpop.f32.mrb[0].mxu0
        %4324 = vmatprep.mubr.bf16.mxu0 0
        %4325 = vmatmul.mubr.bf16.gmra.mrb[0].mxu0 %v3967
        %v4326 = vpop.f32.mrb[0].mxu0
        %v4327 = vadd.f32 0.0, %v4326
        %v4328 = vpop.f32.mrb[0].mxu0
        %v4329 = vpop.f32.mrb[0].mxu0
        %v4330 = vadd.f32 0.0, %v4329
        %v4331 = vpop.f32.mrb[0].mxu0
        %4332 = vmatprep.mubr.bf16.mxu0 0
        %4333 = vmatmul.mubr.bf16.gmra.mrb[0].mxu0 %v3968
        %v4334 = vpop.f32.mrb[0].mxu0
        %v4335 = vadd.f32 0.0, %v4334
        %v4336 = vpop.f32.mrb[0].mxu0
        %v4337 = vpop.f32.mrb[0].mxu0
        %v4338 = vadd.f32 0.0, %v4337
        %v4339 = vpop.f32.mrb[0].mxu0
        %4340 = vmatprep.mubr.bf16.mxu0 0
        %4341 = vmatmul.mubr.bf16.gmra.mrb[0].mxu0 %v3969
        %v4342 = vpop.f32.mrb[0].mxu0
        %v4343 = vadd.f32 0.0, %v4342
        %v4344 = vpop.f32.mrb[0].mxu0
        %v4345 = vpop.f32.mrb[0].mxu0
        %v4346 = vadd.f32 0.0, %v4345
        %v4347 = vpop.f32.mrb[0].mxu0
        %4348 = vmatprep.mubr.bf16.mxu0 0
        %4349 = vmatmul.mubr.bf16.gmra.mrb[0].mxu0 %v3970
        %v4350 = vpop.f32.mrb[0].mxu0
        %v4351 = vadd.f32 0.0, %v4350
        %v4352 = vpop.f32.mrb[0].mxu0
        %v4353 = vpop.f32.mrb[0].mxu0
        %v4354 = vadd.f32 0.0, %v4353
        %v4355 = vpop.f32.mrb[0].mxu0
        %4356 = vdwg.mxu0
        %v4357 = vadd.f32 %v4180, %v4295
        %v4358 = vadd.f32 %v4181, %v4298
        %v4359 = vadd.f32 %v4182, %v4303
        %v4360 = vadd.f32 %v4183, %v4306
        %v4361 = vadd.f32 %v4184, %v4311
        %v4362 = vadd.f32 %v4185, %v4314
        %v4363 = vadd.f32 %v4186, %v4319
        %v4364 = vadd.f32 %v4187, %v4322
        %v4365 = vadd.f32 %v4188, %v4327
        %v4366 = vadd.f32 %v4189, %v4330
        %v4367 = vadd.f32 %v4190, %v4335
        %v4368 = vadd.f32 %v4191, %v4338
        %v4369 = vadd.f32 %v4192, %v4343
        %v4370 = vadd.f32 %v4193, %v4346
        %v4371 = vadd.f32 %v4194, %v4351
        %v4372 = vadd.f32 %v4195, %v4354
        %v4373 = vld [vmem:[%s2220] sm:$0xf]
        %v4374 = vld [vmem:[%s2220 + $0x4] sm:$0xf]
        %v4375 = vld [vmem:[%s2220 + $0x8] sm:$0xf]
        %v4376 = vld [vmem:[%s2220 + $0xc] sm:$0xf]
        %v4377 = vld [vmem:[%s2220 + $0x10] sm:$0xf]
        %v4378 = vld [vmem:[%s2220 + $0x14] sm:$0xf]
        %v4379 = vld [vmem:[%s2220 + $0x18] sm:$0xf]
        %v4380 = vld [vmem:[%s2220 + $0x1c] sm:$0xf]
        %v4381 = vld [vmem:[%s2220 + $0x20] sm:$0xf]
        %v4382 = vld [vmem:[%s2220 + $0x24] sm:$0xf]
        %v4383 = vld [vmem:[%s2220 + $0x28] sm:$0xf]
        %v4384 = vld [vmem:[%s2220 + $0x2c] sm:$0xf]
        %v4385 = vld [vmem:[%s2220 + $0x30] sm:$0xf]
        %v4386 = vld [vmem:[%s2220 + $0x34] sm:$0xf]
        %v4387 = vld [vmem:[%s2220 + $0x38] sm:$0xf]
        %v4388 = vld [vmem:[%s2220 + $0x3c] sm:$0xf]
        %v4405 = vunpack.c.l.b16 %v4373
        %v4406 = vunpack.c.l.b16 %v4374
        %v4407 = vunpack.c.l.b16 %v4375
        %v4408 = vunpack.c.l.b16 %v4376
        %v4409 = vunpack.c.l.b16 %v4377
        %v4410 = vunpack.c.l.b16 %v4378
        %v4411 = vunpack.c.l.b16 %v4379
        %v4412 = vunpack.c.l.b16 %v4380
        %v4413 = vunpack.c.l.b16 %v4381
        %v4414 = vunpack.c.l.b16 %v4382
        %v4415 = vunpack.c.l.b16 %v4383
        %v4416 = vunpack.c.l.b16 %v4384
        %v4417 = vunpack.c.l.b16 %v4385
        %v4418 = vunpack.c.l.b16 %v4386
        %v4419 = vunpack.c.l.b16 %v4387
        %v4420 = vunpack.c.l.b16 %v4388
        %v4421 = vpack.c.b16 %v4406, %v4405
        %v4422 = vpack.c.b16 %v4408, %v4407
        %v4423 = vpack.c.b16 %v4410, %v4409
        %v4424 = vpack.c.b16 %v4412, %v4411
        %v4425 = vpack.c.b16 %v4414, %v4413
        %v4426 = vpack.c.b16 %v4416, %v4415
        %v4427 = vpack.c.b16 %v4418, %v4417
        %v4428 = vpack.c.b16 %v4420, %v4419
        %4437 = vmatprep.subr.bf16.mxu0 0
        %4438 = vmatpush1.bf16.msra.mxu0 %v4421
        %4439 = vmatprep.subr.bf16.mxu0 0
        %4440 = vmatpush1.bf16.msra.mxu0 %v4422
        %4441 = vmatprep.subr.bf16.mxu0 0
        %4442 = vmatpush1.bf16.msra.mxu0 %v4423
        %4443 = vmatprep.subr.bf16.mxu0 0
        %4444 = vmatpush1.bf16.msra.mxu0 %v4424
        %4445 = vmatprep.subr.bf16.mxu0 0
        %4446 = vmatpush1.bf16.msra.mxu0 %v4425
        %4447 = vmatprep.subr.bf16.mxu0 0
        %4448 = vmatpush1.bf16.msra.mxu0 %v4426
        %4449 = vmatprep.subr.bf16.mxu0 0
        %4450 = vmatpush1.bf16.msra.mxu0 %v4427
        %4451 = vmatprep.subr.bf16.mxu0 0
        %4452 = vmatpush1.bf16.msra.mxu0 %v4428
        %4453 = vmatprep.subr.bf16.mxu0 0
        %4454 = vmatpush1.bf16.msra.mxu0 0
        %4455 = vmatprep.subr.bf16.mxu0 0
        %4456 = vmatpush1.bf16.msra.mxu0 0
        %4457 = vmatprep.subr.bf16.mxu0 0
        %4458 = vmatpush1.bf16.msra.mxu0 0
        %4459 = vmatprep.subr.bf16.mxu0 0
        %4460 = vmatpush1.bf16.msra.mxu0 0
        %4461 = vmatprep.subr.bf16.mxu0 0
        %4462 = vmatpush1.bf16.msra.mxu0 0
        %4463 = vmatprep.subr.bf16.mxu0 0
        %4464 = vmatpush1.bf16.msra.mxu0 0
        %4465 = vmatprep.subr.bf16.mxu0 0
        %4466 = vmatpush1.bf16.msra.mxu0 0
        %4467 = vmatprep.subr.bf16.mxu0 0
        %4468 = vmatpush1.bf16.msra.mxu0 0
        %4469 = vmatprep.mubr.bf16.mxu0 0
        %4470 = vmatmul.mubr.bf16.gmra.mrb[0].mxu0 %v3963
        %v4471 = vpop.f32.mrb[0].mxu0
        %v4472 = vadd.f32 0.0, %v4471
        %v4473 = vpop.f32.mrb[0].mxu0
        %v4474 = vpop.f32.mrb[0].mxu0
        %v4475 = vadd.f32 0.0, %v4474
        %v4476 = vpop.f32.mrb[0].mxu0
        %4477 = vmatprep.mubr.bf16.mxu0 0
        %4478 = vmatmul.mubr.bf16.gmra.mrb[0].mxu0 %v3964
        %v4479 = vpop.f32.mrb[0].mxu0
        %v4480 = vadd.f32 0.0, %v4479
        %v4481 = vpop.f32.mrb[0].mxu0
        %v4482 = vpop.f32.mrb[0].mxu0
        %v4483 = vadd.f32 0.0, %v4482
        %v4484 = vpop.f32.mrb[0].mxu0
        %4485 = vmatprep.mubr.bf16.mxu0 0
        %4486 = vmatmul.mubr.bf16.gmra.mrb[0].mxu0 %v3965
        %v4487 = vpop.f32.mrb[0].mxu0
        %v4488 = vadd.f32 0.0, %v4487
        %v4489 = vpop.f32.mrb[0].mxu0
        %v4490 = vpop.f32.mrb[0].mxu0
        %v4491 = vadd.f32 0.0, %v4490
        %v4492 = vpop.f32.mrb[0].mxu0
        %4493 = vmatprep.mubr.bf16.mxu0 0
        %4494 = vmatmul.mubr.bf16.gmra.mrb[0].mxu0 %v3966
        %v4495 = vpop.f32.mrb[0].mxu0
        %v4496 = vadd.f32 0.0, %v4495
        %v4497 = vpop.f32.mrb[0].mxu0
        %v4498 = vpop.f32.mrb[0].mxu0
        %v4499 = vadd.f32 0.0, %v4498
        %v4500 = vpop.f32.mrb[0].mxu0
        %4501 = vmatprep.mubr.bf16.mxu0 0
        %4502 = vmatmul.mubr.bf16.gmra.mrb[0].mxu0 %v3967
        %v4503 = vpop.f32.mrb[0].mxu0
        %v4504 = vadd.f32 0.0, %v4503
        %v4505 = vpop.f32.mrb[0].mxu0
        %v4506 = vpop.f32.mrb[0].mxu0
        %v4507 = vadd.f32 0.0, %v4506
        %v4508 = vpop.f32.mrb[0].mxu0
        %4509 = vmatprep.mubr.bf16.mxu0 0
        %4510 = vmatmul.mubr.bf16.gmra.mrb[0].mxu0 %v3968
        %v4511 = vpop.f32.mrb[0].mxu0
        %v4512 = vadd.f32 0.0, %v4511
        %v4513 = vpop.f32.mrb[0].mxu0
        %v4514 = vpop.f32.mrb[0].mxu0
        %v4515 = vadd.f32 0.0, %v4514
        %v4516 = vpop.f32.mrb[0].mxu0
        %4517 = vmatprep.mubr.bf16.mxu0 0
        %4518 = vmatmul.mubr.bf16.gmra.mrb[0].mxu0 %v3969
        %v4519 = vpop.f32.mrb[0].mxu0
        %v4520 = vadd.f32 0.0, %v4519
        %v4521 = vpop.f32.mrb[0].mxu0
        %v4522 = vpop.f32.mrb[0].mxu0
        %v4523 = vadd.f32 0.0, %v4522
        %v4524 = vpop.f32.mrb[0].mxu0
        %4525 = vmatprep.mubr.bf16.mxu0 0
        %4526 = vmatmul.mubr.bf16.gmra.mrb[0].mxu0 %v3970
        %v4527 = vpop.f32.mrb[0].mxu0
        %v4528 = vadd.f32 0.0, %v4527
        %v4529 = vpop.f32.mrb[0].mxu0
        %v4530 = vpop.f32.mrb[0].mxu0
        %v4531 = vadd.f32 0.0, %v4530
        %v4532 = vpop.f32.mrb[0].mxu0
        %4533 = vdwg.mxu0
        %v4534 = vrot.slane %v4472, 1
        %v4535 = vrot.slane %v4475, 1
        %v4536 = vrot.slane %v4480, 1
        %v4537 = vrot.slane %v4483, 1
        %v4538 = vrot.slane %v4488, 1
        %v4539 = vrot.slane %v4491, 1
        %v4540 = vrot.slane %v4496, 1
        %v4541 = vrot.slane %v4499, 1
        %v4542 = vrot.slane %v4504, 1
        %v4543 = vrot.slane %v4507, 1
        %v4544 = vrot.slane %v4512, 1
        %v4545 = vrot.slane %v4515, 1
        %v4546 = vrot.slane %v4520, 1
        %v4547 = vrot.slane %v4523, 1
        %v4548 = vrot.slane %v4528, 1
        %v4549 = vrot.slane %v4531, 1
        %v4550 = vsel %vm1041, %v4548, %v4549
        %v4551 = vsel %vm1041, %v4547, %v4548
        %v4552 = vsel %vm1041, %v4546, %v4547
        %v4553 = vsel %vm1041, %v4545, %v4546
        %v4554 = vsel %vm1041, %v4544, %v4545
        %v4555 = vsel %vm1041, %v4543, %v4544
        %v4556 = vsel %vm1041, %v4542, %v4543
        %v4557 = vsel %vm1041, %v4541, %v4542
        %v4558 = vsel %vm1041, %v4540, %v4541
        %v4559 = vsel %vm1041, %v4539, %v4540
        %v4560 = vsel %vm1041, %v4538, %v4539
        %v4561 = vsel %vm1041, %v4537, %v4538
        %v4562 = vsel %vm1041, %v4536, %v4537
        %v4563 = vsel %vm1041, %v4535, %v4536
        %v4564 = vsel %vm1041, %v4534, %v4535
        %v4565 = vsel %vm1041, %v4549, %v4534
        %v4566 = vmul.f32 %v4564, %v3219
        %v4567 = vmul.f32 %v4563, %v3224
        %v4568 = vmul.f32 %v4562, %v3229
        %v4569 = vmul.f32 %v4561, %v3234
        %v4570 = vmul.f32 %v4560, %v3239
        %v4571 = vmul.f32 %v4559, %v3244
        %v4572 = vmul.f32 %v4558, %v3249
        %v4573 = vmul.f32 %v4557, %v3254
        %v4574 = vmul.f32 %v4556, %v3259
        %v4575 = vmul.f32 %v4555, %v3264
        %v4576 = vmul.f32 %v4554, %v3269
        %v4577 = vmul.f32 %v4553, %v3274
        %v4578 = vmul.f32 %v4552, %v3279
        %v4579 = vmul.f32 %v4551, %v3284
        %v4580 = vmul.f32 %v4550, %v3289
        %v4581 = vmul.f32 %v4565, %v3294
        %v4582 = vadd.f32 %v4357, %v4566
        %v4583 = vadd.f32 %v4358, %v4567
        %v4584 = vadd.f32 %v4359, %v4568
        %v4585 = vadd.f32 %v4360, %v4569
        %v4586 = vadd.f32 %v4361, %v4570
        %v4587 = vadd.f32 %v4362, %v4571
        %v4588 = vadd.f32 %v4363, %v4572
        %v4589 = vadd.f32 %v4364, %v4573
        %v4590 = vadd.f32 %v4365, %v4574
        %v4591 = vadd.f32 %v4366, %v4575
        %v4592 = vadd.f32 %v4367, %v4576
        %v4593 = vadd.f32 %v4368, %v4577
        %v4594 = vadd.f32 %v4369, %v4578
        %v4595 = vadd.f32 %v4370, %v4579
        %v4596 = vadd.f32 %v4371, %v4580
        %v4597 = vadd.f32 %v4372, %v4581
        %v4598 = vld [vmem:[%s2] sm:$0x1]
        %v4600 = vlaneseq
        %v4601 = vshrl.u32 %v4600, 7
        %v4602 = vsub.s32 0, %v4601
        %v4603 = vrot.slane %v4598, %v4602
        %v4605 = vadd.f32 %v4582, %v4603
        %v4606 = vadd.f32 %v4583, %v4603
        %v4607 = vadd.f32 %v4584, %v4603
        %v4608 = vadd.f32 %v4585, %v4603
        %v4609 = vadd.f32 %v4586, %v4603
        %v4610 = vadd.f32 %v4587, %v4603
        %v4611 = vadd.f32 %v4588, %v4603
        %v4612 = vadd.f32 %v4589, %v4603
        %v4613 = vadd.f32 %v4590, %v4603
        %v4614 = vadd.f32 %v4591, %v4603
        %v4615 = vadd.f32 %v4592, %v4603
        %v4616 = vadd.f32 %v4593, %v4603
        %v4617 = vadd.f32 %v4594, %v4603
        %v4618 = vadd.f32 %v4595, %v4603
        %v4619 = vadd.f32 %v4596, %v4603
        %v4620 = vadd.f32 %v4597, %v4603
        %v4621 = vmax.f32 %v4605, 0.0
        %v4622 = vmax.f32 %v4606, 0.0
        %v4623 = vmax.f32 %v4607, 0.0
        %v4624 = vmax.f32 %v4608, 0.0
        %v4625 = vmax.f32 %v4609, 0.0
        %v4626 = vmax.f32 %v4610, 0.0
        %v4627 = vmax.f32 %v4611, 0.0
        %v4628 = vmax.f32 %v4612, 0.0
        %v4629 = vmax.f32 %v4613, 0.0
        %v4630 = vmax.f32 %v4614, 0.0
        %v4631 = vmax.f32 %v4615, 0.0
        %v4632 = vmax.f32 %v4616, 0.0
        %v4633 = vmax.f32 %v4617, 0.0
        %v4634 = vmax.f32 %v4618, 0.0
        %v4635 = vmax.f32 %v4619, 0.0
        %v4636 = vmax.f32 %v4620, 0.0
        %v4637 = vpack.c.bf16 %v4622, %v4621
        %v4638 = vpack.c.bf16 %v4624, %v4623
        %v4639 = vpack.c.bf16 %v4626, %v4625
        %v4640 = vpack.c.bf16 %v4628, %v4627
        %v4641 = vpack.c.bf16 %v4630, %v4629
        %v4642 = vpack.c.bf16 %v4632, %v4631
        %v4643 = vpack.c.bf16 %v4634, %v4633
        %v4644 = vpack.c.bf16 %v4636, %v4635
        %4645 = vst [vmem:[#allocation3 + $0x48] sm:$0xff] %v4637
        %4646 = vst [vmem:[#allocation3 + $0x50] sm:$0xff] %v4638
        %4647 = vst [vmem:[#allocation3 + $0x58] sm:$0xff] %v4639
        %4648 = vst [vmem:[#allocation3 + $0x60] sm:$0xff] %v4640
        %4649 = vst [vmem:[#allocation3 + $0x68] sm:$0xff] %v4641
        %4650 = vst [vmem:[#allocation3 + $0x70] sm:$0xff] %v4642
        %4651 = vst [vmem:[#allocation3 + $0x78] sm:$0xff] %v4643
        %4652 = vst [vmem:[#allocation3 + $0x80] sm:$0xff] %v4644
        %v4653 = vld [vmem:[%s3] sm:$0xff]
        %v4654 = vld [vmem:[%s3 + $0x8] sm:$0xff]
        %v4655 = vld [vmem:[%s3 + $0x10] sm:$0xff]
        %v4656 = vld [vmem:[%s3 + $0x18] sm:$0xff]
        %v4657 = vld [vmem:[%s3 + $0x20] sm:$0xff]
        %v4658 = vld [vmem:[%s3 + $0x28] sm:$0xff]
        %v4659 = vld [vmem:[%s3 + $0x30] sm:$0xff]
        %v4660 = vld [vmem:[%s3 + $0x38] sm:$0xff]
        %v4661 = vld [vmem:[%s3 + $0x40] sm:$0xff]
        %v4662 = vld [vmem:[%s3 + $0x48] sm:$0xff]
        %v4663 = vld [vmem:[%s3 + $0x50] sm:$0xff]
        %v4664 = vld [vmem:[%s3 + $0x58] sm:$0xff]
        %v4665 = vld [vmem:[%s3 + $0x60] sm:$0xff]
        %v4666 = vld [vmem:[%s3 + $0x68] sm:$0xff]
        %v4667 = vld [vmem:[%s3 + $0x70] sm:$0xff]
        %v4668 = vld [vmem:[%s3 + $0x78] sm:$0xff]
        %v4669 = vld [vmem:[%s352] sm:$0xff]
        %v4670 = vld [vmem:[%s352 + $0x8] sm:$0xff]
        %v4671 = vld [vmem:[%s352 + $0x10] sm:$0xff]
        %v4672 = vld [vmem:[%s352 + $0x18] sm:$0xff]
        %v4673 = vld [vmem:[%s352 + $0x20] sm:$0xff]
        %v4674 = vld [vmem:[%s352 + $0x28] sm:$0xff]
        %v4675 = vld [vmem:[%s352 + $0x30] sm:$0xff]
        %v4676 = vld [vmem:[%s352 + $0x38] sm:$0xff]
        %v4677 = vld [vmem:[%s352 + $0x40] sm:$0xff]
        %v4678 = vld [vmem:[%s352 + $0x48] sm:$0xff]
        %v4679 = vld [vmem:[%s352 + $0x50] sm:$0xff]
        %v4680 = vld [vmem:[%s352 + $0x58] sm:$0xff]
        %v4681 = vld [vmem:[%s352 + $0x60] sm:$0xff]
        %v4682 = vld [vmem:[%s352 + $0x68] sm:$0xff]
        %v4683 = vld [vmem:[%s352 + $0x70] sm:$0xff]
        %v4684 = vld [vmem:[%s352 + $0x78] sm:$0xff]
        %v4685 = vld [vmem:[#allocation3] sm:$0xff]
        %v4686 = vld [vmem:[#allocation3 + $0x8] sm:$0xff]
        %v4687 = vld [vmem:[#allocation3 + $0x10] sm:$0xff]
        %v4688 = vld [vmem:[#allocation3 + $0x18] sm:$0xff]
        %v4689 = vld [vmem:[#allocation3 + $0x20] sm:$0xff]
        %v4690 = vld [vmem:[#allocation3 + $0x28] sm:$0xff]
        %v4691 = vld [vmem:[#allocation3 + $0x30] sm:$0xff]
        %v4692 = vld [vmem:[#allocation3 + $0x38] sm:$0xff]
        %s4693 = scalar_lea.vmem [#allocation4], 576
        %v4694 = vld [vmem:[%s4693] sm:$0xf]
        %v4695 = vld [vmem:[%s4693 + $0x4] sm:$0xf]
        %v4696 = vld [vmem:[%s4693 + $0x8] sm:$0xf]
        %v4697 = vld [vmem:[%s4693 + $0xc] sm:$0xf]
        %v4698 = vld [vmem:[%s4693 + $0x10] sm:$0xf]
        %v4699 = vld [vmem:[%s4693 + $0x14] sm:$0xf]
        %v4700 = vld [vmem:[%s4693 + $0x18] sm:$0xf]
        %v4701 = vld [vmem:[%s4693 + $0x1c] sm:$0xf]
        %v4702 = vld [vmem:[%s4693 + $0x20] sm:$0xf]
        %v4703 = vld [vmem:[%s4693 + $0x24] sm:$0xf]
        %v4704 = vld [vmem:[%s4693 + $0x28] sm:$0xf]
        %v4705 = vld [vmem:[%s4693 + $0x2c] sm:$0xf]
        %v4706 = vld [vmem:[%s4693 + $0x30] sm:$0xf]
        %v4707 = vld [vmem:[%s4693 + $0x34] sm:$0xf]
        %v4708 = vld [vmem:[%s4693 + $0x38] sm:$0xf]
        %v4709 = vld [vmem:[%s4693 + $0x3c] sm:$0xf]
        %v4726 = vunpack.c.l.b16 %v4694
        %v4727 = vunpack.c.l.b16 %v4695
        %v4728 = vunpack.c.l.b16 %v4696
        %v4729 = vunpack.c.l.b16 %v4697
        %v4730 = vunpack.c.l.b16 %v4698
        %v4731 = vunpack.c.l.b16 %v4699
        %v4732 = vunpack.c.l.b16 %v4700
        %v4733 = vunpack.c.l.b16 %v4701
        %v4734 = vunpack.c.l.b16 %v4702
        %v4735 = vunpack.c.l.b16 %v4703
        %v4736 = vunpack.c.l.b16 %v4704
        %v4737 = vunpack.c.l.b16 %v4705
        %v4738 = vunpack.c.l.b16 %v4706
        %v4739 = vunpack.c.l.b16 %v4707
        %v4740 = vunpack.c.l.b16 %v4708
        %v4741 = vunpack.c.l.b16 %v4709
        %v4742 = vpack.c.b16 %v4727, %v4726
        %v4743 = vpack.c.b16 %v4729, %v4728
        %v4744 = vpack.c.b16 %v4731, %v4730
        %v4745 = vpack.c.b16 %v4733, %v4732
        %v4746 = vpack.c.b16 %v4735, %v4734
        %v4747 = vpack.c.b16 %v4737, %v4736
        %v4748 = vpack.c.b16 %v4739, %v4738
        %v4749 = vpack.c.b16 %v4741, %v4740
        %4758 = vmatprep.subr.bf16.mxu0 0
        %4759 = vmatpush1.bf16.msra.mxu0 %v4742
        %4760 = vmatprep.subr.bf16.mxu0 0
        %4761 = vmatpush1.bf16.msra.mxu0 %v4743
        %4762 = vmatprep.subr.bf16.mxu0 0
        %4763 = vmatpush1.bf16.msra.mxu0 %v4744
        %4764 = vmatprep.subr.bf16.mxu0 0
        %4765 = vmatpush1.bf16.msra.mxu0 %v4745
        %4766 = vmatprep.subr.bf16.mxu0 0
        %4767 = vmatpush1.bf16.msra.mxu0 %v4746
        %4768 = vmatprep.subr.bf16.mxu0 0
        %4769 = vmatpush1.bf16.msra.mxu0 %v4747
        %4770 = vmatprep.subr.bf16.mxu0 0
        %4771 = vmatpush1.bf16.msra.mxu0 %v4748
        %4772 = vmatprep.subr.bf16.mxu0 0
        %4773 = vmatpush1.bf16.msra.mxu0 %v4749
        %4774 = vmatprep.subr.bf16.mxu0 0
        %4775 = vmatpush1.bf16.msra.mxu0 0
        %4776 = vmatprep.subr.bf16.mxu0 0
        %4777 = vmatpush1.bf16.msra.mxu0 0
        %4778 = vmatprep.subr.bf16.mxu0 0
        %4779 = vmatpush1.bf16.msra.mxu0 0
        %4780 = vmatprep.subr.bf16.mxu0 0
        %4781 = vmatpush1.bf16.msra.mxu0 0
        %4782 = vmatprep.subr.bf16.mxu0 0
        %4783 = vmatpush1.bf16.msra.mxu0 0
        %4784 = vmatprep.subr.bf16.mxu0 0
        %4785 = vmatpush1.bf16.msra.mxu0 0
        %4786 = vmatprep.subr.bf16.mxu0 0
        %4787 = vmatpush1.bf16.msra.mxu0 0
        %4788 = vmatprep.subr.bf16.mxu0 0
        %4789 = vmatpush1.bf16.msra.mxu0 0
        %4790 = vmatprep.mubr.bf16.mxu0 0
        %4791 = vmatmul.mubr.bf16.gmra.mrb[0].mxu0 %v4685
        %v4792 = vpop.f32.mrb[0].mxu0
        %v4793 = vadd.f32 0.0, %v4792
        %v4794 = vpop.f32.mrb[0].mxu0
        %v4795 = vpop.f32.mrb[0].mxu0
        %v4796 = vadd.f32 0.0, %v4795
        %v4797 = vpop.f32.mrb[0].mxu0
        %4798 = vmatprep.mubr.bf16.mxu0 0
        %4799 = vmatmul.mubr.bf16.gmra.mrb[0].mxu0 %v4686
        %v4800 = vpop.f32.mrb[0].mxu0
        %v4801 = vadd.f32 0.0, %v4800
        %v4802 = vpop.f32.mrb[0].mxu0
        %v4803 = vpop.f32.mrb[0].mxu0
        %v4804 = vadd.f32 0.0, %v4803
        %v4805 = vpop.f32.mrb[0].mxu0
        %4806 = vmatprep.mubr.bf16.mxu0 0
        %4807 = vmatmul.mubr.bf16.gmra.mrb[0].mxu0 %v4687
        %v4808 = vpop.f32.mrb[0].mxu0
        %v4809 = vadd.f32 0.0, %v4808
        %v4810 = vpop.f32.mrb[0].mxu0
        %v4811 = vpop.f32.mrb[0].mxu0
        %v4812 = vadd.f32 0.0, %v4811
        %v4813 = vpop.f32.mrb[0].mxu0
        %4814 = vmatprep.mubr.bf16.mxu0 0
        %4815 = vmatmul.mubr.bf16.gmra.mrb[0].mxu0 %v4688
        %v4816 = vpop.f32.mrb[0].mxu0
        %v4817 = vadd.f32 0.0, %v4816
        %v4818 = vpop.f32.mrb[0].mxu0
        %v4819 = vpop.f32.mrb[0].mxu0
        %v4820 = vadd.f32 0.0, %v4819
        %v4821 = vpop.f32.mrb[0].mxu0
        %4822 = vmatprep.mubr.bf16.mxu0 0
        %4823 = vmatmul.mubr.bf16.gmra.mrb[0].mxu0 %v4689
        %v4824 = vpop.f32.mrb[0].mxu0
        %v4825 = vadd.f32 0.0, %v4824
        %v4826 = vpop.f32.mrb[0].mxu0
        %v4827 = vpop.f32.mrb[0].mxu0
        %v4828 = vadd.f32 0.0, %v4827
        %v4829 = vpop.f32.mrb[0].mxu0
        %4830 = vmatprep.mubr.bf16.mxu0 0
        %4831 = vmatmul.mubr.bf16.gmra.mrb[0].mxu0 %v4690
        %v4832 = vpop.f32.mrb[0].mxu0
        %v4833 = vadd.f32 0.0, %v4832
        %v4834 = vpop.f32.mrb[0].mxu0
        %v4835 = vpop.f32.mrb[0].mxu0
        %v4836 = vadd.f32 0.0, %v4835
        %v4837 = vpop.f32.mrb[0].mxu0
        %4838 = vmatprep.mubr.bf16.mxu0 0
        %4839 = vmatmul.mubr.bf16.gmra.mrb[0].mxu0 %v4691
        %v4840 = vpop.f32.mrb[0].mxu0
        %v4841 = vadd.f32 0.0, %v4840
        %v4842 = vpop.f32.mrb[0].mxu0
        %v4843 = vpop.f32.mrb[0].mxu0
        %v4844 = vadd.f32 0.0, %v4843
        %v4845 = vpop.f32.mrb[0].mxu0
        %4846 = vmatprep.mubr.bf16.mxu0 0
        %4847 = vmatmul.mubr.bf16.gmra.mrb[0].mxu0 %v4692
        %v4848 = vpop.f32.mrb[0].mxu0
        %v4849 = vadd.f32 0.0, %v4848
        %v4850 = vpop.f32.mrb[0].mxu0
        %v4851 = vpop.f32.mrb[0].mxu0
        %v4852 = vadd.f32 0.0, %v4851
        %v4853 = vpop.f32.mrb[0].mxu0
        %4854 = vdwg.mxu0
        %v4855 = vrot.slane %v4793, 7
        %v4856 = vrot.slane %v4796, 7
        %v4857 = vrot.slane %v4801, 7
        %v4858 = vrot.slane %v4804, 7
        %v4859 = vrot.slane %v4809, 7
        %v4860 = vrot.slane %v4812, 7
        %v4861 = vrot.slane %v4817, 7
        %v4862 = vrot.slane %v4820, 7
        %v4863 = vrot.slane %v4825, 7
        %v4864 = vrot.slane %v4828, 7
        %v4865 = vrot.slane %v4833, 7
        %v4866 = vrot.slane %v4836, 7
        %v4867 = vrot.slane %v4841, 7
        %v4868 = vrot.slane %v4844, 7
        %v4869 = vrot.slane %v4849, 7
        %v4870 = vrot.slane %v4852, 7
        %v4871 = vsel %vm556, %v4869, %v4870
        %v4872 = vsel %vm556, %v4868, %v4869
        %v4873 = vsel %vm556, %v4867, %v4868
        %v4874 = vsel %vm556, %v4866, %v4867
        %v4875 = vsel %vm556, %v4865, %v4866
        %v4876 = vsel %vm556, %v4864, %v4865
        %v4877 = vsel %vm556, %v4863, %v4864
        %v4878 = vsel %vm556, %v4862, %v4863
        %v4879 = vsel %vm556, %v4861, %v4862
        %v4880 = vsel %vm556, %v4860, %v4861
        %v4881 = vsel %vm556, %v4859, %v4860
        %v4882 = vsel %vm556, %v4858, %v4859
        %v4883 = vsel %vm556, %v4857, %v4858
        %v4884 = vsel %vm556, %v4856, %v4857
        %v4885 = vsel %vm556, %v4855, %v4856
        %v4886 = vsel %vm556, %v4870, %v4855
        %4888 = vset.pattern.permute.xlu0 0
        %4889 = vperm.xlu0 %4888, %v4653
        %v4890 = vpop.permute.xlu0 %4889
        %4893 = vset.pattern.permute.xlu0 0
        %4894 = vperm.xlu0 %4893, %v4654
        %v4895 = vpop.permute.xlu0 %4894
        %4898 = vset.pattern.permute.xlu0 0
        %4899 = vperm.xlu0 %4898, %v4655
        %v4900 = vpop.permute.xlu0 %4899
        %4903 = vset.pattern.permute.xlu0 0
        %4904 = vperm.xlu0 %4903, %v4656
        %v4905 = vpop.permute.xlu0 %4904
        %4908 = vset.pattern.permute.xlu0 0
        %4909 = vperm.xlu0 %4908, %v4657
        %v4910 = vpop.permute.xlu0 %4909
        %4913 = vset.pattern.permute.xlu0 0
        %4914 = vperm.xlu0 %4913, %v4658
        %v4915 = vpop.permute.xlu0 %4914
        %4918 = vset.pattern.permute.xlu0 0
        %4919 = vperm.xlu0 %4918, %v4659
        %v4920 = vpop.permute.xlu0 %4919
        %4923 = vset.pattern.permute.xlu0 0
        %4924 = vperm.xlu0 %4923, %v4660
        %v4925 = vpop.permute.xlu0 %4924
        %4928 = vset.pattern.permute.xlu0 0
        %4929 = vperm.xlu0 %4928, %v4661
        %v4930 = vpop.permute.xlu0 %4929
        %4933 = vset.pattern.permute.xlu0 0
        %4934 = vperm.xlu0 %4933, %v4662
        %v4935 = vpop.permute.xlu0 %4934
        %4938 = vset.pattern.permute.xlu0 0
        %4939 = vperm.xlu0 %4938, %v4663
        %v4940 = vpop.permute.xlu0 %4939
        %4943 = vset.pattern.permute.xlu0 0
        %4944 = vperm.xlu0 %4943, %v4664
        %v4945 = vpop.permute.xlu0 %4944
        %4948 = vset.pattern.permute.xlu0 0
        %4949 = vperm.xlu0 %4948, %v4665
        %v4950 = vpop.permute.xlu0 %4949
        %4953 = vset.pattern.permute.xlu0 0
        %4954 = vperm.xlu0 %4953, %v4666
        %v4955 = vpop.permute.xlu0 %4954
        %4958 = vset.pattern.permute.xlu0 0
        %4959 = vperm.xlu0 %4958, %v4667
        %v4960 = vpop.permute.xlu0 %4959
        %4963 = vset.pattern.permute.xlu0 0
        %4964 = vperm.xlu0 %4963, %v4668
        %v4965 = vpop.permute.xlu0 %4964
        %v4967 = vmul.f32 %v4886, %v4890
        %v4968 = vmul.f32 %v4885, %v4895
        %v4969 = vmul.f32 %v4884, %v4900
        %v4970 = vmul.f32 %v4883, %v4905
        %v4971 = vmul.f32 %v4882, %v4910
        %v4972 = vmul.f32 %v4881, %v4915
        %v4973 = vmul.f32 %v4880, %v4920
        %v4974 = vmul.f32 %v4879, %v4925
        %v4975 = vmul.f32 %v4878, %v4930
        %v4976 = vmul.f32 %v4877, %v4935
        %v4977 = vmul.f32 %v4876, %v4940
        %v4978 = vmul.f32 %v4875, %v4945
        %v4979 = vmul.f32 %v4874, %v4950
        %v4980 = vmul.f32 %v4873, %v4955
        %v4981 = vmul.f32 %v4872, %v4960
        %v4982 = vmul.f32 %v4871, %v4965
        %v4983 = vadd.f32 %v4967, 0.0
        %v4984 = vadd.f32 %v4968, 0.0
        %v4985 = vadd.f32 %v4969, 0.0
        %v4986 = vadd.f32 %v4970, 0.0
        %v4987 = vadd.f32 %v4971, 0.0
        %v4988 = vadd.f32 %v4972, 0.0
        %v4989 = vadd.f32 %v4973, 0.0
        %v4990 = vadd.f32 %v4974, 0.0
        %v4991 = vadd.f32 %v4975, 0.0
        %v4992 = vadd.f32 %v4976, 0.0
        %v4993 = vadd.f32 %v4977, 0.0
        %v4994 = vadd.f32 %v4978, 0.0
        %v4995 = vadd.f32 %v4979, 0.0
        %v4996 = vadd.f32 %v4980, 0.0
        %v4997 = vadd.f32 %v4981, 0.0
        %v4998 = vadd.f32 %v4982, 0.0
        %s4999 = scalar_lea.vmem [#allocation4], 640
        %v5000 = vld [vmem:[%s4999] sm:$0xf]
        %v5001 = vld [vmem:[%s4999 + $0x4] sm:$0xf]
        %v5002 = vld [vmem:[%s4999 + $0x8] sm:$0xf]
        %v5003 = vld [vmem:[%s4999 + $0xc] sm:$0xf]
        %v5004 = vld [vmem:[%s4999 + $0x10] sm:$0xf]
        %v5005 = vld [vmem:[%s4999 + $0x14] sm:$0xf]
        %v5006 = vld [vmem:[%s4999 + $0x18] sm:$0xf]
        %v5007 = vld [vmem:[%s4999 + $0x1c] sm:$0xf]
        %v5008 = vld [vmem:[%s4999 + $0x20] sm:$0xf]
        %v5009 = vld [vmem:[%s4999 + $0x24] sm:$0xf]
        %v5010 = vld [vmem:[%s4999 + $0x28] sm:$0xf]
        %v5011 = vld [vmem:[%s4999 + $0x2c] sm:$0xf]
        %v5012 = vld [vmem:[%s4999 + $0x30] sm:$0xf]
        %v5013 = vld [vmem:[%s4999 + $0x34] sm:$0xf]
        %v5014 = vld [vmem:[%s4999 + $0x38] sm:$0xf]
        %v5015 = vld [vmem:[%s4999 + $0x3c] sm:$0xf]
        %v5032 = vunpack.c.l.b16 %v5000
        %v5033 = vunpack.c.l.b16 %v5001
        %v5034 = vunpack.c.l.b16 %v5002
        %v5035 = vunpack.c.l.b16 %v5003
        %v5036 = vunpack.c.l.b16 %v5004
        %v5037 = vunpack.c.l.b16 %v5005
        %v5038 = vunpack.c.l.b16 %v5006
        %v5039 = vunpack.c.l.b16 %v5007
        %v5040 = vunpack.c.l.b16 %v5008
        %v5041 = vunpack.c.l.b16 %v5009
        %v5042 = vunpack.c.l.b16 %v5010
        %v5043 = vunpack.c.l.b16 %v5011
        %v5044 = vunpack.c.l.b16 %v5012
        %v5045 = vunpack.c.l.b16 %v5013
        %v5046 = vunpack.c.l.b16 %v5014
        %v5047 = vunpack.c.l.b16 %v5015
        %v5048 = vpack.c.b16 %v5033, %v5032
        %v5049 = vpack.c.b16 %v5035, %v5034
        %v5050 = vpack.c.b16 %v5037, %v5036
        %v5051 = vpack.c.b16 %v5039, %v5038
        %v5052 = vpack.c.b16 %v5041, %v5040
        %v5053 = vpack.c.b16 %v5043, %v5042
        %v5054 = vpack.c.b16 %v5045, %v5044
        %v5055 = vpack.c.b16 %v5047, %v5046
        %5064 = vmatprep.subr.bf16.mxu0 0
        %5065 = vmatpush1.bf16.msra.mxu0 %v5048
        %5066 = vmatprep.subr.bf16.mxu0 0
        %5067 = vmatpush1.bf16.msra.mxu0 %v5049
        %5068 = vmatprep.subr.bf16.mxu0 0
        %5069 = vmatpush1.bf16.msra.mxu0 %v5050
        %5070 = vmatprep.subr.bf16.mxu0 0
        %5071 = vmatpush1.bf16.msra.mxu0 %v5051
        %5072 = vmatprep.subr.bf16.mxu0 0
        %5073 = vmatpush1.bf16.msra.mxu0 %v5052
        %5074 = vmatprep.subr.bf16.mxu0 0
        %5075 = vmatpush1.bf16.msra.mxu0 %v5053
        %5076 = vmatprep.subr.bf16.mxu0 0
        %5077 = vmatpush1.bf16.msra.mxu0 %v5054
        %5078 = vmatprep.subr.bf16.mxu0 0
        %5079 = vmatpush1.bf16.msra.mxu0 %v5055
        %5080 = vmatprep.subr.bf16.mxu0 0
        %5081 = vmatpush1.bf16.msra.mxu0 0
        %5082 = vmatprep.subr.bf16.mxu0 0
        %5083 = vmatpush1.bf16.msra.mxu0 0
        %5084 = vmatprep.subr.bf16.mxu0 0
        %5085 = vmatpush1.bf16.msra.mxu0 0
        %5086 = vmatprep.subr.bf16.mxu0 0
        %5087 = vmatpush1.bf16.msra.mxu0 0
        %5088 = vmatprep.subr.bf16.mxu0 0
        %5089 = vmatpush1.bf16.msra.mxu0 0
        %5090 = vmatprep.subr.bf16.mxu0 0
        %5091 = vmatpush1.bf16.msra.mxu0 0
        %5092 = vmatprep.subr.bf16.mxu0 0
        %5093 = vmatpush1.bf16.msra.mxu0 0
        %5094 = vmatprep.subr.bf16.mxu0 0
        %5095 = vmatpush1.bf16.msra.mxu0 0
        %5096 = vmatprep.mubr.bf16.mxu0 0
        %5097 = vmatmul.mubr.bf16.gmra.mrb[0].mxu0 %v4685
        %v5098 = vpop.f32.mrb[0].mxu0
        %v5099 = vadd.f32 0.0, %v5098
        %v5100 = vpop.f32.mrb[0].mxu0
        %v5101 = vpop.f32.mrb[0].mxu0
        %v5102 = vadd.f32 0.0, %v5101
        %v5103 = vpop.f32.mrb[0].mxu0
        %5104 = vmatprep.mubr.bf16.mxu0 0
        %5105 = vmatmul.mubr.bf16.gmra.mrb[0].mxu0 %v4686
        %v5106 = vpop.f32.mrb[0].mxu0
        %v5107 = vadd.f32 0.0, %v5106
        %v5108 = vpop.f32.mrb[0].mxu0
        %v5109 = vpop.f32.mrb[0].mxu0
        %v5110 = vadd.f32 0.0, %v5109
        %v5111 = vpop.f32.mrb[0].mxu0
        %5112 = vmatprep.mubr.bf16.mxu0 0
        %5113 = vmatmul.mubr.bf16.gmra.mrb[0].mxu0 %v4687
        %v5114 = vpop.f32.mrb[0].mxu0
        %v5115 = vadd.f32 0.0, %v5114
        %v5116 = vpop.f32.mrb[0].mxu0
        %v5117 = vpop.f32.mrb[0].mxu0
        %v5118 = vadd.f32 0.0, %v5117
        %v5119 = vpop.f32.mrb[0].mxu0
        %5120 = vmatprep.mubr.bf16.mxu0 0
        %5121 = vmatmul.mubr.bf16.gmra.mrb[0].mxu0 %v4688
        %v5122 = vpop.f32.mrb[0].mxu0
        %v5123 = vadd.f32 0.0, %v5122
        %v5124 = vpop.f32.mrb[0].mxu0
        %v5125 = vpop.f32.mrb[0].mxu0
        %v5126 = vadd.f32 0.0, %v5125
        %v5127 = vpop.f32.mrb[0].mxu0
        %5128 = vmatprep.mubr.bf16.mxu0 0
        %5129 = vmatmul.mubr.bf16.gmra.mrb[0].mxu0 %v4689
        %v5130 = vpop.f32.mrb[0].mxu0
        %v5131 = vadd.f32 0.0, %v5130
        %v5132 = vpop.f32.mrb[0].mxu0
        %v5133 = vpop.f32.mrb[0].mxu0
        %v5134 = vadd.f32 0.0, %v5133
        %v5135 = vpop.f32.mrb[0].mxu0
        %5136 = vmatprep.mubr.bf16.mxu0 0
        %5137 = vmatmul.mubr.bf16.gmra.mrb[0].mxu0 %v4690
        %v5138 = vpop.f32.mrb[0].mxu0
        %v5139 = vadd.f32 0.0, %v5138
        %v5140 = vpop.f32.mrb[0].mxu0
        %v5141 = vpop.f32.mrb[0].mxu0
        %v5142 = vadd.f32 0.0, %v5141
        %v5143 = vpop.f32.mrb[0].mxu0
        %5144 = vmatprep.mubr.bf16.mxu0 0
        %5145 = vmatmul.mubr.bf16.gmra.mrb[0].mxu0 %v4691
        %v5146 = vpop.f32.mrb[0].mxu0
        %v5147 = vadd.f32 0.0, %v5146
        %v5148 = vpop.f32.mrb[0].mxu0
        %v5149 = vpop.f32.mrb[0].mxu0
        %v5150 = vadd.f32 0.0, %v5149
        %v5151 = vpop.f32.mrb[0].mxu0
        %5152 = vmatprep.mubr.bf16.mxu0 0
        %5153 = vmatmul.mubr.bf16.gmra.mrb[0].mxu0 %v4692
        %v5154 = vpop.f32.mrb[0].mxu0
        %v5155 = vadd.f32 0.0, %v5154
        %v5156 = vpop.f32.mrb[0].mxu0
        %v5157 = vpop.f32.mrb[0].mxu0
        %v5158 = vadd.f32 0.0, %v5157
        %v5159 = vpop.f32.mrb[0].mxu0
        %5160 = vdwg.mxu0
        %v5161 = vadd.f32 %v4983, %v5099
        %v5162 = vadd.f32 %v4984, %v5102
        %v5163 = vadd.f32 %v4985, %v5107
        %v5164 = vadd.f32 %v4986, %v5110
        %v5165 = vadd.f32 %v4987, %v5115
        %v5166 = vadd.f32 %v4988, %v5118
        %v5167 = vadd.f32 %v4989, %v5123
        %v5168 = vadd.f32 %v4990, %v5126
        %v5169 = vadd.f32 %v4991, %v5131
        %v5170 = vadd.f32 %v4992, %v5134
        %v5171 = vadd.f32 %v4993, %v5139
        %v5172 = vadd.f32 %v4994, %v5142
        %v5173 = vadd.f32 %v4995, %v5147
        %v5174 = vadd.f32 %v4996, %v5150
        %v5175 = vadd.f32 %v4997, %v5155
        %v5176 = vadd.f32 %v4998, %v5158
        %s5177 = scalar_lea.vmem [#allocation4], 704
        %v5178 = vld [vmem:[%s5177] sm:$0xf]
        %v5179 = vld [vmem:[%s5177 + $0x4] sm:$0xf]
        %v5180 = vld [vmem:[%s5177 + $0x8] sm:$0xf]
        %v5181 = vld [vmem:[%s5177 + $0xc] sm:$0xf]
        %v5182 = vld [vmem:[%s5177 + $0x10] sm:$0xf]
        %v5183 = vld [vmem:[%s5177 + $0x14] sm:$0xf]
        %v5184 = vld [vmem:[%s5177 + $0x18] sm:$0xf]
        %v5185 = vld [vmem:[%s5177 + $0x1c] sm:$0xf]
        %v5186 = vld [vmem:[%s5177 + $0x20] sm:$0xf]
        %v5187 = vld [vmem:[%s5177 + $0x24] sm:$0xf]
        %v5188 = vld [vmem:[%s5177 + $0x28] sm:$0xf]
        %v5189 = vld [vmem:[%s5177 + $0x2c] sm:$0xf]
        %v5190 = vld [vmem:[%s5177 + $0x30] sm:$0xf]
        %v5191 = vld [vmem:[%s5177 + $0x34] sm:$0xf]
        %v5192 = vld [vmem:[%s5177 + $0x38] sm:$0xf]
        %v5193 = vld [vmem:[%s5177 + $0x3c] sm:$0xf]
        %v5210 = vunpack.c.l.b16 %v5178
        %v5211 = vunpack.c.l.b16 %v5179
        %v5212 = vunpack.c.l.b16 %v5180
        %v5213 = vunpack.c.l.b16 %v5181
        %v5214 = vunpack.c.l.b16 %v5182
        %v5215 = vunpack.c.l.b16 %v5183
        %v5216 = vunpack.c.l.b16 %v5184
        %v5217 = vunpack.c.l.b16 %v5185
        %v5218 = vunpack.c.l.b16 %v5186
        %v5219 = vunpack.c.l.b16 %v5187
        %v5220 = vunpack.c.l.b16 %v5188
        %v5221 = vunpack.c.l.b16 %v5189
        %v5222 = vunpack.c.l.b16 %v5190
        %v5223 = vunpack.c.l.b16 %v5191
        %v5224 = vunpack.c.l.b16 %v5192
        %v5225 = vunpack.c.l.b16 %v5193
        %v5226 = vpack.c.b16 %v5211, %v5210
        %v5227 = vpack.c.b16 %v5213, %v5212
        %v5228 = vpack.c.b16 %v5215, %v5214
        %v5229 = vpack.c.b16 %v5217, %v5216
        %v5230 = vpack.c.b16 %v5219, %v5218
        %v5231 = vpack.c.b16 %v5221, %v5220
        %v5232 = vpack.c.b16 %v5223, %v5222
        %v5233 = vpack.c.b16 %v5225, %v5224
        %5242 = vmatprep.subr.bf16.mxu0 0
        %5243 = vmatpush1.bf16.msra.mxu0 %v5226
        %5244 = vmatprep.subr.bf16.mxu0 0
        %5245 = vmatpush1.bf16.msra.mxu0 %v5227
        %5246 = vmatprep.subr.bf16.mxu0 0
        %5247 = vmatpush1.bf16.msra.mxu0 %v5228
        %5248 = vmatprep.subr.bf16.mxu0 0
        %5249 = vmatpush1.bf16.msra.mxu0 %v5229
        %5250 = vmatprep.subr.bf16.mxu0 0
        %5251 = vmatpush1.bf16.msra.mxu0 %v5230
        %5252 = vmatprep.subr.bf16.mxu0 0
        %5253 = vmatpush1.bf16.msra.mxu0 %v5231
        %5254 = vmatprep.subr.bf16.mxu0 0
        %5255 = vmatpush1.bf16.msra.mxu0 %v5232
        %5256 = vmatprep.subr.bf16.mxu0 0
        %5257 = vmatpush1.bf16.msra.mxu0 %v5233
        %5258 = vmatprep.subr.bf16.mxu0 0
        %5259 = vmatpush1.bf16.msra.mxu0 0
        %5260 = vmatprep.subr.bf16.mxu0 0
        %5261 = vmatpush1.bf16.msra.mxu0 0
        %5262 = vmatprep.subr.bf16.mxu0 0
        %5263 = vmatpush1.bf16.msra.mxu0 0
        %5264 = vmatprep.subr.bf16.mxu0 0
        %5265 = vmatpush1.bf16.msra.mxu0 0
        %5266 = vmatprep.subr.bf16.mxu0 0
        %5267 = vmatpush1.bf16.msra.mxu0 0
        %5268 = vmatprep.subr.bf16.mxu0 0
        %5269 = vmatpush1.bf16.msra.mxu0 0
        %5270 = vmatprep.subr.bf16.mxu0 0
        %5271 = vmatpush1.bf16.msra.mxu0 0
        %5272 = vmatprep.subr.bf16.mxu0 0
        %5273 = vmatpush1.bf16.msra.mxu0 0
        %5274 = vmatprep.mubr.bf16.mxu0 0
        %5275 = vmatmul.mubr.bf16.gmra.mrb[0].mxu0 %v4685
        %v5276 = vpop.f32.mrb[0].mxu0
        %v5277 = vadd.f32 0.0, %v5276
        %v5278 = vpop.f32.mrb[0].mxu0
        %v5279 = vpop.f32.mrb[0].mxu0
        %v5280 = vadd.f32 0.0, %v5279
        %v5281 = vpop.f32.mrb[0].mxu0
        %5282 = vmatprep.mubr.bf16.mxu0 0
        %5283 = vmatmul.mubr.bf16.gmra.mrb[0].mxu0 %v4686
        %v5284 = vpop.f32.mrb[0].mxu0
        %v5285 = vadd.f32 0.0, %v5284
        %v5286 = vpop.f32.mrb[0].mxu0
        %v5287 = vpop.f32.mrb[0].mxu0
        %v5288 = vadd.f32 0.0, %v5287
        %v5289 = vpop.f32.mrb[0].mxu0
        %5290 = vmatprep.mubr.bf16.mxu0 0
        %5291 = vmatmul.mubr.bf16.gmra.mrb[0].mxu0 %v4687
        %v5292 = vpop.f32.mrb[0].mxu0
        %v5293 = vadd.f32 0.0, %v5292
        %v5294 = vpop.f32.mrb[0].mxu0
        %v5295 = vpop.f32.mrb[0].mxu0
        %v5296 = vadd.f32 0.0, %v5295
        %v5297 = vpop.f32.mrb[0].mxu0
        %5298 = vmatprep.mubr.bf16.mxu0 0
        %5299 = vmatmul.mubr.bf16.gmra.mrb[0].mxu0 %v4688
        %v5300 = vpop.f32.mrb[0].mxu0
        %v5301 = vadd.f32 0.0, %v5300
        %v5302 = vpop.f32.mrb[0].mxu0
        %v5303 = vpop.f32.mrb[0].mxu0
        %v5304 = vadd.f32 0.0, %v5303
        %v5305 = vpop.f32.mrb[0].mxu0
        %5306 = vmatprep.mubr.bf16.mxu0 0
        %5307 = vmatmul.mubr.bf16.gmra.mrb[0].mxu0 %v4689
        %v5308 = vpop.f32.mrb[0].mxu0
        %v5309 = vadd.f32 0.0, %v5308
        %v5310 = vpop.f32.mrb[0].mxu0
        %v5311 = vpop.f32.mrb[0].mxu0
        %v5312 = vadd.f32 0.0, %v5311
        %v5313 = vpop.f32.mrb[0].mxu0
        %5314 = vmatprep.mubr.bf16.mxu0 0
        %5315 = vmatmul.mubr.bf16.gmra.mrb[0].mxu0 %v4690
        %v5316 = vpop.f32.mrb[0].mxu0
        %v5317 = vadd.f32 0.0, %v5316
        %v5318 = vpop.f32.mrb[0].mxu0
        %v5319 = vpop.f32.mrb[0].mxu0
        %v5320 = vadd.f32 0.0, %v5319
        %v5321 = vpop.f32.mrb[0].mxu0
        %5322 = vmatprep.mubr.bf16.mxu0 0
        %5323 = vmatmul.mubr.bf16.gmra.mrb[0].mxu0 %v4691
        %v5324 = vpop.f32.mrb[0].mxu0
        %v5325 = vadd.f32 0.0, %v5324
        %v5326 = vpop.f32.mrb[0].mxu0
        %v5327 = vpop.f32.mrb[0].mxu0
        %v5328 = vadd.f32 0.0, %v5327
        %v5329 = vpop.f32.mrb[0].mxu0
        %5330 = vmatprep.mubr.bf16.mxu0 0
        %5331 = vmatmul.mubr.bf16.gmra.mrb[0].mxu0 %v4692
        %v5332 = vpop.f32.mrb[0].mxu0
        %v5333 = vadd.f32 0.0, %v5332
        %v5334 = vpop.f32.mrb[0].mxu0
        %v5335 = vpop.f32.mrb[0].mxu0
        %v5336 = vadd.f32 0.0, %v5335
        %v5337 = vpop.f32.mrb[0].mxu0
        %5338 = vdwg.mxu0
        %v5339 = vrot.slane %v5277, 1
        %v5340 = vrot.slane %v5280, 1
        %v5341 = vrot.slane %v5285, 1
        %v5342 = vrot.slane %v5288, 1
        %v5343 = vrot.slane %v5293, 1
        %v5344 = vrot.slane %v5296, 1
        %v5345 = vrot.slane %v5301, 1
        %v5346 = vrot.slane %v5304, 1
        %v5347 = vrot.slane %v5309, 1
        %v5348 = vrot.slane %v5312, 1
        %v5349 = vrot.slane %v5317, 1
        %v5350 = vrot.slane %v5320, 1
        %v5351 = vrot.slane %v5325, 1
        %v5352 = vrot.slane %v5328, 1
        %v5353 = vrot.slane %v5333, 1
        %v5354 = vrot.slane %v5336, 1
        %v5355 = vsel %vm1041, %v5353, %v5354
        %v5356 = vsel %vm1041, %v5352, %v5353
        %v5357 = vsel %vm1041, %v5351, %v5352
        %v5358 = vsel %vm1041, %v5350, %v5351
        %v5359 = vsel %vm1041, %v5349, %v5350
        %v5360 = vsel %vm1041, %v5348, %v5349
        %v5361 = vsel %vm1041, %v5347, %v5348
        %v5362 = vsel %vm1041, %v5346, %v5347
        %v5363 = vsel %vm1041, %v5345, %v5346
        %v5364 = vsel %vm1041, %v5344, %v5345
        %v5365 = vsel %vm1041, %v5343, %v5344
        %v5366 = vsel %vm1041, %v5342, %v5343
        %v5367 = vsel %vm1041, %v5341, %v5342
        %v5368 = vsel %vm1041, %v5340, %v5341
        %v5369 = vsel %vm1041, %v5339, %v5340
        %v5370 = vsel %vm1041, %v5354, %v5339
        %5372 = vset.pattern.permute.xlu0 0
        %5373 = vperm.xlu0 %5372, %v4669
        %v5374 = vpop.permute.xlu0 %5373
        %5377 = vset.pattern.permute.xlu0 0
        %5378 = vperm.xlu0 %5377, %v4670
        %v5379 = vpop.permute.xlu0 %5378
        %5382 = vset.pattern.permute.xlu0 0
        %5383 = vperm.xlu0 %5382, %v4671
        %v5384 = vpop.permute.xlu0 %5383
        %5387 = vset.pattern.permute.xlu0 0
        %5388 = vperm.xlu0 %5387, %v4672
        %v5389 = vpop.permute.xlu0 %5388
        %5392 = vset.pattern.permute.xlu0 0
        %5393 = vperm.xlu0 %5392, %v4673
        %v5394 = vpop.permute.xlu0 %5393
        %5397 = vset.pattern.permute.xlu0 0
        %5398 = vperm.xlu0 %5397, %v4674
        %v5399 = vpop.permute.xlu0 %5398
        %5402 = vset.pattern.permute.xlu0 0
        %5403 = vperm.xlu0 %5402, %v4675
        %v5404 = vpop.permute.xlu0 %5403
        %5407 = vset.pattern.permute.xlu0 0
        %5408 = vperm.xlu0 %5407, %v4676
        %v5409 = vpop.permute.xlu0 %5408
        %5412 = vset.pattern.permute.xlu0 0
        %5413 = vperm.xlu0 %5412, %v4677
        %v5414 = vpop.permute.xlu0 %5413
        %5417 = vset.pattern.permute.xlu0 0
        %5418 = vperm.xlu0 %5417, %v4678
        %v5419 = vpop.permute.xlu0 %5418
        %5422 = vset.pattern.permute.xlu0 0
        %5423 = vperm.xlu0 %5422, %v4679
        %v5424 = vpop.permute.xlu0 %5423
        %5427 = vset.pattern.permute.xlu0 0
        %5428 = vperm.xlu0 %5427, %v4680
        %v5429 = vpop.permute.xlu0 %5428
        %5432 = vset.pattern.permute.xlu0 0
        %5433 = vperm.xlu0 %5432, %v4681
        %v5434 = vpop.permute.xlu0 %5433
        %5437 = vset.pattern.permute.xlu0 0
        %5438 = vperm.xlu0 %5437, %v4682
        %v5439 = vpop.permute.xlu0 %5438
        %5442 = vset.pattern.permute.xlu0 0
        %5443 = vperm.xlu0 %5442, %v4683
        %v5444 = vpop.permute.xlu0 %5443
        %5447 = vset.pattern.permute.xlu0 0
        %5448 = vperm.xlu0 %5447, %v4684
        %v5449 = vpop.permute.xlu0 %5448
        %v5451 = vmul.f32 %v5369, %v5374
        %v5452 = vmul.f32 %v5368, %v5379
        %v5453 = vmul.f32 %v5367, %v5384
        %v5454 = vmul.f32 %v5366, %v5389
        %v5455 = vmul.f32 %v5365, %v5394
        %v5456 = vmul.f32 %v5364, %v5399
        %v5457 = vmul.f32 %v5363, %v5404
        %v5458 = vmul.f32 %v5362, %v5409
        %v5459 = vmul.f32 %v5361, %v5414
        %v5460 = vmul.f32 %v5360, %v5419
        %v5461 = vmul.f32 %v5359, %v5424
        %v5462 = vmul.f32 %v5358, %v5429
        %v5463 = vmul.f32 %v5357, %v5434
        %v5464 = vmul.f32 %v5356, %v5439
        %v5465 = vmul.f32 %v5355, %v5444
        %v5466 = vmul.f32 %v5370, %v5449
        %v5467 = vadd.f32 %v5161, %v5451
        %v5468 = vadd.f32 %v5162, %v5452
        %v5469 = vadd.f32 %v5163, %v5453
        %v5470 = vadd.f32 %v5164, %v5454
        %v5471 = vadd.f32 %v5165, %v5455
        %v5472 = vadd.f32 %v5166, %v5456
        %v5473 = vadd.f32 %v5167, %v5457
        %v5474 = vadd.f32 %v5168, %v5458
        %v5475 = vadd.f32 %v5169, %v5459
        %v5476 = vadd.f32 %v5170, %v5460
        %v5477 = vadd.f32 %v5171, %v5461
        %v5478 = vadd.f32 %v5172, %v5462
        %v5479 = vadd.f32 %v5173, %v5463
        %v5480 = vadd.f32 %v5174, %v5464
        %v5481 = vadd.f32 %v5175, %v5465
        %v5482 = vadd.f32 %v5176, %v5466
        %v5483 = vld [vmem:[#allocation3 + $0x8] sm:$0xff]
        %v5484 = vld [vmem:[#allocation3 + $0x10] sm:$0xff]
        %v5485 = vld [vmem:[#allocation3 + $0x18] sm:$0xff]
        %v5486 = vld [vmem:[#allocation3 + $0x20] sm:$0xff]
        %v5487 = vld [vmem:[#allocation3 + $0x28] sm:$0xff]
        %v5488 = vld [vmem:[#allocation3 + $0x30] sm:$0xff]
        %v5489 = vld [vmem:[#allocation3 + $0x38] sm:$0xff]
        %v5490 = vld [vmem:[#allocation3 + $0x40] sm:$0xff]
        %s5491 = scalar_lea.vmem [#allocation4], 768
        %v5492 = vld [vmem:[%s5491] sm:$0xf]
        %v5493 = vld [vmem:[%s5491 + $0x4] sm:$0xf]
        %v5494 = vld [vmem:[%s5491 + $0x8] sm:$0xf]
        %v5495 = vld [vmem:[%s5491 + $0xc] sm:$0xf]
        %v5496 = vld [vmem:[%s5491 + $0x10] sm:$0xf]
        %v5497 = vld [vmem:[%s5491 + $0x14] sm:$0xf]
        %v5498 = vld [vmem:[%s5491 + $0x18] sm:$0xf]
        %v5499 = vld [vmem:[%s5491 + $0x1c] sm:$0xf]
        %v5500 = vld [vmem:[%s5491 + $0x20] sm:$0xf]
        %v5501 = vld [vmem:[%s5491 + $0x24] sm:$0xf]
        %v5502 = vld [vmem:[%s5491 + $0x28] sm:$0xf]
        %v5503 = vld [vmem:[%s5491 + $0x2c] sm:$0xf]
        %v5504 = vld [vmem:[%s5491 + $0x30] sm:$0xf]
        %v5505 = vld [vmem:[%s5491 + $0x34] sm:$0xf]
        %v5506 = vld [vmem:[%s5491 + $0x38] sm:$0xf]
        %v5507 = vld [vmem:[%s5491 + $0x3c] sm:$0xf]
        %v5524 = vunpack.c.l.b16 %v5492
        %v5525 = vunpack.c.l.b16 %v5493
        %v5526 = vunpack.c.l.b16 %v5494
        %v5527 = vunpack.c.l.b16 %v5495
        %v5528 = vunpack.c.l.b16 %v5496
        %v5529 = vunpack.c.l.b16 %v5497
        %v5530 = vunpack.c.l.b16 %v5498
        %v5531 = vunpack.c.l.b16 %v5499
        %v5532 = vunpack.c.l.b16 %v5500
        %v5533 = vunpack.c.l.b16 %v5501
        %v5534 = vunpack.c.l.b16 %v5502
        %v5535 = vunpack.c.l.b16 %v5503
        %v5536 = vunpack.c.l.b16 %v5504
        %v5537 = vunpack.c.l.b16 %v5505
        %v5538 = vunpack.c.l.b16 %v5506
        %v5539 = vunpack.c.l.b16 %v5507
        %v5540 = vpack.c.b16 %v5525, %v5524
        %v5541 = vpack.c.b16 %v5527, %v5526
        %v5542 = vpack.c.b16 %v5529, %v5528
        %v5543 = vpack.c.b16 %v5531, %v5530
        %v5544 = vpack.c.b16 %v5533, %v5532
        %v5545 = vpack.c.b16 %v5535, %v5534
        %v5546 = vpack.c.b16 %v5537, %v5536
        %v5547 = vpack.c.b16 %v5539, %v5538
        %5556 = vmatprep.subr.bf16.mxu0 0
        %5557 = vmatpush1.bf16.msra.mxu0 %v5540
        %5558 = vmatprep.subr.bf16.mxu0 0
        %5559 = vmatpush1.bf16.msra.mxu0 %v5541
        %5560 = vmatprep.subr.bf16.mxu0 0
        %5561 = vmatpush1.bf16.msra.mxu0 %v5542
        %5562 = vmatprep.subr.bf16.mxu0 0
        %5563 = vmatpush1.bf16.msra.mxu0 %v5543
        %5564 = vmatprep.subr.bf16.mxu0 0
        %5565 = vmatpush1.bf16.msra.mxu0 %v5544
        %5566 = vmatprep.subr.bf16.mxu0 0
        %5567 = vmatpush1.bf16.msra.mxu0 %v5545
        %5568 = vmatprep.subr.bf16.mxu0 0
        %5569 = vmatpush1.bf16.msra.mxu0 %v5546
        %5570 = vmatprep.subr.bf16.mxu0 0
        %5571 = vmatpush1.bf16.msra.mxu0 %v5547
        %5572 = vmatprep.subr.bf16.mxu0 0
        %5573 = vmatpush1.bf16.msra.mxu0 0
        %5574 = vmatprep.subr.bf16.mxu0 0
        %5575 = vmatpush1.bf16.msra.mxu0 0
        %5576 = vmatprep.subr.bf16.mxu0 0
        %5577 = vmatpush1.bf16.msra.mxu0 0
        %5578 = vmatprep.subr.bf16.mxu0 0
        %5579 = vmatpush1.bf16.msra.mxu0 0
        %5580 = vmatprep.subr.bf16.mxu0 0
        %5581 = vmatpush1.bf16.msra.mxu0 0
        %5582 = vmatprep.subr.bf16.mxu0 0
        %5583 = vmatpush1.bf16.msra.mxu0 0
        %5584 = vmatprep.subr.bf16.mxu0 0
        %5585 = vmatpush1.bf16.msra.mxu0 0
        %5586 = vmatprep.subr.bf16.mxu0 0
        %5587 = vmatpush1.bf16.msra.mxu0 0
        %5588 = vmatprep.mubr.bf16.mxu0 0
        %5589 = vmatmul.mubr.bf16.gmra.mrb[0].mxu0 %v5483
        %v5590 = vpop.f32.mrb[0].mxu0
        %v5591 = vadd.f32 0.0, %v5590
        %v5592 = vpop.f32.mrb[0].mxu0
        %v5593 = vpop.f32.mrb[0].mxu0
        %v5594 = vadd.f32 0.0, %v5593
        %v5595 = vpop.f32.mrb[0].mxu0
        %5596 = vmatprep.mubr.bf16.mxu0 0
        %5597 = vmatmul.mubr.bf16.gmra.mrb[0].mxu0 %v5484
        %v5598 = vpop.f32.mrb[0].mxu0
        %v5599 = vadd.f32 0.0, %v5598
        %v5600 = vpop.f32.mrb[0].mxu0
        %v5601 = vpop.f32.mrb[0].mxu0
        %v5602 = vadd.f32 0.0, %v5601
        %v5603 = vpop.f32.mrb[0].mxu0
        %5604 = vmatprep.mubr.bf16.mxu0 0
        %5605 = vmatmul.mubr.bf16.gmra.mrb[0].mxu0 %v5485
        %v5606 = vpop.f32.mrb[0].mxu0
        %v5607 = vadd.f32 0.0, %v5606
        %v5608 = vpop.f32.mrb[0].mxu0
        %v5609 = vpop.f32.mrb[0].mxu0
        %v5610 = vadd.f32 0.0, %v5609
        %v5611 = vpop.f32.mrb[0].mxu0
        %5612 = vmatprep.mubr.bf16.mxu0 0
        %5613 = vmatmul.mubr.bf16.gmra.mrb[0].mxu0 %v5486
        %v5614 = vpop.f32.mrb[0].mxu0
        %v5615 = vadd.f32 0.0, %v5614
        %v5616 = vpop.f32.mrb[0].mxu0
        %v5617 = vpop.f32.mrb[0].mxu0
        %v5618 = vadd.f32 0.0, %v5617
        %v5619 = vpop.f32.mrb[0].mxu0
        %5620 = vmatprep.mubr.bf16.mxu0 0
        %5621 = vmatmul.mubr.bf16.gmra.mrb[0].mxu0 %v5487
        %v5622 = vpop.f32.mrb[0].mxu0
        %v5623 = vadd.f32 0.0, %v5622
        %v5624 = vpop.f32.mrb[0].mxu0
        %v5625 = vpop.f32.mrb[0].mxu0
        %v5626 = vadd.f32 0.0, %v5625
        %v5627 = vpop.f32.mrb[0].mxu0
        %5628 = vmatprep.mubr.bf16.mxu0 0
        %5629 = vmatmul.mubr.bf16.gmra.mrb[0].mxu0 %v5488
        %v5630 = vpop.f32.mrb[0].mxu0
        %v5631 = vadd.f32 0.0, %v5630
        %v5632 = vpop.f32.mrb[0].mxu0
        %v5633 = vpop.f32.mrb[0].mxu0
        %v5634 = vadd.f32 0.0, %v5633
        %v5635 = vpop.f32.mrb[0].mxu0
        %5636 = vmatprep.mubr.bf16.mxu0 0
        %5637 = vmatmul.mubr.bf16.gmra.mrb[0].mxu0 %v5489
        %v5638 = vpop.f32.mrb[0].mxu0
        %v5639 = vadd.f32 0.0, %v5638
        %v5640 = vpop.f32.mrb[0].mxu0
        %v5641 = vpop.f32.mrb[0].mxu0
        %v5642 = vadd.f32 0.0, %v5641
        %v5643 = vpop.f32.mrb[0].mxu0
        %5644 = vmatprep.mubr.bf16.mxu0 0
        %5645 = vmatmul.mubr.bf16.gmra.mrb[0].mxu0 %v5490
        %v5646 = vpop.f32.mrb[0].mxu0
        %v5647 = vadd.f32 0.0, %v5646
        %v5648 = vpop.f32.mrb[0].mxu0
        %v5649 = vpop.f32.mrb[0].mxu0
        %v5650 = vadd.f32 0.0, %v5649
        %v5651 = vpop.f32.mrb[0].mxu0
        %5652 = vdwg.mxu0
        %v5653 = vrot.slane %v5591, 7
        %v5654 = vrot.slane %v5594, 7
        %v5655 = vrot.slane %v5599, 7
        %v5656 = vrot.slane %v5602, 7
        %v5657 = vrot.slane %v5607, 7
        %v5658 = vrot.slane %v5610, 7
        %v5659 = vrot.slane %v5615, 7
        %v5660 = vrot.slane %v5618, 7
        %v5661 = vrot.slane %v5623, 7
        %v5662 = vrot.slane %v5626, 7
        %v5663 = vrot.slane %v5631, 7
        %v5664 = vrot.slane %v5634, 7
        %v5665 = vrot.slane %v5639, 7
        %v5666 = vrot.slane %v5642, 7
        %v5667 = vrot.slane %v5647, 7
        %v5668 = vrot.slane %v5650, 7
        %v5669 = vsel %vm556, %v5667, %v5668
        %v5670 = vsel %vm556, %v5666, %v5667
        %v5671 = vsel %vm556, %v5665, %v5666
        %v5672 = vsel %vm556, %v5664, %v5665
        %v5673 = vsel %vm556, %v5663, %v5664
        %v5674 = vsel %vm556, %v5662, %v5663
        %v5675 = vsel %vm556, %v5661, %v5662
        %v5676 = vsel %vm556, %v5660, %v5661
        %v5677 = vsel %vm556, %v5659, %v5660
        %v5678 = vsel %vm556, %v5658, %v5659
        %v5679 = vsel %vm556, %v5657, %v5658
        %v5680 = vsel %vm556, %v5656, %v5657
        %v5681 = vsel %vm556, %v5655, %v5656
        %v5682 = vsel %vm556, %v5654, %v5655
        %v5683 = vsel %vm556, %v5653, %v5654
        %v5684 = vsel %vm556, %v5668, %v5653
        %v5685 = vmul.f32 %v5684, %v4890
        %v5686 = vmul.f32 %v5683, %v4895
        %v5687 = vmul.f32 %v5682, %v4900
        %v5688 = vmul.f32 %v5681, %v4905
        %v5689 = vmul.f32 %v5680, %v4910
        %v5690 = vmul.f32 %v5679, %v4915
        %v5691 = vmul.f32 %v5678, %v4920
        %v5692 = vmul.f32 %v5677, %v4925
        %v5693 = vmul.f32 %v5676, %v4930
        %v5694 = vmul.f32 %v5675, %v4935
        %v5695 = vmul.f32 %v5674, %v4940
        %v5696 = vmul.f32 %v5673, %v4945
        %v5697 = vmul.f32 %v5672, %v4950
        %v5698 = vmul.f32 %v5671, %v4955
        %v5699 = vmul.f32 %v5670, %v4960
        %v5700 = vmul.f32 %v5669, %v4965
        %v5701 = vadd.f32 %v5467, %v5685
        %v5702 = vadd.f32 %v5468, %v5686
        %v5703 = vadd.f32 %v5469, %v5687
        %v5704 = vadd.f32 %v5470, %v5688
        %v5705 = vadd.f32 %v5471, %v5689
        %v5706 = vadd.f32 %v5472, %v5690
        %v5707 = vadd.f32 %v5473, %v5691
        %v5708 = vadd.f32 %v5474, %v5692
        %v5709 = vadd.f32 %v5475, %v5693
        %v5710 = vadd.f32 %v5476, %v5694
        %v5711 = vadd.f32 %v5477, %v5695
        %v5712 = vadd.f32 %v5478, %v5696
        %v5713 = vadd.f32 %v5479, %v5697
        %v5714 = vadd.f32 %v5480, %v5698
        %v5715 = vadd.f32 %v5481, %v5699
        %v5716 = vadd.f32 %v5482, %v5700
        %s5717 = scalar_lea.vmem [#allocation4], 832
        %v5718 = vld [vmem:[%s5717] sm:$0xf]
        %v5719 = vld [vmem:[%s5717 + $0x4] sm:$0xf]
        %v5720 = vld [vmem:[%s5717 + $0x8] sm:$0xf]
        %v5721 = vld [vmem:[%s5717 + $0xc] sm:$0xf]
        %v5722 = vld [vmem:[%s5717 + $0x10] sm:$0xf]
        %v5723 = vld [vmem:[%s5717 + $0x14] sm:$0xf]
        %v5724 = vld [vmem:[%s5717 + $0x18] sm:$0xf]
        %v5725 = vld [vmem:[%s5717 + $0x1c] sm:$0xf]
        %v5726 = vld [vmem:[%s5717 + $0x20] sm:$0xf]
        %v5727 = vld [vmem:[%s5717 + $0x24] sm:$0xf]
        %v5728 = vld [vmem:[%s5717 + $0x28] sm:$0xf]
        %v5729 = vld [vmem:[%s5717 + $0x2c] sm:$0xf]
        %v5730 = vld [vmem:[%s5717 + $0x30] sm:$0xf]
        %v5731 = vld [vmem:[%s5717 + $0x34] sm:$0xf]
        %v5732 = vld [vmem:[%s5717 + $0x38] sm:$0xf]
        %v5733 = vld [vmem:[%s5717 + $0x3c] sm:$0xf]
        %v5750 = vunpack.c.l.b16 %v5718
        %v5751 = vunpack.c.l.b16 %v5719
        %v5752 = vunpack.c.l.b16 %v5720
        %v5753 = vunpack.c.l.b16 %v5721
        %v5754 = vunpack.c.l.b16 %v5722
        %v5755 = vunpack.c.l.b16 %v5723
        %v5756 = vunpack.c.l.b16 %v5724
        %v5757 = vunpack.c.l.b16 %v5725
        %v5758 = vunpack.c.l.b16 %v5726
        %v5759 = vunpack.c.l.b16 %v5727
        %v5760 = vunpack.c.l.b16 %v5728
        %v5761 = vunpack.c.l.b16 %v5729
        %v5762 = vunpack.c.l.b16 %v5730
        %v5763 = vunpack.c.l.b16 %v5731
        %v5764 = vunpack.c.l.b16 %v5732
        %v5765 = vunpack.c.l.b16 %v5733
        %v5766 = vpack.c.b16 %v5751, %v5750
        %v5767 = vpack.c.b16 %v5753, %v5752
        %v5768 = vpack.c.b16 %v5755, %v5754
        %v5769 = vpack.c.b16 %v5757, %v5756
        %v5770 = vpack.c.b16 %v5759, %v5758
        %v5771 = vpack.c.b16 %v5761, %v5760
        %v5772 = vpack.c.b16 %v5763, %v5762
        %v5773 = vpack.c.b16 %v5765, %v5764
        %5782 = vmatprep.subr.bf16.mxu0 0
        %5783 = vmatpush1.bf16.msra.mxu0 %v5766
        %5784 = vmatprep.subr.bf16.mxu0 0
        %5785 = vmatpush1.bf16.msra.mxu0 %v5767
        %5786 = vmatprep.subr.bf16.mxu0 0
        %5787 = vmatpush1.bf16.msra.mxu0 %v5768
        %5788 = vmatprep.subr.bf16.mxu0 0
        %5789 = vmatpush1.bf16.msra.mxu0 %v5769
        %5790 = vmatprep.subr.bf16.mxu0 0
        %5791 = vmatpush1.bf16.msra.mxu0 %v5770
        %5792 = vmatprep.subr.bf16.mxu0 0
        %5793 = vmatpush1.bf16.msra.mxu0 %v5771
        %5794 = vmatprep.subr.bf16.mxu0 0
        %5795 = vmatpush1.bf16.msra.mxu0 %v5772
        %5796 = vmatprep.subr.bf16.mxu0 0
        %5797 = vmatpush1.bf16.msra.mxu0 %v5773
        %5798 = vmatprep.subr.bf16.mxu0 0
        %5799 = vmatpush1.bf16.msra.mxu0 0
        %5800 = vmatprep.subr.bf16.mxu0 0
        %5801 = vmatpush1.bf16.msra.mxu0 0
        %5802 = vmatprep.subr.bf16.mxu0 0
        %5803 = vmatpush1.bf16.msra.mxu0 0
        %5804 = vmatprep.subr.bf16.mxu0 0
        %5805 = vmatpush1.bf16.msra.mxu0 0
        %5806 = vmatprep.subr.bf16.mxu0 0
        %5807 = vmatpush1.bf16.msra.mxu0 0
        %5808 = vmatprep.subr.bf16.mxu0 0
        %5809 = vmatpush1.bf16.msra.mxu0 0
        %5810 = vmatprep.subr.bf16.mxu0 0
        %5811 = vmatpush1.bf16.msra.mxu0 0
        %5812 = vmatprep.subr.bf16.mxu0 0
        %5813 = vmatpush1.bf16.msra.mxu0 0
        %5814 = vmatprep.mubr.bf16.mxu0 0
        %5815 = vmatmul.mubr.bf16.gmra.mrb[0].mxu0 %v5483
        %v5816 = vpop.f32.mrb[0].mxu0
        %v5817 = vadd.f32 0.0, %v5816
        %v5818 = vpop.f32.mrb[0].mxu0
        %v5819 = vpop.f32.mrb[0].mxu0
        %v5820 = vadd.f32 0.0, %v5819
        %v5821 = vpop.f32.mrb[0].mxu0
        %5822 = vmatprep.mubr.bf16.mxu0 0
        %5823 = vmatmul.mubr.bf16.gmra.mrb[0].mxu0 %v5484
        %v5824 = vpop.f32.mrb[0].mxu0
        %v5825 = vadd.f32 0.0, %v5824
        %v5826 = vpop.f32.mrb[0].mxu0
        %v5827 = vpop.f32.mrb[0].mxu0
        %v5828 = vadd.f32 0.0, %v5827
        %v5829 = vpop.f32.mrb[0].mxu0
        %5830 = vmatprep.mubr.bf16.mxu0 0
        %5831 = vmatmul.mubr.bf16.gmra.mrb[0].mxu0 %v5485
        %v5832 = vpop.f32.mrb[0].mxu0
        %v5833 = vadd.f32 0.0, %v5832
        %v5834 = vpop.f32.mrb[0].mxu0
        %v5835 = vpop.f32.mrb[0].mxu0
        %v5836 = vadd.f32 0.0, %v5835
        %v5837 = vpop.f32.mrb[0].mxu0
        %5838 = vmatprep.mubr.bf16.mxu0 0
        %5839 = vmatmul.mubr.bf16.gmra.mrb[0].mxu0 %v5486
        %v5840 = vpop.f32.mrb[0].mxu0
        %v5841 = vadd.f32 0.0, %v5840
        %v5842 = vpop.f32.mrb[0].mxu0
        %v5843 = vpop.f32.mrb[0].mxu0
        %v5844 = vadd.f32 0.0, %v5843
        %v5845 = vpop.f32.mrb[0].mxu0
        %5846 = vmatprep.mubr.bf16.mxu0 0
        %5847 = vmatmul.mubr.bf16.gmra.mrb[0].mxu0 %v5487
        %v5848 = vpop.f32.mrb[0].mxu0
        %v5849 = vadd.f32 0.0, %v5848
        %v5850 = vpop.f32.mrb[0].mxu0
        %v5851 = vpop.f32.mrb[0].mxu0
        %v5852 = vadd.f32 0.0, %v5851
        %v5853 = vpop.f32.mrb[0].mxu0
        %5854 = vmatprep.mubr.bf16.mxu0 0
        %5855 = vmatmul.mubr.bf16.gmra.mrb[0].mxu0 %v5488
        %v5856 = vpop.f32.mrb[0].mxu0
        %v5857 = vadd.f32 0.0, %v5856
        %v5858 = vpop.f32.mrb[0].mxu0
        %v5859 = vpop.f32.mrb[0].mxu0
        %v5860 = vadd.f32 0.0, %v5859
        %v5861 = vpop.f32.mrb[0].mxu0
        %5862 = vmatprep.mubr.bf16.mxu0 0
        %5863 = vmatmul.mubr.bf16.gmra.mrb[0].mxu0 %v5489
        %v5864 = vpop.f32.mrb[0].mxu0
        %v5865 = vadd.f32 0.0, %v5864
        %v5866 = vpop.f32.mrb[0].mxu0
        %v5867 = vpop.f32.mrb[0].mxu0
        %v5868 = vadd.f32 0.0, %v5867
        %v5869 = vpop.f32.mrb[0].mxu0
        %5870 = vmatprep.mubr.bf16.mxu0 0
        %5871 = vmatmul.mubr.bf16.gmra.mrb[0].mxu0 %v5490
        %v5872 = vpop.f32.mrb[0].mxu0
        %v5873 = vadd.f32 0.0, %v5872
        %v5874 = vpop.f32.mrb[0].mxu0
        %v5875 = vpop.f32.mrb[0].mxu0
        %v5876 = vadd.f32 0.0, %v5875
        %v5877 = vpop.f32.mrb[0].mxu0
        %5878 = vdwg.mxu0
        %v5879 = vadd.f32 %v5701, %v5817
        %v5880 = vadd.f32 %v5702, %v5820
        %v5881 = vadd.f32 %v5703, %v5825
        %v5882 = vadd.f32 %v5704, %v5828
        %v5883 = vadd.f32 %v5705, %v5833
        %v5884 = vadd.f32 %v5706, %v5836
        %v5885 = vadd.f32 %v5707, %v5841
        %v5886 = vadd.f32 %v5708, %v5844
        %v5887 = vadd.f32 %v5709, %v5849
        %v5888 = vadd.f32 %v5710, %v5852
        %v5889 = vadd.f32 %v5711, %v5857
        %v5890 = vadd.f32 %v5712, %v5860
        %v5891 = vadd.f32 %v5713, %v5865
        %v5892 = vadd.f32 %v5714, %v5868
        %v5893 = vadd.f32 %v5715, %v5873
        %v5894 = vadd.f32 %v5716, %v5876
        %s5895 = scalar_lea.vmem [#allocation4], 896
        %v5896 = vld [vmem:[%s5895] sm:$0xf]
        %v5897 = vld [vmem:[%s5895 + $0x4] sm:$0xf]
        %v5898 = vld [vmem:[%s5895 + $0x8] sm:$0xf]
        %v5899 = vld [vmem:[%s5895 + $0xc] sm:$0xf]
        %v5900 = vld [vmem:[%s5895 + $0x10] sm:$0xf]
        %v5901 = vld [vmem:[%s5895 + $0x14] sm:$0xf]
        %v5902 = vld [vmem:[%s5895 + $0x18] sm:$0xf]
        %v5903 = vld [vmem:[%s5895 + $0x1c] sm:$0xf]
        %v5904 = vld [vmem:[%s5895 + $0x20] sm:$0xf]
        %v5905 = vld [vmem:[%s5895 + $0x24] sm:$0xf]
        %v5906 = vld [vmem:[%s5895 + $0x28] sm:$0xf]
        %v5907 = vld [vmem:[%s5895 + $0x2c] sm:$0xf]
        %v5908 = vld [vmem:[%s5895 + $0x30] sm:$0xf]
        %v5909 = vld [vmem:[%s5895 + $0x34] sm:$0xf]
        %v5910 = vld [vmem:[%s5895 + $0x38] sm:$0xf]
        %v5911 = vld [vmem:[%s5895 + $0x3c] sm:$0xf]
        %v5928 = vunpack.c.l.b16 %v5896
        %v5929 = vunpack.c.l.b16 %v5897
        %v5930 = vunpack.c.l.b16 %v5898
        %v5931 = vunpack.c.l.b16 %v5899
        %v5932 = vunpack.c.l.b16 %v5900
        %v5933 = vunpack.c.l.b16 %v5901
        %v5934 = vunpack.c.l.b16 %v5902
        %v5935 = vunpack.c.l.b16 %v5903
        %v5936 = vunpack.c.l.b16 %v5904
        %v5937 = vunpack.c.l.b16 %v5905
        %v5938 = vunpack.c.l.b16 %v5906
        %v5939 = vunpack.c.l.b16 %v5907
        %v5940 = vunpack.c.l.b16 %v5908
        %v5941 = vunpack.c.l.b16 %v5909
        %v5942 = vunpack.c.l.b16 %v5910
        %v5943 = vunpack.c.l.b16 %v5911
        %v5944 = vpack.c.b16 %v5929, %v5928
        %v5945 = vpack.c.b16 %v5931, %v5930
        %v5946 = vpack.c.b16 %v5933, %v5932
        %v5947 = vpack.c.b16 %v5935, %v5934
        %v5948 = vpack.c.b16 %v5937, %v5936
        %v5949 = vpack.c.b16 %v5939, %v5938
        %v5950 = vpack.c.b16 %v5941, %v5940
        %v5951 = vpack.c.b16 %v5943, %v5942
        %5960 = vmatprep.subr.bf16.mxu0 0
        %5961 = vmatpush1.bf16.msra.mxu0 %v5944
        %5962 = vmatprep.subr.bf16.mxu0 0
        %5963 = vmatpush1.bf16.msra.mxu0 %v5945
        %5964 = vmatprep.subr.bf16.mxu0 0
        %5965 = vmatpush1.bf16.msra.mxu0 %v5946
        %5966 = vmatprep.subr.bf16.mxu0 0
        %5967 = vmatpush1.bf16.msra.mxu0 %v5947
        %5968 = vmatprep.subr.bf16.mxu0 0
        %5969 = vmatpush1.bf16.msra.mxu0 %v5948
        %5970 = vmatprep.subr.bf16.mxu0 0
        %5971 = vmatpush1.bf16.msra.mxu0 %v5949
        %5972 = vmatprep.subr.bf16.mxu0 0
        %5973 = vmatpush1.bf16.msra.mxu0 %v5950
        %5974 = vmatprep.subr.bf16.mxu0 0
        %5975 = vmatpush1.bf16.msra.mxu0 %v5951
        %5976 = vmatprep.subr.bf16.mxu0 0
        %5977 = vmatpush1.bf16.msra.mxu0 0
        %5978 = vmatprep.subr.bf16.mxu0 0
        %5979 = vmatpush1.bf16.msra.mxu0 0
        %5980 = vmatprep.subr.bf16.mxu0 0
        %5981 = vmatpush1.bf16.msra.mxu0 0
        %5982 = vmatprep.subr.bf16.mxu0 0
        %5983 = vmatpush1.bf16.msra.mxu0 0
        %5984 = vmatprep.subr.bf16.mxu0 0
        %5985 = vmatpush1.bf16.msra.mxu0 0
        %5986 = vmatprep.subr.bf16.mxu0 0
        %5987 = vmatpush1.bf16.msra.mxu0 0
        %5988 = vmatprep.subr.bf16.mxu0 0
        %5989 = vmatpush1.bf16.msra.mxu0 0
        %5990 = vmatprep.subr.bf16.mxu0 0
        %5991 = vmatpush1.bf16.msra.mxu0 0
        %5992 = vmatprep.mubr.bf16.mxu0 0
        %5993 = vmatmul.mubr.bf16.gmra.mrb[0].mxu0 %v5483
        %v5994 = vpop.f32.mrb[0].mxu0
        %v5995 = vadd.f32 0.0, %v5994
        %v5996 = vpop.f32.mrb[0].mxu0
        %v5997 = vpop.f32.mrb[0].mxu0
        %v5998 = vadd.f32 0.0, %v5997
        %v5999 = vpop.f32.mrb[0].mxu0
        %6000 = vmatprep.mubr.bf16.mxu0 0
        %6001 = vmatmul.mubr.bf16.gmra.mrb[0].mxu0 %v5484
        %v6002 = vpop.f32.mrb[0].mxu0
        %v6003 = vadd.f32 0.0, %v6002
        %v6004 = vpop.f32.mrb[0].mxu0
        %v6005 = vpop.f32.mrb[0].mxu0
        %v6006 = vadd.f32 0.0, %v6005
        %v6007 = vpop.f32.mrb[0].mxu0
        %6008 = vmatprep.mubr.bf16.mxu0 0
        %6009 = vmatmul.mubr.bf16.gmra.mrb[0].mxu0 %v5485
        %v6010 = vpop.f32.mrb[0].mxu0
        %v6011 = vadd.f32 0.0, %v6010
        %v6012 = vpop.f32.mrb[0].mxu0
        %v6013 = vpop.f32.mrb[0].mxu0
        %v6014 = vadd.f32 0.0, %v6013
        %v6015 = vpop.f32.mrb[0].mxu0
        %6016 = vmatprep.mubr.bf16.mxu0 0
        %6017 = vmatmul.mubr.bf16.gmra.mrb[0].mxu0 %v5486
        %v6018 = vpop.f32.mrb[0].mxu0
        %v6019 = vadd.f32 0.0, %v6018
        %v6020 = vpop.f32.mrb[0].mxu0
        %v6021 = vpop.f32.mrb[0].mxu0
        %v6022 = vadd.f32 0.0, %v6021
        %v6023 = vpop.f32.mrb[0].mxu0
        %6024 = vmatprep.mubr.bf16.mxu0 0
        %6025 = vmatmul.mubr.bf16.gmra.mrb[0].mxu0 %v5487
        %v6026 = vpop.f32.mrb[0].mxu0
        %v6027 = vadd.f32 0.0, %v6026
        %v6028 = vpop.f32.mrb[0].mxu0
        %v6029 = vpop.f32.mrb[0].mxu0
        %v6030 = vadd.f32 0.0, %v6029
        %v6031 = vpop.f32.mrb[0].mxu0
        %6032 = vmatprep.mubr.bf16.mxu0 0
        %6033 = vmatmul.mubr.bf16.gmra.mrb[0].mxu0 %v5488
        %v6034 = vpop.f32.mrb[0].mxu0
        %v6035 = vadd.f32 0.0, %v6034
        %v6036 = vpop.f32.mrb[0].mxu0
        %v6037 = vpop.f32.mrb[0].mxu0
        %v6038 = vadd.f32 0.0, %v6037
        %v6039 = vpop.f32.mrb[0].mxu0
        %6040 = vmatprep.mubr.bf16.mxu0 0
        %6041 = vmatmul.mubr.bf16.gmra.mrb[0].mxu0 %v5489
        %v6042 = vpop.f32.mrb[0].mxu0
        %v6043 = vadd.f32 0.0, %v6042
        %v6044 = vpop.f32.mrb[0].mxu0
        %v6045 = vpop.f32.mrb[0].mxu0
        %v6046 = vadd.f32 0.0, %v6045
        %v6047 = vpop.f32.mrb[0].mxu0
        %6048 = vmatprep.mubr.bf16.mxu0 0
        %6049 = vmatmul.mubr.bf16.gmra.mrb[0].mxu0 %v5490
        %v6050 = vpop.f32.mrb[0].mxu0
        %v6051 = vadd.f32 0.0, %v6050
        %v6052 = vpop.f32.mrb[0].mxu0
        %v6053 = vpop.f32.mrb[0].mxu0
        %v6054 = vadd.f32 0.0, %v6053
        %v6055 = vpop.f32.mrb[0].mxu0
        %6056 = vdwg.mxu0
        %v6057 = vrot.slane %v5995, 1
        %v6058 = vrot.slane %v5998, 1
        %v6059 = vrot.slane %v6003, 1
        %v6060 = vrot.slane %v6006, 1
        %v6061 = vrot.slane %v6011, 1
        %v6062 = vrot.slane %v6014, 1
        %v6063 = vrot.slane %v6019, 1
        %v6064 = vrot.slane %v6022, 1
        %v6065 = vrot.slane %v6027, 1
        %v6066 = vrot.slane %v6030, 1
        %v6067 = vrot.slane %v6035, 1
        %v6068 = vrot.slane %v6038, 1
        %v6069 = vrot.slane %v6043, 1
        %v6070 = vrot.slane %v6046, 1
        %v6071 = vrot.slane %v6051, 1
        %v6072 = vrot.slane %v6054, 1
        %v6073 = vsel %vm1041, %v6071, %v6072
        %v6074 = vsel %vm1041, %v6070, %v6071
        %v6075 = vsel %vm1041, %v6069, %v6070
        %v6076 = vsel %vm1041, %v6068, %v6069
        %v6077 = vsel %vm1041, %v6067, %v6068
        %v6078 = vsel %vm1041, %v6066, %v6067
        %v6079 = vsel %vm1041, %v6065, %v6066
        %v6080 = vsel %vm1041, %v6064, %v6065
        %v6081 = vsel %vm1041, %v6063, %v6064
        %v6082 = vsel %vm1041, %v6062, %v6063
        %v6083 = vsel %vm1041, %v6061, %v6062
        %v6084 = vsel %vm1041, %v6060, %v6061
        %v6085 = vsel %vm1041, %v6059, %v6060
        %v6086 = vsel %vm1041, %v6058, %v6059
        %v6087 = vsel %vm1041, %v6057, %v6058
        %v6088 = vsel %vm1041, %v6072, %v6057
        %v6089 = vmul.f32 %v6087, %v5374
        %v6090 = vmul.f32 %v6086, %v5379
        %v6091 = vmul.f32 %v6085, %v5384
        %v6092 = vmul.f32 %v6084, %v5389
        %v6093 = vmul.f32 %v6083, %v5394
        %v6094 = vmul.f32 %v6082, %v5399
        %v6095 = vmul.f32 %v6081, %v5404
        %v6096 = vmul.f32 %v6080, %v5409
        %v6097 = vmul.f32 %v6079, %v5414
        %v6098 = vmul.f32 %v6078, %v5419
        %v6099 = vmul.f32 %v6077, %v5424
        %v6100 = vmul.f32 %v6076, %v5429
        %v6101 = vmul.f32 %v6075, %v5434
        %v6102 = vmul.f32 %v6074, %v5439
        %v6103 = vmul.f32 %v6073, %v5444
        %v6104 = vmul.f32 %v6088, %v5449
        %v6105 = vadd.f32 %v5879, %v6089
        %v6106 = vadd.f32 %v5880, %v6090
        %v6107 = vadd.f32 %v5881, %v6091
        %v6108 = vadd.f32 %v5882, %v6092
        %v6109 = vadd.f32 %v5883, %v6093
        %v6110 = vadd.f32 %v5884, %v6094
        %v6111 = vadd.f32 %v5885, %v6095
        %v6112 = vadd.f32 %v5886, %v6096
        %v6113 = vadd.f32 %v5887, %v6097
        %v6114 = vadd.f32 %v5888, %v6098
        %v6115 = vadd.f32 %v5889, %v6099
        %v6116 = vadd.f32 %v5890, %v6100
        %v6117 = vadd.f32 %v5891, %v6101
        %v6118 = vadd.f32 %v5892, %v6102
        %v6119 = vadd.f32 %v5893, %v6103
        %v6120 = vadd.f32 %v5894, %v6104
        %v6121 = vld [vmem:[#allocation3 + $0x10] sm:$0xff]
        %v6122 = vld [vmem:[#allocation3 + $0x18] sm:$0xff]
        %v6123 = vld [vmem:[#allocation3 + $0x20] sm:$0xff]
        %v6124 = vld [vmem:[#allocation3 + $0x28] sm:$0xff]
        %v6125 = vld [vmem:[#allocation3 + $0x30] sm:$0xff]
        %v6126 = vld [vmem:[#allocation3 + $0x38] sm:$0xff]
        %v6127 = vld [vmem:[#allocation3 + $0x40] sm:$0xff]
        %v6128 = vld [vmem:[#allocation3 + $0x48] sm:$0xff]
        %s6129 = scalar_lea.vmem [#allocation4], 960
        %v6130 = vld [vmem:[%s6129] sm:$0xf]
        %v6131 = vld [vmem:[%s6129 + $0x4] sm:$0xf]
        %v6132 = vld [vmem:[%s6129 + $0x8] sm:$0xf]
        %v6133 = vld [vmem:[%s6129 + $0xc] sm:$0xf]
        %v6134 = vld [vmem:[%s6129 + $0x10] sm:$0xf]
        %v6135 = vld [vmem:[%s6129 + $0x14] sm:$0xf]
        %v6136 = vld [vmem:[%s6129 + $0x18] sm:$0xf]
        %v6137 = vld [vmem:[%s6129 + $0x1c] sm:$0xf]
        %v6138 = vld [vmem:[%s6129 + $0x20] sm:$0xf]
        %v6139 = vld [vmem:[%s6129 + $0x24] sm:$0xf]
        %v6140 = vld [vmem:[%s6129 + $0x28] sm:$0xf]
        %v6141 = vld [vmem:[%s6129 + $0x2c] sm:$0xf]
        %v6142 = vld [vmem:[%s6129 + $0x30] sm:$0xf]
        %v6143 = vld [vmem:[%s6129 + $0x34] sm:$0xf]
        %v6144 = vld [vmem:[%s6129 + $0x38] sm:$0xf]
        %v6145 = vld [vmem:[%s6129 + $0x3c] sm:$0xf]
        %v6162 = vunpack.c.l.b16 %v6130
        %v6163 = vunpack.c.l.b16 %v6131
        %v6164 = vunpack.c.l.b16 %v6132
        %v6165 = vunpack.c.l.b16 %v6133
        %v6166 = vunpack.c.l.b16 %v6134
        %v6167 = vunpack.c.l.b16 %v6135
        %v6168 = vunpack.c.l.b16 %v6136
        %v6169 = vunpack.c.l.b16 %v6137
        %v6170 = vunpack.c.l.b16 %v6138
        %v6171 = vunpack.c.l.b16 %v6139
        %v6172 = vunpack.c.l.b16 %v6140
        %v6173 = vunpack.c.l.b16 %v6141
        %v6174 = vunpack.c.l.b16 %v6142
        %v6175 = vunpack.c.l.b16 %v6143
        %v6176 = vunpack.c.l.b16 %v6144
        %v6177 = vunpack.c.l.b16 %v6145
        %v6178 = vpack.c.b16 %v6163, %v6162
        %v6179 = vpack.c.b16 %v6165, %v6164
        %v6180 = vpack.c.b16 %v6167, %v6166
        %v6181 = vpack.c.b16 %v6169, %v6168
        %v6182 = vpack.c.b16 %v6171, %v6170
        %v6183 = vpack.c.b16 %v6173, %v6172
        %v6184 = vpack.c.b16 %v6175, %v6174
        %v6185 = vpack.c.b16 %v6177, %v6176
        %6194 = vmatprep.subr.bf16.mxu0 0
        %6195 = vmatpush1.bf16.msra.mxu0 %v6178
        %6196 = vmatprep.subr.bf16.mxu0 0
        %6197 = vmatpush1.bf16.msra.mxu0 %v6179
        %6198 = vmatprep.subr.bf16.mxu0 0
        %6199 = vmatpush1.bf16.msra.mxu0 %v6180
        %6200 = vmatprep.subr.bf16.mxu0 0
        %6201 = vmatpush1.bf16.msra.mxu0 %v6181
        %6202 = vmatprep.subr.bf16.mxu0 0
        %6203 = vmatpush1.bf16.msra.mxu0 %v6182
        %6204 = vmatprep.subr.bf16.mxu0 0
        %6205 = vmatpush1.bf16.msra.mxu0 %v6183
        %6206 = vmatprep.subr.bf16.mxu0 0
        %6207 = vmatpush1.bf16.msra.mxu0 %v6184
        %6208 = vmatprep.subr.bf16.mxu0 0
        %6209 = vmatpush1.bf16.msra.mxu0 %v6185
        %6210 = vmatprep.subr.bf16.mxu0 0
        %6211 = vmatpush1.bf16.msra.mxu0 0
        %6212 = vmatprep.subr.bf16.mxu0 0
        %6213 = vmatpush1.bf16.msra.mxu0 0
        %6214 = vmatprep.subr.bf16.mxu0 0
        %6215 = vmatpush1.bf16.msra.mxu0 0
        %6216 = vmatprep.subr.bf16.mxu0 0
        %6217 = vmatpush1.bf16.msra.mxu0 0
        %6218 = vmatprep.subr.bf16.mxu0 0
        %6219 = vmatpush1.bf16.msra.mxu0 0
        %6220 = vmatprep.subr.bf16.mxu0 0
        %6221 = vmatpush1.bf16.msra.mxu0 0
        %6222 = vmatprep.subr.bf16.mxu0 0
        %6223 = vmatpush1.bf16.msra.mxu0 0
        %6224 = vmatprep.subr.bf16.mxu0 0
        %6225 = vmatpush1.bf16.msra.mxu0 0
        %6226 = vmatprep.mubr.bf16.mxu0 0
        %6227 = vmatmul.mubr.bf16.gmra.mrb[0].mxu0 %v6121
        %v6228 = vpop.f32.mrb[0].mxu0
        %v6229 = vadd.f32 0.0, %v6228
        %v6230 = vpop.f32.mrb[0].mxu0
        %v6231 = vpop.f32.mrb[0].mxu0
        %v6232 = vadd.f32 0.0, %v6231
        %v6233 = vpop.f32.mrb[0].mxu0
        %6234 = vmatprep.mubr.bf16.mxu0 0
        %6235 = vmatmul.mubr.bf16.gmra.mrb[0].mxu0 %v6122
        %v6236 = vpop.f32.mrb[0].mxu0
        %v6237 = vadd.f32 0.0, %v6236
        %v6238 = vpop.f32.mrb[0].mxu0
        %v6239 = vpop.f32.mrb[0].mxu0
        %v6240 = vadd.f32 0.0, %v6239
        %v6241 = vpop.f32.mrb[0].mxu0
        %6242 = vmatprep.mubr.bf16.mxu0 0
        %6243 = vmatmul.mubr.bf16.gmra.mrb[0].mxu0 %v6123
        %v6244 = vpop.f32.mrb[0].mxu0
        %v6245 = vadd.f32 0.0, %v6244
        %v6246 = vpop.f32.mrb[0].mxu0
        %v6247 = vpop.f32.mrb[0].mxu0
        %v6248 = vadd.f32 0.0, %v6247
        %v6249 = vpop.f32.mrb[0].mxu0
        %6250 = vmatprep.mubr.bf16.mxu0 0
        %6251 = vmatmul.mubr.bf16.gmra.mrb[0].mxu0 %v6124
        %v6252 = vpop.f32.mrb[0].mxu0
        %v6253 = vadd.f32 0.0, %v6252
        %v6254 = vpop.f32.mrb[0].mxu0
        %v6255 = vpop.f32.mrb[0].mxu0
        %v6256 = vadd.f32 0.0, %v6255
        %v6257 = vpop.f32.mrb[0].mxu0
        %6258 = vmatprep.mubr.bf16.mxu0 0
        %6259 = vmatmul.mubr.bf16.gmra.mrb[0].mxu0 %v6125
        %v6260 = vpop.f32.mrb[0].mxu0
        %v6261 = vadd.f32 0.0, %v6260
        %v6262 = vpop.f32.mrb[0].mxu0
        %v6263 = vpop.f32.mrb[0].mxu0
        %v6264 = vadd.f32 0.0, %v6263
        %v6265 = vpop.f32.mrb[0].mxu0
        %6266 = vmatprep.mubr.bf16.mxu0 0
        %6267 = vmatmul.mubr.bf16.gmra.mrb[0].mxu0 %v6126
        %v6268 = vpop.f32.mrb[0].mxu0
        %v6269 = vadd.f32 0.0, %v6268
        %v6270 = vpop.f32.mrb[0].mxu0
        %v6271 = vpop.f32.mrb[0].mxu0
        %v6272 = vadd.f32 0.0, %v6271
        %v6273 = vpop.f32.mrb[0].mxu0
        %6274 = vmatprep.mubr.bf16.mxu0 0
        %6275 = vmatmul.mubr.bf16.gmra.mrb[0].mxu0 %v6127
        %v6276 = vpop.f32.mrb[0].mxu0
        %v6277 = vadd.f32 0.0, %v6276
        %v6278 = vpop.f32.mrb[0].mxu0
        %v6279 = vpop.f32.mrb[0].mxu0
        %v6280 = vadd.f32 0.0, %v6279
        %v6281 = vpop.f32.mrb[0].mxu0
        %6282 = vmatprep.mubr.bf16.mxu0 0
        %6283 = vmatmul.mubr.bf16.gmra.mrb[0].mxu0 %v6128
        %v6284 = vpop.f32.mrb[0].mxu0
        %v6285 = vadd.f32 0.0, %v6284
        %v6286 = vpop.f32.mrb[0].mxu0
        %v6287 = vpop.f32.mrb[0].mxu0
        %v6288 = vadd.f32 0.0, %v6287
        %v6289 = vpop.f32.mrb[0].mxu0
        %6290 = vdwg.mxu0
        %v6291 = vrot.slane %v6229, 7
        %v6292 = vrot.slane %v6232, 7
        %v6293 = vrot.slane %v6237, 7
        %v6294 = vrot.slane %v6240, 7
        %v6295 = vrot.slane %v6245, 7
        %v6296 = vrot.slane %v6248, 7
        %v6297 = vrot.slane %v6253, 7
        %v6298 = vrot.slane %v6256, 7
        %v6299 = vrot.slane %v6261, 7
        %v6300 = vrot.slane %v6264, 7
        %v6301 = vrot.slane %v6269, 7
        %v6302 = vrot.slane %v6272, 7
        %v6303 = vrot.slane %v6277, 7
        %v6304 = vrot.slane %v6280, 7
        %v6305 = vrot.slane %v6285, 7
        %v6306 = vrot.slane %v6288, 7
        %v6307 = vsel %vm556, %v6305, %v6306
        %v6308 = vsel %vm556, %v6304, %v6305
        %v6309 = vsel %vm556, %v6303, %v6304
        %v6310 = vsel %vm556, %v6302, %v6303
        %v6311 = vsel %vm556, %v6301, %v6302
        %v6312 = vsel %vm556, %v6300, %v6301
        %v6313 = vsel %vm556, %v6299, %v6300
        %v6314 = vsel %vm556, %v6298, %v6299
        %v6315 = vsel %vm556, %v6297, %v6298
        %v6316 = vsel %vm556, %v6296, %v6297
        %v6317 = vsel %vm556, %v6295, %v6296
        %v6318 = vsel %vm556, %v6294, %v6295
        %v6319 = vsel %vm556, %v6293, %v6294
        %v6320 = vsel %vm556, %v6292, %v6293
        %v6321 = vsel %vm556, %v6291, %v6292
        %v6322 = vsel %vm556, %v6306, %v6291
        %v6323 = vmul.f32 %v6322, %v4890
        %v6324 = vmul.f32 %v6321, %v4895
        %v6325 = vmul.f32 %v6320, %v4900
        %v6326 = vmul.f32 %v6319, %v4905
        %v6327 = vmul.f32 %v6318, %v4910
        %v6328 = vmul.f32 %v6317, %v4915
        %v6329 = vmul.f32 %v6316, %v4920
        %v6330 = vmul.f32 %v6315, %v4925
        %v6331 = vmul.f32 %v6314, %v4930
        %v6332 = vmul.f32 %v6313, %v4935
        %v6333 = vmul.f32 %v6312, %v4940
        %v6334 = vmul.f32 %v6311, %v4945
        %v6335 = vmul.f32 %v6310, %v4950
        %v6336 = vmul.f32 %v6309, %v4955
        %v6337 = vmul.f32 %v6308, %v4960
        %v6338 = vmul.f32 %v6307, %v4965
        %v6339 = vadd.f32 %v6105, %v6323
        %v6340 = vadd.f32 %v6106, %v6324
        %v6341 = vadd.f32 %v6107, %v6325
        %v6342 = vadd.f32 %v6108, %v6326
        %v6343 = vadd.f32 %v6109, %v6327
        %v6344 = vadd.f32 %v6110, %v6328
        %v6345 = vadd.f32 %v6111, %v6329
        %v6346 = vadd.f32 %v6112, %v6330
        %v6347 = vadd.f32 %v6113, %v6331
        %v6348 = vadd.f32 %v6114, %v6332
        %v6349 = vadd.f32 %v6115, %v6333
        %v6350 = vadd.f32 %v6116, %v6334
        %v6351 = vadd.f32 %v6117, %v6335
        %v6352 = vadd.f32 %v6118, %v6336
        %v6353 = vadd.f32 %v6119, %v6337
        %v6354 = vadd.f32 %v6120, %v6338
        %s6355 = scalar_lea.vmem [#allocation4], 1024
        %v6356 = vld [vmem:[%s6355] sm:$0xf]
        %v6357 = vld [vmem:[%s6355 + $0x4] sm:$0xf]
        %v6358 = vld [vmem:[%s6355 + $0x8] sm:$0xf]
        %v6359 = vld [vmem:[%s6355 + $0xc] sm:$0xf]
        %v6360 = vld [vmem:[%s6355 + $0x10] sm:$0xf]
        %v6361 = vld [vmem:[%s6355 + $0x14] sm:$0xf]
        %v6362 = vld [vmem:[%s6355 + $0x18] sm:$0xf]
        %v6363 = vld [vmem:[%s6355 + $0x1c] sm:$0xf]
        %v6364 = vld [vmem:[%s6355 + $0x20] sm:$0xf]
        %v6365 = vld [vmem:[%s6355 + $0x24] sm:$0xf]
        %v6366 = vld [vmem:[%s6355 + $0x28] sm:$0xf]
        %v6367 = vld [vmem:[%s6355 + $0x2c] sm:$0xf]
        %v6368 = vld [vmem:[%s6355 + $0x30] sm:$0xf]
        %v6369 = vld [vmem:[%s6355 + $0x34] sm:$0xf]
        %v6370 = vld [vmem:[%s6355 + $0x38] sm:$0xf]
        %v6371 = vld [vmem:[%s6355 + $0x3c] sm:$0xf]
        %v6388 = vunpack.c.l.b16 %v6356
        %v6389 = vunpack.c.l.b16 %v6357
        %v6390 = vunpack.c.l.b16 %v6358
        %v6391 = vunpack.c.l.b16 %v6359
        %v6392 = vunpack.c.l.b16 %v6360
        %v6393 = vunpack.c.l.b16 %v6361
        %v6394 = vunpack.c.l.b16 %v6362
        %v6395 = vunpack.c.l.b16 %v6363
        %v6396 = vunpack.c.l.b16 %v6364
        %v6397 = vunpack.c.l.b16 %v6365
        %v6398 = vunpack.c.l.b16 %v6366
        %v6399 = vunpack.c.l.b16 %v6367
        %v6400 = vunpack.c.l.b16 %v6368
        %v6401 = vunpack.c.l.b16 %v6369
        %v6402 = vunpack.c.l.b16 %v6370
        %v6403 = vunpack.c.l.b16 %v6371
        %v6404 = vpack.c.b16 %v6389, %v6388
        %v6405 = vpack.c.b16 %v6391, %v6390
        %v6406 = vpack.c.b16 %v6393, %v6392
        %v6407 = vpack.c.b16 %v6395, %v6394
        %v6408 = vpack.c.b16 %v6397, %v6396
        %v6409 = vpack.c.b16 %v6399, %v6398
        %v6410 = vpack.c.b16 %v6401, %v6400
        %v6411 = vpack.c.b16 %v6403, %v6402
        %6420 = vmatprep.subr.bf16.mxu0 0
        %6421 = vmatpush1.bf16.msra.mxu0 %v6404
        %6422 = vmatprep.subr.bf16.mxu0 0
        %6423 = vmatpush1.bf16.msra.mxu0 %v6405
        %6424 = vmatprep.subr.bf16.mxu0 0
        %6425 = vmatpush1.bf16.msra.mxu0 %v6406
        %6426 = vmatprep.subr.bf16.mxu0 0
        %6427 = vmatpush1.bf16.msra.mxu0 %v6407
        %6428 = vmatprep.subr.bf16.mxu0 0
        %6429 = vmatpush1.bf16.msra.mxu0 %v6408
        %6430 = vmatprep.subr.bf16.mxu0 0
        %6431 = vmatpush1.bf16.msra.mxu0 %v6409
        %6432 = vmatprep.subr.bf16.mxu0 0
        %6433 = vmatpush1.bf16.msra.mxu0 %v6410
        %6434 = vmatprep.subr.bf16.mxu0 0
        %6435 = vmatpush1.bf16.msra.mxu0 %v6411
        %6436 = vmatprep.subr.bf16.mxu0 0
        %6437 = vmatpush1.bf16.msra.mxu0 0
        %6438 = vmatprep.subr.bf16.mxu0 0
        %6439 = vmatpush1.bf16.msra.mxu0 0
        %6440 = vmatprep.subr.bf16.mxu0 0
        %6441 = vmatpush1.bf16.msra.mxu0 0
        %6442 = vmatprep.subr.bf16.mxu0 0
        %6443 = vmatpush1.bf16.msra.mxu0 0
        %6444 = vmatprep.subr.bf16.mxu0 0
        %6445 = vmatpush1.bf16.msra.mxu0 0
        %6446 = vmatprep.subr.bf16.mxu0 0
        %6447 = vmatpush1.bf16.msra.mxu0 0
        %6448 = vmatprep.subr.bf16.mxu0 0
        %6449 = vmatpush1.bf16.msra.mxu0 0
        %6450 = vmatprep.subr.bf16.mxu0 0
        %6451 = vmatpush1.bf16.msra.mxu0 0
        %6452 = vmatprep.mubr.bf16.mxu0 0
        %6453 = vmatmul.mubr.bf16.gmra.mrb[0].mxu0 %v6121
        %v6454 = vpop.f32.mrb[0].mxu0
        %v6455 = vadd.f32 0.0, %v6454
        %v6456 = vpop.f32.mrb[0].mxu0
        %v6457 = vpop.f32.mrb[0].mxu0
        %v6458 = vadd.f32 0.0, %v6457
        %v6459 = vpop.f32.mrb[0].mxu0
        %6460 = vmatprep.mubr.bf16.mxu0 0
        %6461 = vmatmul.mubr.bf16.gmra.mrb[0].mxu0 %v6122
        %v6462 = vpop.f32.mrb[0].mxu0
        %v6463 = vadd.f32 0.0, %v6462
        %v6464 = vpop.f32.mrb[0].mxu0
        %v6465 = vpop.f32.mrb[0].mxu0
        %v6466 = vadd.f32 0.0, %v6465
        %v6467 = vpop.f32.mrb[0].mxu0
        %6468 = vmatprep.mubr.bf16.mxu0 0
        %6469 = vmatmul.mubr.bf16.gmra.mrb[0].mxu0 %v6123
        %v6470 = vpop.f32.mrb[0].mxu0
        %v6471 = vadd.f32 0.0, %v6470
        %v6472 = vpop.f32.mrb[0].mxu0
        %v6473 = vpop.f32.mrb[0].mxu0
        %v6474 = vadd.f32 0.0, %v6473
        %v6475 = vpop.f32.mrb[0].mxu0
        %6476 = vmatprep.mubr.bf16.mxu0 0
        %6477 = vmatmul.mubr.bf16.gmra.mrb[0].mxu0 %v6124
        %v6478 = vpop.f32.mrb[0].mxu0
        %v6479 = vadd.f32 0.0, %v6478
        %v6480 = vpop.f32.mrb[0].mxu0
        %v6481 = vpop.f32.mrb[0].mxu0
        %v6482 = vadd.f32 0.0, %v6481
        %v6483 = vpop.f32.mrb[0].mxu0
        %6484 = vmatprep.mubr.bf16.mxu0 0
        %6485 = vmatmul.mubr.bf16.gmra.mrb[0].mxu0 %v6125
        %v6486 = vpop.f32.mrb[0].mxu0
        %v6487 = vadd.f32 0.0, %v6486
        %v6488 = vpop.f32.mrb[0].mxu0
        %v6489 = vpop.f32.mrb[0].mxu0
        %v6490 = vadd.f32 0.0, %v6489
        %v6491 = vpop.f32.mrb[0].mxu0
        %6492 = vmatprep.mubr.bf16.mxu0 0
        %6493 = vmatmul.mubr.bf16.gmra.mrb[0].mxu0 %v6126
        %v6494 = vpop.f32.mrb[0].mxu0
        %v6495 = vadd.f32 0.0, %v6494
        %v6496 = vpop.f32.mrb[0].mxu0
        %v6497 = vpop.f32.mrb[0].mxu0
        %v6498 = vadd.f32 0.0, %v6497
        %v6499 = vpop.f32.mrb[0].mxu0
        %6500 = vmatprep.mubr.bf16.mxu0 0
        %6501 = vmatmul.mubr.bf16.gmra.mrb[0].mxu0 %v6127
        %v6502 = vpop.f32.mrb[0].mxu0
        %v6503 = vadd.f32 0.0, %v6502
        %v6504 = vpop.f32.mrb[0].mxu0
        %v6505 = vpop.f32.mrb[0].mxu0
        %v6506 = vadd.f32 0.0, %v6505
        %v6507 = vpop.f32.mrb[0].mxu0
        %6508 = vmatprep.mubr.bf16.mxu0 0
        %6509 = vmatmul.mubr.bf16.gmra.mrb[0].mxu0 %v6128
        %v6510 = vpop.f32.mrb[0].mxu0
        %v6511 = vadd.f32 0.0, %v6510
        %v6512 = vpop.f32.mrb[0].mxu0
        %v6513 = vpop.f32.mrb[0].mxu0
        %v6514 = vadd.f32 0.0, %v6513
        %v6515 = vpop.f32.mrb[0].mxu0
        %6516 = vdwg.mxu0
        %v6517 = vadd.f32 %v6339, %v6455
        %v6518 = vadd.f32 %v6340, %v6458
        %v6519 = vadd.f32 %v6341, %v6463
        %v6520 = vadd.f32 %v6342, %v6466
        %v6521 = vadd.f32 %v6343, %v6471
        %v6522 = vadd.f32 %v6344, %v6474
        %v6523 = vadd.f32 %v6345, %v6479
        %v6524 = vadd.f32 %v6346, %v6482
        %v6525 = vadd.f32 %v6347, %v6487
        %v6526 = vadd.f32 %v6348, %v6490
        %v6527 = vadd.f32 %v6349, %v6495
        %v6528 = vadd.f32 %v6350, %v6498
        %v6529 = vadd.f32 %v6351, %v6503
        %v6530 = vadd.f32 %v6352, %v6506
        %v6531 = vadd.f32 %v6353, %v6511
        %v6532 = vadd.f32 %v6354, %v6514
        %s6533 = scalar_lea.vmem [#allocation4], 1088
        %v6534 = vld [vmem:[%s6533] sm:$0xf]
        %v6535 = vld [vmem:[%s6533 + $0x4] sm:$0xf]
        %v6536 = vld [vmem:[%s6533 + $0x8] sm:$0xf]
        %v6537 = vld [vmem:[%s6533 + $0xc] sm:$0xf]
        %v6538 = vld [vmem:[%s6533 + $0x10] sm:$0xf]
        %v6539 = vld [vmem:[%s6533 + $0x14] sm:$0xf]
        %v6540 = vld [vmem:[%s6533 + $0x18] sm:$0xf]
        %v6541 = vld [vmem:[%s6533 + $0x1c] sm:$0xf]
        %v6542 = vld [vmem:[%s6533 + $0x20] sm:$0xf]
        %v6543 = vld [vmem:[%s6533 + $0x24] sm:$0xf]
        %v6544 = vld [vmem:[%s6533 + $0x28] sm:$0xf]
        %v6545 = vld [vmem:[%s6533 + $0x2c] sm:$0xf]
        %v6546 = vld [vmem:[%s6533 + $0x30] sm:$0xf]
        %v6547 = vld [vmem:[%s6533 + $0x34] sm:$0xf]
        %v6548 = vld [vmem:[%s6533 + $0x38] sm:$0xf]
        %v6549 = vld [vmem:[%s6533 + $0x3c] sm:$0xf]
        %v6566 = vunpack.c.l.b16 %v6534
        %v6567 = vunpack.c.l.b16 %v6535
        %v6568 = vunpack.c.l.b16 %v6536
        %v6569 = vunpack.c.l.b16 %v6537
        %v6570 = vunpack.c.l.b16 %v6538
        %v6571 = vunpack.c.l.b16 %v6539
        %v6572 = vunpack.c.l.b16 %v6540
        %v6573 = vunpack.c.l.b16 %v6541
        %v6574 = vunpack.c.l.b16 %v6542
        %v6575 = vunpack.c.l.b16 %v6543
        %v6576 = vunpack.c.l.b16 %v6544
        %v6577 = vunpack.c.l.b16 %v6545
        %v6578 = vunpack.c.l.b16 %v6546
        %v6579 = vunpack.c.l.b16 %v6547
        %v6580 = vunpack.c.l.b16 %v6548
        %v6581 = vunpack.c.l.b16 %v6549
        %v6582 = vpack.c.b16 %v6567, %v6566
        %v6583 = vpack.c.b16 %v6569, %v6568
        %v6584 = vpack.c.b16 %v6571, %v6570
        %v6585 = vpack.c.b16 %v6573, %v6572
        %v6586 = vpack.c.b16 %v6575, %v6574
        %v6587 = vpack.c.b16 %v6577, %v6576
        %v6588 = vpack.c.b16 %v6579, %v6578
        %v6589 = vpack.c.b16 %v6581, %v6580
        %6598 = vmatprep.subr.bf16.mxu0 0
        %6599 = vmatpush1.bf16.msra.mxu0 %v6582
        %6600 = vmatprep.subr.bf16.mxu0 0
        %6601 = vmatpush1.bf16.msra.mxu0 %v6583
        %6602 = vmatprep.subr.bf16.mxu0 0
        %6603 = vmatpush1.bf16.msra.mxu0 %v6584
        %6604 = vmatprep.subr.bf16.mxu0 0
        %6605 = vmatpush1.bf16.msra.mxu0 %v6585
        %6606 = vmatprep.subr.bf16.mxu0 0
        %6607 = vmatpush1.bf16.msra.mxu0 %v6586
        %6608 = vmatprep.subr.bf16.mxu0 0
        %6609 = vmatpush1.bf16.msra.mxu0 %v6587
        %6610 = vmatprep.subr.bf16.mxu0 0
        %6611 = vmatpush1.bf16.msra.mxu0 %v6588
        %6612 = vmatprep.subr.bf16.mxu0 0
        %6613 = vmatpush1.bf16.msra.mxu0 %v6589
        %6614 = vmatprep.subr.bf16.mxu0 0
        %6615 = vmatpush1.bf16.msra.mxu0 0
        %6616 = vmatprep.subr.bf16.mxu0 0
        %6617 = vmatpush1.bf16.msra.mxu0 0
        %6618 = vmatprep.subr.bf16.mxu0 0
        %6619 = vmatpush1.bf16.msra.mxu0 0
        %6620 = vmatprep.subr.bf16.mxu0 0
        %6621 = vmatpush1.bf16.msra.mxu0 0
        %6622 = vmatprep.subr.bf16.mxu0 0
        %6623 = vmatpush1.bf16.msra.mxu0 0
        %6624 = vmatprep.subr.bf16.mxu0 0
        %6625 = vmatpush1.bf16.msra.mxu0 0
        %6626 = vmatprep.subr.bf16.mxu0 0
        %6627 = vmatpush1.bf16.msra.mxu0 0
        %6628 = vmatprep.subr.bf16.mxu0 0
        %6629 = vmatpush1.bf16.msra.mxu0 0
        %6630 = vmatprep.mubr.bf16.mxu0 0
        %6631 = vmatmul.mubr.bf16.gmra.mrb[0].mxu0 %v6121
        %v6632 = vpop.f32.mrb[0].mxu0
        %v6633 = vadd.f32 0.0, %v6632
        %v6634 = vpop.f32.mrb[0].mxu0
        %v6635 = vpop.f32.mrb[0].mxu0
        %v6636 = vadd.f32 0.0, %v6635
        %v6637 = vpop.f32.mrb[0].mxu0
        %6638 = vmatprep.mubr.bf16.mxu0 0
        %6639 = vmatmul.mubr.bf16.gmra.mrb[0].mxu0 %v6122
        %v6640 = vpop.f32.mrb[0].mxu0
        %v6641 = vadd.f32 0.0, %v6640
        %v6642 = vpop.f32.mrb[0].mxu0
        %v6643 = vpop.f32.mrb[0].mxu0
        %v6644 = vadd.f32 0.0, %v6643
        %v6645 = vpop.f32.mrb[0].mxu0
        %6646 = vmatprep.mubr.bf16.mxu0 0
        %6647 = vmatmul.mubr.bf16.gmra.mrb[0].mxu0 %v6123
        %v6648 = vpop.f32.mrb[0].mxu0
        %v6649 = vadd.f32 0.0, %v6648
        %v6650 = vpop.f32.mrb[0].mxu0
        %v6651 = vpop.f32.mrb[0].mxu0
        %v6652 = vadd.f32 0.0, %v6651
        %v6653 = vpop.f32.mrb[0].mxu0
        %6654 = vmatprep.mubr.bf16.mxu0 0
        %6655 = vmatmul.mubr.bf16.gmra.mrb[0].mxu0 %v6124
        %v6656 = vpop.f32.mrb[0].mxu0
        %v6657 = vadd.f32 0.0, %v6656
        %v6658 = vpop.f32.mrb[0].mxu0
        %v6659 = vpop.f32.mrb[0].mxu0
        %v6660 = vadd.f32 0.0, %v6659
        %v6661 = vpop.f32.mrb[0].mxu0
        %6662 = vmatprep.mubr.bf16.mxu0 0
        %6663 = vmatmul.mubr.bf16.gmra.mrb[0].mxu0 %v6125
        %v6664 = vpop.f32.mrb[0].mxu0
        %v6665 = vadd.f32 0.0, %v6664
        %v6666 = vpop.f32.mrb[0].mxu0
        %v6667 = vpop.f32.mrb[0].mxu0
        %v6668 = vadd.f32 0.0, %v6667
        %v6669 = vpop.f32.mrb[0].mxu0
        %6670 = vmatprep.mubr.bf16.mxu0 0
        %6671 = vmatmul.mubr.bf16.gmra.mrb[0].mxu0 %v6126
        %v6672 = vpop.f32.mrb[0].mxu0
        %v6673 = vadd.f32 0.0, %v6672
        %v6674 = vpop.f32.mrb[0].mxu0
        %v6675 = vpop.f32.mrb[0].mxu0
        %v6676 = vadd.f32 0.0, %v6675
        %v6677 = vpop.f32.mrb[0].mxu0
        %6678 = vmatprep.mubr.bf16.mxu0 0
        %6679 = vmatmul.mubr.bf16.gmra.mrb[0].mxu0 %v6127
        %v6680 = vpop.f32.mrb[0].mxu0
        %v6681 = vadd.f32 0.0, %v6680
        %v6682 = vpop.f32.mrb[0].mxu0
        %v6683 = vpop.f32.mrb[0].mxu0
        %v6684 = vadd.f32 0.0, %v6683
        %v6685 = vpop.f32.mrb[0].mxu0
        %6686 = vmatprep.mubr.bf16.mxu0 0
        %6687 = vmatmul.mubr.bf16.gmra.mrb[0].mxu0 %v6128
        %v6688 = vpop.f32.mrb[0].mxu0
        %v6689 = vadd.f32 0.0, %v6688
        %v6690 = vpop.f32.mrb[0].mxu0
        %v6691 = vpop.f32.mrb[0].mxu0
        %v6692 = vadd.f32 0.0, %v6691
        %v6693 = vpop.f32.mrb[0].mxu0
        %6694 = vdwg.mxu0
        %v6695 = vrot.slane %v6633, 1
        %v6696 = vrot.slane %v6636, 1
        %v6697 = vrot.slane %v6641, 1
        %v6698 = vrot.slane %v6644, 1
        %v6699 = vrot.slane %v6649, 1
        %v6700 = vrot.slane %v6652, 1
        %v6701 = vrot.slane %v6657, 1
        %v6702 = vrot.slane %v6660, 1
        %v6703 = vrot.slane %v6665, 1
        %v6704 = vrot.slane %v6668, 1
        %v6705 = vrot.slane %v6673, 1
        %v6706 = vrot.slane %v6676, 1
        %v6707 = vrot.slane %v6681, 1
        %v6708 = vrot.slane %v6684, 1
        %v6709 = vrot.slane %v6689, 1
        %v6710 = vrot.slane %v6692, 1
        %v6711 = vsel %vm1041, %v6709, %v6710
        %v6712 = vsel %vm1041, %v6708, %v6709
        %v6713 = vsel %vm1041, %v6707, %v6708
        %v6714 = vsel %vm1041, %v6706, %v6707
        %v6715 = vsel %vm1041, %v6705, %v6706
        %v6716 = vsel %vm1041, %v6704, %v6705
        %v6717 = vsel %vm1041, %v6703, %v6704
        %v6718 = vsel %vm1041, %v6702, %v6703
        %v6719 = vsel %vm1041, %v6701, %v6702
        %v6720 = vsel %vm1041, %v6700, %v6701
        %v6721 = vsel %vm1041, %v6699, %v6700
        %v6722 = vsel %vm1041, %v6698, %v6699
        %v6723 = vsel %vm1041, %v6697, %v6698
        %v6724 = vsel %vm1041, %v6696, %v6697
        %v6725 = vsel %vm1041, %v6695, %v6696
        %v6726 = vsel %vm1041, %v6710, %v6695
        %v6727 = vmul.f32 %v6725, %v5374
        %v6728 = vmul.f32 %v6724, %v5379
        %v6729 = vmul.f32 %v6723, %v5384
        %v6730 = vmul.f32 %v6722, %v5389
        %v6731 = vmul.f32 %v6721, %v5394
        %v6732 = vmul.f32 %v6720, %v5399
        %v6733 = vmul.f32 %v6719, %v5404
        %v6734 = vmul.f32 %v6718, %v5409
        %v6735 = vmul.f32 %v6717, %v5414
        %v6736 = vmul.f32 %v6716, %v5419
        %v6737 = vmul.f32 %v6715, %v5424
        %v6738 = vmul.f32 %v6714, %v5429
        %v6739 = vmul.f32 %v6713, %v5434
        %v6740 = vmul.f32 %v6712, %v5439
        %v6741 = vmul.f32 %v6711, %v5444
        %v6742 = vmul.f32 %v6726, %v5449
        %v6743 = vadd.f32 %v6517, %v6727
        %v6744 = vadd.f32 %v6518, %v6728
        %v6745 = vadd.f32 %v6519, %v6729
        %v6746 = vadd.f32 %v6520, %v6730
        %v6747 = vadd.f32 %v6521, %v6731
        %v6748 = vadd.f32 %v6522, %v6732
        %v6749 = vadd.f32 %v6523, %v6733
        %v6750 = vadd.f32 %v6524, %v6734
        %v6751 = vadd.f32 %v6525, %v6735
        %v6752 = vadd.f32 %v6526, %v6736
        %v6753 = vadd.f32 %v6527, %v6737
        %v6754 = vadd.f32 %v6528, %v6738
        %v6755 = vadd.f32 %v6529, %v6739
        %v6756 = vadd.f32 %v6530, %v6740
        %v6757 = vadd.f32 %v6531, %v6741
        %v6758 = vadd.f32 %v6532, %v6742
        %s6759 = scalar_lea.vmem %s2, 1
        %v6760 = vld [vmem:[%s6759] sm:$0x1]
        %v6762 = vlaneseq
        %v6763 = vshrl.u32 %v6762, 7
        %v6764 = vsub.s32 0, %v6763
        %v6765 = vrot.slane %v6760, %v6764
        %v6767 = vadd.f32 %v6743, %v6765
        %v6768 = vadd.f32 %v6744, %v6765
        %v6769 = vadd.f32 %v6745, %v6765
        %v6770 = vadd.f32 %v6746, %v6765
        %v6771 = vadd.f32 %v6747, %v6765
        %v6772 = vadd.f32 %v6748, %v6765
        %v6773 = vadd.f32 %v6749, %v6765
        %v6774 = vadd.f32 %v6750, %v6765
        %v6775 = vadd.f32 %v6751, %v6765
        %v6776 = vadd.f32 %v6752, %v6765
        %v6777 = vadd.f32 %v6753, %v6765
        %v6778 = vadd.f32 %v6754, %v6765
        %v6779 = vadd.f32 %v6755, %v6765
        %v6780 = vadd.f32 %v6756, %v6765
        %v6781 = vadd.f32 %v6757, %v6765
        %v6782 = vadd.f32 %v6758, %v6765
        %v6783 = vmax.f32 %v6767, 0.0
        %v6784 = vmax.f32 %v6768, 0.0
        %v6785 = vmax.f32 %v6769, 0.0
        %v6786 = vmax.f32 %v6770, 0.0
        %v6787 = vmax.f32 %v6771, 0.0
        %v6788 = vmax.f32 %v6772, 0.0
        %v6789 = vmax.f32 %v6773, 0.0
        %v6790 = vmax.f32 %v6774, 0.0
        %v6791 = vmax.f32 %v6775, 0.0
        %v6792 = vmax.f32 %v6776, 0.0
        %v6793 = vmax.f32 %v6777, 0.0
        %v6794 = vmax.f32 %v6778, 0.0
        %v6795 = vmax.f32 %v6779, 0.0
        %v6796 = vmax.f32 %v6780, 0.0
        %v6797 = vmax.f32 %v6781, 0.0
        %v6798 = vmax.f32 %v6782, 0.0
        %v6799 = vpack.c.bf16 %v6784, %v6783
        %v6800 = vpack.c.bf16 %v6786, %v6785
        %v6801 = vpack.c.bf16 %v6788, %v6787
        %v6802 = vpack.c.bf16 %v6790, %v6789
        %v6803 = vpack.c.bf16 %v6792, %v6791
        %v6804 = vpack.c.bf16 %v6794, %v6793
        %v6805 = vpack.c.bf16 %v6796, %v6795
        %v6806 = vpack.c.bf16 %v6798, %v6797
        %v6815 = vunpack.c.l.b16 %v6799
        %v6816 = vunpack.c.h.b16 %v6799
        %v6817 = vunpack.c.l.b16 %v6800
        %v6818 = vunpack.c.h.b16 %v6800
        %v6819 = vunpack.c.l.b16 %v6801
        %v6820 = vunpack.c.h.b16 %v6801
        %v6821 = vunpack.c.l.b16 %v6802
        %v6822 = vunpack.c.h.b16 %v6802
        %v6823 = vunpack.c.l.b16 %v6803
        %v6824 = vunpack.c.h.b16 %v6803
        %v6825 = vunpack.c.l.b16 %v6804
        %v6826 = vunpack.c.h.b16 %v6804
        %v6827 = vunpack.c.l.b16 %v6805
        %v6828 = vunpack.c.h.b16 %v6805
        %v6829 = vunpack.c.l.b16 %v6806
        %v6830 = vunpack.c.h.b16 %v6806
        %v6831 = vpack.c.b16 %v6815, %v6815
        %v6832 = vpack.c.b16 %v6816, %v6816
        %v6833 = vpack.c.b16 %v6817, %v6817
        %v6834 = vpack.c.b16 %v6818, %v6818
        %v6835 = vpack.c.b16 %v6819, %v6819
        %v6836 = vpack.c.b16 %v6820, %v6820
        %v6837 = vpack.c.b16 %v6821, %v6821
        %v6838 = vpack.c.b16 %v6822, %v6822
        %v6839 = vpack.c.b16 %v6823, %v6823
        %v6840 = vpack.c.b16 %v6824, %v6824
        %v6841 = vpack.c.b16 %v6825, %v6825
        %v6842 = vpack.c.b16 %v6826, %v6826
        %v6843 = vpack.c.b16 %v6827, %v6827
        %v6844 = vpack.c.b16 %v6828, %v6828
        %v6845 = vpack.c.b16 %v6829, %v6829
        %v6846 = vpack.c.b16 %v6830, %v6830
        %vm6863 = vcmask 60416
        %6864 = vst.msk [vmem:[%s249] sm:$0xf] %vm6863, %v6831
        %6865 = vst.msk [vmem:[%s249 + $0x4] sm:$0xf] %vm6863, %v6832
        %6866 = vst.msk [vmem:[%s249 + $0x8] sm:$0xf] %vm6863, %v6833
        %6867 = vst.msk [vmem:[%s249 + $0xc] sm:$0xf] %vm6863, %v6834
        %6868 = vst.msk [vmem:[%s249 + $0x10] sm:$0xf] %vm6863, %v6835
        %6869 = vst.msk [vmem:[%s249 + $0x14] sm:$0xf] %vm6863, %v6836
        %6870 = vst.msk [vmem:[%s249 + $0x18] sm:$0xf] %vm6863, %v6837
        %6871 = vst.msk [vmem:[%s249 + $0x1c] sm:$0xf] %vm6863, %v6838
        %6872 = vst.msk [vmem:[%s249 + $0x20] sm:$0xf] %vm6863, %v6839
        %6873 = vst.msk [vmem:[%s249 + $0x24] sm:$0xf] %vm6863, %v6840
        %6874 = vst.msk [vmem:[%s249 + $0x28] sm:$0xf] %vm6863, %v6841
        %6875 = vst.msk [vmem:[%s249 + $0x2c] sm:$0xf] %vm6863, %v6842
        %6876 = vst.msk [vmem:[%s249 + $0x30] sm:$0xf] %vm6863, %v6843
        %6877 = vst.msk [vmem:[%s249 + $0x34] sm:$0xf] %vm6863, %v6844
        %6878 = vst.msk [vmem:[%s249 + $0x38] sm:$0xf] %vm6863, %v6845
        %6879 = vst.msk [vmem:[%s249 + $0x3c] sm:$0xf] %vm6863, %v6846
        %v6880 = vadd.f32 %v6783, %v6784
        %v6881 = vadd.f32 %v6880, %v6785
        %v6882 = vadd.f32 %v6881, %v6786
        %v6883 = vadd.f32 %v6882, %v6787
        %v6884 = vadd.f32 %v6883, %v6788
        %v6885 = vadd.f32 %v6884, %v6789
        %v6886 = vadd.f32 %v6885, %v6790
        %v6887 = vadd.f32 %v6886, %v6791
        %v6888 = vadd.f32 %v6887, %v6792
        %v6889 = vadd.f32 %v6888, %v6793
        %v6890 = vadd.f32 %v6889, %v6794
        %v6891 = vadd.f32 %v6890, %v6795
        %v6892 = vadd.f32 %v6891, %v6796
        %v6893 = vadd.f32 %v6892, %v6797
        %v6894 = vadd.f32 %v6893, %v6798
        %v6895 = vrot.slane %v6894, 4
        %v6896 = vadd.f32 %v6894, %v6895
        %v6897 = vrot.slane %v6896, 2
        %v6898 = vadd.f32 %v6896, %v6897
        %v6899 = vrot.slane %v6898, 1
        %v6900 = vadd.f32 %v6898, %v6899
        %v6901 = vadd.f32 %v6900, 0.0
        %v6902 = vld [vmem:[%s3 + $0x80] sm:$0xff]
        %v6903 = vld [vmem:[%s3 + $0x88] sm:$0xff]
        %v6904 = vld [vmem:[%s3 + $0x90] sm:$0xff]
        %v6905 = vld [vmem:[%s3 + $0x98] sm:$0xff]
        %v6906 = vld [vmem:[%s3 + $0xa0] sm:$0xff]
        %v6907 = vld [vmem:[%s3 + $0xa8] sm:$0xff]
        %v6908 = vld [vmem:[%s3 + $0xb0] sm:$0xff]
        %v6909 = vld [vmem:[%s3 + $0xb8] sm:$0xff]
        %v6910 = vld [vmem:[%s3 + $0xc0] sm:$0xff]
        %v6911 = vld [vmem:[%s3 + $0xc8] sm:$0xff]
        %v6912 = vld [vmem:[%s3 + $0xd0] sm:$0xff]
        %v6913 = vld [vmem:[%s3 + $0xd8] sm:$0xff]
        %v6914 = vld [vmem:[%s3 + $0xe0] sm:$0xff]
        %v6915 = vld [vmem:[%s3 + $0xe8] sm:$0xff]
        %v6916 = vld [vmem:[%s3 + $0xf0] sm:$0xff]
        %v6917 = vld [vmem:[%s3 + $0xf8] sm:$0xff]
        %v6918 = vld [vmem:[%s352 + $0x80] sm:$0xff]
        %v6919 = vld [vmem:[%s352 + $0x88] sm:$0xff]
        %v6920 = vld [vmem:[%s352 + $0x90] sm:$0xff]
        %v6921 = vld [vmem:[%s352 + $0x98] sm:$0xff]
        %v6922 = vld [vmem:[%s352 + $0xa0] sm:$0xff]
        %v6923 = vld [vmem:[%s352 + $0xa8] sm:$0xff]
        %v6924 = vld [vmem:[%s352 + $0xb0] sm:$0xff]
        %v6925 = vld [vmem:[%s352 + $0xb8] sm:$0xff]
        %v6926 = vld [vmem:[%s352 + $0xc0] sm:$0xff]
        %v6927 = vld [vmem:[%s352 + $0xc8] sm:$0xff]
        %v6928 = vld [vmem:[%s352 + $0xd0] sm:$0xff]
        %v6929 = vld [vmem:[%s352 + $0xd8] sm:$0xff]
        %v6930 = vld [vmem:[%s352 + $0xe0] sm:$0xff]
        %v6931 = vld [vmem:[%s352 + $0xe8] sm:$0xff]
        %v6932 = vld [vmem:[%s352 + $0xf0] sm:$0xff]
        %v6933 = vld [vmem:[%s352 + $0xf8] sm:$0xff]
        %v6934 = vld [vmem:[#allocation3 + $0x40] sm:$0xff]
        %v6935 = vld [vmem:[#allocation3 + $0x48] sm:$0xff]
        %v6936 = vld [vmem:[#allocation3 + $0x50] sm:$0xff]
        %v6937 = vld [vmem:[#allocation3 + $0x58] sm:$0xff]
        %v6938 = vld [vmem:[#allocation3 + $0x60] sm:$0xff]
        %v6939 = vld [vmem:[#allocation3 + $0x68] sm:$0xff]
        %v6940 = vld [vmem:[#allocation3 + $0x70] sm:$0xff]
        %v6941 = vld [vmem:[#allocation3 + $0x78] sm:$0xff]
        %v6942 = vld [vmem:[%s4693] sm:$0xf]
        %v6943 = vld [vmem:[%s4693 + $0x4] sm:$0xf]
        %v6944 = vld [vmem:[%s4693 + $0x8] sm:$0xf]
        %v6945 = vld [vmem:[%s4693 + $0xc] sm:$0xf]
        %v6946 = vld [vmem:[%s4693 + $0x10] sm:$0xf]
        %v6947 = vld [vmem:[%s4693 + $0x14] sm:$0xf]
        %v6948 = vld [vmem:[%s4693 + $0x18] sm:$0xf]
        %v6949 = vld [vmem:[%s4693 + $0x1c] sm:$0xf]
        %v6950 = vld [vmem:[%s4693 + $0x20] sm:$0xf]
        %v6951 = vld [vmem:[%s4693 + $0x24] sm:$0xf]
        %v6952 = vld [vmem:[%s4693 + $0x28] sm:$0xf]
        %v6953 = vld [vmem:[%s4693 + $0x2c] sm:$0xf]
        %v6954 = vld [vmem:[%s4693 + $0x30] sm:$0xf]
        %v6955 = vld [vmem:[%s4693 + $0x34] sm:$0xf]
        %v6956 = vld [vmem:[%s4693 + $0x38] sm:$0xf]
        %v6957 = vld [vmem:[%s4693 + $0x3c] sm:$0xf]
        %v6974 = vunpack.c.l.b16 %v6942
        %v6975 = vunpack.c.l.b16 %v6943
        %v6976 = vunpack.c.l.b16 %v6944
        %v6977 = vunpack.c.l.b16 %v6945
        %v6978 = vunpack.c.l.b16 %v6946
        %v6979 = vunpack.c.l.b16 %v6947
        %v6980 = vunpack.c.l.b16 %v6948
        %v6981 = vunpack.c.l.b16 %v6949
        %v6982 = vunpack.c.l.b16 %v6950
        %v6983 = vunpack.c.l.b16 %v6951
        %v6984 = vunpack.c.l.b16 %v6952
        %v6985 = vunpack.c.l.b16 %v6953
        %v6986 = vunpack.c.l.b16 %v6954
        %v6987 = vunpack.c.l.b16 %v6955
        %v6988 = vunpack.c.l.b16 %v6956
        %v6989 = vunpack.c.l.b16 %v6957
        %v6990 = vpack.c.b16 %v6975, %v6974
        %v6991 = vpack.c.b16 %v6977, %v6976
        %v6992 = vpack.c.b16 %v6979, %v6978
        %v6993 = vpack.c.b16 %v6981, %v6980
        %v6994 = vpack.c.b16 %v6983, %v6982
        %v6995 = vpack.c.b16 %v6985, %v6984
        %v6996 = vpack.c.b16 %v6987, %v6986
        %v6997 = vpack.c.b16 %v6989, %v6988
        %7006 = vmatprep.subr.bf16.mxu0 0
        %7007 = vmatpush1.bf16.msra.mxu0 %v6990
        %7008 = vmatprep.subr.bf16.mxu0 0
        %7009 = vmatpush1.bf16.msra.mxu0 %v6991
        %7010 = vmatprep.subr.bf16.mxu0 0
        %7011 = vmatpush1.bf16.msra.mxu0 %v6992
        %7012 = vmatprep.subr.bf16.mxu0 0
        %7013 = vmatpush1.bf16.msra.mxu0 %v6993
        %7014 = vmatprep.subr.bf16.mxu0 0
        %7015 = vmatpush1.bf16.msra.mxu0 %v6994
        %7016 = vmatprep.subr.bf16.mxu0 0
        %7017 = vmatpush1.bf16.msra.mxu0 %v6995
        %7018 = vmatprep.subr.bf16.mxu0 0
        %7019 = vmatpush1.bf16.msra.mxu0 %v6996
        %7020 = vmatprep.subr.bf16.mxu0 0
        %7021 = vmatpush1.bf16.msra.mxu0 %v6997
        %7022 = vmatprep.subr.bf16.mxu0 0
        %7023 = vmatpush1.bf16.msra.mxu0 0
        %7024 = vmatprep.subr.bf16.mxu0 0
        %7025 = vmatpush1.bf16.msra.mxu0 0
        %7026 = vmatprep.subr.bf16.mxu0 0
        %7027 = vmatpush1.bf16.msra.mxu0 0
        %7028 = vmatprep.subr.bf16.mxu0 0
        %7029 = vmatpush1.bf16.msra.mxu0 0
        %7030 = vmatprep.subr.bf16.mxu0 0
        %7031 = vmatpush1.bf16.msra.mxu0 0
        %7032 = vmatprep.subr.bf16.mxu0 0
        %7033 = vmatpush1.bf16.msra.mxu0 0
        %7034 = vmatprep.subr.bf16.mxu0 0
        %7035 = vmatpush1.bf16.msra.mxu0 0
        %7036 = vmatprep.subr.bf16.mxu0 0
        %7037 = vmatpush1.bf16.msra.mxu0 0
        %7038 = vmatprep.mubr.bf16.mxu0 0
        %7039 = vmatmul.mubr.bf16.gmra.mrb[0].mxu0 %v6934
        %v7040 = vpop.f32.mrb[0].mxu0
        %v7041 = vadd.f32 0.0, %v7040
        %v7042 = vpop.f32.mrb[0].mxu0
        %v7043 = vpop.f32.mrb[0].mxu0
        %v7044 = vadd.f32 0.0, %v7043
        %v7045 = vpop.f32.mrb[0].mxu0
        %7046 = vmatprep.mubr.bf16.mxu0 0
        %7047 = vmatmul.mubr.bf16.gmra.mrb[0].mxu0 %v6935
        %v7048 = vpop.f32.mrb[0].mxu0
        %v7049 = vadd.f32 0.0, %v7048
        %v7050 = vpop.f32.mrb[0].mxu0
        %v7051 = vpop.f32.mrb[0].mxu0
        %v7052 = vadd.f32 0.0, %v7051
        %v7053 = vpop.f32.mrb[0].mxu0
        %7054 = vmatprep.mubr.bf16.mxu0 0
        %7055 = vmatmul.mubr.bf16.gmra.mrb[0].mxu0 %v6936
        %v7056 = vpop.f32.mrb[0].mxu0
        %v7057 = vadd.f32 0.0, %v7056
        %v7058 = vpop.f32.mrb[0].mxu0
        %v7059 = vpop.f32.mrb[0].mxu0
        %v7060 = vadd.f32 0.0, %v7059
        %v7061 = vpop.f32.mrb[0].mxu0
        %7062 = vmatprep.mubr.bf16.mxu0 0
        %7063 = vmatmul.mubr.bf16.gmra.mrb[0].mxu0 %v6937
        %v7064 = vpop.f32.mrb[0].mxu0
        %v7065 = vadd.f32 0.0, %v7064
        %v7066 = vpop.f32.mrb[0].mxu0
        %v7067 = vpop.f32.mrb[0].mxu0
        %v7068 = vadd.f32 0.0, %v7067
        %v7069 = vpop.f32.mrb[0].mxu0
        %7070 = vmatprep.mubr.bf16.mxu0 0
        %7071 = vmatmul.mubr.bf16.gmra.mrb[0].mxu0 %v6938
        %v7072 = vpop.f32.mrb[0].mxu0
        %v7073 = vadd.f32 0.0, %v7072
        %v7074 = vpop.f32.mrb[0].mxu0
        %v7075 = vpop.f32.mrb[0].mxu0
        %v7076 = vadd.f32 0.0, %v7075
        %v7077 = vpop.f32.mrb[0].mxu0
        %7078 = vmatprep.mubr.bf16.mxu0 0
        %7079 = vmatmul.mubr.bf16.gmra.mrb[0].mxu0 %v6939
        %v7080 = vpop.f32.mrb[0].mxu0
        %v7081 = vadd.f32 0.0, %v7080
        %v7082 = vpop.f32.mrb[0].mxu0
        %v7083 = vpop.f32.mrb[0].mxu0
        %v7084 = vadd.f32 0.0, %v7083
        %v7085 = vpop.f32.mrb[0].mxu0
        %7086 = vmatprep.mubr.bf16.mxu0 0
        %7087 = vmatmul.mubr.bf16.gmra.mrb[0].mxu0 %v6940
        %v7088 = vpop.f32.mrb[0].mxu0
        %v7089 = vadd.f32 0.0, %v7088
        %v7090 = vpop.f32.mrb[0].mxu0
        %v7091 = vpop.f32.mrb[0].mxu0
        %v7092 = vadd.f32 0.0, %v7091
        %v7093 = vpop.f32.mrb[0].mxu0
        %7094 = vmatprep.mubr.bf16.mxu0 0
        %7095 = vmatmul.mubr.bf16.gmra.mrb[0].mxu0 %v6941
        %v7096 = vpop.f32.mrb[0].mxu0
        %v7097 = vadd.f32 0.0, %v7096
        %v7098 = vpop.f32.mrb[0].mxu0
        %v7099 = vpop.f32.mrb[0].mxu0
        %v7100 = vadd.f32 0.0, %v7099
        %v7101 = vpop.f32.mrb[0].mxu0
        %7102 = vdwg.mxu0
        %v7103 = vrot.slane %v7041, 7
        %v7104 = vrot.slane %v7044, 7
        %v7105 = vrot.slane %v7049, 7
        %v7106 = vrot.slane %v7052, 7
        %v7107 = vrot.slane %v7057, 7
        %v7108 = vrot.slane %v7060, 7
        %v7109 = vrot.slane %v7065, 7
        %v7110 = vrot.slane %v7068, 7
        %v7111 = vrot.slane %v7073, 7
        %v7112 = vrot.slane %v7076, 7
        %v7113 = vrot.slane %v7081, 7
        %v7114 = vrot.slane %v7084, 7
        %v7115 = vrot.slane %v7089, 7
        %v7116 = vrot.slane %v7092, 7
        %v7117 = vrot.slane %v7097, 7
        %v7118 = vrot.slane %v7100, 7
        %v7119 = vsel %vm556, %v7117, %v7118
        %v7120 = vsel %vm556, %v7116, %v7117
        %v7121 = vsel %vm556, %v7115, %v7116
        %v7122 = vsel %vm556, %v7114, %v7115
        %v7123 = vsel %vm556, %v7113, %v7114
        %v7124 = vsel %vm556, %v7112, %v7113
        %v7125 = vsel %vm556, %v7111, %v7112
        %v7126 = vsel %vm556, %v7110, %v7111
        %v7127 = vsel %vm556, %v7109, %v7110
        %v7128 = vsel %vm556, %v7108, %v7109
        %v7129 = vsel %vm556, %v7107, %v7108
        %v7130 = vsel %vm556, %v7106, %v7107
        %v7131 = vsel %vm556, %v7105, %v7106
        %v7132 = vsel %vm556, %v7104, %v7105
        %v7133 = vsel %vm556, %v7103, %v7104
        %v7134 = vsel %vm556, %v7118, %v7103
        %7136 = vset.pattern.permute.xlu0 0
        %7137 = vperm.xlu0 %7136, %v6902
        %v7138 = vpop.permute.xlu0 %7137
        %7141 = vset.pattern.permute.xlu0 0
        %7142 = vperm.xlu0 %7141, %v6903
        %v7143 = vpop.permute.xlu0 %7142
        %7146 = vset.pattern.permute.xlu0 0
        %7147 = vperm.xlu0 %7146, %v6904
        %v7148 = vpop.permute.xlu0 %7147
        %7151 = vset.pattern.permute.xlu0 0
        %7152 = vperm.xlu0 %7151, %v6905
        %v7153 = vpop.permute.xlu0 %7152
        %7156 = vset.pattern.permute.xlu0 0
        %7157 = vperm.xlu0 %7156, %v6906
        %v7158 = vpop.permute.xlu0 %7157
        %7161 = vset.pattern.permute.xlu0 0
        %7162 = vperm.xlu0 %7161, %v6907
        %v7163 = vpop.permute.xlu0 %7162
        %7166 = vset.pattern.permute.xlu0 0
        %7167 = vperm.xlu0 %7166, %v6908
        %v7168 = vpop.permute.xlu0 %7167
        %7171 = vset.pattern.permute.xlu0 0
        %7172 = vperm.xlu0 %7171, %v6909
        %v7173 = vpop.permute.xlu0 %7172
        %7176 = vset.pattern.permute.xlu0 0
        %7177 = vperm.xlu0 %7176, %v6910
        %v7178 = vpop.permute.xlu0 %7177
        %7181 = vset.pattern.permute.xlu0 0
        %7182 = vperm.xlu0 %7181, %v6911
        %v7183 = vpop.permute.xlu0 %7182
        %7186 = vset.pattern.permute.xlu0 0
        %7187 = vperm.xlu0 %7186, %v6912
        %v7188 = vpop.permute.xlu0 %7187
        %7191 = vset.pattern.permute.xlu0 0
        %7192 = vperm.xlu0 %7191, %v6913
        %v7193 = vpop.permute.xlu0 %7192
        %7196 = vset.pattern.permute.xlu0 0
        %7197 = vperm.xlu0 %7196, %v6914
        %v7198 = vpop.permute.xlu0 %7197
        %7201 = vset.pattern.permute.xlu0 0
        %7202 = vperm.xlu0 %7201, %v6915
        %v7203 = vpop.permute.xlu0 %7202
        %7206 = vset.pattern.permute.xlu0 0
        %7207 = vperm.xlu0 %7206, %v6916
        %v7208 = vpop.permute.xlu0 %7207
        %7211 = vset.pattern.permute.xlu0 0
        %7212 = vperm.xlu0 %7211, %v6917
        %v7213 = vpop.permute.xlu0 %7212
        %v7215 = vmul.f32 %v7134, %v7138
        %v7216 = vmul.f32 %v7133, %v7143
        %v7217 = vmul.f32 %v7132, %v7148
        %v7218 = vmul.f32 %v7131, %v7153
        %v7219 = vmul.f32 %v7130, %v7158
        %v7220 = vmul.f32 %v7129, %v7163
        %v7221 = vmul.f32 %v7128, %v7168
        %v7222 = vmul.f32 %v7127, %v7173
        %v7223 = vmul.f32 %v7126, %v7178
        %v7224 = vmul.f32 %v7125, %v7183
        %v7225 = vmul.f32 %v7124, %v7188
        %v7226 = vmul.f32 %v7123, %v7193
        %v7227 = vmul.f32 %v7122, %v7198
        %v7228 = vmul.f32 %v7121, %v7203
        %v7229 = vmul.f32 %v7120, %v7208
        %v7230 = vmul.f32 %v7119, %v7213
        %v7231 = vadd.f32 %v7215, 0.0
        %v7232 = vadd.f32 %v7216, 0.0
        %v7233 = vadd.f32 %v7217, 0.0
        %v7234 = vadd.f32 %v7218, 0.0
        %v7235 = vadd.f32 %v7219, 0.0
        %v7236 = vadd.f32 %v7220, 0.0
        %v7237 = vadd.f32 %v7221, 0.0
        %v7238 = vadd.f32 %v7222, 0.0
        %v7239 = vadd.f32 %v7223, 0.0
        %v7240 = vadd.f32 %v7224, 0.0
        %v7241 = vadd.f32 %v7225, 0.0
        %v7242 = vadd.f32 %v7226, 0.0
        %v7243 = vadd.f32 %v7227, 0.0
        %v7244 = vadd.f32 %v7228, 0.0
        %v7245 = vadd.f32 %v7229, 0.0
        %v7246 = vadd.f32 %v7230, 0.0
        %v7247 = vld [vmem:[%s4999] sm:$0xf]
        %v7248 = vld [vmem:[%s4999 + $0x4] sm:$0xf]
        %v7249 = vld [vmem:[%s4999 + $0x8] sm:$0xf]
        %v7250 = vld [vmem:[%s4999 + $0xc] sm:$0xf]
        %v7251 = vld [vmem:[%s4999 + $0x10] sm:$0xf]
        %v7252 = vld [vmem:[%s4999 + $0x14] sm:$0xf]
        %v7253 = vld [vmem:[%s4999 + $0x18] sm:$0xf]
        %v7254 = vld [vmem:[%s4999 + $0x1c] sm:$0xf]
        %v7255 = vld [vmem:[%s4999 + $0x20] sm:$0xf]
        %v7256 = vld [vmem:[%s4999 + $0x24] sm:$0xf]
        %v7257 = vld [vmem:[%s4999 + $0x28] sm:$0xf]
        %v7258 = vld [vmem:[%s4999 + $0x2c] sm:$0xf]
        %v7259 = vld [vmem:[%s4999 + $0x30] sm:$0xf]
        %v7260 = vld [vmem:[%s4999 + $0x34] sm:$0xf]
        %v7261 = vld [vmem:[%s4999 + $0x38] sm:$0xf]
        %v7262 = vld [vmem:[%s4999 + $0x3c] sm:$0xf]
        %v7279 = vunpack.c.l.b16 %v7247
        %v7280 = vunpack.c.l.b16 %v7248
        %v7281 = vunpack.c.l.b16 %v7249
        %v7282 = vunpack.c.l.b16 %v7250
        %v7283 = vunpack.c.l.b16 %v7251
        %v7284 = vunpack.c.l.b16 %v7252
        %v7285 = vunpack.c.l.b16 %v7253
        %v7286 = vunpack.c.l.b16 %v7254
        %v7287 = vunpack.c.l.b16 %v7255
        %v7288 = vunpack.c.l.b16 %v7256
        %v7289 = vunpack.c.l.b16 %v7257
        %v7290 = vunpack.c.l.b16 %v7258
        %v7291 = vunpack.c.l.b16 %v7259
        %v7292 = vunpack.c.l.b16 %v7260
        %v7293 = vunpack.c.l.b16 %v7261
        %v7294 = vunpack.c.l.b16 %v7262
        %v7295 = vpack.c.b16 %v7280, %v7279
        %v7296 = vpack.c.b16 %v7282, %v7281
        %v7297 = vpack.c.b16 %v7284, %v7283
        %v7298 = vpack.c.b16 %v7286, %v7285
        %v7299 = vpack.c.b16 %v7288, %v7287
        %v7300 = vpack.c.b16 %v7290, %v7289
        %v7301 = vpack.c.b16 %v7292, %v7291
        %v7302 = vpack.c.b16 %v7294, %v7293
        %7311 = vmatprep.subr.bf16.mxu0 0
        %7312 = vmatpush1.bf16.msra.mxu0 %v7295
        %7313 = vmatprep.subr.bf16.mxu0 0
        %7314 = vmatpush1.bf16.msra.mxu0 %v7296
        %7315 = vmatprep.subr.bf16.mxu0 0
        %7316 = vmatpush1.bf16.msra.mxu0 %v7297
        %7317 = vmatprep.subr.bf16.mxu0 0
        %7318 = vmatpush1.bf16.msra.mxu0 %v7298
        %7319 = vmatprep.subr.bf16.mxu0 0
        %7320 = vmatpush1.bf16.msra.mxu0 %v7299
        %7321 = vmatprep.subr.bf16.mxu0 0
        %7322 = vmatpush1.bf16.msra.mxu0 %v7300
        %7323 = vmatprep.subr.bf16.mxu0 0
        %7324 = vmatpush1.bf16.msra.mxu0 %v7301
        %7325 = vmatprep.subr.bf16.mxu0 0
        %7326 = vmatpush1.bf16.msra.mxu0 %v7302
        %7327 = vmatprep.subr.bf16.mxu0 0
        %7328 = vmatpush1.bf16.msra.mxu0 0
        %7329 = vmatprep.subr.bf16.mxu0 0
        %7330 = vmatpush1.bf16.msra.mxu0 0
        %7331 = vmatprep.subr.bf16.mxu0 0
        %7332 = vmatpush1.bf16.msra.mxu0 0
        %7333 = vmatprep.subr.bf16.mxu0 0
        %7334 = vmatpush1.bf16.msra.mxu0 0
        %7335 = vmatprep.subr.bf16.mxu0 0
        %7336 = vmatpush1.bf16.msra.mxu0 0
        %7337 = vmatprep.subr.bf16.mxu0 0
        %7338 = vmatpush1.bf16.msra.mxu0 0
        %7339 = vmatprep.subr.bf16.mxu0 0
        %7340 = vmatpush1.bf16.msra.mxu0 0
        %7341 = vmatprep.subr.bf16.mxu0 0
        %7342 = vmatpush1.bf16.msra.mxu0 0
        %7343 = vmatprep.mubr.bf16.mxu0 0
        %7344 = vmatmul.mubr.bf16.gmra.mrb[0].mxu0 %v6934
        %v7345 = vpop.f32.mrb[0].mxu0
        %v7346 = vadd.f32 0.0, %v7345
        %v7347 = vpop.f32.mrb[0].mxu0
        %v7348 = vpop.f32.mrb[0].mxu0
        %v7349 = vadd.f32 0.0, %v7348
        %v7350 = vpop.f32.mrb[0].mxu0
        %7351 = vmatprep.mubr.bf16.mxu0 0
        %7352 = vmatmul.mubr.bf16.gmra.mrb[0].mxu0 %v6935
        %v7353 = vpop.f32.mrb[0].mxu0
        %v7354 = vadd.f32 0.0, %v7353
        %v7355 = vpop.f32.mrb[0].mxu0
        %v7356 = vpop.f32.mrb[0].mxu0
        %v7357 = vadd.f32 0.0, %v7356
        %v7358 = vpop.f32.mrb[0].mxu0
        %7359 = vmatprep.mubr.bf16.mxu0 0
        %7360 = vmatmul.mubr.bf16.gmra.mrb[0].mxu0 %v6936
        %v7361 = vpop.f32.mrb[0].mxu0
        %v7362 = vadd.f32 0.0, %v7361
        %v7363 = vpop.f32.mrb[0].mxu0
        %v7364 = vpop.f32.mrb[0].mxu0
        %v7365 = vadd.f32 0.0, %v7364
        %v7366 = vpop.f32.mrb[0].mxu0
        %7367 = vmatprep.mubr.bf16.mxu0 0
        %7368 = vmatmul.mubr.bf16.gmra.mrb[0].mxu0 %v6937
        %v7369 = vpop.f32.mrb[0].mxu0
        %v7370 = vadd.f32 0.0, %v7369
        %v7371 = vpop.f32.mrb[0].mxu0
        %v7372 = vpop.f32.mrb[0].mxu0
        %v7373 = vadd.f32 0.0, %v7372
        %v7374 = vpop.f32.mrb[0].mxu0
        %7375 = vmatprep.mubr.bf16.mxu0 0
        %7376 = vmatmul.mubr.bf16.gmra.mrb[0].mxu0 %v6938
        %v7377 = vpop.f32.mrb[0].mxu0
        %v7378 = vadd.f32 0.0, %v7377
        %v7379 = vpop.f32.mrb[0].mxu0
        %v7380 = vpop.f32.mrb[0].mxu0
        %v7381 = vadd.f32 0.0, %v7380
        %v7382 = vpop.f32.mrb[0].mxu0
        %7383 = vmatprep.mubr.bf16.mxu0 0
        %7384 = vmatmul.mubr.bf16.gmra.mrb[0].mxu0 %v6939
        %v7385 = vpop.f32.mrb[0].mxu0
        %v7386 = vadd.f32 0.0, %v7385
        %v7387 = vpop.f32.mrb[0].mxu0
        %v7388 = vpop.f32.mrb[0].mxu0
        %v7389 = vadd.f32 0.0, %v7388
        %v7390 = vpop.f32.mrb[0].mxu0
        %7391 = vmatprep.mubr.bf16.mxu0 0
        %7392 = vmatmul.mubr.bf16.gmra.mrb[0].mxu0 %v6940
        %v7393 = vpop.f32.mrb[0].mxu0
        %v7394 = vadd.f32 0.0, %v7393
        %v7395 = vpop.f32.mrb[0].mxu0
        %v7396 = vpop.f32.mrb[0].mxu0
        %v7397 = vadd.f32 0.0, %v7396
        %v7398 = vpop.f32.mrb[0].mxu0
        %7399 = vmatprep.mubr.bf16.mxu0 0
        %7400 = vmatmul.mubr.bf16.gmra.mrb[0].mxu0 %v6941
        %v7401 = vpop.f32.mrb[0].mxu0
        %v7402 = vadd.f32 0.0, %v7401
        %v7403 = vpop.f32.mrb[0].mxu0
        %v7404 = vpop.f32.mrb[0].mxu0
        %v7405 = vadd.f32 0.0, %v7404
        %v7406 = vpop.f32.mrb[0].mxu0
        %7407 = vdwg.mxu0
        %v7408 = vadd.f32 %v7231, %v7346
        %v7409 = vadd.f32 %v7232, %v7349
        %v7410 = vadd.f32 %v7233, %v7354
        %v7411 = vadd.f32 %v7234, %v7357
        %v7412 = vadd.f32 %v7235, %v7362
        %v7413 = vadd.f32 %v7236, %v7365
        %v7414 = vadd.f32 %v7237, %v7370
        %v7415 = vadd.f32 %v7238, %v7373
        %v7416 = vadd.f32 %v7239, %v7378
        %v7417 = vadd.f32 %v7240, %v7381
        %v7418 = vadd.f32 %v7241, %v7386
        %v7419 = vadd.f32 %v7242, %v7389
        %v7420 = vadd.f32 %v7243, %v7394
        %v7421 = vadd.f32 %v7244, %v7397
        %v7422 = vadd.f32 %v7245, %v7402
        %v7423 = vadd.f32 %v7246, %v7405
        %v7424 = vld [vmem:[%s5177] sm:$0xf]
        %v7425 = vld [vmem:[%s5177 + $0x4] sm:$0xf]
        %v7426 = vld [vmem:[%s5177 + $0x8] sm:$0xf]
        %v7427 = vld [vmem:[%s5177 + $0xc] sm:$0xf]
        %v7428 = vld [vmem:[%s5177 + $0x10] sm:$0xf]
        %v7429 = vld [vmem:[%s5177 + $0x14] sm:$0xf]
        %v7430 = vld [vmem:[%s5177 + $0x18] sm:$0xf]
        %v7431 = vld [vmem:[%s5177 + $0x1c] sm:$0xf]
        %v7432 = vld [vmem:[%s5177 + $0x20] sm:$0xf]
        %v7433 = vld [vmem:[%s5177 + $0x24] sm:$0xf]
        %v7434 = vld [vmem:[%s5177 + $0x28] sm:$0xf]
        %v7435 = vld [vmem:[%s5177 + $0x2c] sm:$0xf]
        %v7436 = vld [vmem:[%s5177 + $0x30] sm:$0xf]
        %v7437 = vld [vmem:[%s5177 + $0x34] sm:$0xf]
        %v7438 = vld [vmem:[%s5177 + $0x38] sm:$0xf]
        %v7439 = vld [vmem:[%s5177 + $0x3c] sm:$0xf]
        %v7456 = vunpack.c.l.b16 %v7424
        %v7457 = vunpack.c.l.b16 %v7425
        %v7458 = vunpack.c.l.b16 %v7426
        %v7459 = vunpack.c.l.b16 %v7427
        %v7460 = vunpack.c.l.b16 %v7428
        %v7461 = vunpack.c.l.b16 %v7429
        %v7462 = vunpack.c.l.b16 %v7430
        %v7463 = vunpack.c.l.b16 %v7431
        %v7464 = vunpack.c.l.b16 %v7432
        %v7465 = vunpack.c.l.b16 %v7433
        %v7466 = vunpack.c.l.b16 %v7434
        %v7467 = vunpack.c.l.b16 %v7435
        %v7468 = vunpack.c.l.b16 %v7436
        %v7469 = vunpack.c.l.b16 %v7437
        %v7470 = vunpack.c.l.b16 %v7438
        %v7471 = vunpack.c.l.b16 %v7439
        %v7472 = vpack.c.b16 %v7457, %v7456
        %v7473 = vpack.c.b16 %v7459, %v7458
        %v7474 = vpack.c.b16 %v7461, %v7460
        %v7475 = vpack.c.b16 %v7463, %v7462
        %v7476 = vpack.c.b16 %v7465, %v7464
        %v7477 = vpack.c.b16 %v7467, %v7466
        %v7478 = vpack.c.b16 %v7469, %v7468
        %v7479 = vpack.c.b16 %v7471, %v7470
        %7488 = vmatprep.subr.bf16.mxu0 0
        %7489 = vmatpush1.bf16.msra.mxu0 %v7472
        %7490 = vmatprep.subr.bf16.mxu0 0
        %7491 = vmatpush1.bf16.msra.mxu0 %v7473
        %7492 = vmatprep.subr.bf16.mxu0 0
        %7493 = vmatpush1.bf16.msra.mxu0 %v7474
        %7494 = vmatprep.subr.bf16.mxu0 0
        %7495 = vmatpush1.bf16.msra.mxu0 %v7475
        %7496 = vmatprep.subr.bf16.mxu0 0
        %7497 = vmatpush1.bf16.msra.mxu0 %v7476
        %7498 = vmatprep.subr.bf16.mxu0 0
        %7499 = vmatpush1.bf16.msra.mxu0 %v7477
        %7500 = vmatprep.subr.bf16.mxu0 0
        %7501 = vmatpush1.bf16.msra.mxu0 %v7478
        %7502 = vmatprep.subr.bf16.mxu0 0
        %7503 = vmatpush1.bf16.msra.mxu0 %v7479
        %7504 = vmatprep.subr.bf16.mxu0 0
        %7505 = vmatpush1.bf16.msra.mxu0 0
        %7506 = vmatprep.subr.bf16.mxu0 0
        %7507 = vmatpush1.bf16.msra.mxu0 0
        %7508 = vmatprep.subr.bf16.mxu0 0
        %7509 = vmatpush1.bf16.msra.mxu0 0
        %7510 = vmatprep.subr.bf16.mxu0 0
        %7511 = vmatpush1.bf16.msra.mxu0 0
        %7512 = vmatprep.subr.bf16.mxu0 0
        %7513 = vmatpush1.bf16.msra.mxu0 0
        %7514 = vmatprep.subr.bf16.mxu0 0
        %7515 = vmatpush1.bf16.msra.mxu0 0
        %7516 = vmatprep.subr.bf16.mxu0 0
        %7517 = vmatpush1.bf16.msra.mxu0 0
        %7518 = vmatprep.subr.bf16.mxu0 0
        %7519 = vmatpush1.bf16.msra.mxu0 0
        %7520 = vmatprep.mubr.bf16.mxu0 0
        %7521 = vmatmul.mubr.bf16.gmra.mrb[0].mxu0 %v6934
        %v7522 = vpop.f32.mrb[0].mxu0
        %v7523 = vadd.f32 0.0, %v7522
        %v7524 = vpop.f32.mrb[0].mxu0
        %v7525 = vpop.f32.mrb[0].mxu0
        %v7526 = vadd.f32 0.0, %v7525
        %v7527 = vpop.f32.mrb[0].mxu0
        %7528 = vmatprep.mubr.bf16.mxu0 0
        %7529 = vmatmul.mubr.bf16.gmra.mrb[0].mxu0 %v6935
        %v7530 = vpop.f32.mrb[0].mxu0
        %v7531 = vadd.f32 0.0, %v7530
        %v7532 = vpop.f32.mrb[0].mxu0
        %v7533 = vpop.f32.mrb[0].mxu0
        %v7534 = vadd.f32 0.0, %v7533
        %v7535 = vpop.f32.mrb[0].mxu0
        %7536 = vmatprep.mubr.bf16.mxu0 0
        %7537 = vmatmul.mubr.bf16.gmra.mrb[0].mxu0 %v6936
        %v7538 = vpop.f32.mrb[0].mxu0
        %v7539 = vadd.f32 0.0, %v7538
        %v7540 = vpop.f32.mrb[0].mxu0
        %v7541 = vpop.f32.mrb[0].mxu0
        %v7542 = vadd.f32 0.0, %v7541
        %v7543 = vpop.f32.mrb[0].mxu0
        %7544 = vmatprep.mubr.bf16.mxu0 0
        %7545 = vmatmul.mubr.bf16.gmra.mrb[0].mxu0 %v6937
        %v7546 = vpop.f32.mrb[0].mxu0
        %v7547 = vadd.f32 0.0, %v7546
        %v7548 = vpop.f32.mrb[0].mxu0
        %v7549 = vpop.f32.mrb[0].mxu0
        %v7550 = vadd.f32 0.0, %v7549
        %v7551 = vpop.f32.mrb[0].mxu0
        %7552 = vmatprep.mubr.bf16.mxu0 0
        %7553 = vmatmul.mubr.bf16.gmra.mrb[0].mxu0 %v6938
        %v7554 = vpop.f32.mrb[0].mxu0
        %v7555 = vadd.f32 0.0, %v7554
        %v7556 = vpop.f32.mrb[0].mxu0
        %v7557 = vpop.f32.mrb[0].mxu0
        %v7558 = vadd.f32 0.0, %v7557
        %v7559 = vpop.f32.mrb[0].mxu0
        %7560 = vmatprep.mubr.bf16.mxu0 0
        %7561 = vmatmul.mubr.bf16.gmra.mrb[0].mxu0 %v6939
        %v7562 = vpop.f32.mrb[0].mxu0
        %v7563 = vadd.f32 0.0, %v7562
        %v7564 = vpop.f32.mrb[0].mxu0
        %v7565 = vpop.f32.mrb[0].mxu0
        %v7566 = vadd.f32 0.0, %v7565
        %v7567 = vpop.f32.mrb[0].mxu0
        %7568 = vmatprep.mubr.bf16.mxu0 0
        %7569 = vmatmul.mubr.bf16.gmra.mrb[0].mxu0 %v6940
        %v7570 = vpop.f32.mrb[0].mxu0
        %v7571 = vadd.f32 0.0, %v7570
        %v7572 = vpop.f32.mrb[0].mxu0
        %v7573 = vpop.f32.mrb[0].mxu0
        %v7574 = vadd.f32 0.0, %v7573
        %v7575 = vpop.f32.mrb[0].mxu0
        %7576 = vmatprep.mubr.bf16.mxu0 0
        %7577 = vmatmul.mubr.bf16.gmra.mrb[0].mxu0 %v6941
        %v7578 = vpop.f32.mrb[0].mxu0
        %v7579 = vadd.f32 0.0, %v7578
        %v7580 = vpop.f32.mrb[0].mxu0
        %v7581 = vpop.f32.mrb[0].mxu0
        %v7582 = vadd.f32 0.0, %v7581
        %v7583 = vpop.f32.mrb[0].mxu0
        %7584 = vdwg.mxu0
        %v7585 = vrot.slane %v7523, 1
        %v7586 = vrot.slane %v7526, 1
        %v7587 = vrot.slane %v7531, 1
        %v7588 = vrot.slane %v7534, 1
        %v7589 = vrot.slane %v7539, 1
        %v7590 = vrot.slane %v7542, 1
        %v7591 = vrot.slane %v7547, 1
        %v7592 = vrot.slane %v7550, 1
        %v7593 = vrot.slane %v7555, 1
        %v7594 = vrot.slane %v7558, 1
        %v7595 = vrot.slane %v7563, 1
        %v7596 = vrot.slane %v7566, 1
        %v7597 = vrot.slane %v7571, 1
        %v7598 = vrot.slane %v7574, 1
        %v7599 = vrot.slane %v7579, 1
        %v7600 = vrot.slane %v7582, 1
        %v7601 = vsel %vm1041, %v7599, %v7600
        %v7602 = vsel %vm1041, %v7598, %v7599
        %v7603 = vsel %vm1041, %v7597, %v7598
        %v7604 = vsel %vm1041, %v7596, %v7597
        %v7605 = vsel %vm1041, %v7595, %v7596
        %v7606 = vsel %vm1041, %v7594, %v7595
        %v7607 = vsel %vm1041, %v7593, %v7594
        %v7608 = vsel %vm1041, %v7592, %v7593
        %v7609 = vsel %vm1041, %v7591, %v7592
        %v7610 = vsel %vm1041, %v7590, %v7591
        %v7611 = vsel %vm1041, %v7589, %v7590
        %v7612 = vsel %vm1041, %v7588, %v7589
        %v7613 = vsel %vm1041, %v7587, %v7588
        %v7614 = vsel %vm1041, %v7586, %v7587
        %v7615 = vsel %vm1041, %v7585, %v7586
        %v7616 = vsel %vm1041, %v7600, %v7585
        %7618 = vset.pattern.permute.xlu0 0
        %7619 = vperm.xlu0 %7618, %v6918
        %v7620 = vpop.permute.xlu0 %7619
        %7623 = vset.pattern.permute.xlu0 0
        %7624 = vperm.xlu0 %7623, %v6919
        %v7625 = vpop.permute.xlu0 %7624
        %7628 = vset.pattern.permute.xlu0 0
        %7629 = vperm.xlu0 %7628, %v6920
        %v7630 = vpop.permute.xlu0 %7629
        %7633 = vset.pattern.permute.xlu0 0
        %7634 = vperm.xlu0 %7633, %v6921
        %v7635 = vpop.permute.xlu0 %7634
        %7638 = vset.pattern.permute.xlu0 0
        %7639 = vperm.xlu0 %7638, %v6922
        %v7640 = vpop.permute.xlu0 %7639
        %7643 = vset.pattern.permute.xlu0 0
        %7644 = vperm.xlu0 %7643, %v6923
        %v7645 = vpop.permute.xlu0 %7644
        %7648 = vset.pattern.permute.xlu0 0
        %7649 = vperm.xlu0 %7648, %v6924
        %v7650 = vpop.permute.xlu0 %7649
        %7653 = vset.pattern.permute.xlu0 0
        %7654 = vperm.xlu0 %7653, %v6925
        %v7655 = vpop.permute.xlu0 %7654
        %7658 = vset.pattern.permute.xlu0 0
        %7659 = vperm.xlu0 %7658, %v6926
        %v7660 = vpop.permute.xlu0 %7659
        %7663 = vset.pattern.permute.xlu0 0
        %7664 = vperm.xlu0 %7663, %v6927
        %v7665 = vpop.permute.xlu0 %7664
        %7668 = vset.pattern.permute.xlu0 0
        %7669 = vperm.xlu0 %7668, %v6928
        %v7670 = vpop.permute.xlu0 %7669
        %7673 = vset.pattern.permute.xlu0 0
        %7674 = vperm.xlu0 %7673, %v6929
        %v7675 = vpop.permute.xlu0 %7674
        %7678 = vset.pattern.permute.xlu0 0
        %7679 = vperm.xlu0 %7678, %v6930
        %v7680 = vpop.permute.xlu0 %7679
        %7683 = vset.pattern.permute.xlu0 0
        %7684 = vperm.xlu0 %7683, %v6931
        %v7685 = vpop.permute.xlu0 %7684
        %7688 = vset.pattern.permute.xlu0 0
        %7689 = vperm.xlu0 %7688, %v6932
        %v7690 = vpop.permute.xlu0 %7689
        %7693 = vset.pattern.permute.xlu0 0
        %7694 = vperm.xlu0 %7693, %v6933
        %v7695 = vpop.permute.xlu0 %7694
        %v7697 = vmul.f32 %v7615, %v7620
        %v7698 = vmul.f32 %v7614, %v7625
        %v7699 = vmul.f32 %v7613, %v7630
        %v7700 = vmul.f32 %v7612, %v7635
        %v7701 = vmul.f32 %v7611, %v7640
        %v7702 = vmul.f32 %v7610, %v7645
        %v7703 = vmul.f32 %v7609, %v7650
        %v7704 = vmul.f32 %v7608, %v7655
        %v7705 = vmul.f32 %v7607, %v7660
        %v7706 = vmul.f32 %v7606, %v7665
        %v7707 = vmul.f32 %v7605, %v7670
        %v7708 = vmul.f32 %v7604, %v7675
        %v7709 = vmul.f32 %v7603, %v7680
        %v7710 = vmul.f32 %v7602, %v7685
        %v7711 = vmul.f32 %v7601, %v7690
        %v7712 = vmul.f32 %v7616, %v7695
        %v7713 = vadd.f32 %v7408, %v7697
        %v7714 = vadd.f32 %v7409, %v7698
        %v7715 = vadd.f32 %v7410, %v7699
        %v7716 = vadd.f32 %v7411, %v7700
        %v7717 = vadd.f32 %v7412, %v7701
        %v7718 = vadd.f32 %v7413, %v7702
        %v7719 = vadd.f32 %v7414, %v7703
        %v7720 = vadd.f32 %v7415, %v7704
        %v7721 = vadd.f32 %v7416, %v7705
        %v7722 = vadd.f32 %v7417, %v7706
        %v7723 = vadd.f32 %v7418, %v7707
        %v7724 = vadd.f32 %v7419, %v7708
        %v7725 = vadd.f32 %v7420, %v7709
        %v7726 = vadd.f32 %v7421, %v7710
        %v7727 = vadd.f32 %v7422, %v7711
        %v7728 = vadd.f32 %v7423, %v7712
        %v7729 = vld [vmem:[#allocation3 + $0x48] sm:$0xff]
        %v7730 = vld [vmem:[#allocation3 + $0x50] sm:$0xff]
        %v7731 = vld [vmem:[#allocation3 + $0x58] sm:$0xff]
        %v7732 = vld [vmem:[#allocation3 + $0x60] sm:$0xff]
        %v7733 = vld [vmem:[#allocation3 + $0x68] sm:$0xff]
        %v7734 = vld [vmem:[#allocation3 + $0x70] sm:$0xff]
        %v7735 = vld [vmem:[#allocation3 + $0x78] sm:$0xff]
        %v7736 = vld [vmem:[#allocation3 + $0x80] sm:$0xff]
        %v7737 = vld [vmem:[%s5491] sm:$0xf]
        %v7738 = vld [vmem:[%s5491 + $0x4] sm:$0xf]
        %v7739 = vld [vmem:[%s5491 + $0x8] sm:$0xf]
        %v7740 = vld [vmem:[%s5491 + $0xc] sm:$0xf]
        %v7741 = vld [vmem:[%s5491 + $0x10] sm:$0xf]
        %v7742 = vld [vmem:[%s5491 + $0x14] sm:$0xf]
        %v7743 = vld [vmem:[%s5491 + $0x18] sm:$0xf]
        %v7744 = vld [vmem:[%s5491 + $0x1c] sm:$0xf]
        %v7745 = vld [vmem:[%s5491 + $0x20] sm:$0xf]
        %v7746 = vld [vmem:[%s5491 + $0x24] sm:$0xf]
        %v7747 = vld [vmem:[%s5491 + $0x28] sm:$0xf]
        %v7748 = vld [vmem:[%s5491 + $0x2c] sm:$0xf]
        %v7749 = vld [vmem:[%s5491 + $0x30] sm:$0xf]
        %v7750 = vld [vmem:[%s5491 + $0x34] sm:$0xf]
        %v7751 = vld [vmem:[%s5491 + $0x38] sm:$0xf]
        %v7752 = vld [vmem:[%s5491 + $0x3c] sm:$0xf]
        %v7769 = vunpack.c.l.b16 %v7737
        %v7770 = vunpack.c.l.b16 %v7738
        %v7771 = vunpack.c.l.b16 %v7739
        %v7772 = vunpack.c.l.b16 %v7740
        %v7773 = vunpack.c.l.b16 %v7741
        %v7774 = vunpack.c.l.b16 %v7742
        %v7775 = vunpack.c.l.b16 %v7743
        %v7776 = vunpack.c.l.b16 %v7744
        %v7777 = vunpack.c.l.b16 %v7745
        %v7778 = vunpack.c.l.b16 %v7746
        %v7779 = vunpack.c.l.b16 %v7747
        %v7780 = vunpack.c.l.b16 %v7748
        %v7781 = vunpack.c.l.b16 %v7749
        %v7782 = vunpack.c.l.b16 %v7750
        %v7783 = vunpack.c.l.b16 %v7751
        %v7784 = vunpack.c.l.b16 %v7752
        %v7785 = vpack.c.b16 %v7770, %v7769
        %v7786 = vpack.c.b16 %v7772, %v7771
        %v7787 = vpack.c.b16 %v7774, %v7773
        %v7788 = vpack.c.b16 %v7776, %v7775
        %v7789 = vpack.c.b16 %v7778, %v7777
        %v7790 = vpack.c.b16 %v7780, %v7779
        %v7791 = vpack.c.b16 %v7782, %v7781
        %v7792 = vpack.c.b16 %v7784, %v7783
        %7801 = vmatprep.subr.bf16.mxu0 0
        %7802 = vmatpush1.bf16.msra.mxu0 %v7785
        %7803 = vmatprep.subr.bf16.mxu0 0
        %7804 = vmatpush1.bf16.msra.mxu0 %v7786
        %7805 = vmatprep.subr.bf16.mxu0 0
        %7806 = vmatpush1.bf16.msra.mxu0 %v7787
        %7807 = vmatprep.subr.bf16.mxu0 0
        %7808 = vmatpush1.bf16.msra.mxu0 %v7788
        %7809 = vmatprep.subr.bf16.mxu0 0
        %7810 = vmatpush1.bf16.msra.mxu0 %v7789
        %7811 = vmatprep.subr.bf16.mxu0 0
        %7812 = vmatpush1.bf16.msra.mxu0 %v7790
        %7813 = vmatprep.subr.bf16.mxu0 0
        %7814 = vmatpush1.bf16.msra.mxu0 %v7791
        %7815 = vmatprep.subr.bf16.mxu0 0
        %7816 = vmatpush1.bf16.msra.mxu0 %v7792
        %7817 = vmatprep.subr.bf16.mxu0 0
        %7818 = vmatpush1.bf16.msra.mxu0 0
        %7819 = vmatprep.subr.bf16.mxu0 0
        %7820 = vmatpush1.bf16.msra.mxu0 0
        %7821 = vmatprep.subr.bf16.mxu0 0
        %7822 = vmatpush1.bf16.msra.mxu0 0
        %7823 = vmatprep.subr.bf16.mxu0 0
        %7824 = vmatpush1.bf16.msra.mxu0 0
        %7825 = vmatprep.subr.bf16.mxu0 0
        %7826 = vmatpush1.bf16.msra.mxu0 0
        %7827 = vmatprep.subr.bf16.mxu0 0
        %7828 = vmatpush1.bf16.msra.mxu0 0
        %7829 = vmatprep.subr.bf16.mxu0 0
        %7830 = vmatpush1.bf16.msra.mxu0 0
        %7831 = vmatprep.subr.bf16.mxu0 0
        %7832 = vmatpush1.bf16.msra.mxu0 0
        %7833 = vmatprep.mubr.bf16.mxu0 0
        %7834 = vmatmul.mubr.bf16.gmra.mrb[0].mxu0 %v7729
        %v7835 = vpop.f32.mrb[0].mxu0
        %v7836 = vadd.f32 0.0, %v7835
        %v7837 = vpop.f32.mrb[0].mxu0
        %v7838 = vpop.f32.mrb[0].mxu0
        %v7839 = vadd.f32 0.0, %v7838
        %v7840 = vpop.f32.mrb[0].mxu0
        %7841 = vmatprep.mubr.bf16.mxu0 0
        %7842 = vmatmul.mubr.bf16.gmra.mrb[0].mxu0 %v7730
        %v7843 = vpop.f32.mrb[0].mxu0
        %v7844 = vadd.f32 0.0, %v7843
        %v7845 = vpop.f32.mrb[0].mxu0
        %v7846 = vpop.f32.mrb[0].mxu0
        %v7847 = vadd.f32 0.0, %v7846
        %v7848 = vpop.f32.mrb[0].mxu0
        %7849 = vmatprep.mubr.bf16.mxu0 0
        %7850 = vmatmul.mubr.bf16.gmra.mrb[0].mxu0 %v7731
        %v7851 = vpop.f32.mrb[0].mxu0
        %v7852 = vadd.f32 0.0, %v7851
        %v7853 = vpop.f32.mrb[0].mxu0
        %v7854 = vpop.f32.mrb[0].mxu0
        %v7855 = vadd.f32 0.0, %v7854
        %v7856 = vpop.f32.mrb[0].mxu0
        %7857 = vmatprep.mubr.bf16.mxu0 0
        %7858 = vmatmul.mubr.bf16.gmra.mrb[0].mxu0 %v7732
        %v7859 = vpop.f32.mrb[0].mxu0
        %v7860 = vadd.f32 0.0, %v7859
        %v7861 = vpop.f32.mrb[0].mxu0
        %v7862 = vpop.f32.mrb[0].mxu0
        %v7863 = vadd.f32 0.0, %v7862
        %v7864 = vpop.f32.mrb[0].mxu0
        %7865 = vmatprep.mubr.bf16.mxu0 0
        %7866 = vmatmul.mubr.bf16.gmra.mrb[0].mxu0 %v7733
        %v7867 = vpop.f32.mrb[0].mxu0
        %v7868 = vadd.f32 0.0, %v7867
        %v7869 = vpop.f32.mrb[0].mxu0
        %v7870 = vpop.f32.mrb[0].mxu0
        %v7871 = vadd.f32 0.0, %v7870
        %v7872 = vpop.f32.mrb[0].mxu0
        %7873 = vmatprep.mubr.bf16.mxu0 0
        %7874 = vmatmul.mubr.bf16.gmra.mrb[0].mxu0 %v7734
        %v7875 = vpop.f32.mrb[0].mxu0
        %v7876 = vadd.f32 0.0, %v7875
        %v7877 = vpop.f32.mrb[0].mxu0
        %v7878 = vpop.f32.mrb[0].mxu0
        %v7879 = vadd.f32 0.0, %v7878
        %v7880 = vpop.f32.mrb[0].mxu0
        %7881 = vmatprep.mubr.bf16.mxu0 0
        %7882 = vmatmul.mubr.bf16.gmra.mrb[0].mxu0 %v7735
        %v7883 = vpop.f32.mrb[0].mxu0
        %v7884 = vadd.f32 0.0, %v7883
        %v7885 = vpop.f32.mrb[0].mxu0
        %v7886 = vpop.f32.mrb[0].mxu0
        %v7887 = vadd.f32 0.0, %v7886
        %v7888 = vpop.f32.mrb[0].mxu0
        %7889 = vmatprep.mubr.bf16.mxu0 0
        %7890 = vmatmul.mubr.bf16.gmra.mrb[0].mxu0 %v7736
        %v7891 = vpop.f32.mrb[0].mxu0
        %v7892 = vadd.f32 0.0, %v7891
        %v7893 = vpop.f32.mrb[0].mxu0
        %v7894 = vpop.f32.mrb[0].mxu0
        %v7895 = vadd.f32 0.0, %v7894
        %v7896 = vpop.f32.mrb[0].mxu0
        %7897 = vdwg.mxu0
        %v7898 = vrot.slane %v7836, 7
        %v7899 = vrot.slane %v7839, 7
        %v7900 = vrot.slane %v7844, 7
        %v7901 = vrot.slane %v7847, 7
        %v7902 = vrot.slane %v7852, 7
        %v7903 = vrot.slane %v7855, 7
        %v7904 = vrot.slane %v7860, 7
        %v7905 = vrot.slane %v7863, 7
        %v7906 = vrot.slane %v7868, 7
        %v7907 = vrot.slane %v7871, 7
        %v7908 = vrot.slane %v7876, 7
        %v7909 = vrot.slane %v7879, 7
        %v7910 = vrot.slane %v7884, 7
        %v7911 = vrot.slane %v7887, 7
        %v7912 = vrot.slane %v7892, 7
        %v7913 = vrot.slane %v7895, 7
        %v7914 = vsel %vm556, %v7912, %v7913
        %v7915 = vsel %vm556, %v7911, %v7912
        %v7916 = vsel %vm556, %v7910, %v7911
        %v7917 = vsel %vm556, %v7909, %v7910
        %v7918 = vsel %vm556, %v7908, %v7909
        %v7919 = vsel %vm556, %v7907, %v7908
        %v7920 = vsel %vm556, %v7906, %v7907
        %v7921 = vsel %vm556, %v7905, %v7906
        %v7922 = vsel %vm556, %v7904, %v7905
        %v7923 = vsel %vm556, %v7903, %v7904
        %v7924 = vsel %vm556, %v7902, %v7903
        %v7925 = vsel %vm556, %v7901, %v7902
        %v7926 = vsel %vm556, %v7900, %v7901
        %v7927 = vsel %vm556, %v7899, %v7900
        %v7928 = vsel %vm556, %v7898, %v7899
        %v7929 = vsel %vm556, %v7913, %v7898
        %v7930 = vmul.f32 %v7929, %v7138
        %v7931 = vmul.f32 %v7928, %v7143
        %v7932 = vmul.f32 %v7927, %v7148
        %v7933 = vmul.f32 %v7926, %v7153
        %v7934 = vmul.f32 %v7925, %v7158
        %v7935 = vmul.f32 %v7924, %v7163
        %v7936 = vmul.f32 %v7923, %v7168
        %v7937 = vmul.f32 %v7922, %v7173
        %v7938 = vmul.f32 %v7921, %v7178
        %v7939 = vmul.f32 %v7920, %v7183
        %v7940 = vmul.f32 %v7919, %v7188
        %v7941 = vmul.f32 %v7918, %v7193
        %v7942 = vmul.f32 %v7917, %v7198
        %v7943 = vmul.f32 %v7916, %v7203
        %v7944 = vmul.f32 %v7915, %v7208
        %v7945 = vmul.f32 %v7914, %v7213
        %v7946 = vadd.f32 %v7713, %v7930
        %v7947 = vadd.f32 %v7714, %v7931
        %v7948 = vadd.f32 %v7715, %v7932
        %v7949 = vadd.f32 %v7716, %v7933
        %v7950 = vadd.f32 %v7717, %v7934
        %v7951 = vadd.f32 %v7718, %v7935
        %v7952 = vadd.f32 %v7719, %v7936
        %v7953 = vadd.f32 %v7720, %v7937
        %v7954 = vadd.f32 %v7721, %v7938
        %v7955 = vadd.f32 %v7722, %v7939
        %v7956 = vadd.f32 %v7723, %v7940
        %v7957 = vadd.f32 %v7724, %v7941
        %v7958 = vadd.f32 %v7725, %v7942
        %v7959 = vadd.f32 %v7726, %v7943
        %v7960 = vadd.f32 %v7727, %v7944
        %v7961 = vadd.f32 %v7728, %v7945
        %v7962 = vld [vmem:[%s5717] sm:$0xf]
        %v7963 = vld [vmem:[%s5717 + $0x4] sm:$0xf]
        %v7964 = vld [vmem:[%s5717 + $0x8] sm:$0xf]
        %v7965 = vld [vmem:[%s5717 + $0xc] sm:$0xf]
        %v7966 = vld [vmem:[%s5717 + $0x10] sm:$0xf]
        %v7967 = vld [vmem:[%s5717 + $0x14] sm:$0xf]
        %v7968 = vld [vmem:[%s5717 + $0x18] sm:$0xf]
        %v7969 = vld [vmem:[%s5717 + $0x1c] sm:$0xf]
        %v7970 = vld [vmem:[%s5717 + $0x20] sm:$0xf]
        %v7971 = vld [vmem:[%s5717 + $0x24] sm:$0xf]
        %v7972 = vld [vmem:[%s5717 + $0x28] sm:$0xf]
        %v7973 = vld [vmem:[%s5717 + $0x2c] sm:$0xf]
        %v7974 = vld [vmem:[%s5717 + $0x30] sm:$0xf]
        %v7975 = vld [vmem:[%s5717 + $0x34] sm:$0xf]
        %v7976 = vld [vmem:[%s5717 + $0x38] sm:$0xf]
        %v7977 = vld [vmem:[%s5717 + $0x3c] sm:$0xf]
        %v7994 = vunpack.c.l.b16 %v7962
        %v7995 = vunpack.c.l.b16 %v7963
        %v7996 = vunpack.c.l.b16 %v7964
        %v7997 = vunpack.c.l.b16 %v7965
        %v7998 = vunpack.c.l.b16 %v7966
        %v7999 = vunpack.c.l.b16 %v7967
        %v8000 = vunpack.c.l.b16 %v7968
        %v8001 = vunpack.c.l.b16 %v7969
        %v8002 = vunpack.c.l.b16 %v7970
        %v8003 = vunpack.c.l.b16 %v7971
        %v8004 = vunpack.c.l.b16 %v7972
        %v8005 = vunpack.c.l.b16 %v7973
        %v8006 = vunpack.c.l.b16 %v7974
        %v8007 = vunpack.c.l.b16 %v7975
        %v8008 = vunpack.c.l.b16 %v7976
        %v8009 = vunpack.c.l.b16 %v7977
        %v8010 = vpack.c.b16 %v7995, %v7994
        %v8011 = vpack.c.b16 %v7997, %v7996
        %v8012 = vpack.c.b16 %v7999, %v7998
        %v8013 = vpack.c.b16 %v8001, %v8000
        %v8014 = vpack.c.b16 %v8003, %v8002
        %v8015 = vpack.c.b16 %v8005, %v8004
        %v8016 = vpack.c.b16 %v8007, %v8006
        %v8017 = vpack.c.b16 %v8009, %v8008
        %8026 = vmatprep.subr.bf16.mxu0 0
        %8027 = vmatpush1.bf16.msra.mxu0 %v8010
        %8028 = vmatprep.subr.bf16.mxu0 0
        %8029 = vmatpush1.bf16.msra.mxu0 %v8011
        %8030 = vmatprep.subr.bf16.mxu0 0
        %8031 = vmatpush1.bf16.msra.mxu0 %v8012
        %8032 = vmatprep.subr.bf16.mxu0 0
        %8033 = vmatpush1.bf16.msra.mxu0 %v8013
        %8034 = vmatprep.subr.bf16.mxu0 0
        %8035 = vmatpush1.bf16.msra.mxu0 %v8014
        %8036 = vmatprep.subr.bf16.mxu0 0
        %8037 = vmatpush1.bf16.msra.mxu0 %v8015
        %8038 = vmatprep.subr.bf16.mxu0 0
        %8039 = vmatpush1.bf16.msra.mxu0 %v8016
        %8040 = vmatprep.subr.bf16.mxu0 0
        %8041 = vmatpush1.bf16.msra.mxu0 %v8017
        %8042 = vmatprep.subr.bf16.mxu0 0
        %8043 = vmatpush1.bf16.msra.mxu0 0
        %8044 = vmatprep.subr.bf16.mxu0 0
        %8045 = vmatpush1.bf16.msra.mxu0 0
        %8046 = vmatprep.subr.bf16.mxu0 0
        %8047 = vmatpush1.bf16.msra.mxu0 0
        %8048 = vmatprep.subr.bf16.mxu0 0
        %8049 = vmatpush1.bf16.msra.mxu0 0
        %8050 = vmatprep.subr.bf16.mxu0 0
        %8051 = vmatpush1.bf16.msra.mxu0 0
        %8052 = vmatprep.subr.bf16.mxu0 0
        %8053 = vmatpush1.bf16.msra.mxu0 0
        %8054 = vmatprep.subr.bf16.mxu0 0
        %8055 = vmatpush1.bf16.msra.mxu0 0
        %8056 = vmatprep.subr.bf16.mxu0 0
        %8057 = vmatpush1.bf16.msra.mxu0 0
        %8058 = vmatprep.mubr.bf16.mxu0 0
        %8059 = vmatmul.mubr.bf16.gmra.mrb[0].mxu0 %v7729
        %v8060 = vpop.f32.mrb[0].mxu0
        %v8061 = vadd.f32 0.0, %v8060
        %v8062 = vpop.f32.mrb[0].mxu0
        %v8063 = vpop.f32.mrb[0].mxu0
        %v8064 = vadd.f32 0.0, %v8063
        %v8065 = vpop.f32.mrb[0].mxu0
        %8066 = vmatprep.mubr.bf16.mxu0 0
        %8067 = vmatmul.mubr.bf16.gmra.mrb[0].mxu0 %v7730
        %v8068 = vpop.f32.mrb[0].mxu0
        %v8069 = vadd.f32 0.0, %v8068
        %v8070 = vpop.f32.mrb[0].mxu0
        %v8071 = vpop.f32.mrb[0].mxu0
        %v8072 = vadd.f32 0.0, %v8071
        %v8073 = vpop.f32.mrb[0].mxu0
        %8074 = vmatprep.mubr.bf16.mxu0 0
        %8075 = vmatmul.mubr.bf16.gmra.mrb[0].mxu0 %v7731
        %v8076 = vpop.f32.mrb[0].mxu0
        %v8077 = vadd.f32 0.0, %v8076
        %v8078 = vpop.f32.mrb[0].mxu0
        %v8079 = vpop.f32.mrb[0].mxu0
        %v8080 = vadd.f32 0.0, %v8079
        %v8081 = vpop.f32.mrb[0].mxu0
        %8082 = vmatprep.mubr.bf16.mxu0 0
        %8083 = vmatmul.mubr.bf16.gmra.mrb[0].mxu0 %v7732
        %v8084 = vpop.f32.mrb[0].mxu0
        %v8085 = vadd.f32 0.0, %v8084
        %v8086 = vpop.f32.mrb[0].mxu0
        %v8087 = vpop.f32.mrb[0].mxu0
        %v8088 = vadd.f32 0.0, %v8087
        %v8089 = vpop.f32.mrb[0].mxu0
        %8090 = vmatprep.mubr.bf16.mxu0 0
        %8091 = vmatmul.mubr.bf16.gmra.mrb[0].mxu0 %v7733
        %v8092 = vpop.f32.mrb[0].mxu0
        %v8093 = vadd.f32 0.0, %v8092
        %v8094 = vpop.f32.mrb[0].mxu0
        %v8095 = vpop.f32.mrb[0].mxu0
        %v8096 = vadd.f32 0.0, %v8095
        %v8097 = vpop.f32.mrb[0].mxu0
        %8098 = vmatprep.mubr.bf16.mxu0 0
        %8099 = vmatmul.mubr.bf16.gmra.mrb[0].mxu0 %v7734
        %v8100 = vpop.f32.mrb[0].mxu0
        %v8101 = vadd.f32 0.0, %v8100
        %v8102 = vpop.f32.mrb[0].mxu0
        %v8103 = vpop.f32.mrb[0].mxu0
        %v8104 = vadd.f32 0.0, %v8103
        %v8105 = vpop.f32.mrb[0].mxu0
        %8106 = vmatprep.mubr.bf16.mxu0 0
        %8107 = vmatmul.mubr.bf16.gmra.mrb[0].mxu0 %v7735
        %v8108 = vpop.f32.mrb[0].mxu0
        %v8109 = vadd.f32 0.0, %v8108
        %v8110 = vpop.f32.mrb[0].mxu0
        %v8111 = vpop.f32.mrb[0].mxu0
        %v8112 = vadd.f32 0.0, %v8111
        %v8113 = vpop.f32.mrb[0].mxu0
        %8114 = vmatprep.mubr.bf16.mxu0 0
        %8115 = vmatmul.mubr.bf16.gmra.mrb[0].mxu0 %v7736
        %v8116 = vpop.f32.mrb[0].mxu0
        %v8117 = vadd.f32 0.0, %v8116
        %v8118 = vpop.f32.mrb[0].mxu0
        %v8119 = vpop.f32.mrb[0].mxu0
        %v8120 = vadd.f32 0.0, %v8119
        %v8121 = vpop.f32.mrb[0].mxu0
        %8122 = vdwg.mxu0
        %v8123 = vadd.f32 %v7946, %v8061
        %v8124 = vadd.f32 %v7947, %v8064
        %v8125 = vadd.f32 %v7948, %v8069
        %v8126 = vadd.f32 %v7949, %v8072
        %v8127 = vadd.f32 %v7950, %v8077
        %v8128 = vadd.f32 %v7951, %v8080
        %v8129 = vadd.f32 %v7952, %v8085
        %v8130 = vadd.f32 %v7953, %v8088
        %v8131 = vadd.f32 %v7954, %v8093
        %v8132 = vadd.f32 %v7955, %v8096
        %v8133 = vadd.f32 %v7956, %v8101
        %v8134 = vadd.f32 %v7957, %v8104
        %v8135 = vadd.f32 %v7958, %v8109
        %v8136 = vadd.f32 %v7959, %v8112
        %v8137 = vadd.f32 %v7960, %v8117
        %v8138 = vadd.f32 %v7961, %v8120
        %v8139 = vld [vmem:[%s5895] sm:$0xf]
        %v8140 = vld [vmem:[%s5895 + $0x4] sm:$0xf]
        %v8141 = vld [vmem:[%s5895 + $0x8] sm:$0xf]
        %v8142 = vld [vmem:[%s5895 + $0xc] sm:$0xf]
        %v8143 = vld [vmem:[%s5895 + $0x10] sm:$0xf]
        %v8144 = vld [vmem:[%s5895 + $0x14] sm:$0xf]
        %v8145 = vld [vmem:[%s5895 + $0x18] sm:$0xf]
        %v8146 = vld [vmem:[%s5895 + $0x1c] sm:$0xf]
        %v8147 = vld [vmem:[%s5895 + $0x20] sm:$0xf]
        %v8148 = vld [vmem:[%s5895 + $0x24] sm:$0xf]
        %v8149 = vld [vmem:[%s5895 + $0x28] sm:$0xf]
        %v8150 = vld [vmem:[%s5895 + $0x2c] sm:$0xf]
        %v8151 = vld [vmem:[%s5895 + $0x30] sm:$0xf]
        %v8152 = vld [vmem:[%s5895 + $0x34] sm:$0xf]
        %v8153 = vld [vmem:[%s5895 + $0x38] sm:$0xf]
        %v8154 = vld [vmem:[%s5895 + $0x3c] sm:$0xf]
        %v8171 = vunpack.c.l.b16 %v8139
        %v8172 = vunpack.c.l.b16 %v8140
        %v8173 = vunpack.c.l.b16 %v8141
        %v8174 = vunpack.c.l.b16 %v8142
        %v8175 = vunpack.c.l.b16 %v8143
        %v8176 = vunpack.c.l.b16 %v8144
        %v8177 = vunpack.c.l.b16 %v8145
        %v8178 = vunpack.c.l.b16 %v8146
        %v8179 = vunpack.c.l.b16 %v8147
        %v8180 = vunpack.c.l.b16 %v8148
        %v8181 = vunpack.c.l.b16 %v8149
        %v8182 = vunpack.c.l.b16 %v8150
        %v8183 = vunpack.c.l.b16 %v8151
        %v8184 = vunpack.c.l.b16 %v8152
        %v8185 = vunpack.c.l.b16 %v8153
        %v8186 = vunpack.c.l.b16 %v8154
        %v8187 = vpack.c.b16 %v8172, %v8171
        %v8188 = vpack.c.b16 %v8174, %v8173
        %v8189 = vpack.c.b16 %v8176, %v8175
        %v8190 = vpack.c.b16 %v8178, %v8177
        %v8191 = vpack.c.b16 %v8180, %v8179
        %v8192 = vpack.c.b16 %v8182, %v8181
        %v8193 = vpack.c.b16 %v8184, %v8183
        %v8194 = vpack.c.b16 %v8186, %v8185
        %8203 = vmatprep.subr.bf16.mxu0 0
        %8204 = vmatpush1.bf16.msra.mxu0 %v8187
        %8205 = vmatprep.subr.bf16.mxu0 0
        %8206 = vmatpush1.bf16.msra.mxu0 %v8188
        %8207 = vmatprep.subr.bf16.mxu0 0
        %8208 = vmatpush1.bf16.msra.mxu0 %v8189
        %8209 = vmatprep.subr.bf16.mxu0 0
        %8210 = vmatpush1.bf16.msra.mxu0 %v8190
        %8211 = vmatprep.subr.bf16.mxu0 0
        %8212 = vmatpush1.bf16.msra.mxu0 %v8191
        %8213 = vmatprep.subr.bf16.mxu0 0
        %8214 = vmatpush1.bf16.msra.mxu0 %v8192
        %8215 = vmatprep.subr.bf16.mxu0 0
        %8216 = vmatpush1.bf16.msra.mxu0 %v8193
        %8217 = vmatprep.subr.bf16.mxu0 0
        %8218 = vmatpush1.bf16.msra.mxu0 %v8194
        %8219 = vmatprep.subr.bf16.mxu0 0
        %8220 = vmatpush1.bf16.msra.mxu0 0
        %8221 = vmatprep.subr.bf16.mxu0 0
        %8222 = vmatpush1.bf16.msra.mxu0 0
        %8223 = vmatprep.subr.bf16.mxu0 0
        %8224 = vmatpush1.bf16.msra.mxu0 0
        %8225 = vmatprep.subr.bf16.mxu0 0
        %8226 = vmatpush1.bf16.msra.mxu0 0
        %8227 = vmatprep.subr.bf16.mxu0 0
        %8228 = vmatpush1.bf16.msra.mxu0 0
        %8229 = vmatprep.subr.bf16.mxu0 0
        %8230 = vmatpush1.bf16.msra.mxu0 0
        %8231 = vmatprep.subr.bf16.mxu0 0
        %8232 = vmatpush1.bf16.msra.mxu0 0
        %8233 = vmatprep.subr.bf16.mxu0 0
        %8234 = vmatpush1.bf16.msra.mxu0 0
        %8235 = vmatprep.mubr.bf16.mxu0 0
        %8236 = vmatmul.mubr.bf16.gmra.mrb[0].mxu0 %v7729
        %v8237 = vpop.f32.mrb[0].mxu0
        %v8238 = vadd.f32 0.0, %v8237
        %v8239 = vpop.f32.mrb[0].mxu0
        %v8240 = vpop.f32.mrb[0].mxu0
        %v8241 = vadd.f32 0.0, %v8240
        %v8242 = vpop.f32.mrb[0].mxu0
        %8243 = vmatprep.mubr.bf16.mxu0 0
        %8244 = vmatmul.mubr.bf16.gmra.mrb[0].mxu0 %v7730
        %v8245 = vpop.f32.mrb[0].mxu0
        %v8246 = vadd.f32 0.0, %v8245
        %v8247 = vpop.f32.mrb[0].mxu0
        %v8248 = vpop.f32.mrb[0].mxu0
        %v8249 = vadd.f32 0.0, %v8248
        %v8250 = vpop.f32.mrb[0].mxu0
        %8251 = vmatprep.mubr.bf16.mxu0 0
        %8252 = vmatmul.mubr.bf16.gmra.mrb[0].mxu0 %v7731
        %v8253 = vpop.f32.mrb[0].mxu0
        %v8254 = vadd.f32 0.0, %v8253
        %v8255 = vpop.f32.mrb[0].mxu0
        %v8256 = vpop.f32.mrb[0].mxu0
        %v8257 = vadd.f32 0.0, %v8256
        %v8258 = vpop.f32.mrb[0].mxu0
        %8259 = vmatprep.mubr.bf16.mxu0 0
        %8260 = vmatmul.mubr.bf16.gmra.mrb[0].mxu0 %v7732
        %v8261 = vpop.f32.mrb[0].mxu0
        %v8262 = vadd.f32 0.0, %v8261
        %v8263 = vpop.f32.mrb[0].mxu0
        %v8264 = vpop.f32.mrb[0].mxu0
        %v8265 = vadd.f32 0.0, %v8264
        %v8266 = vpop.f32.mrb[0].mxu0
        %8267 = vmatprep.mubr.bf16.mxu0 0
        %8268 = vmatmul.mubr.bf16.gmra.mrb[0].mxu0 %v7733
        %v8269 = vpop.f32.mrb[0].mxu0
        %v8270 = vadd.f32 0.0, %v8269
        %v8271 = vpop.f32.mrb[0].mxu0
        %v8272 = vpop.f32.mrb[0].mxu0
        %v8273 = vadd.f32 0.0, %v8272
        %v8274 = vpop.f32.mrb[0].mxu0
        %8275 = vmatprep.mubr.bf16.mxu0 0
        %8276 = vmatmul.mubr.bf16.gmra.mrb[0].mxu0 %v7734
        %v8277 = vpop.f32.mrb[0].mxu0
        %v8278 = vadd.f32 0.0, %v8277
        %v8279 = vpop.f32.mrb[0].mxu0
        %v8280 = vpop.f32.mrb[0].mxu0
        %v8281 = vadd.f32 0.0, %v8280
        %v8282 = vpop.f32.mrb[0].mxu0
        %8283 = vmatprep.mubr.bf16.mxu0 0
        %8284 = vmatmul.mubr.bf16.gmra.mrb[0].mxu0 %v7735
        %v8285 = vpop.f32.mrb[0].mxu0
        %v8286 = vadd.f32 0.0, %v8285
        %v8287 = vpop.f32.mrb[0].mxu0
        %v8288 = vpop.f32.mrb[0].mxu0
        %v8289 = vadd.f32 0.0, %v8288
        %v8290 = vpop.f32.mrb[0].mxu0
        %8291 = vmatprep.mubr.bf16.mxu0 0
        %8292 = vmatmul.mubr.bf16.gmra.mrb[0].mxu0 %v7736
        %v8293 = vpop.f32.mrb[0].mxu0
        %v8294 = vadd.f32 0.0, %v8293
        %v8295 = vpop.f32.mrb[0].mxu0
        %v8296 = vpop.f32.mrb[0].mxu0
        %v8297 = vadd.f32 0.0, %v8296
        %v8298 = vpop.f32.mrb[0].mxu0
        %8299 = vdwg.mxu0
        %v8300 = vrot.slane %v8238, 1
        %v8301 = vrot.slane %v8241, 1
        %v8302 = vrot.slane %v8246, 1
        %v8303 = vrot.slane %v8249, 1
        %v8304 = vrot.slane %v8254, 1
        %v8305 = vrot.slane %v8257, 1
        %v8306 = vrot.slane %v8262, 1
        %v8307 = vrot.slane %v8265, 1
        %v8308 = vrot.slane %v8270, 1
        %v8309 = vrot.slane %v8273, 1
        %v8310 = vrot.slane %v8278, 1
        %v8311 = vrot.slane %v8281, 1
        %v8312 = vrot.slane %v8286, 1
        %v8313 = vrot.slane %v8289, 1
        %v8314 = vrot.slane %v8294, 1
        %v8315 = vrot.slane %v8297, 1
        %v8316 = vsel %vm1041, %v8314, %v8315
        %v8317 = vsel %vm1041, %v8313, %v8314
        %v8318 = vsel %vm1041, %v8312, %v8313
        %v8319 = vsel %vm1041, %v8311, %v8312
        %v8320 = vsel %vm1041, %v8310, %v8311
        %v8321 = vsel %vm1041, %v8309, %v8310
        %v8322 = vsel %vm1041, %v8308, %v8309
        %v8323 = vsel %vm1041, %v8307, %v8308
        %v8324 = vsel %vm1041, %v8306, %v8307
        %v8325 = vsel %vm1041, %v8305, %v8306
        %v8326 = vsel %vm1041, %v8304, %v8305
        %v8327 = vsel %vm1041, %v8303, %v8304
        %v8328 = vsel %vm1041, %v8302, %v8303
        %v8329 = vsel %vm1041, %v8301, %v8302
        %v8330 = vsel %vm1041, %v8300, %v8301
        %v8331 = vsel %vm1041, %v8315, %v8300
        %v8332 = vmul.f32 %v8330, %v7620
        %v8333 = vmul.f32 %v8329, %v7625
        %v8334 = vmul.f32 %v8328, %v7630
        %v8335 = vmul.f32 %v8327, %v7635
        %v8336 = vmul.f32 %v8326, %v7640
        %v8337 = vmul.f32 %v8325, %v7645
        %v8338 = vmul.f32 %v8324, %v7650
        %v8339 = vmul.f32 %v8323, %v7655
        %v8340 = vmul.f32 %v8322, %v7660
        %v8341 = vmul.f32 %v8321, %v7665
        %v8342 = vmul.f32 %v8320, %v7670
        %v8343 = vmul.f32 %v8319, %v7675
        %v8344 = vmul.f32 %v8318, %v7680
        %v8345 = vmul.f32 %v8317, %v7685
        %v8346 = vmul.f32 %v8316, %v7690
        %v8347 = vmul.f32 %v8331, %v7695
        %v8348 = vadd.f32 %v8123, %v8332
        %v8349 = vadd.f32 %v8124, %v8333
        %v8350 = vadd.f32 %v8125, %v8334
        %v8351 = vadd.f32 %v8126, %v8335
        %v8352 = vadd.f32 %v8127, %v8336
        %v8353 = vadd.f32 %v8128, %v8337
        %v8354 = vadd.f32 %v8129, %v8338
        %v8355 = vadd.f32 %v8130, %v8339
        %v8356 = vadd.f32 %v8131, %v8340
        %v8357 = vadd.f32 %v8132, %v8341
        %v8358 = vadd.f32 %v8133, %v8342
        %v8359 = vadd.f32 %v8134, %v8343
        %v8360 = vadd.f32 %v8135, %v8344
        %v8361 = vadd.f32 %v8136, %v8345
        %v8362 = vadd.f32 %v8137, %v8346
        %v8363 = vadd.f32 %v8138, %v8347
        %v8364 = vld [vmem:[#allocation3 + $0x50] sm:$0xff]
        %v8365 = vld [vmem:[#allocation3 + $0x58] sm:$0xff]
        %v8366 = vld [vmem:[#allocation3 + $0x60] sm:$0xff]
        %v8367 = vld [vmem:[#allocation3 + $0x68] sm:$0xff]
        %v8368 = vld [vmem:[#allocation3 + $0x70] sm:$0xff]
        %v8369 = vld [vmem:[#allocation3 + $0x78] sm:$0xff]
        %v8370 = vld [vmem:[#allocation3 + $0x80] sm:$0xff]
        %v8371 = vld [vmem:[#allocation3 + $0x88] sm:$0xff]
        %v8372 = vld [vmem:[%s6129] sm:$0xf]
        %v8373 = vld [vmem:[%s6129 + $0x4] sm:$0xf]
        %v8374 = vld [vmem:[%s6129 + $0x8] sm:$0xf]
        %v8375 = vld [vmem:[%s6129 + $0xc] sm:$0xf]
        %v8376 = vld [vmem:[%s6129 + $0x10] sm:$0xf]
        %v8377 = vld [vmem:[%s6129 + $0x14] sm:$0xf]
        %v8378 = vld [vmem:[%s6129 + $0x18] sm:$0xf]
        %v8379 = vld [vmem:[%s6129 + $0x1c] sm:$0xf]
        %v8380 = vld [vmem:[%s6129 + $0x20] sm:$0xf]
        %v8381 = vld [vmem:[%s6129 + $0x24] sm:$0xf]
        %v8382 = vld [vmem:[%s6129 + $0x28] sm:$0xf]
        %v8383 = vld [vmem:[%s6129 + $0x2c] sm:$0xf]
        %v8384 = vld [vmem:[%s6129 + $0x30] sm:$0xf]
        %v8385 = vld [vmem:[%s6129 + $0x34] sm:$0xf]
        %v8386 = vld [vmem:[%s6129 + $0x38] sm:$0xf]
        %v8387 = vld [vmem:[%s6129 + $0x3c] sm:$0xf]
        %v8404 = vunpack.c.l.b16 %v8372
        %v8405 = vunpack.c.l.b16 %v8373
        %v8406 = vunpack.c.l.b16 %v8374
        %v8407 = vunpack.c.l.b16 %v8375
        %v8408 = vunpack.c.l.b16 %v8376
        %v8409 = vunpack.c.l.b16 %v8377
        %v8410 = vunpack.c.l.b16 %v8378
        %v8411 = vunpack.c.l.b16 %v8379
        %v8412 = vunpack.c.l.b16 %v8380
        %v8413 = vunpack.c.l.b16 %v8381
        %v8414 = vunpack.c.l.b16 %v8382
        %v8415 = vunpack.c.l.b16 %v8383
        %v8416 = vunpack.c.l.b16 %v8384
        %v8417 = vunpack.c.l.b16 %v8385
        %v8418 = vunpack.c.l.b16 %v8386
        %v8419 = vunpack.c.l.b16 %v8387
        %v8420 = vpack.c.b16 %v8405, %v8404
        %v8421 = vpack.c.b16 %v8407, %v8406
        %v8422 = vpack.c.b16 %v8409, %v8408
        %v8423 = vpack.c.b16 %v8411, %v8410
        %v8424 = vpack.c.b16 %v8413, %v8412
        %v8425 = vpack.c.b16 %v8415, %v8414
        %v8426 = vpack.c.b16 %v8417, %v8416
        %v8427 = vpack.c.b16 %v8419, %v8418
        %8436 = vmatprep.subr.bf16.mxu0 0
        %8437 = vmatpush1.bf16.msra.mxu0 %v8420
        %8438 = vmatprep.subr.bf16.mxu0 0
        %8439 = vmatpush1.bf16.msra.mxu0 %v8421
        %8440 = vmatprep.subr.bf16.mxu0 0
        %8441 = vmatpush1.bf16.msra.mxu0 %v8422
        %8442 = vmatprep.subr.bf16.mxu0 0
        %8443 = vmatpush1.bf16.msra.mxu0 %v8423
        %8444 = vmatprep.subr.bf16.mxu0 0
        %8445 = vmatpush1.bf16.msra.mxu0 %v8424
        %8446 = vmatprep.subr.bf16.mxu0 0
        %8447 = vmatpush1.bf16.msra.mxu0 %v8425
        %8448 = vmatprep.subr.bf16.mxu0 0
        %8449 = vmatpush1.bf16.msra.mxu0 %v8426
        %8450 = vmatprep.subr.bf16.mxu0 0
        %8451 = vmatpush1.bf16.msra.mxu0 %v8427
        %8452 = vmatprep.subr.bf16.mxu0 0
        %8453 = vmatpush1.bf16.msra.mxu0 0
        %8454 = vmatprep.subr.bf16.mxu0 0
        %8455 = vmatpush1.bf16.msra.mxu0 0
        %8456 = vmatprep.subr.bf16.mxu0 0
        %8457 = vmatpush1.bf16.msra.mxu0 0
        %8458 = vmatprep.subr.bf16.mxu0 0
        %8459 = vmatpush1.bf16.msra.mxu0 0
        %8460 = vmatprep.subr.bf16.mxu0 0
        %8461 = vmatpush1.bf16.msra.mxu0 0
        %8462 = vmatprep.subr.bf16.mxu0 0
        %8463 = vmatpush1.bf16.msra.mxu0 0
        %8464 = vmatprep.subr.bf16.mxu0 0
        %8465 = vmatpush1.bf16.msra.mxu0 0
        %8466 = vmatprep.subr.bf16.mxu0 0
        %8467 = vmatpush1.bf16.msra.mxu0 0
        %8468 = vmatprep.mubr.bf16.mxu0 0
        %8469 = vmatmul.mubr.bf16.gmra.mrb[0].mxu0 %v8364
        %v8470 = vpop.f32.mrb[0].mxu0
        %v8471 = vadd.f32 0.0, %v8470
        %v8472 = vpop.f32.mrb[0].mxu0
        %v8473 = vpop.f32.mrb[0].mxu0
        %v8474 = vadd.f32 0.0, %v8473
        %v8475 = vpop.f32.mrb[0].mxu0
        %8476 = vmatprep.mubr.bf16.mxu0 0
        %8477 = vmatmul.mubr.bf16.gmra.mrb[0].mxu0 %v8365
        %v8478 = vpop.f32.mrb[0].mxu0
        %v8479 = vadd.f32 0.0, %v8478
        %v8480 = vpop.f32.mrb[0].mxu0
        %v8481 = vpop.f32.mrb[0].mxu0
        %v8482 = vadd.f32 0.0, %v8481
        %v8483 = vpop.f32.mrb[0].mxu0
        %8484 = vmatprep.mubr.bf16.mxu0 0
        %8485 = vmatmul.mubr.bf16.gmra.mrb[0].mxu0 %v8366
        %v8486 = vpop.f32.mrb[0].mxu0
        %v8487 = vadd.f32 0.0, %v8486
        %v8488 = vpop.f32.mrb[0].mxu0
        %v8489 = vpop.f32.mrb[0].mxu0
        %v8490 = vadd.f32 0.0, %v8489
        %v8491 = vpop.f32.mrb[0].mxu0
        %8492 = vmatprep.mubr.bf16.mxu0 0
        %8493 = vmatmul.mubr.bf16.gmra.mrb[0].mxu0 %v8367
        %v8494 = vpop.f32.mrb[0].mxu0
        %v8495 = vadd.f32 0.0, %v8494
        %v8496 = vpop.f32.mrb[0].mxu0
        %v8497 = vpop.f32.mrb[0].mxu0
        %v8498 = vadd.f32 0.0, %v8497
        %v8499 = vpop.f32.mrb[0].mxu0
        %8500 = vmatprep.mubr.bf16.mxu0 0
        %8501 = vmatmul.mubr.bf16.gmra.mrb[0].mxu0 %v8368
        %v8502 = vpop.f32.mrb[0].mxu0
        %v8503 = vadd.f32 0.0, %v8502
        %v8504 = vpop.f32.mrb[0].mxu0
        %v8505 = vpop.f32.mrb[0].mxu0
        %v8506 = vadd.f32 0.0, %v8505
        %v8507 = vpop.f32.mrb[0].mxu0
        %8508 = vmatprep.mubr.bf16.mxu0 0
        %8509 = vmatmul.mubr.bf16.gmra.mrb[0].mxu0 %v8369
        %v8510 = vpop.f32.mrb[0].mxu0
        %v8511 = vadd.f32 0.0, %v8510
        %v8512 = vpop.f32.mrb[0].mxu0
        %v8513 = vpop.f32.mrb[0].mxu0
        %v8514 = vadd.f32 0.0, %v8513
        %v8515 = vpop.f32.mrb[0].mxu0
        %8516 = vmatprep.mubr.bf16.mxu0 0
        %8517 = vmatmul.mubr.bf16.gmra.mrb[0].mxu0 %v8370
        %v8518 = vpop.f32.mrb[0].mxu0
        %v8519 = vadd.f32 0.0, %v8518
        %v8520 = vpop.f32.mrb[0].mxu0
        %v8521 = vpop.f32.mrb[0].mxu0
        %v8522 = vadd.f32 0.0, %v8521
        %v8523 = vpop.f32.mrb[0].mxu0
        %8524 = vmatprep.mubr.bf16.mxu0 0
        %8525 = vmatmul.mubr.bf16.gmra.mrb[0].mxu0 %v8371
        %v8526 = vpop.f32.mrb[0].mxu0
        %v8527 = vadd.f32 0.0, %v8526
        %v8528 = vpop.f32.mrb[0].mxu0
        %v8529 = vpop.f32.mrb[0].mxu0
        %v8530 = vadd.f32 0.0, %v8529
        %v8531 = vpop.f32.mrb[0].mxu0
        %8532 = vdwg.mxu0
        %v8533 = vrot.slane %v8471, 7
        %v8534 = vrot.slane %v8474, 7
        %v8535 = vrot.slane %v8479, 7
        %v8536 = vrot.slane %v8482, 7
        %v8537 = vrot.slane %v8487, 7
        %v8538 = vrot.slane %v8490, 7
        %v8539 = vrot.slane %v8495, 7
        %v8540 = vrot.slane %v8498, 7
        %v8541 = vrot.slane %v8503, 7
        %v8542 = vrot.slane %v8506, 7
        %v8543 = vrot.slane %v8511, 7
        %v8544 = vrot.slane %v8514, 7
        %v8545 = vrot.slane %v8519, 7
        %v8546 = vrot.slane %v8522, 7
        %v8547 = vrot.slane %v8527, 7
        %v8548 = vrot.slane %v8530, 7
        %v8549 = vsel %vm556, %v8547, %v8548
        %v8550 = vsel %vm556, %v8546, %v8547
        %v8551 = vsel %vm556, %v8545, %v8546
        %v8552 = vsel %vm556, %v8544, %v8545
        %v8553 = vsel %vm556, %v8543, %v8544
        %v8554 = vsel %vm556, %v8542, %v8543
        %v8555 = vsel %vm556, %v8541, %v8542
        %v8556 = vsel %vm556, %v8540, %v8541
        %v8557 = vsel %vm556, %v8539, %v8540
        %v8558 = vsel %vm556, %v8538, %v8539
        %v8559 = vsel %vm556, %v8537, %v8538
        %v8560 = vsel %vm556, %v8536, %v8537
        %v8561 = vsel %vm556, %v8535, %v8536
        %v8562 = vsel %vm556, %v8534, %v8535
        %v8563 = vsel %vm556, %v8533, %v8534
        %v8564 = vsel %vm556, %v8548, %v8533
        %v8565 = vmul.f32 %v8564, %v7138
        %v8566 = vmul.f32 %v8563, %v7143
        %v8567 = vmul.f32 %v8562, %v7148
        %v8568 = vmul.f32 %v8561, %v7153
        %v8569 = vmul.f32 %v8560, %v7158
        %v8570 = vmul.f32 %v8559, %v7163
        %v8571 = vmul.f32 %v8558, %v7168
        %v8572 = vmul.f32 %v8557, %v7173
        %v8573 = vmul.f32 %v8556, %v7178
        %v8574 = vmul.f32 %v8555, %v7183
        %v8575 = vmul.f32 %v8554, %v7188
        %v8576 = vmul.f32 %v8553, %v7193
        %v8577 = vmul.f32 %v8552, %v7198
        %v8578 = vmul.f32 %v8551, %v7203
        %v8579 = vmul.f32 %v8550, %v7208
        %v8580 = vmul.f32 %v8549, %v7213
        %v8581 = vadd.f32 %v8348, %v8565
        %v8582 = vadd.f32 %v8349, %v8566
        %v8583 = vadd.f32 %v8350, %v8567
        %v8584 = vadd.f32 %v8351, %v8568
        %v8585 = vadd.f32 %v8352, %v8569
        %v8586 = vadd.f32 %v8353, %v8570
        %v8587 = vadd.f32 %v8354, %v8571
        %v8588 = vadd.f32 %v8355, %v8572
        %v8589 = vadd.f32 %v8356, %v8573
        %v8590 = vadd.f32 %v8357, %v8574
        %v8591 = vadd.f32 %v8358, %v8575
        %v8592 = vadd.f32 %v8359, %v8576
        %v8593 = vadd.f32 %v8360, %v8577
        %v8594 = vadd.f32 %v8361, %v8578
        %v8595 = vadd.f32 %v8362, %v8579
        %v8596 = vadd.f32 %v8363, %v8580
        %v8597 = vld [vmem:[%s6355] sm:$0xf]
        %v8598 = vld [vmem:[%s6355 + $0x4] sm:$0xf]
        %v8599 = vld [vmem:[%s6355 + $0x8] sm:$0xf]
        %v8600 = vld [vmem:[%s6355 + $0xc] sm:$0xf]
        %v8601 = vld [vmem:[%s6355 + $0x10] sm:$0xf]
        %v8602 = vld [vmem:[%s6355 + $0x14] sm:$0xf]
        %v8603 = vld [vmem:[%s6355 + $0x18] sm:$0xf]
        %v8604 = vld [vmem:[%s6355 + $0x1c] sm:$0xf]
        %v8605 = vld [vmem:[%s6355 + $0x20] sm:$0xf]
        %v8606 = vld [vmem:[%s6355 + $0x24] sm:$0xf]
        %v8607 = vld [vmem:[%s6355 + $0x28] sm:$0xf]
        %v8608 = vld [vmem:[%s6355 + $0x2c] sm:$0xf]
        %v8609 = vld [vmem:[%s6355 + $0x30] sm:$0xf]
        %v8610 = vld [vmem:[%s6355 + $0x34] sm:$0xf]
        %v8611 = vld [vmem:[%s6355 + $0x38] sm:$0xf]
        %v8612 = vld [vmem:[%s6355 + $0x3c] sm:$0xf]
        %v8629 = vunpack.c.l.b16 %v8597
        %v8630 = vunpack.c.l.b16 %v8598
        %v8631 = vunpack.c.l.b16 %v8599
        %v8632 = vunpack.c.l.b16 %v8600
        %v8633 = vunpack.c.l.b16 %v8601
        %v8634 = vunpack.c.l.b16 %v8602
        %v8635 = vunpack.c.l.b16 %v8603
        %v8636 = vunpack.c.l.b16 %v8604
        %v8637 = vunpack.c.l.b16 %v8605
        %v8638 = vunpack.c.l.b16 %v8606
        %v8639 = vunpack.c.l.b16 %v8607
        %v8640 = vunpack.c.l.b16 %v8608
        %v8641 = vunpack.c.l.b16 %v8609
        %v8642 = vunpack.c.l.b16 %v8610
        %v8643 = vunpack.c.l.b16 %v8611
        %v8644 = vunpack.c.l.b16 %v8612
        %v8645 = vpack.c.b16 %v8630, %v8629
        %v8646 = vpack.c.b16 %v8632, %v8631
        %v8647 = vpack.c.b16 %v8634, %v8633
        %v8648 = vpack.c.b16 %v8636, %v8635
        %v8649 = vpack.c.b16 %v8638, %v8637
        %v8650 = vpack.c.b16 %v8640, %v8639
        %v8651 = vpack.c.b16 %v8642, %v8641
        %v8652 = vpack.c.b16 %v8644, %v8643
        %8661 = vmatprep.subr.bf16.mxu0 0
        %8662 = vmatpush1.bf16.msra.mxu0 %v8645
        %8663 = vmatprep.subr.bf16.mxu0 0
        %8664 = vmatpush1.bf16.msra.mxu0 %v8646
        %8665 = vmatprep.subr.bf16.mxu0 0
        %8666 = vmatpush1.bf16.msra.mxu0 %v8647
        %8667 = vmatprep.subr.bf16.mxu0 0
        %8668 = vmatpush1.bf16.msra.mxu0 %v8648
        %8669 = vmatprep.subr.bf16.mxu0 0
        %8670 = vmatpush1.bf16.msra.mxu0 %v8649
        %8671 = vmatprep.subr.bf16.mxu0 0
        %8672 = vmatpush1.bf16.msra.mxu0 %v8650
        %8673 = vmatprep.subr.bf16.mxu0 0
        %8674 = vmatpush1.bf16.msra.mxu0 %v8651
        %8675 = vmatprep.subr.bf16.mxu0 0
        %8676 = vmatpush1.bf16.msra.mxu0 %v8652
        %8677 = vmatprep.subr.bf16.mxu0 0
        %8678 = vmatpush1.bf16.msra.mxu0 0
        %8679 = vmatprep.subr.bf16.mxu0 0
        %8680 = vmatpush1.bf16.msra.mxu0 0
        %8681 = vmatprep.subr.bf16.mxu0 0
        %8682 = vmatpush1.bf16.msra.mxu0 0
        %8683 = vmatprep.subr.bf16.mxu0 0
        %8684 = vmatpush1.bf16.msra.mxu0 0
        %8685 = vmatprep.subr.bf16.mxu0 0
        %8686 = vmatpush1.bf16.msra.mxu0 0
        %8687 = vmatprep.subr.bf16.mxu0 0
        %8688 = vmatpush1.bf16.msra.mxu0 0
        %8689 = vmatprep.subr.bf16.mxu0 0
        %8690 = vmatpush1.bf16.msra.mxu0 0
        %8691 = vmatprep.subr.bf16.mxu0 0
        %8692 = vmatpush1.bf16.msra.mxu0 0
        %8693 = vmatprep.mubr.bf16.mxu0 0
        %8694 = vmatmul.mubr.bf16.gmra.mrb[0].mxu0 %v8364
        %v8695 = vpop.f32.mrb[0].mxu0
        %v8696 = vadd.f32 0.0, %v8695
        %v8697 = vpop.f32.mrb[0].mxu0
        %v8698 = vpop.f32.mrb[0].mxu0
        %v8699 = vadd.f32 0.0, %v8698
        %v8700 = vpop.f32.mrb[0].mxu0
        %8701 = vmatprep.mubr.bf16.mxu0 0
        %8702 = vmatmul.mubr.bf16.gmra.mrb[0].mxu0 %v8365
        %v8703 = vpop.f32.mrb[0].mxu0
        %v8704 = vadd.f32 0.0, %v8703
        %v8705 = vpop.f32.mrb[0].mxu0
        %v8706 = vpop.f32.mrb[0].mxu0
        %v8707 = vadd.f32 0.0, %v8706
        %v8708 = vpop.f32.mrb[0].mxu0
        %8709 = vmatprep.mubr.bf16.mxu0 0
        %8710 = vmatmul.mubr.bf16.gmra.mrb[0].mxu0 %v8366
        %v8711 = vpop.f32.mrb[0].mxu0
        %v8712 = vadd.f32 0.0, %v8711
        %v8713 = vpop.f32.mrb[0].mxu0
        %v8714 = vpop.f32.mrb[0].mxu0
        %v8715 = vadd.f32 0.0, %v8714
        %v8716 = vpop.f32.mrb[0].mxu0
        %8717 = vmatprep.mubr.bf16.mxu0 0
        %8718 = vmatmul.mubr.bf16.gmra.mrb[0].mxu0 %v8367
        %v8719 = vpop.f32.mrb[0].mxu0
        %v8720 = vadd.f32 0.0, %v8719
        %v8721 = vpop.f32.mrb[0].mxu0
        %v8722 = vpop.f32.mrb[0].mxu0
        %v8723 = vadd.f32 0.0, %v8722
        %v8724 = vpop.f32.mrb[0].mxu0
        %8725 = vmatprep.mubr.bf16.mxu0 0
        %8726 = vmatmul.mubr.bf16.gmra.mrb[0].mxu0 %v8368
        %v8727 = vpop.f32.mrb[0].mxu0
        %v8728 = vadd.f32 0.0, %v8727
        %v8729 = vpop.f32.mrb[0].mxu0
        %v8730 = vpop.f32.mrb[0].mxu0
        %v8731 = vadd.f32 0.0, %v8730
        %v8732 = vpop.f32.mrb[0].mxu0
        %8733 = vmatprep.mubr.bf16.mxu0 0
        %8734 = vmatmul.mubr.bf16.gmra.mrb[0].mxu0 %v8369
        %v8735 = vpop.f32.mrb[0].mxu0
        %v8736 = vadd.f32 0.0, %v8735
        %v8737 = vpop.f32.mrb[0].mxu0
        %v8738 = vpop.f32.mrb[0].mxu0
        %v8739 = vadd.f32 0.0, %v8738
        %v8740 = vpop.f32.mrb[0].mxu0
        %8741 = vmatprep.mubr.bf16.mxu0 0
        %8742 = vmatmul.mubr.bf16.gmra.mrb[0].mxu0 %v8370
        %v8743 = vpop.f32.mrb[0].mxu0
        %v8744 = vadd.f32 0.0, %v8743
        %v8745 = vpop.f32.mrb[0].mxu0
        %v8746 = vpop.f32.mrb[0].mxu0
        %v8747 = vadd.f32 0.0, %v8746
        %v8748 = vpop.f32.mrb[0].mxu0
        %8749 = vmatprep.mubr.bf16.mxu0 0
        %8750 = vmatmul.mubr.bf16.gmra.mrb[0].mxu0 %v8371
        %v8751 = vpop.f32.mrb[0].mxu0
        %v8752 = vadd.f32 0.0, %v8751
        %v8753 = vpop.f32.mrb[0].mxu0
        %v8754 = vpop.f32.mrb[0].mxu0
        %v8755 = vadd.f32 0.0, %v8754
        %v8756 = vpop.f32.mrb[0].mxu0
        %8757 = vdwg.mxu0
        %v8758 = vadd.f32 %v8581, %v8696
        %v8759 = vadd.f32 %v8582, %v8699
        %v8760 = vadd.f32 %v8583, %v8704
        %v8761 = vadd.f32 %v8584, %v8707
        %v8762 = vadd.f32 %v8585, %v8712
        %v8763 = vadd.f32 %v8586, %v8715
        %v8764 = vadd.f32 %v8587, %v8720
        %v8765 = vadd.f32 %v8588, %v8723
        %v8766 = vadd.f32 %v8589, %v8728
        %v8767 = vadd.f32 %v8590, %v8731
        %v8768 = vadd.f32 %v8591, %v8736
        %v8769 = vadd.f32 %v8592, %v8739
        %v8770 = vadd.f32 %v8593, %v8744
        %v8771 = vadd.f32 %v8594, %v8747
        %v8772 = vadd.f32 %v8595, %v8752
        %v8773 = vadd.f32 %v8596, %v8755
        %v8774 = vld [vmem:[%s6533] sm:$0xf]
        %v8775 = vld [vmem:[%s6533 + $0x4] sm:$0xf]
        %v8776 = vld [vmem:[%s6533 + $0x8] sm:$0xf]
        %v8777 = vld [vmem:[%s6533 + $0xc] sm:$0xf]
        %v8778 = vld [vmem:[%s6533 + $0x10] sm:$0xf]
        %v8779 = vld [vmem:[%s6533 + $0x14] sm:$0xf]
        %v8780 = vld [vmem:[%s6533 + $0x18] sm:$0xf]
        %v8781 = vld [vmem:[%s6533 + $0x1c] sm:$0xf]
        %v8782 = vld [vmem:[%s6533 + $0x20] sm:$0xf]
        %v8783 = vld [vmem:[%s6533 + $0x24] sm:$0xf]
        %v8784 = vld [vmem:[%s6533 + $0x28] sm:$0xf]
        %v8785 = vld [vmem:[%s6533 + $0x2c] sm:$0xf]
        %v8786 = vld [vmem:[%s6533 + $0x30] sm:$0xf]
        %v8787 = vld [vmem:[%s6533 + $0x34] sm:$0xf]
        %v8788 = vld [vmem:[%s6533 + $0x38] sm:$0xf]
        %v8789 = vld [vmem:[%s6533 + $0x3c] sm:$0xf]
        %v8806 = vunpack.c.l.b16 %v8774
        %v8807 = vunpack.c.l.b16 %v8775
        %v8808 = vunpack.c.l.b16 %v8776
        %v8809 = vunpack.c.l.b16 %v8777
        %v8810 = vunpack.c.l.b16 %v8778
        %v8811 = vunpack.c.l.b16 %v8779
        %v8812 = vunpack.c.l.b16 %v8780
        %v8813 = vunpack.c.l.b16 %v8781
        %v8814 = vunpack.c.l.b16 %v8782
        %v8815 = vunpack.c.l.b16 %v8783
        %v8816 = vunpack.c.l.b16 %v8784
        %v8817 = vunpack.c.l.b16 %v8785
        %v8818 = vunpack.c.l.b16 %v8786
        %v8819 = vunpack.c.l.b16 %v8787
        %v8820 = vunpack.c.l.b16 %v8788
        %v8821 = vunpack.c.l.b16 %v8789
        %v8822 = vpack.c.b16 %v8807, %v8806
        %v8823 = vpack.c.b16 %v8809, %v8808
        %v8824 = vpack.c.b16 %v8811, %v8810
        %v8825 = vpack.c.b16 %v8813, %v8812
        %v8826 = vpack.c.b16 %v8815, %v8814
        %v8827 = vpack.c.b16 %v8817, %v8816
        %v8828 = vpack.c.b16 %v8819, %v8818
        %v8829 = vpack.c.b16 %v8821, %v8820
        %8838 = vmatprep.subr.bf16.mxu0 0
        %8839 = vmatpush1.bf16.msra.mxu0 %v8822
        %8840 = vmatprep.subr.bf16.mxu0 0
        %8841 = vmatpush1.bf16.msra.mxu0 %v8823
        %8842 = vmatprep.subr.bf16.mxu0 0
        %8843 = vmatpush1.bf16.msra.mxu0 %v8824
        %8844 = vmatprep.subr.bf16.mxu0 0
        %8845 = vmatpush1.bf16.msra.mxu0 %v8825
        %8846 = vmatprep.subr.bf16.mxu0 0
        %8847 = vmatpush1.bf16.msra.mxu0 %v8826
        %8848 = vmatprep.subr.bf16.mxu0 0
        %8849 = vmatpush1.bf16.msra.mxu0 %v8827
        %8850 = vmatprep.subr.bf16.mxu0 0
        %8851 = vmatpush1.bf16.msra.mxu0 %v8828
        %8852 = vmatprep.subr.bf16.mxu0 0
        %8853 = vmatpush1.bf16.msra.mxu0 %v8829
        %8854 = vmatprep.subr.bf16.mxu0 0
        %8855 = vmatpush1.bf16.msra.mxu0 0
        %8856 = vmatprep.subr.bf16.mxu0 0
        %8857 = vmatpush1.bf16.msra.mxu0 0
        %8858 = vmatprep.subr.bf16.mxu0 0
        %8859 = vmatpush1.bf16.msra.mxu0 0
        %8860 = vmatprep.subr.bf16.mxu0 0
        %8861 = vmatpush1.bf16.msra.mxu0 0
        %8862 = vmatprep.subr.bf16.mxu0 0
        %8863 = vmatpush1.bf16.msra.mxu0 0
        %8864 = vmatprep.subr.bf16.mxu0 0
        %8865 = vmatpush1.bf16.msra.mxu0 0
        %8866 = vmatprep.subr.bf16.mxu0 0
        %8867 = vmatpush1.bf16.msra.mxu0 0
        %8868 = vmatprep.subr.bf16.mxu0 0
        %8869 = vmatpush1.bf16.msra.mxu0 0
        %8870 = vmatprep.mubr.bf16.mxu0 0
        %8871 = vmatmul.mubr.bf16.gmra.mrb[0].mxu0 %v8364
        %v8872 = vpop.f32.mrb[0].mxu0
        %v8873 = vadd.f32 0.0, %v8872
        %v8874 = vpop.f32.mrb[0].mxu0
        %v8875 = vpop.f32.mrb[0].mxu0
        %v8876 = vadd.f32 0.0, %v8875
        %v8877 = vpop.f32.mrb[0].mxu0
        %8878 = vmatprep.mubr.bf16.mxu0 0
        %8879 = vmatmul.mubr.bf16.gmra.mrb[0].mxu0 %v8365
        %v8880 = vpop.f32.mrb[0].mxu0
        %v8881 = vadd.f32 0.0, %v8880
        %v8882 = vpop.f32.mrb[0].mxu0
        %v8883 = vpop.f32.mrb[0].mxu0
        %v8884 = vadd.f32 0.0, %v8883
        %v8885 = vpop.f32.mrb[0].mxu0
        %8886 = vmatprep.mubr.bf16.mxu0 0
        %8887 = vmatmul.mubr.bf16.gmra.mrb[0].mxu0 %v8366
        %v8888 = vpop.f32.mrb[0].mxu0
        %v8889 = vadd.f32 0.0, %v8888
        %v8890 = vpop.f32.mrb[0].mxu0
        %v8891 = vpop.f32.mrb[0].mxu0
        %v8892 = vadd.f32 0.0, %v8891
        %v8893 = vpop.f32.mrb[0].mxu0
        %8894 = vmatprep.mubr.bf16.mxu0 0
        %8895 = vmatmul.mubr.bf16.gmra.mrb[0].mxu0 %v8367
        %v8896 = vpop.f32.mrb[0].mxu0
        %v8897 = vadd.f32 0.0, %v8896
        %v8898 = vpop.f32.mrb[0].mxu0
        %v8899 = vpop.f32.mrb[0].mxu0
        %v8900 = vadd.f32 0.0, %v8899
        %v8901 = vpop.f32.mrb[0].mxu0
        %8902 = vmatprep.mubr.bf16.mxu0 0
        %8903 = vmatmul.mubr.bf16.gmra.mrb[0].mxu0 %v8368
        %v8904 = vpop.f32.mrb[0].mxu0
        %v8905 = vadd.f32 0.0, %v8904
        %v8906 = vpop.f32.mrb[0].mxu0
        %v8907 = vpop.f32.mrb[0].mxu0
        %v8908 = vadd.f32 0.0, %v8907
        %v8909 = vpop.f32.mrb[0].mxu0
        %8910 = vmatprep.mubr.bf16.mxu0 0
        %8911 = vmatmul.mubr.bf16.gmra.mrb[0].mxu0 %v8369
        %v8912 = vpop.f32.mrb[0].mxu0
        %v8913 = vadd.f32 0.0, %v8912
        %v8914 = vpop.f32.mrb[0].mxu0
        %v8915 = vpop.f32.mrb[0].mxu0
        %v8916 = vadd.f32 0.0, %v8915
        %v8917 = vpop.f32.mrb[0].mxu0
        %8918 = vmatprep.mubr.bf16.mxu0 0
        %8919 = vmatmul.mubr.bf16.gmra.mrb[0].mxu0 %v8370
        %v8920 = vpop.f32.mrb[0].mxu0
        %v8921 = vadd.f32 0.0, %v8920
        %v8922 = vpop.f32.mrb[0].mxu0
        %v8923 = vpop.f32.mrb[0].mxu0
        %v8924 = vadd.f32 0.0, %v8923
        %v8925 = vpop.f32.mrb[0].mxu0
        %8926 = vmatprep.mubr.bf16.mxu0 0
        %8927 = vmatmul.mubr.bf16.gmra.mrb[0].mxu0 %v8371
        %v8928 = vpop.f32.mrb[0].mxu0
        %v8929 = vadd.f32 0.0, %v8928
        %v8930 = vpop.f32.mrb[0].mxu0
        %v8931 = vpop.f32.mrb[0].mxu0
        %v8932 = vadd.f32 0.0, %v8931
        %v8933 = vpop.f32.mrb[0].mxu0
        %8934 = vdwg.mxu0
        %v8935 = vrot.slane %v8873, 1
        %v8936 = vrot.slane %v8876, 1
        %v8937 = vrot.slane %v8881, 1
        %v8938 = vrot.slane %v8884, 1
        %v8939 = vrot.slane %v8889, 1
        %v8940 = vrot.slane %v8892, 1
        %v8941 = vrot.slane %v8897, 1
        %v8942 = vrot.slane %v8900, 1
        %v8943 = vrot.slane %v8905, 1
        %v8944 = vrot.slane %v8908, 1
        %v8945 = vrot.slane %v8913, 1
        %v8946 = vrot.slane %v8916, 1
        %v8947 = vrot.slane %v8921, 1
        %v8948 = vrot.slane %v8924, 1
        %v8949 = vrot.slane %v8929, 1
        %v8950 = vrot.slane %v8932, 1
        %v8951 = vsel %vm1041, %v8949, %v8950
        %v8952 = vsel %vm1041, %v8948, %v8949
        %v8953 = vsel %vm1041, %v8947, %v8948
        %v8954 = vsel %vm1041, %v8946, %v8947
        %v8955 = vsel %vm1041, %v8945, %v8946
        %v8956 = vsel %vm1041, %v8944, %v8945
        %v8957 = vsel %vm1041, %v8943, %v8944
        %v8958 = vsel %vm1041, %v8942, %v8943
        %v8959 = vsel %vm1041, %v8941, %v8942
        %v8960 = vsel %vm1041, %v8940, %v8941
        %v8961 = vsel %vm1041, %v8939, %v8940
        %v8962 = vsel %vm1041, %v8938, %v8939
        %v8963 = vsel %vm1041, %v8937, %v8938
        %v8964 = vsel %vm1041, %v8936, %v8937
        %v8965 = vsel %vm1041, %v8935, %v8936
        %v8966 = vsel %vm1041, %v8950, %v8935
        %v8967 = vmul.f32 %v8965, %v7620
        %v8968 = vmul.f32 %v8964, %v7625
        %v8969 = vmul.f32 %v8963, %v7630
        %v8970 = vmul.f32 %v8962, %v7635
        %v8971 = vmul.f32 %v8961, %v7640
        %v8972 = vmul.f32 %v8960, %v7645
        %v8973 = vmul.f32 %v8959, %v7650
        %v8974 = vmul.f32 %v8958, %v7655
        %v8975 = vmul.f32 %v8957, %v7660
        %v8976 = vmul.f32 %v8956, %v7665
        %v8977 = vmul.f32 %v8955, %v7670
        %v8978 = vmul.f32 %v8954, %v7675
        %v8979 = vmul.f32 %v8953, %v7680
        %v8980 = vmul.f32 %v8952, %v7685
        %v8981 = vmul.f32 %v8951, %v7690
        %v8982 = vmul.f32 %v8966, %v7695
        %v8983 = vadd.f32 %v8758, %v8967
        %v8984 = vadd.f32 %v8759, %v8968
        %v8985 = vadd.f32 %v8760, %v8969
        %v8986 = vadd.f32 %v8761, %v8970
        %v8987 = vadd.f32 %v8762, %v8971
        %v8988 = vadd.f32 %v8763, %v8972
        %v8989 = vadd.f32 %v8764, %v8973
        %v8990 = vadd.f32 %v8765, %v8974
        %v8991 = vadd.f32 %v8766, %v8975
        %v8992 = vadd.f32 %v8767, %v8976
        %v8993 = vadd.f32 %v8768, %v8977
        %v8994 = vadd.f32 %v8769, %v8978
        %v8995 = vadd.f32 %v8770, %v8979
        %v8996 = vadd.f32 %v8771, %v8980
        %v8997 = vadd.f32 %v8772, %v8981
        %v8998 = vadd.f32 %v8773, %v8982
        %v8999 = vld [vmem:[%s6759] sm:$0x1]
        %v9001 = vlaneseq
        %v9002 = vshrl.u32 %v9001, 7
        %v9003 = vsub.s32 0, %v9002
        %v9004 = vrot.slane %v8999, %v9003
        %v9006 = vadd.f32 %v8983, %v9004
        %v9007 = vadd.f32 %v8984, %v9004
        %v9008 = vadd.f32 %v8985, %v9004
        %v9009 = vadd.f32 %v8986, %v9004
        %v9010 = vadd.f32 %v8987, %v9004
        %v9011 = vadd.f32 %v8988, %v9004
        %v9012 = vadd.f32 %v8989, %v9004
        %v9013 = vadd.f32 %v8990, %v9004
        %v9014 = vadd.f32 %v8991, %v9004
        %v9015 = vadd.f32 %v8992, %v9004
        %v9016 = vadd.f32 %v8993, %v9004
        %v9017 = vadd.f32 %v8994, %v9004
        %v9018 = vadd.f32 %v8995, %v9004
        %v9019 = vadd.f32 %v8996, %v9004
        %v9020 = vadd.f32 %v8997, %v9004
        %v9021 = vadd.f32 %v8998, %v9004
        %v9022 = vmax.f32 %v9006, 0.0
        %v9023 = vmax.f32 %v9007, 0.0
        %v9024 = vmax.f32 %v9008, 0.0
        %v9025 = vmax.f32 %v9009, 0.0
        %v9026 = vmax.f32 %v9010, 0.0
        %v9027 = vmax.f32 %v9011, 0.0
        %v9028 = vmax.f32 %v9012, 0.0
        %v9029 = vmax.f32 %v9013, 0.0
        %v9030 = vmax.f32 %v9014, 0.0
        %v9031 = vmax.f32 %v9015, 0.0
        %v9032 = vmax.f32 %v9016, 0.0
        %v9033 = vmax.f32 %v9017, 0.0
        %v9034 = vmax.f32 %v9018, 0.0
        %v9035 = vmax.f32 %v9019, 0.0
        %v9036 = vmax.f32 %v9020, 0.0
        %v9037 = vmax.f32 %v9021, 0.0
        %v9038 = vpack.c.bf16 %v9023, %v9022
        %v9039 = vpack.c.bf16 %v9025, %v9024
        %v9040 = vpack.c.bf16 %v9027, %v9026
        %v9041 = vpack.c.bf16 %v9029, %v9028
        %v9042 = vpack.c.bf16 %v9031, %v9030
        %v9043 = vpack.c.bf16 %v9033, %v9032
        %v9044 = vpack.c.bf16 %v9035, %v9034
        %v9045 = vpack.c.bf16 %v9037, %v9036
        %v9054 = vunpack.c.l.b16 %v9038
        %v9055 = vunpack.c.h.b16 %v9038
        %v9056 = vunpack.c.l.b16 %v9039
        %v9057 = vunpack.c.h.b16 %v9039
        %v9058 = vunpack.c.l.b16 %v9040
        %v9059 = vunpack.c.h.b16 %v9040
        %v9060 = vunpack.c.l.b16 %v9041
        %v9061 = vunpack.c.h.b16 %v9041
        %v9062 = vunpack.c.l.b16 %v9042
        %v9063 = vunpack.c.h.b16 %v9042
        %v9064 = vunpack.c.l.b16 %v9043
        %v9065 = vunpack.c.h.b16 %v9043
        %v9066 = vunpack.c.l.b16 %v9044
        %v9067 = vunpack.c.h.b16 %v9044
        %v9068 = vunpack.c.l.b16 %v9045
        %v9069 = vunpack.c.h.b16 %v9045
        %v9070 = vpack.c.b16 %v9054, %v9054
        %v9071 = vpack.c.b16 %v9055, %v9055
        %v9072 = vpack.c.b16 %v9056, %v9056
        %v9073 = vpack.c.b16 %v9057, %v9057
        %v9074 = vpack.c.b16 %v9058, %v9058
        %v9075 = vpack.c.b16 %v9059, %v9059
        %v9076 = vpack.c.b16 %v9060, %v9060
        %v9077 = vpack.c.b16 %v9061, %v9061
        %v9078 = vpack.c.b16 %v9062, %v9062
        %v9079 = vpack.c.b16 %v9063, %v9063
        %v9080 = vpack.c.b16 %v9064, %v9064
        %v9081 = vpack.c.b16 %v9065, %v9065
        %v9082 = vpack.c.b16 %v9066, %v9066
        %v9083 = vpack.c.b16 %v9067, %v9067
        %v9084 = vpack.c.b16 %v9068, %v9068
        %v9085 = vpack.c.b16 %v9069, %v9069
        %9102 = vst.msk [vmem:[%s249 + $0x40] sm:$0xf] %vm6863, %v9070
        %9103 = vst.msk [vmem:[%s249 + $0x44] sm:$0xf] %vm6863, %v9071
        %9104 = vst.msk [vmem:[%s249 + $0x48] sm:$0xf] %vm6863, %v9072
        %9105 = vst.msk [vmem:[%s249 + $0x4c] sm:$0xf] %vm6863, %v9073
        %9106 = vst.msk [vmem:[%s249 + $0x50] sm:$0xf] %vm6863, %v9074
        %9107 = vst.msk [vmem:[%s249 + $0x54] sm:$0xf] %vm6863, %v9075
        %9108 = vst.msk [vmem:[%s249 + $0x58] sm:$0xf] %vm6863, %v9076
        %9109 = vst.msk [vmem:[%s249 + $0x5c] sm:$0xf] %vm6863, %v9077
        %9110 = vst.msk [vmem:[%s249 + $0x60] sm:$0xf] %vm6863, %v9078
        %9111 = vst.msk [vmem:[%s249 + $0x64] sm:$0xf] %vm6863, %v9079
        %9112 = vst.msk [vmem:[%s249 + $0x68] sm:$0xf] %vm6863, %v9080
        %9113 = vst.msk [vmem:[%s249 + $0x6c] sm:$0xf] %vm6863, %v9081
        %9114 = vst.msk [vmem:[%s249 + $0x70] sm:$0xf] %vm6863, %v9082
        %9115 = vst.msk [vmem:[%s249 + $0x74] sm:$0xf] %vm6863, %v9083
        %9116 = vst.msk [vmem:[%s249 + $0x78] sm:$0xf] %vm6863, %v9084
        %9117 = vst.msk [vmem:[%s249 + $0x7c] sm:$0xf] %vm6863, %v9085
        %v9118 = vadd.f32 %v9022, %v9023
        %v9119 = vadd.f32 %v9118, %v9024
        %v9120 = vadd.f32 %v9119, %v9025
        %v9121 = vadd.f32 %v9120, %v9026
        %v9122 = vadd.f32 %v9121, %v9027
        %v9123 = vadd.f32 %v9122, %v9028
        %v9124 = vadd.f32 %v9123, %v9029
        %v9125 = vadd.f32 %v9124, %v9030
        %v9126 = vadd.f32 %v9125, %v9031
        %v9127 = vadd.f32 %v9126, %v9032
        %v9128 = vadd.f32 %v9127, %v9033
        %v9129 = vadd.f32 %v9128, %v9034
        %v9130 = vadd.f32 %v9129, %v9035
        %v9131 = vadd.f32 %v9130, %v9036
        %v9132 = vadd.f32 %v9131, %v9037
        %v9133 = vrot.slane %v9132, 4
        %v9134 = vadd.f32 %v9132, %v9133
        %v9135 = vrot.slane %v9134, 2
        %v9136 = vadd.f32 %v9134, %v9135
        %v9137 = vrot.slane %v9136, 1
        %v9138 = vadd.f32 %v9136, %v9137
        %v9139 = vadd.f32 %v6901, %v9138
        %9140 = vst [vmem:[%s239] sm:$0x1] %v9139
        %p9141 = scmp.lt.s32.totalorder %s21, 1
        %s9142 = scalar_select %p9141, %s21, 1
        %s9143 = smul.addr %s9142, 32
        %s9144 = smul.addr %s9143, 4
        %s9145 = scalar_lea.vmem %s4, %s9144
        %s9146 = sand.u32 %s144, 1
        %s9147 = scalar_lea.sflag [#allocation6], %s9146
        %s9148 = sand.u32 %s144, 1
        %s9149 = scalar_lea.vmem [#allocation7], %s9148
        // Predicated region
        $region41: #{tpu_custom_call.1} parent=35 // pred_check
          %p9150 = pneg %p128
        $region42: #{tpu_custom_call.1} parent=35 // pred_check_branch
          %9152 = sbr.rel (%p9150) target = $region44
        $region43: #{tpu_custom_call.1} parent=35 // pred_region
          _
        $region44: #{tpu_custom_call.1} parent=35 // pred_fallthru
          _
        // Predicated region
        $region45: #{tpu_custom_call.1} parent=35 // pred_check
          %p9153 = pneg %p154
        $region46: #{tpu_custom_call.1} parent=35 // pred_check_branch
          %9155 = sbr.rel (%p9153) target = $region48
        $region47: #{tpu_custom_call.1} parent=35 // pred_region
          %s9157 = ssub.s32 16, 16
          %9158 = vsyncadd %s9147, %s9157
          %s9159 = smul.addr %s21, 16
          %s9160 = scalar_lea.hbm %s5, %s9159
          %s9162 = sshll.u32 %s9149, 4
          %s9163 = int_to_ptr.vmem [resolvable:$true] %s9162
          %9165 = dma.vmem_to_hbm [thread:$0]  %s9163, 16, %s9160, %s9147
        $region48: #{tpu_custom_call.1} parent=35 // pred_fallthru
          _
      $region36: #{tpu_custom_call.1} parent=5 // pred_fallthru
        _
      %p9166 = scmp.le.s32.totalorder 2, %s16
      // Predicated region
      $region49: #{tpu_custom_call.1} parent=5 // pred_check
        %p9167 = pneg %p9166
      $region50: #{tpu_custom_call.1} parent=5 // pred_check_branch
        %9169 = sbr.rel (%p9167) target = $region52
      $region51: #{tpu_custom_call.1} parent=5 // pred_region
        %s9170 = ssub.s32 %s16, 2
        // Predicated region
        $region53: #{tpu_custom_call.1} parent=51 // pred_check
          %p9171 = pneg %p134
        $region54: #{tpu_custom_call.1} parent=51 // pred_check_branch
          %9173 = sbr.rel (%p9171) target = $region56
        $region55: #{tpu_custom_call.1} parent=51 // pred_region
          %p9174 = scmp.lt.s32.totalorder %s22, 1
          %s9175 = scalar_select %p9174, %s22, 1
          %s9176 = smul.addr %s9175, 32
          %s9177 = smul.addr %s9176, 4
          %s9178 = scalar_lea.vmem %s4, %s9177
        $region56: #{tpu_custom_call.1} parent=51 // pred_fallthru
          _
        // Predicated region
        $region57: #{tpu_custom_call.1} parent=51 // pred_check
          %p9179 = pneg %p160
        $region58: #{tpu_custom_call.1} parent=51 // pred_check_branch
          %9181 = sbr.rel (%p9179) target = $region60
        $region59: #{tpu_custom_call.1} parent=51 // pred_region
          %s9182 = sand.u32 %s145, 1
          %s9183 = scalar_lea.sflag [#allocation6], %s9182
          %s9184 = sand.u32 %s145, 1
          %s9185 = scalar_lea.vmem [#allocation7], %s9184
          %9186 = dma.done %s9183, 16
        $region60: #{tpu_custom_call.1} parent=51 // pred_fallthru
          _
      $region52: #{tpu_custom_call.1} parent=5 // pred_fallthru
        _
    $region6: #{tpu_custom_call.1} parent=1 // loop_footer
      %s20 = sadd.s32 1, %s16
    $region7: #{tpu_custom_call.1} parent=1 // loop_footer_branch
      %15 = sbr.rel target = $region3
    $region8: #{tpu_custom_call.1} parent=1 // loop_exit
      _
    %9187 = vsyncpa [#allocation5], 1
    %s9188 = scalar_lea.sflag [#allocation5], 1
    %9189 = vsyncpa %s9188, 1
    %9190 = vsyncpa [#allocation6], 1
    %s9191 = scalar_lea.sflag [#allocation6], 1
    %9192 = vsyncpa %s9191, 1

</llo_original>
